<compile_context>
chip_gen: v6e
topology: v6e:2x2x1
jax: 0.10.0
libtpu: 0.0.40
codegen_flags: <defaults>
</compile_context>

<pallas_src>
import functools

import jax
import jax.numpy as jnp
from jax.experimental import pallas as pl
from jax.experimental.pallas import tpu as pltpu

# ---- module config (mirrors the PyTorch script) ----
n_embd = 384
n_head = 6
head_size = n_embd // n_head          # 64
block_size = 256
dropout = 0.2                         # unused: eval-mode (identity)


# ----------------------------------------------------------------------------
# Helpers
# ----------------------------------------------------------------------------
def _layernorm(x, gamma, beta, eps=1e-5):
    """x: (..., C) f32; gamma/beta: (1, C). Matches torch.nn.LayerNorm."""
    mean = jnp.mean(x, axis=-1, keepdims=True)
    xc = x - mean
    var = jnp.mean(xc * xc, axis=-1, keepdims=True)
    return xc * jax.lax.rsqrt(var + eps) * gamma + beta


def _round_up(x, m):
    return (x + m - 1) // m * m


def _lm_tiling(V):
    """Pad the vocab to a lane-dense size and pick a V tile."""
    Vp = _round_up(V, 128)
    if Vp > 1024:
        Vp = _round_up(V, 1024)
        return Vp, 1024
    return Vp, Vp


def _pick_bt(B, T):
    """Batch elements per grid step: aim for >=256 rows, bt must divide B."""
    target = max(1, 256 // T)
    bt = 1
    for d in range(1, B + 1):
        if B % d == 0 and d <= target:
            bt = d
    return bt


# ----------------------------------------------------------------------------
# Kernel 1: the whole stack of Transformer blocks.
#   grid = (B // Bt, L) : batch chunks "parallel", layers "arbitrary".
#   Per layer l the kernel sees:
#     vecs   (6, C)   f32 : [ln1_g, ln1_b, ln2_g, ln2_b, b_proj, b_fc2]
#     bfc1   (1, 4C)  f32
#     w_cat  (C, 8C)  bf16: [Wqkv (3C) | Wproj (C) | Wfc1 (4C)]
#     wfc2   (4C, C)  bf16
#   The residual stream (Bt, T, C) f32 lives in a VMEM scratch across layers.
# ----------------------------------------------------------------------------
def _block_stack_kernel(x_ref, vecs_ref, bfc1_ref, wcat_ref, wfc2_ref,
                        o_ref, carry_ref, *, num_heads, hs):
    C = num_heads * hs
    l = pl.program_id(1)
    n_layers = pl.num_programs(1)

    @pl.when(l == 0)
    def _():
        carry_ref[...] = x_ref[...]

    xb = carry_ref[...]                          # (Bt, T, C) f32
    Bt, T, _ = xb.shape
    M = Bt * T
    x = xb.reshape(M, C)

    vecs = vecs_ref[...]                         # (6, C) f32
    g1, b1 = vecs[0:1, :], vecs[1:2, :]
    g2, b2 = vecs[2:3, :], vecs[3:4, :]
    b_proj, b_fc2 = vecs[4:5, :], vecs[5:6, :]
    b_fc1 = bfc1_ref[...]                        # (1, 4C) f32

    # ---------------- self-attention ----------------
    h = _layernorm(x, g1, b1).astype(jnp.bfloat16)          # (M, C) bf16
    w_qkv = wcat_ref[:, 0:3 * C]                              # (C, 3C) bf16
    qkv = jnp.dot(h, w_qkv, preferred_element_type=jnp.float32)   # (M, 3C) f32
    qkv = qkv.reshape(Bt, T, 3 * C)

    scale = hs ** -0.5
    q_all = (qkv[:, :, 0:C] * scale).astype(jnp.bfloat16)    # scale folded in q
    k_all = qkv[:, :, C:2 * C].astype(jnp.bfloat16)
    v_all = qkv[:, :, 2 * C:3 * C].astype(jnp.bfloat16)

    row = jax.lax.broadcasted_iota(jnp.int32, (T, T), 0)
    col = jax.lax.broadcasted_iota(jnp.int32, (T, T), 1)
    causal = col <= row

    sa = jnp.zeros((M, C), jnp.float32)
    for hd in range(num_heads):
        lo, hi = hd * hs, (hd + 1) * hs
        q = q_all[:, :, lo:hi]                                # (Bt, T, hs)
        k = k_all[:, :, lo:hi]
        v = v_all[:, :, lo:hi]
        s = jnp.einsum('btd,bsd->bts', q, k,
                       preferred_element_type=jnp.float32)    # (Bt, T, T) f32
        s = jnp.where(causal, s, -jnp.inf)
        p = jnp.exp(s - jnp.max(s, axis=-1, keepdims=True))
        p = p * pl.reciprocal(jnp.sum(p, axis=-1, keepdims=True), approx=True)
        # TODO(synk): attention dropout skipped (eval mode).
        ho = jnp.einsum('bts,bsd->btd', p.astype(jnp.bfloat16), v,
                        preferred_element_type=jnp.float32)   # (Bt, T, hs)
        w_p = wcat_ref[lo:hi, 3 * C:4 * C]                    # (hs, C) bf16
        sa = sa + jnp.dot(ho.reshape(M, hs).astype(jnp.bfloat16), w_p,
                          preferred_element_type=jnp.float32)
    x1 = x + sa + b_proj                                      # residual 1

    # ---------------- feed-forward ----------------
    h2 = _layernorm(x1, g2, b2).astype(jnp.bfloat16)
    w_fc1 = wcat_ref[:, 4 * C:8 * C]                          # (C, 4C) bf16
    ff = jnp.dot(h2, w_fc1, preferred_element_type=jnp.float32) + b_fc1
    ff = jnp.maximum(ff, 0.0).astype(jnp.bfloat16)
    ff = jnp.dot(ff, wfc2_ref[...], preferred_element_type=jnp.float32) + b_fc2
    out = (x1 + ff).reshape(Bt, T, C)                         # residual 2

    carry_ref[...] = out

    @pl.when(l == n_layers - 1)
    def _():
        o_ref[...] = out


def transformer_stack(x, vecs, bfc1, w_cat, wfc2, *, bt):
    B, T, C = x.shape
    L = w_cat.shape[0]
    kernel = functools.partial(_block_stack_kernel,
                               num_heads=n_head, hs=head_size)
    return pl.pallas_call(
        kernel,
        out_shape=jax.ShapeDtypeStruct((B, T, C), jnp.float32),
        grid_spec=pltpu.PrefetchScalarGridSpec(
            num_scalar_prefetch=0,
            grid=(B // bt, L),
            in_specs=[
                pl.BlockSpec((bt, T, C), lambda b, l: (b, 0, 0)),
                pl.BlockSpec((None, 6, C), lambda b, l: (l, 0, 0)),
                pl.BlockSpec((None, 1, 4 * C), lambda b, l: (l, 0, 0)),
                pl.BlockSpec((None, C, 8 * C), lambda b, l: (l, 0, 0)),
                pl.BlockSpec((None, 4 * C, C), lambda b, l: (l, 0, 0)),
            ],
            out_specs=pl.BlockSpec((bt, T, C), lambda b, l: (b, 0, 0)),
            scratch_shapes=[pltpu.VMEM((bt, T, C), jnp.float32)],
        ),
        compiler_params=pltpu.CompilerParams(
            dimension_semantics=("parallel", "arbitrary"),
            vmem_limit_bytes=32 * 1024 * 1024),
    )(x, vecs, bfc1, w_cat, wfc2)


# ----------------------------------------------------------------------------
# Kernel 2: final LayerNorm + lm_head, tiled over a lane-dense padded vocab.
# ----------------------------------------------------------------------------
def _lm_head_kernel(x_ref, lnf_ref, wlm_ref, blm_ref, o_ref):
    x = x_ref[...]                                  # (Bt, T, C) f32
    Bt, T, C = x.shape
    lnf = lnf_ref[...]                              # (2, C) f32
    h = _layernorm(x, lnf[0:1, :], lnf[1:2, :])
    hb = h.reshape(Bt * T, C).astype(jnp.bfloat16)
    logits = jnp.dot(hb, wlm_ref[...], preferred_element_type=jnp.float32)
    logits = logits + blm_ref[...]
    o_ref[...] = logits.reshape(Bt, T, -1)


def lm_head(x, lnf, wlm_p, blm_p, *, bt, v_tile):
    B, T, C = x.shape
    Vp = wlm_p.shape[1]
    return pl.pallas_call(
        _lm_head_kernel,
        out_shape=jax.ShapeDtypeStruct((B, T, Vp), jnp.float32),
        grid_spec=pltpu.PrefetchScalarGridSpec(
            num_scalar_prefetch=0,
            grid=(B // bt, Vp // v_tile),
            in_specs=[
                pl.BlockSpec((bt, T, C), lambda b, j: (b, 0, 0)),
                pl.BlockSpec((2, C), lambda b, j: (0, 0)),
                pl.BlockSpec((C, v_tile), lambda b, j: (0, j)),
                pl.BlockSpec((1, v_tile), lambda b, j: (0, j)),
            ],
            out_specs=pl.BlockSpec((bt, T, v_tile), lambda b, j: (b, 0, j)),
        ),
        compiler_params=pltpu.CompilerParams(
            dimension_semantics=("parallel", "parallel"),
            vmem_limit_bytes=32 * 1024 * 1024),
    )(x, lnf, wlm_p, blm_p)


# ----------------------------------------------------------------------------
# Full model forward (embedding gather + loss in plain JAX around the kernels)
# ----------------------------------------------------------------------------
@jax.jit
def _gpt_logits(idx, params):
    B, T = idx.shape
    x = jnp.take(params["tok_emb"], idx, axis=0) + params["pos_emb"][:T][None]
    bt = _pick_bt(B, T)
    x = transformer_stack(x, params["vecs"], params["bfc1"],
                          params["w_cat"], params["wfc2"], bt=bt)
    Vp = params["wlm"].shape[1]
    v_tile = Vp if Vp <= 1024 else 1024
    logits_p = lm_head(x, params["lnf"], params["wlm"], params["blm"],
                       bt=bt, v_tile=v_tile)
    V = params["tok_emb"].shape[0]
    return logits_p[:, :, :V]


def cross_entropy(logits, targets):
    B, T, V = logits.shape
    lg = logits.reshape(B * T, V)
    tg = targets.reshape(B * T)
    logz = jax.nn.logsumexp(lg, axis=-1)
    picked = jnp.take_along_axis(lg, tg[:, None], axis=1)[:, 0]
    return jnp.mean(logz - picked)


def gpt_forward(idx, params, targets=None):
    logits = _gpt_logits(idx, params)
    loss = None if targets is None else cross_entropy(logits, targets)
    return logits, loss


# ----------------------------------------------------------------------------
# Pure-JAX f32 reference (eval mode: dropout = identity), same bf16-stored
# weights cast back to f32.
# ----------------------------------------------------------------------------
def reference_forward(idx, params, vocab_size):
    C = n_embd
    hs = head_size
    T = idx.shape[1]

    def ln(x, g, b, eps=1e-5):
        mu = jnp.mean(x, axis=-1, keepdims=True)
        var = jnp.mean((x - mu) ** 2, axis=-1, keepdims=True)
        return (x - mu) * jax.lax.rsqrt(var + eps) * g + b

    x = jnp.take(params["tok_emb"], idx, axis=0) + params["pos_emb"][:T][None]
    mask = jnp.tril(jnp.ones((T, T), dtype=bool))
    L = params["w_cat"].shape[0]
    for l in range(L):
        vecs = params["vecs"][l]
        g1, b1, g2, b2, bproj, bfc2 = (vecs[i] for i in range(6))
        w_cat = params["w_cat"][l].astype(jnp.float32)
        wqkv, wproj, wfc1 = (w_cat[:, :3 * C], w_cat[:, 3 * C:4 * C],
                             w_cat[:, 4 * C:])
        wfc2 = params["wfc2"][l].astype(jnp.float32)
        bfc1 = params["bfc1"][l]
        h = ln(x, g1, b1)
        qkv = h @ wqkv
        outs = []
        for hd in range(n_head):
            q = qkv[..., hd * hs:(hd + 1) * hs]
            k = qkv[..., C + hd * hs:C + (hd + 1) * hs]
            v = qkv[..., 2 * C + hd * hs:2 * C + (hd + 1) * hs]
            wei = (q @ jnp.swapaxes(k, -2, -1)) * hs ** -0.5
            wei = jnp.where(mask, wei, -jnp.inf)
            wei = jax.nn.softmax(wei, axis=-1)
            outs.append(wei @ v)
        x = x + (jnp.concatenate(outs, axis=-1) @ wproj + bproj)
        h2 = ln(x, g2, b2)
        ff = jnp.maximum(h2 @ wfc1 + bfc1, 0.0) @ wfc2 + bfc2
        x = x + ff
    lnf = params["lnf"]
    x = ln(x, lnf[0], lnf[1])
    wlm = params["wlm"].astype(jnp.float32)[:, :vocab_size]
    blm = params["blm"][:, :vocab_size]
    return x @ wlm + blm


# ----------------------------------------------------------------------------
# Deterministic parameter construction (Linear/Embedding ~ N(0, 0.02) like the
# torch init; LN affine / biases get small random values purely to exercise
# those code paths).  Matmul weights are stored in bfloat16, packed per layer.
# ----------------------------------------------------------------------------
def init_params(key, *, vocab_size, n_layer):
    C = n_embd

    def nrm(k, shape, std=0.02):
        return std * jax.random.normal(k, shape, jnp.float32)

    keys = jax.random.split(key, 5 + n_layer)
    Vp, _ = _lm_tiling(vocab_size)
    wlm = nrm(keys[4], (C, vocab_size))
    wlm_p = jnp.zeros((C, Vp), jnp.float32).at[:, :vocab_size].set(wlm)

    params = {
        "tok_emb": nrm(keys[0], (vocab_size, C)),
        "pos_emb": nrm(keys[1], (block_size, C)),
        "lnf": jnp.concatenate(
            [1.0 + nrm(keys[2], (1, C), 0.05), nrm(keys[3], (1, C), 0.05)], 0),
        "wlm": wlm_p.astype(jnp.bfloat16),          # (C, Vp) bf16, lane-dense
        "blm": jnp.zeros((1, Vp), jnp.float32),
    }

    vecs_l, bfc1_l, wcat_l, wfc2_l = [], [], [], []
    for l in range(n_layer):
        k = jax.random.split(keys[5 + l], 11)
        wqkv = nrm(k[0], (C, 3 * C))
        wproj = nrm(k[1], (C, C))
        wfc1 = nrm(k[2], (C, 4 * C))
        wfc2 = nrm(k[3], (4 * C, C))
        g1 = 1.0 + nrm(k[4], (1, C), 0.05)
        b1 = nrm(k[5], (1, C), 0.05)
        g2 = 1.0 + nrm(k[6], (1, C), 0.05)
        b2 = nrm(k[7], (1, C), 0.05)
        bproj = nrm(k[8], (1, C), 0.05)
        bfc1 = nrm(k[9], (1, 4 * C), 0.05)
        bfc2 = nrm(k[10], (1, C), 0.05)
        vecs_l.append(jnp.concatenate([g1, b1, g2, b2, bproj, bfc2], axis=0))
        bfc1_l.append(bfc1)
        wcat_l.append(jnp.concatenate([wqkv, wproj, wfc1], axis=1))  # (C, 8C)
        wfc2_l.append(wfc2)

    params["vecs"] = jnp.stack(vecs_l)                                # (L,6,C)
    params["bfc1"] = jnp.stack(bfc1_l)                                # (L,1,4C)
    params["w_cat"] = jnp.stack(wcat_l).astype(jnp.bfloat16)          # (L,C,8C)
    params["wfc2"] = jnp.stack(wfc2_l).astype(jnp.bfloat16)           # (L,4C,C)
    return params


if __name__ == "__main__":
    # SMALL shapes consistent with the module: n_embd=384, n_head=6 (head_size
    # 64), seq T=8 (<= block_size=256), batch B=2, tiny vocab, 2 layers.
    B, T = 2, 8
    vocab_size = 65
    n_layer_small = 2

    key = jax.random.PRNGKey(0)
    kp, ki, kt = jax.random.split(key, 3)
    params = init_params(kp, vocab_size=vocab_size, n_layer=n_layer_small)
    idx = jax.random.randint(ki, (B, T), 0, vocab_size, dtype=jnp.int32)
    targets = jax.random.randint(kt, (B, T), 0, vocab_size, dtype=jnp.int32)

    logits, loss = gpt_forward(idx, params, targets=targets)
    logits = jax.block_until_ready(logits)

    ref_logits = reference_forward(idx, params, vocab_size)
    ref_loss = cross_entropy(ref_logits, targets)

    assert logits.shape == (B, T, vocab_size), logits.shape
    max_err = float(jnp.max(jnp.abs(logits - ref_logits)))
    # bf16 matmul operands + approx softmax reciprocal -> modest tolerance.
    assert jnp.allclose(logits, ref_logits, atol=3e-2, rtol=3e-2), max_err
    assert jnp.allclose(loss, ref_loss, atol=3e-2, rtol=3e-2), (
        float(loss), float(ref_loss))

    print("KERNEL_OK")
</pallas_src>

<mosaic_0001>
module attributes {stable_mosaic.version = 11 : i64} {
  func.func @_block_stack_kernel(%arg0: i32, %arg1: i32, %arg2: memref<2x8x384xf32, #tpu.memory_space<vmem>>, %arg3: memref<1x6x384xf32, #tpu.memory_space<vmem>>, %arg4: memref<1x1x1536xf32, #tpu.memory_space<vmem>>, %arg5: memref<1x384x3072xbf16, #tpu.memory_space<vmem>>, %arg6: memref<1x1536x384xbf16, #tpu.memory_space<vmem>>, %arg7: memref<2x8x384xf32, #tpu.memory_space<vmem>>, %arg8: memref<2x8x384xf32, #tpu.memory_space<vmem>>) attributes {dimension_semantics = [#tpu.dimension_semantics<parallel>, #tpu.dimension_semantics<arbitrary>], iteration_bounds = array<i64: 1, 2>, scalar_prefetch = 0 : i64, scratch_operands = 1 : i64, tpu.core_type = #tpu.core_type<tc>, window_params = [{transform_indices = @transform_0, window_bounds = array<i64: 2, 8, 384>}, {transform_indices = @transform_1, window_bounds = array<i64: 1, 6, 384>}, {transform_indices = @transform_2, window_bounds = array<i64: 1, 1, 1536>}, {transform_indices = @transform_3, window_bounds = array<i64: 1, 384, 3072>}, {transform_indices = @transform_4, window_bounds = array<i64: 1, 1536, 384>}, {transform_indices = @transform_5, window_bounds = array<i64: 2, 8, 384>}]} {
    %c0_i32 = arith.constant 0 : i32
    %0 = arith.cmpi eq, %arg1, %c0_i32 : i32
    %1 = arith.extui %0 : i1 to i32
    %c0_i32_0 = arith.constant 0 : i32
    %2 = arith.cmpi ne, %1, %c0_i32_0 : i32
    scf.if %2 {
      %c0_84 = arith.constant 0 : index
      %c0_85 = arith.constant 0 : index
      %c0_86 = arith.constant 0 : index
      %251 = vector.load %arg2[%c0_84, %c0_85, %c0_86] : memref<2x8x384xf32, #tpu.memory_space<vmem>>, vector<2x8x384xf32>
      %c0_87 = arith.constant 0 : index
      %c0_88 = arith.constant 0 : index
      %c0_89 = arith.constant 0 : index
      %252 = vector.load %arg8[%c0_87, %c0_88, %c0_89] : memref<2x8x384xf32, #tpu.memory_space<vmem>>, vector<2x8x384xf32>
      tpu.vector_store %arg8[%c0_87, %c0_88, %c0_89], %251 {strides = array<i32>} : memref<2x8x384xf32, #tpu.memory_space<vmem>>, vector<2x8x384xf32>,
    } else {
    }
    %c0 = arith.constant 0 : index
    %c0_1 = arith.constant 0 : index
    %c0_2 = arith.constant 0 : index
    %3 = vector.load %arg8[%c0, %c0_1, %c0_2] : memref<2x8x384xf32, #tpu.memory_space<vmem>>, vector<2x8x384xf32>
    %4 = vector.shape_cast %3 : vector<2x8x384xf32> to vector<16x384xf32>
    %c0_3 = arith.constant 0 : index
    %c0_4 = arith.constant 0 : index
    %c0_5 = arith.constant 0 : index
    %5 = vector.load %arg3[%c0_3, %c0_4, %c0_5] : memref<1x6x384xf32, #tpu.memory_space<vmem>>, vector<1x6x384xf32>
    %6 = vector.shape_cast %5 : vector<1x6x384xf32> to vector<6x384xf32>
    %7 = vector.extract_strided_slice %6 {offsets = [0, 0], sizes = [1, 384], strides = [1, 1]} : vector<6x384xf32> to vector<1x384xf32>
    %8 = vector.extract_strided_slice %6 {offsets = [1, 0], sizes = [1, 384], strides = [1, 1]} : vector<6x384xf32> to vector<1x384xf32>
    %9 = vector.extract_strided_slice %6 {offsets = [2, 0], sizes = [1, 384], strides = [1, 1]} : vector<6x384xf32> to vector<1x384xf32>
    %10 = vector.extract_strided_slice %6 {offsets = [3, 0], sizes = [1, 384], strides = [1, 1]} : vector<6x384xf32> to vector<1x384xf32>
    %11 = vector.extract_strided_slice %6 {offsets = [4, 0], sizes = [1, 384], strides = [1, 1]} : vector<6x384xf32> to vector<1x384xf32>
    %12 = vector.extract_strided_slice %6 {offsets = [5, 0], sizes = [1, 384], strides = [1, 1]} : vector<6x384xf32> to vector<1x384xf32>
    %c0_6 = arith.constant 0 : index
    %c0_7 = arith.constant 0 : index
    %c0_8 = arith.constant 0 : index
    %13 = vector.load %arg4[%c0_6, %c0_7, %c0_8] : memref<1x1x1536xf32, #tpu.memory_space<vmem>>, vector<1x1x1536xf32>
    %14 = vector.shape_cast %13 : vector<1x1x1536xf32> to vector<1x1536xf32>
    %cst = arith.constant dense<0.000000e+00> : vector<16xf32>
    %15 = vector.multi_reduction <add>, %4, %cst [1] : vector<16x384xf32> to vector<16xf32>
    %16 = vector.shape_cast %15 : vector<16xf32> to vector<16x1xf32>
    %cst_9 = arith.constant 3.840000e+02 : f32
    %17 = vector.broadcast %cst_9 : f32 to vector<16x1xf32>
    %18 = arith.divf %16, %17 : vector<16x1xf32>
    %19 = vector.broadcast %18 : vector<16x1xf32> to vector<16x384xf32>
    %20 = arith.subf %4, %19 : vector<16x384xf32>
    %21 = arith.mulf %20, %20 : vector<16x384xf32>
    %cst_10 = arith.constant dense<0.000000e+00> : vector<16xf32>
    %22 = vector.multi_reduction <add>, %21, %cst_10 [1] : vector<16x384xf32> to vector<16xf32>
    %23 = vector.shape_cast %22 : vector<16xf32> to vector<16x1xf32>
    %cst_11 = arith.constant 3.840000e+02 : f32
    %24 = vector.broadcast %cst_11 : f32 to vector<16x1xf32>
    %25 = arith.divf %23, %24 : vector<16x1xf32>
    %cst_12 = arith.constant 9.99999974E-6 : f32
    %26 = vector.broadcast %cst_12 : f32 to vector<16x1xf32>
    %27 = arith.addf %25, %26 : vector<16x1xf32>
    %28 = math.rsqrt %27 : vector<16x1xf32>
    %29 = vector.broadcast %28 : vector<16x1xf32> to vector<16x384xf32>
    %30 = arith.mulf %20, %29 : vector<16x384xf32>
    %31 = vector.broadcast %7 : vector<1x384xf32> to vector<16x384xf32>
    %32 = arith.mulf %30, %31 : vector<16x384xf32>
    %33 = vector.broadcast %8 : vector<1x384xf32> to vector<16x384xf32>
    %34 = arith.addf %32, %33 : vector<16x384xf32>
    %35 = arith.truncf %34 : vector<16x384xf32> to vector<16x384xbf16>
    %c0_13 = arith.constant 0 : index
    %c0_14 = arith.constant 0 : index
    %c0_15 = arith.constant 0 : index
    %36 = vector.load %arg5[%c0_13, %c0_14, %c0_15] : memref<1x384x3072xbf16, #tpu.memory_space<vmem>>, vector<1x384x1152xbf16>
    %37 = vector.shape_cast %36 : vector<1x384x1152xbf16> to vector<384x1152xbf16>
    %cst_16 = arith.constant dense<0.000000e+00> : vector<16x1152xf32>
    %38 = tpu.matmul %35, %37, %cst_16 {dimension_numbers = #tpu.dot_dimension_numbers<[1], [0], [0], [1], [0, 0, 1, 1], [], []>} : vector<16x384xbf16>, vector<384x1152xbf16>, vector<16x1152xf32> -> vector<16x1152xf32>
    %39 = vector.shape_cast %38 : vector<16x1152xf32> to vector<2x8x1152xf32>
    %40 = vector.extract_strided_slice %39 {offsets = [0, 0, 0], sizes = [2, 8, 384], strides = [1, 1, 1]} : vector<2x8x1152xf32> to vector<2x8x384xf32>
    %cst_17 = arith.constant 1.250000e-01 : f32
    %41 = vector.broadcast %cst_17 : f32 to vector<2x8x384xf32>
    %42 = arith.mulf %40, %41 : vector<2x8x384xf32>
    %43 = arith.truncf %42 : vector<2x8x384xf32> to vector<2x8x384xbf16>
    %44 = vector.extract_strided_slice %39 {offsets = [0, 0, 384], sizes = [2, 8, 384], strides = [1, 1, 1]} : vector<2x8x1152xf32> to vector<2x8x384xf32>
    %45 = arith.truncf %44 : vector<2x8x384xf32> to vector<2x8x384xbf16>
    %46 = vector.extract_strided_slice %39 {offsets = [0, 0, 768], sizes = [2, 8, 384], strides = [1, 1, 1]} : vector<2x8x1152xf32> to vector<2x8x384xf32>
    %47 = arith.truncf %46 : vector<2x8x384xf32> to vector<2x8x384xbf16>
    %48 = tpu.iota {dimensions = array<i32: 0>} : vector<8x8xi32>
    %49 = tpu.iota {dimensions = array<i32: 1>} : vector<8x8xi32>
    %50 = arith.cmpi sle, %49, %48 : vector<8x8xi32>
    %cst_18 = arith.constant 0.000000e+00 : f32
    %51 = vector.broadcast %cst_18 : f32 to vector<16x384xf32>
    %52 = vector.extract_strided_slice %43 {offsets = [0, 0, 0], sizes = [2, 8, 64], strides = [1, 1, 1]} : vector<2x8x384xbf16> to vector<2x8x64xbf16>
    %53 = vector.extract_strided_slice %45 {offsets = [0, 0, 0], sizes = [2, 8, 64], strides = [1, 1, 1]} : vector<2x8x384xbf16> to vector<2x8x64xbf16>
    %54 = vector.extract_strided_slice %47 {offsets = [0, 0, 0], sizes = [2, 8, 64], strides = [1, 1, 1]} : vector<2x8x384xbf16> to vector<2x8x64xbf16>
    "tpu.trace_start"() <{level = 10 : i32, message = "btd,bsd->bts"}> : () -> ()
    %cst_19 = arith.constant dense<0.000000e+00> : vector<2x8x8xf32>
    %55 = tpu.matmul %52, %53, %cst_19 {dimension_numbers = #tpu.dot_dimension_numbers<[2], [2], [1], [1], [0, 0, 0, 1, 1, 1], [0], [0]>} : vector<2x8x64xbf16>, vector<2x8x64xbf16>, vector<2x8x8xf32> -> vector<2x8x8xf32>
    %cst_20 = arith.constant 0xFF800000 : f32
    "tpu.trace_stop"() : () -> ()
    %56 = vector.shape_cast %50 : vector<8x8xi1> to vector<1x8x8xi1>
    %57 = vector.broadcast %56 : vector<1x8x8xi1> to vector<2x8x8xi1>
    %58 = vector.broadcast %cst_20 : f32 to vector<2x8x8xf32>
    %59 = arith.select %57, %55, %58 : vector<2x8x8xi1>, vector<2x8x8xf32>
    %cst_21 = arith.constant dense<0xFF800000> : vector<2x8xf32>
    %60 = vector.multi_reduction <maximumf>, %59, %cst_21 [2] : vector<2x8x8xf32> to vector<2x8xf32>
    %61 = vector.shape_cast %60 : vector<2x8xf32> to vector<2x8x1xf32>
    %62 = vector.broadcast %61 : vector<2x8x1xf32> to vector<2x8x8xf32>
    %63 = arith.subf %59, %62 : vector<2x8x8xf32>
    %64 = math.exp %63 : vector<2x8x8xf32>
    %cst_22 = arith.constant dense<0.000000e+00> : vector<2x8xf32>
    %65 = vector.multi_reduction <add>, %64, %cst_22 [2] : vector<2x8x8xf32> to vector<2x8xf32>
    %66 = vector.shape_cast %65 : vector<2x8xf32> to vector<2x8x1xf32>
    %67 = tpu.reciprocal %66 {approx = true} : vector<2x8x1xf32> -> vector<2x8x1xf32>
    %68 = vector.broadcast %67 : vector<2x8x1xf32> to vector<2x8x8xf32>
    %69 = arith.mulf %64, %68 : vector<2x8x8xf32>
    %70 = arith.truncf %69 : vector<2x8x8xf32> to vector<2x8x8xbf16>
    "tpu.trace_start"() <{level = 10 : i32, message = "bts,bsd->btd"}> : () -> ()
    %cst_23 = arith.constant dense<0.000000e+00> : vector<2x8x64xf32>
    %71 = tpu.matmul %70, %54, %cst_23 {dimension_numbers = #tpu.dot_dimension_numbers<[2], [1], [1], [2], [0, 0, 0, 1, 1, 2], [0], [0]>} : vector<2x8x8xbf16>, vector<2x8x64xbf16>, vector<2x8x64xf32> -> vector<2x8x64xf32>
    "tpu.trace_stop"() : () -> ()
    %c0_24 = arith.constant 0 : index
    %c0_25 = arith.constant 0 : index
    %c1152 = arith.constant 1152 : index
    %72 = vector.load %arg5[%c0_24, %c0_25, %c1152] : memref<1x384x3072xbf16, #tpu.memory_space<vmem>>, vector<1x64x384xbf16>
    %73 = vector.shape_cast %72 : vector<1x64x384xbf16> to vector<64x384xbf16>
    %74 = vector.shape_cast %71 : vector<2x8x64xf32> to vector<16x64xf32>
    %75 = arith.truncf %74 : vector<16x64xf32> to vector<16x64xbf16>
    %cst_26 = arith.constant dense<0.000000e+00> : vector<16x384xf32>
    %76 = tpu.matmul %75, %73, %cst_26 {dimension_numbers = #tpu.dot_dimension_numbers<[1], [0], [0], [1], [0, 0, 1, 1], [], []>} : vector<16x64xbf16>, vector<64x384xbf16>, vector<16x384xf32> -> vector<16x384xf32>
    %77 = arith.addf %51, %76 : vector<16x384xf32>
    %78 = vector.extract_strided_slice %43 {offsets = [0, 0, 64], sizes = [2, 8, 64], strides = [1, 1, 1]} : vector<2x8x384xbf16> to vector<2x8x64xbf16>
    %79 = vector.extract_strided_slice %45 {offsets = [0, 0, 64], sizes = [2, 8, 64], strides = [1, 1, 1]} : vector<2x8x384xbf16> to vector<2x8x64xbf16>
    %80 = vector.extract_strided_slice %47 {offsets = [0, 0, 64], sizes = [2, 8, 64], strides = [1, 1, 1]} : vector<2x8x384xbf16> to vector<2x8x64xbf16>
    "tpu.trace_start"() <{level = 10 : i32, message = "btd,bsd->bts"}> : () -> ()
    %cst_27 = arith.constant dense<0.000000e+00> : vector<2x8x8xf32>
    %81 = tpu.matmul %78, %79, %cst_27 {dimension_numbers = #tpu.dot_dimension_numbers<[2], [2], [1], [1], [0, 0, 0, 1, 1, 1], [0], [0]>} : vector<2x8x64xbf16>, vector<2x8x64xbf16>, vector<2x8x8xf32> -> vector<2x8x8xf32>
    %cst_28 = arith.constant 0xFF800000 : f32
    "tpu.trace_stop"() : () -> ()
    %82 = vector.shape_cast %50 : vector<8x8xi1> to vector<1x8x8xi1>
    %83 = vector.broadcast %82 : vector<1x8x8xi1> to vector<2x8x8xi1>
    %84 = vector.broadcast %cst_28 : f32 to vector<2x8x8xf32>
    %85 = arith.select %83, %81, %84 : vector<2x8x8xi1>, vector<2x8x8xf32>
    %cst_29 = arith.constant dense<0xFF800000> : vector<2x8xf32>
    %86 = vector.multi_reduction <maximumf>, %85, %cst_29 [2] : vector<2x8x8xf32> to vector<2x8xf32>
    %87 = vector.shape_cast %86 : vector<2x8xf32> to vector<2x8x1xf32>
    %88 = vector.broadcast %87 : vector<2x8x1xf32> to vector<2x8x8xf32>
    %89 = arith.subf %85, %88 : vector<2x8x8xf32>
    %90 = math.exp %89 : vector<2x8x8xf32>
    %cst_30 = arith.constant dense<0.000000e+00> : vector<2x8xf32>
    %91 = vector.multi_reduction <add>, %90, %cst_30 [2] : vector<2x8x8xf32> to vector<2x8xf32>
    %92 = vector.shape_cast %91 : vector<2x8xf32> to vector<2x8x1xf32>
    %93 = tpu.reciprocal %92 {approx = true} : vector<2x8x1xf32> -> vector<2x8x1xf32>
    %94 = vector.broadcast %93 : vector<2x8x1xf32> to vector<2x8x8xf32>
    %95 = arith.mulf %90, %94 : vector<2x8x8xf32>
    %96 = arith.truncf %95 : vector<2x8x8xf32> to vector<2x8x8xbf16>
    "tpu.trace_start"() <{level = 10 : i32, message = "bts,bsd->btd"}> : () -> ()
    %cst_31 = arith.constant dense<0.000000e+00> : vector<2x8x64xf32>
    %97 = tpu.matmul %96, %80, %cst_31 {dimension_numbers = #tpu.dot_dimension_numbers<[2], [1], [1], [2], [0, 0, 0, 1, 1, 2], [0], [0]>} : vector<2x8x8xbf16>, vector<2x8x64xbf16>, vector<2x8x64xf32> -> vector<2x8x64xf32>
    "tpu.trace_stop"() : () -> ()
    %c0_32 = arith.constant 0 : index
    %c64 = arith.constant 64 : index
    %c1152_33 = arith.constant 1152 : index
    %98 = vector.load %arg5[%c0_32, %c64, %c1152_33] : memref<1x384x3072xbf16, #tpu.memory_space<vmem>>, vector<1x64x384xbf16>
    %99 = vector.shape_cast %98 : vector<1x64x384xbf16> to vector<64x384xbf16>
    %100 = vector.shape_cast %97 : vector<2x8x64xf32> to vector<16x64xf32>
    %101 = arith.truncf %100 : vector<16x64xf32> to vector<16x64xbf16>
    %cst_34 = arith.constant dense<0.000000e+00> : vector<16x384xf32>
    %102 = tpu.matmul %101, %99, %cst_34 {dimension_numbers = #tpu.dot_dimension_numbers<[1], [0], [0], [1], [0, 0, 1, 1], [], []>} : vector<16x64xbf16>, vector<64x384xbf16>, vector<16x384xf32> -> vector<16x384xf32>
    %103 = arith.addf %77, %102 : vector<16x384xf32>
    %104 = vector.extract_strided_slice %43 {offsets = [0, 0, 128], sizes = [2, 8, 64], strides = [1, 1, 1]} : vector<2x8x384xbf16> to vector<2x8x64xbf16>
    %105 = vector.extract_strided_slice %45 {offsets = [0, 0, 128], sizes = [2, 8, 64], strides = [1, 1, 1]} : vector<2x8x384xbf16> to vector<2x8x64xbf16>
    %106 = vector.extract_strided_slice %47 {offsets = [0, 0, 128], sizes = [2, 8, 64], strides = [1, 1, 1]} : vector<2x8x384xbf16> to vector<2x8x64xbf16>
    "tpu.trace_start"() <{level = 10 : i32, message = "btd,bsd->bts"}> : () -> ()
    %cst_35 = arith.constant dense<0.000000e+00> : vector<2x8x8xf32>
    %107 = tpu.matmul %104, %105, %cst_35 {dimension_numbers = #tpu.dot_dimension_numbers<[2], [2], [1], [1], [0, 0, 0, 1, 1, 1], [0], [0]>} : vector<2x8x64xbf16>, vector<2x8x64xbf16>, vector<2x8x8xf32> -> vector<2x8x8xf32>
    %cst_36 = arith.constant 0xFF800000 : f32
    "tpu.trace_stop"() : () -> ()
    %108 = vector.shape_cast %50 : vector<8x8xi1> to vector<1x8x8xi1>
    %109 = vector.broadcast %108 : vector<1x8x8xi1> to vector<2x8x8xi1>
    %110 = vector.broadcast %cst_36 : f32 to vector<2x8x8xf32>
    %111 = arith.select %109, %107, %110 : vector<2x8x8xi1>, vector<2x8x8xf32>
    %cst_37 = arith.constant dense<0xFF800000> : vector<2x8xf32>
    %112 = vector.multi_reduction <maximumf>, %111, %cst_37 [2] : vector<2x8x8xf32> to vector<2x8xf32>
    %113 = vector.shape_cast %112 : vector<2x8xf32> to vector<2x8x1xf32>
    %114 = vector.broadcast %113 : vector<2x8x1xf32> to vector<2x8x8xf32>
    %115 = arith.subf %111, %114 : vector<2x8x8xf32>
    %116 = math.exp %115 : vector<2x8x8xf32>
    %cst_38 = arith.constant dense<0.000000e+00> : vector<2x8xf32>
    %117 = vector.multi_reduction <add>, %116, %cst_38 [2] : vector<2x8x8xf32> to vector<2x8xf32>
    %118 = vector.shape_cast %117 : vector<2x8xf32> to vector<2x8x1xf32>
    %119 = tpu.reciprocal %118 {approx = true} : vector<2x8x1xf32> -> vector<2x8x1xf32>
    %120 = vector.broadcast %119 : vector<2x8x1xf32> to vector<2x8x8xf32>
    %121 = arith.mulf %116, %120 : vector<2x8x8xf32>
    %122 = arith.truncf %121 : vector<2x8x8xf32> to vector<2x8x8xbf16>
    "tpu.trace_start"() <{level = 10 : i32, message = "bts,bsd->btd"}> : () -> ()
    %cst_39 = arith.constant dense<0.000000e+00> : vector<2x8x64xf32>
    %123 = tpu.matmul %122, %106, %cst_39 {dimension_numbers = #tpu.dot_dimension_numbers<[2], [1], [1], [2], [0, 0, 0, 1, 1, 2], [0], [0]>} : vector<2x8x8xbf16>, vector<2x8x64xbf16>, vector<2x8x64xf32> -> vector<2x8x64xf32>
    "tpu.trace_stop"() : () -> ()
    %c0_40 = arith.constant 0 : index
    %c128 = arith.constant 128 : index
    %c1152_41 = arith.constant 1152 : index
    %124 = vector.load %arg5[%c0_40, %c128, %c1152_41] : memref<1x384x3072xbf16, #tpu.memory_space<vmem>>, vector<1x64x384xbf16>
    %125 = vector.shape_cast %124 : vector<1x64x384xbf16> to vector<64x384xbf16>
    %126 = vector.shape_cast %123 : vector<2x8x64xf32> to vector<16x64xf32>
    %127 = arith.truncf %126 : vector<16x64xf32> to vector<16x64xbf16>
    %cst_42 = arith.constant dense<0.000000e+00> : vector<16x384xf32>
    %128 = tpu.matmul %127, %125, %cst_42 {dimension_numbers = #tpu.dot_dimension_numbers<[1], [0], [0], [1], [0, 0, 1, 1], [], []>} : vector<16x64xbf16>, vector<64x384xbf16>, vector<16x384xf32> -> vector<16x384xf32>
    %129 = arith.addf %103, %128 : vector<16x384xf32>
    %130 = vector.extract_strided_slice %43 {offsets = [0, 0, 192], sizes = [2, 8, 64], strides = [1, 1, 1]} : vector<2x8x384xbf16> to vector<2x8x64xbf16>
    %131 = vector.extract_strided_slice %45 {offsets = [0, 0, 192], sizes = [2, 8, 64], strides = [1, 1, 1]} : vector<2x8x384xbf16> to vector<2x8x64xbf16>
    %132 = vector.extract_strided_slice %47 {offsets = [0, 0, 192], sizes = [2, 8, 64], strides = [1, 1, 1]} : vector<2x8x384xbf16> to vector<2x8x64xbf16>
    "tpu.trace_start"() <{level = 10 : i32, message = "btd,bsd->bts"}> : () -> ()
    %cst_43 = arith.constant dense<0.000000e+00> : vector<2x8x8xf32>
    %133 = tpu.matmul %130, %131, %cst_43 {dimension_numbers = #tpu.dot_dimension_numbers<[2], [2], [1], [1], [0, 0, 0, 1, 1, 1], [0], [0]>} : vector<2x8x64xbf16>, vector<2x8x64xbf16>, vector<2x8x8xf32> -> vector<2x8x8xf32>
    %cst_44 = arith.constant 0xFF800000 : f32
    "tpu.trace_stop"() : () -> ()
    %134 = vector.shape_cast %50 : vector<8x8xi1> to vector<1x8x8xi1>
    %135 = vector.broadcast %134 : vector<1x8x8xi1> to vector<2x8x8xi1>
    %136 = vector.broadcast %cst_44 : f32 to vector<2x8x8xf32>
    %137 = arith.select %135, %133, %136 : vector<2x8x8xi1>, vector<2x8x8xf32>
    %cst_45 = arith.constant dense<0xFF800000> : vector<2x8xf32>
    %138 = vector.multi_reduction <maximumf>, %137, %cst_45 [2] : vector<2x8x8xf32> to vector<2x8xf32>
    %139 = vector.shape_cast %138 : vector<2x8xf32> to vector<2x8x1xf32>
    %140 = vector.broadcast %139 : vector<2x8x1xf32> to vector<2x8x8xf32>
    %141 = arith.subf %137, %140 : vector<2x8x8xf32>
    %142 = math.exp %141 : vector<2x8x8xf32>
    %cst_46 = arith.constant dense<0.000000e+00> : vector<2x8xf32>
    %143 = vector.multi_reduction <add>, %142, %cst_46 [2] : vector<2x8x8xf32> to vector<2x8xf32>
    %144 = vector.shape_cast %143 : vector<2x8xf32> to vector<2x8x1xf32>
    %145 = tpu.reciprocal %144 {approx = true} : vector<2x8x1xf32> -> vector<2x8x1xf32>
    %146 = vector.broadcast %145 : vector<2x8x1xf32> to vector<2x8x8xf32>
    %147 = arith.mulf %142, %146 : vector<2x8x8xf32>
    %148 = arith.truncf %147 : vector<2x8x8xf32> to vector<2x8x8xbf16>
    "tpu.trace_start"() <{level = 10 : i32, message = "bts,bsd->btd"}> : () -> ()
    %cst_47 = arith.constant dense<0.000000e+00> : vector<2x8x64xf32>
    %149 = tpu.matmul %148, %132, %cst_47 {dimension_numbers = #tpu.dot_dimension_numbers<[2], [1], [1], [2], [0, 0, 0, 1, 1, 2], [0], [0]>} : vector<2x8x8xbf16>, vector<2x8x64xbf16>, vector<2x8x64xf32> -> vector<2x8x64xf32>
    "tpu.trace_stop"() : () -> ()
    %c0_48 = arith.constant 0 : index
    %c192 = arith.constant 192 : index
    %c1152_49 = arith.constant 1152 : index
    %150 = vector.load %arg5[%c0_48, %c192, %c1152_49] : memref<1x384x3072xbf16, #tpu.memory_space<vmem>>, vector<1x64x384xbf16>
    %151 = vector.shape_cast %150 : vector<1x64x384xbf16> to vector<64x384xbf16>
    %152 = vector.shape_cast %149 : vector<2x8x64xf32> to vector<16x64xf32>
    %153 = arith.truncf %152 : vector<16x64xf32> to vector<16x64xbf16>
    %cst_50 = arith.constant dense<0.000000e+00> : vector<16x384xf32>
    %154 = tpu.matmul %153, %151, %cst_50 {dimension_numbers = #tpu.dot_dimension_numbers<[1], [0], [0], [1], [0, 0, 1, 1], [], []>} : vector<16x64xbf16>, vector<64x384xbf16>, vector<16x384xf32> -> vector<16x384xf32>
    %155 = arith.addf %129, %154 : vector<16x384xf32>
    %156 = vector.extract_strided_slice %43 {offsets = [0, 0, 256], sizes = [2, 8, 64], strides = [1, 1, 1]} : vector<2x8x384xbf16> to vector<2x8x64xbf16>
    %157 = vector.extract_strided_slice %45 {offsets = [0, 0, 256], sizes = [2, 8, 64], strides = [1, 1, 1]} : vector<2x8x384xbf16> to vector<2x8x64xbf16>
    %158 = vector.extract_strided_slice %47 {offsets = [0, 0, 256], sizes = [2, 8, 64], strides = [1, 1, 1]} : vector<2x8x384xbf16> to vector<2x8x64xbf16>
    "tpu.trace_start"() <{level = 10 : i32, message = "btd,bsd->bts"}> : () -> ()
    %cst_51 = arith.constant dense<0.000000e+00> : vector<2x8x8xf32>
    %159 = tpu.matmul %156, %157, %cst_51 {dimension_numbers = #tpu.dot_dimension_numbers<[2], [2], [1], [1], [0, 0, 0, 1, 1, 1], [0], [0]>} : vector<2x8x64xbf16>, vector<2x8x64xbf16>, vector<2x8x8xf32> -> vector<2x8x8xf32>
    %cst_52 = arith.constant 0xFF800000 : f32
    "tpu.trace_stop"() : () -> ()
    %160 = vector.shape_cast %50 : vector<8x8xi1> to vector<1x8x8xi1>
    %161 = vector.broadcast %160 : vector<1x8x8xi1> to vector<2x8x8xi1>
    %162 = vector.broadcast %cst_52 : f32 to vector<2x8x8xf32>
    %163 = arith.select %161, %159, %162 : vector<2x8x8xi1>, vector<2x8x8xf32>
    %cst_53 = arith.constant dense<0xFF800000> : vector<2x8xf32>
    %164 = vector.multi_reduction <maximumf>, %163, %cst_53 [2] : vector<2x8x8xf32> to vector<2x8xf32>
    %165 = vector.shape_cast %164 : vector<2x8xf32> to vector<2x8x1xf32>
    %166 = vector.broadcast %165 : vector<2x8x1xf32> to vector<2x8x8xf32>
    %167 = arith.subf %163, %166 : vector<2x8x8xf32>
    %168 = math.exp %167 : vector<2x8x8xf32>
    %cst_54 = arith.constant dense<0.000000e+00> : vector<2x8xf32>
    %169 = vector.multi_reduction <add>, %168, %cst_54 [2] : vector<2x8x8xf32> to vector<2x8xf32>
    %170 = vector.shape_cast %169 : vector<2x8xf32> to vector<2x8x1xf32>
    %171 = tpu.reciprocal %170 {approx = true} : vector<2x8x1xf32> -> vector<2x8x1xf32>
    %172 = vector.broadcast %171 : vector<2x8x1xf32> to vector<2x8x8xf32>
    %173 = arith.mulf %168, %172 : vector<2x8x8xf32>
    %174 = arith.truncf %173 : vector<2x8x8xf32> to vector<2x8x8xbf16>
    "tpu.trace_start"() <{level = 10 : i32, message = "bts,bsd->btd"}> : () -> ()
    %cst_55 = arith.constant dense<0.000000e+00> : vector<2x8x64xf32>
    %175 = tpu.matmul %174, %158, %cst_55 {dimension_numbers = #tpu.dot_dimension_numbers<[2], [1], [1], [2], [0, 0, 0, 1, 1, 2], [0], [0]>} : vector<2x8x8xbf16>, vector<2x8x64xbf16>, vector<2x8x64xf32> -> vector<2x8x64xf32>
    "tpu.trace_stop"() : () -> ()
    %c0_56 = arith.constant 0 : index
    %c256 = arith.constant 256 : index
    %c1152_57 = arith.constant 1152 : index
    %176 = vector.load %arg5[%c0_56, %c256, %c1152_57] : memref<1x384x3072xbf16, #tpu.memory_space<vmem>>, vector<1x64x384xbf16>
    %177 = vector.shape_cast %176 : vector<1x64x384xbf16> to vector<64x384xbf16>
    %178 = vector.shape_cast %175 : vector<2x8x64xf32> to vector<16x64xf32>
    %179 = arith.truncf %178 : vector<16x64xf32> to vector<16x64xbf16>
    %cst_58 = arith.constant dense<0.000000e+00> : vector<16x384xf32>
    %180 = tpu.matmul %179, %177, %cst_58 {dimension_numbers = #tpu.dot_dimension_numbers<[1], [0], [0], [1], [0, 0, 1, 1], [], []>} : vector<16x64xbf16>, vector<64x384xbf16>, vector<16x384xf32> -> vector<16x384xf32>
    %181 = arith.addf %155, %180 : vector<16x384xf32>
    %182 = vector.extract_strided_slice %43 {offsets = [0, 0, 320], sizes = [2, 8, 64], strides = [1, 1, 1]} : vector<2x8x384xbf16> to vector<2x8x64xbf16>
    %183 = vector.extract_strided_slice %45 {offsets = [0, 0, 320], sizes = [2, 8, 64], strides = [1, 1, 1]} : vector<2x8x384xbf16> to vector<2x8x64xbf16>
    %184 = vector.extract_strided_slice %47 {offsets = [0, 0, 320], sizes = [2, 8, 64], strides = [1, 1, 1]} : vector<2x8x384xbf16> to vector<2x8x64xbf16>
    "tpu.trace_start"() <{level = 10 : i32, message = "btd,bsd->bts"}> : () -> ()
    %cst_59 = arith.constant dense<0.000000e+00> : vector<2x8x8xf32>
    %185 = tpu.matmul %182, %183, %cst_59 {dimension_numbers = #tpu.dot_dimension_numbers<[2], [2], [1], [1], [0, 0, 0, 1, 1, 1], [0], [0]>} : vector<2x8x64xbf16>, vector<2x8x64xbf16>, vector<2x8x8xf32> -> vector<2x8x8xf32>
    %cst_60 = arith.constant 0xFF800000 : f32
    "tpu.trace_stop"() : () -> ()
    %186 = vector.shape_cast %50 : vector<8x8xi1> to vector<1x8x8xi1>
    %187 = vector.broadcast %186 : vector<1x8x8xi1> to vector<2x8x8xi1>
    %188 = vector.broadcast %cst_60 : f32 to vector<2x8x8xf32>
    %189 = arith.select %187, %185, %188 : vector<2x8x8xi1>, vector<2x8x8xf32>
    %cst_61 = arith.constant dense<0xFF800000> : vector<2x8xf32>
    %190 = vector.multi_reduction <maximumf>, %189, %cst_61 [2] : vector<2x8x8xf32> to vector<2x8xf32>
    %191 = vector.shape_cast %190 : vector<2x8xf32> to vector<2x8x1xf32>
    %192 = vector.broadcast %191 : vector<2x8x1xf32> to vector<2x8x8xf32>
    %193 = arith.subf %189, %192 : vector<2x8x8xf32>
    %194 = math.exp %193 : vector<2x8x8xf32>
    %cst_62 = arith.constant dense<0.000000e+00> : vector<2x8xf32>
    %195 = vector.multi_reduction <add>, %194, %cst_62 [2] : vector<2x8x8xf32> to vector<2x8xf32>
    %196 = vector.shape_cast %195 : vector<2x8xf32> to vector<2x8x1xf32>
    %197 = tpu.reciprocal %196 {approx = true} : vector<2x8x1xf32> -> vector<2x8x1xf32>
    %198 = vector.broadcast %197 : vector<2x8x1xf32> to vector<2x8x8xf32>
    %199 = arith.mulf %194, %198 : vector<2x8x8xf32>
    %200 = arith.truncf %199 : vector<2x8x8xf32> to vector<2x8x8xbf16>
    "tpu.trace_start"() <{level = 10 : i32, message = "bts,bsd->btd"}> : () -> ()
    %cst_63 = arith.constant dense<0.000000e+00> : vector<2x8x64xf32>
    %201 = tpu.matmul %200, %184, %cst_63 {dimension_numbers = #tpu.dot_dimension_numbers<[2], [1], [1], [2], [0, 0, 0, 1, 1, 2], [0], [0]>} : vector<2x8x8xbf16>, vector<2x8x64xbf16>, vector<2x8x64xf32> -> vector<2x8x64xf32>
    "tpu.trace_stop"() : () -> ()
    %c0_64 = arith.constant 0 : index
    %c320 = arith.constant 320 : index
    %c1152_65 = arith.constant 1152 : index
    %202 = vector.load %arg5[%c0_64, %c320, %c1152_65] : memref<1x384x3072xbf16, #tpu.memory_space<vmem>>, vector<1x64x384xbf16>
    %203 = vector.shape_cast %202 : vector<1x64x384xbf16> to vector<64x384xbf16>
    %204 = vector.shape_cast %201 : vector<2x8x64xf32> to vector<16x64xf32>
    %205 = arith.truncf %204 : vector<16x64xf32> to vector<16x64xbf16>
    %cst_66 = arith.constant dense<0.000000e+00> : vector<16x384xf32>
    %206 = tpu.matmul %205, %203, %cst_66 {dimension_numbers = #tpu.dot_dimension_numbers<[1], [0], [0], [1], [0, 0, 1, 1], [], []>} : vector<16x64xbf16>, vector<64x384xbf16>, vector<16x384xf32> -> vector<16x384xf32>
    %207 = arith.addf %181, %206 : vector<16x384xf32>
    %208 = arith.addf %4, %207 : vector<16x384xf32>
    %209 = vector.broadcast %11 : vector<1x384xf32> to vector<16x384xf32>
    %210 = arith.addf %208, %209 : vector<16x384xf32>
    %cst_67 = arith.constant dense<0.000000e+00> : vector<16xf32>
    %211 = vector.multi_reduction <add>, %210, %cst_67 [1] : vector<16x384xf32> to vector<16xf32>
    %212 = vector.shape_cast %211 : vector<16xf32> to vector<16x1xf32>
    %cst_68 = arith.constant 3.840000e+02 : f32
    %213 = vector.broadcast %cst_68 : f32 to vector<16x1xf32>
    %214 = arith.divf %212, %213 : vector<16x1xf32>
    %215 = vector.broadcast %214 : vector<16x1xf32> to vector<16x384xf32>
    %216 = arith.subf %210, %215 : vector<16x384xf32>
    %217 = arith.mulf %216, %216 : vector<16x384xf32>
    %cst_69 = arith.constant dense<0.000000e+00> : vector<16xf32>
    %218 = vector.multi_reduction <add>, %217, %cst_69 [1] : vector<16x384xf32> to vector<16xf32>
    %219 = vector.shape_cast %218 : vector<16xf32> to vector<16x1xf32>
    %cst_70 = arith.constant 3.840000e+02 : f32
    %220 = vector.broadcast %cst_70 : f32 to vector<16x1xf32>
    %221 = arith.divf %219, %220 : vector<16x1xf32>
    %cst_71 = arith.constant 9.99999974E-6 : f32
    %222 = vector.broadcast %cst_71 : f32 to vector<16x1xf32>
    %223 = arith.addf %221, %222 : vector<16x1xf32>
    %224 = math.rsqrt %223 : vector<16x1xf32>
    %225 = vector.broadcast %224 : vector<16x1xf32> to vector<16x384xf32>
    %226 = arith.mulf %216, %225 : vector<16x384xf32>
    %227 = vector.broadcast %9 : vector<1x384xf32> to vector<16x384xf32>
    %228 = arith.mulf %226, %227 : vector<16x384xf32>
    %229 = vector.broadcast %10 : vector<1x384xf32> to vector<16x384xf32>
    %230 = arith.addf %228, %229 : vector<16x384xf32>
    %231 = arith.truncf %230 : vector<16x384xf32> to vector<16x384xbf16>
    %c0_72 = arith.constant 0 : index
    %c0_73 = arith.constant 0 : index
    %c1536 = arith.constant 1536 : index
    %232 = vector.load %arg5[%c0_72, %c0_73, %c1536] : memref<1x384x3072xbf16, #tpu.memory_space<vmem>>, vector<1x384x1536xbf16>
    %233 = vector.shape_cast %232 : vector<1x384x1536xbf16> to vector<384x1536xbf16>
    %cst_74 = arith.constant dense<0.000000e+00> : vector<16x1536xf32>
    %234 = tpu.matmul %231, %233, %cst_74 {dimension_numbers = #tpu.dot_dimension_numbers<[1], [0], [0], [1], [0, 0, 1, 1], [], []>} : vector<16x384xbf16>, vector<384x1536xbf16>, vector<16x1536xf32> -> vector<16x1536xf32>
    %235 = vector.broadcast %14 : vector<1x1536xf32> to vector<16x1536xf32>
    %236 = arith.addf %234, %235 : vector<16x1536xf32>
    %cst_75 = arith.constant 0.000000e+00 : f32
    %237 = vector.broadcast %cst_75 : f32 to vector<16x1536xf32>
    %238 = arith.maximumf %236, %237 : vector<16x1536xf32>
    %239 = arith.truncf %238 : vector<16x1536xf32> to vector<16x1536xbf16>
    %c0_76 = arith.constant 0 : index
    %c0_77 = arith.constant 0 : index
    %c0_78 = arith.constant 0 : index
    %240 = vector.load %arg6[%c0_76, %c0_77, %c0_78] : memref<1x1536x384xbf16, #tpu.memory_space<vmem>>, vector<1x1536x384xbf16>
    %241 = vector.shape_cast %240 : vector<1x1536x384xbf16> to vector<1536x384xbf16>
    %cst_79 = arith.constant dense<0.000000e+00> : vector<16x384xf32>
    %242 = tpu.matmul %239, %241, %cst_79 {dimension_numbers = #tpu.dot_dimension_numbers<[1], [0], [0], [1], [0, 0, 1, 1], [], []>} : vector<16x1536xbf16>, vector<1536x384xbf16>, vector<16x384xf32> -> vector<16x384xf32>
    %243 = vector.broadcast %12 : vector<1x384xf32> to vector<16x384xf32>
    %244 = arith.addf %242, %243 : vector<16x384xf32>
    %245 = arith.addf %210, %244 : vector<16x384xf32>
    %246 = vector.shape_cast %245 : vector<16x384xf32> to vector<2x8x384xf32>
    %c0_80 = arith.constant 0 : index
    %c0_81 = arith.constant 0 : index
    %c0_82 = arith.constant 0 : index
    %247 = vector.load %arg8[%c0_80, %c0_81, %c0_82] : memref<2x8x384xf32, #tpu.memory_space<vmem>>, vector<2x8x384xf32>
    tpu.vector_store %arg8[%c0_80, %c0_81, %c0_82], %246 {strides = array<i32>} : memref<2x8x384xf32, #tpu.memory_space<vmem>>, vector<2x8x384xf32>,
    %c1_i32 = arith.constant 1 : i32
    %248 = arith.cmpi eq, %arg1, %c1_i32 : i32
    %249 = arith.extui %248 : i1 to i32
    %c0_i32_83 = arith.constant 0 : i32
    %250 = arith.cmpi ne, %249, %c0_i32_83 : i32
    scf.if %250 {
      %c0_84 = arith.constant 0 : index
      %c0_85 = arith.constant 0 : index
      %c0_86 = arith.constant 0 : index
      %251 = vector.load %arg7[%c0_84, %c0_85, %c0_86] : memref<2x8x384xf32, #tpu.memory_space<vmem>>, vector<2x8x384xf32>
      tpu.vector_store %arg7[%c0_84, %c0_85, %c0_86], %246 {strides = array<i32>} : memref<2x8x384xf32, #tpu.memory_space<vmem>>, vector<2x8x384xf32>,
    } else {
    }
    return
  }
  func.func @transform_0(%arg0: i32, %arg1: i32) -> (i32, i32, i32) {
    %c0_i32 = arith.constant 0 : i32
    %c0_i32_0 = arith.constant 0 : i32
    %c0_i32_1 = arith.constant 0 : i32
    return %arg0, %c0_i32, %c0_i32_0 : i32, i32, i32
  }
  func.func @transform_1(%arg0: i32, %arg1: i32) -> (i32, i32, i32) {
    %c0_i32 = arith.constant 0 : i32
    %c0_i32_0 = arith.constant 0 : i32
    %c0_i32_1 = arith.constant 0 : i32
    return %arg1, %c0_i32, %c0_i32_0 : i32, i32, i32
  }
  func.func @transform_2(%arg0: i32, %arg1: i32) -> (i32, i32, i32) {
    %c0_i32 = arith.constant 0 : i32
    %c0_i32_0 = arith.constant 0 : i32
    %c0_i32_1 = arith.constant 0 : i32
    return %arg1, %c0_i32, %c0_i32_0 : i32, i32, i32
  }
  func.func @transform_3(%arg0: i32, %arg1: i32) -> (i32, i32, i32) {
    %c0_i32 = arith.constant 0 : i32
    %c0_i32_0 = arith.constant 0 : i32
    %c0_i32_1 = arith.constant 0 : i32
    return %arg1, %c0_i32, %c0_i32_0 : i32, i32, i32
  }
  func.func @transform_4(%arg0: i32, %arg1: i32) -> (i32, i32, i32) {
    %c0_i32 = arith.constant 0 : i32
    %c0_i32_0 = arith.constant 0 : i32
    %c0_i32_1 = arith.constant 0 : i32
    return %arg1, %c0_i32, %c0_i32_0 : i32, i32, i32
  }
  func.func @transform_5(%arg0: i32, %arg1: i32) -> (i32, i32, i32) {
    %c0_i32 = arith.constant 0 : i32
    %c0_i32_0 = arith.constant 0 : i32
    %c0_i32_1 = arith.constant 0 : i32
    return %arg0, %c0_i32, %c0_i32_0 : i32, i32, i32
  }
}

module attributes {stable_mosaic.version = 11 : i64} {
  func.func @_lm_head_kernel(%arg0: i32, %arg1: i32, %arg2: memref<2x8x384xf32, #tpu.memory_space<vmem>>, %arg3: memref<2x384xf32, #tpu.memory_space<vmem>>, %arg4: memref<384x128xbf16, #tpu.memory_space<vmem>>, %arg5: memref<1x128xf32, #tpu.memory_space<vmem>>, %arg6: memref<2x8x128xf32, #tpu.memory_space<vmem>>) attributes {dimension_semantics = [#tpu.dimension_semantics<parallel>, #tpu.dimension_semantics<parallel>], iteration_bounds = array<i64: 1, 1>, scalar_prefetch = 0 : i64, scratch_operands = 0 : i64, tpu.core_type = #tpu.core_type<tc>, window_params = [{transform_indices = @transform_0, window_bounds = array<i64: 2, 8, 384>}, {pipeline_mode = #tpu.pipeline_mode<synchronous>, transform_indices = @transform_1, window_bounds = array<i64: 2, 384>}, {transform_indices = @transform_2, window_bounds = array<i64: 384, 128>}, {transform_indices = @transform_3, window_bounds = array<i64: 1, 128>}, {transform_indices = @transform_4, window_bounds = array<i64: 2, 8, 128>}]} {
    %c0 = arith.constant 0 : index
    %c0_0 = arith.constant 0 : index
    %c0_1 = arith.constant 0 : index
    %0 = vector.load %arg2[%c0, %c0_0, %c0_1] : memref<2x8x384xf32, #tpu.memory_space<vmem>>, vector<2x8x384xf32>
    %c0_2 = arith.constant 0 : index
    %c0_3 = arith.constant 0 : index
    %1 = vector.load %arg3[%c0_2, %c0_3] : memref<2x384xf32, #tpu.memory_space<vmem>>, vector<2x384xf32>
    %2 = vector.extract_strided_slice %1 {offsets = [0, 0], sizes = [1, 384], strides = [1, 1]} : vector<2x384xf32> to vector<1x384xf32>
    %3 = vector.extract_strided_slice %1 {offsets = [1, 0], sizes = [1, 384], strides = [1, 1]} : vector<2x384xf32> to vector<1x384xf32>
    %cst = arith.constant dense<0.000000e+00> : vector<2x8xf32>
    %4 = vector.multi_reduction <add>, %0, %cst [2] : vector<2x8x384xf32> to vector<2x8xf32>
    %5 = vector.shape_cast %4 : vector<2x8xf32> to vector<2x8x1xf32>
    %cst_4 = arith.constant 3.840000e+02 : f32
    %6 = vector.broadcast %cst_4 : f32 to vector<2x8x1xf32>
    %7 = arith.divf %5, %6 : vector<2x8x1xf32>
    %8 = vector.broadcast %7 : vector<2x8x1xf32> to vector<2x8x384xf32>
    %9 = arith.subf %0, %8 : vector<2x8x384xf32>
    %10 = arith.mulf %9, %9 : vector<2x8x384xf32>
    %cst_5 = arith.constant dense<0.000000e+00> : vector<2x8xf32>
    %11 = vector.multi_reduction <add>, %10, %cst_5 [2] : vector<2x8x384xf32> to vector<2x8xf32>
    %12 = vector.shape_cast %11 : vector<2x8xf32> to vector<2x8x1xf32>
    %cst_6 = arith.constant 3.840000e+02 : f32
    %13 = vector.broadcast %cst_6 : f32 to vector<2x8x1xf32>
    %14 = arith.divf %12, %13 : vector<2x8x1xf32>
    %cst_7 = arith.constant 9.99999974E-6 : f32
    %15 = vector.broadcast %cst_7 : f32 to vector<2x8x1xf32>
    %16 = arith.addf %14, %15 : vector<2x8x1xf32>
    %17 = math.rsqrt %16 : vector<2x8x1xf32>
    %18 = vector.broadcast %17 : vector<2x8x1xf32> to vector<2x8x384xf32>
    %19 = arith.mulf %9, %18 : vector<2x8x384xf32>
    %20 = vector.shape_cast %2 : vector<1x384xf32> to vector<1x1x384xf32>
    %21 = vector.broadcast %20 : vector<1x1x384xf32> to vector<2x8x384xf32>
    %22 = arith.mulf %19, %21 : vector<2x8x384xf32>
    %23 = vector.shape_cast %3 : vector<1x384xf32> to vector<1x1x384xf32>
    %24 = vector.broadcast %23 : vector<1x1x384xf32> to vector<2x8x384xf32>
    %25 = arith.addf %22, %24 : vector<2x8x384xf32>
    %26 = vector.shape_cast %25 : vector<2x8x384xf32> to vector<16x384xf32>
    %27 = arith.truncf %26 : vector<16x384xf32> to vector<16x384xbf16>
    %c0_8 = arith.constant 0 : index
    %c0_9 = arith.constant 0 : index
    %28 = vector.load %arg4[%c0_8, %c0_9] : memref<384x128xbf16, #tpu.memory_space<vmem>>, vector<384x128xbf16>
    %cst_10 = arith.constant dense<0.000000e+00> : vector<16x128xf32>
    %29 = tpu.matmul %27, %28, %cst_10 {dimension_numbers = #tpu.dot_dimension_numbers<[1], [0], [0], [1], [0, 0, 1, 1], [], []>} : vector<16x384xbf16>, vector<384x128xbf16>, vector<16x128xf32> -> vector<16x128xf32>
    %c0_11 = arith.constant 0 : index
    %c0_12 = arith.constant 0 : index
    %30 = vector.load %arg5[%c0_11, %c0_12] : memref<1x128xf32, #tpu.memory_space<vmem>>, vector<1x128xf32>
    %31 = vector.broadcast %30 : vector<1x128xf32> to vector<16x128xf32>
    %32 = arith.addf %29, %31 : vector<16x128xf32>
    %33 = vector.shape_cast %32 : vector<16x128xf32> to vector<2x8x128xf32>
    %c0_13 = arith.constant 0 : index
    %c0_14 = arith.constant 0 : index
    %c0_15 = arith.constant 0 : index
    %34 = vector.load %arg6[%c0_13, %c0_14, %c0_15] : memref<2x8x128xf32, #tpu.memory_space<vmem>>, vector<2x8x128xf32>
    tpu.vector_store %arg6[%c0_13, %c0_14, %c0_15], %33 {strides = array<i32>} : memref<2x8x128xf32, #tpu.memory_space<vmem>>, vector<2x8x128xf32>,
    return
  }
  func.func @transform_0(%arg0: i32, %arg1: i32) -> (i32, i32, i32) {
    %c0_i32 = arith.constant 0 : i32
    %c0_i32_0 = arith.constant 0 : i32
    %c0_i32_1 = arith.constant 0 : i32
    return %arg0, %c0_i32, %c0_i32_0 : i32, i32, i32
  }
  func.func @transform_1(%arg0: i32, %arg1: i32) -> (i32, i32) {
    %c0_i32 = arith.constant 0 : i32
    %c0_i32_0 = arith.constant 0 : i32
    %c0_i32_1 = arith.constant 0 : i32
    return %c0_i32, %c0_i32_0 : i32, i32
  }
  func.func @transform_2(%arg0: i32, %arg1: i32) -> (i32, i32) {
    %c0_i32 = arith.constant 0 : i32
    %c0_i32_0 = arith.constant 0 : i32
    return %c0_i32, %arg1 : i32, i32
  }
  func.func @transform_3(%arg0: i32, %arg1: i32) -> (i32, i32) {
    %c0_i32 = arith.constant 0 : i32
    %c0_i32_0 = arith.constant 0 : i32
    return %c0_i32, %arg1 : i32, i32
  }
  func.func @transform_4(%arg0: i32, %arg1: i32) -> (i32, i32, i32) {
    %c0_i32 = arith.constant 0 : i32
    %c0_i32_0 = arith.constant 0 : i32
    return %arg0, %c0_i32, %arg1 : i32, i32, i32
  }
}

</mosaic_0001>

<llo_original>
// kernel: _gpt_logits.3
$region0: #{_gpt_logits.3}
  #allocation0 [shape = 'u32[]', space=smem, size = 0x4, offset = 0x4, fixed_abs, tag = 'smem constant byte address 0x4 - core index']
  #allocation1 [shape = 'u32[144,128]{1,0:T(1,128)}', space=vmem, size = 0x12000, scoped, tag = 'internal scratch']
  %s0 = inlined_call_operand.vmem [shape: f32[2,8,384], index: 0, kind: input, shape index: {}]
  %s1 = inlined_call_operand.vmem [shape: f32[2,384], index: 1, kind: input, shape index: {}]
  %s2 = inlined_call_operand.vmem [shape: bf16[384,128], index: 2, kind: input, shape index: {}]
  %s3 = inlined_call_operand.vmem [shape: f32[1,128], index: 3, kind: input, shape index: {}]
  %s4 = inlined_call_operand.hbm [shape: f32[2,8,128], index: 4, kind: output, shape index: {}]
  %s5 = sld [smem:[#allocation0]]
  $region26: #{_gpt_logits.3} parent=0
    _
  %s7 = ssub.s32 1, %s5
  %s8 = scalar_select 0, %s7, %s5
  $region1: #{_gpt_logits.3} parent=0
    #allocation2 [shape = 'u8[8192]{0}', space=vmem, size = 0x2000, scoped, tag = 'output window, operand 0, single buffered']
    #allocation3 [shape = 's32[1]{0}', space=sflag, size = 0x4, scoped, tag = 'scoped memory for _gpt_logits.3']
    %9 = vsyncpa [#allocation3], 0
    // Predicated region
    $region2: #{_gpt_logits.3} parent=1 // pred_check
      _
    $region3: #{_gpt_logits.3} parent=1 // pred_check_branch
      %11 = sbr.rel (0) target = $region5
    $region4: #{_gpt_logits.3} parent=1 // pred_region
      _
    $region5: #{_gpt_logits.3} parent=1 // pred_fallthru
      _
    // Predicated region
    $region6: #{_gpt_logits.3} parent=1 // pred_check
      _
    $region7: #{_gpt_logits.3} parent=1 // pred_check_branch
      %13 = sbr.rel (0) target = $region9
    $region8: #{_gpt_logits.3} parent=1 // pred_region
      _
    $region9: #{_gpt_logits.3} parent=1 // pred_fallthru
      _
    // Predicated region
    $region10: #{_gpt_logits.3} parent=1 // pred_check
      _
    $region11: #{_gpt_logits.3} parent=1 // pred_check_branch
      %15 = sbr.rel (0) target = $region13
    $region12: #{_gpt_logits.3} parent=1 // pred_region
      _
    $region13: #{_gpt_logits.3} parent=1 // pred_fallthru
      _
    // Predicated region
    $region14: #{_gpt_logits.3} parent=1 // pred_check
      _
    $region15: #{_gpt_logits.3} parent=1 // pred_check_branch
      %17 = sbr.rel (0) target = $region17
    $region16: #{_gpt_logits.3} parent=1 // pred_region
      _
    $region17: #{_gpt_logits.3} parent=1 // pred_fallthru
      _
    %v19 = vld [vmem:[%s0] sm:$0xff]
    %v20 = vld [vmem:[%s0 + $0x8] sm:$0xff]
    %v21 = vld [vmem:[%s0 + $0x10] sm:$0xff]
    %v22 = vld [vmem:[%s0 + $0x18] sm:$0xff]
    %v23 = vld [vmem:[%s0 + $0x20] sm:$0xff]
    %v24 = vld [vmem:[%s0 + $0x28] sm:$0xff]
    %v25 = vld [vmem:[%s1] sm:$0x3f]
    %v26 = vadd.f32 %v19, %v20
    %v27 = vadd.f32 %v26, %v21
    %28 = vadd.xlane.f32.xlu0 %v27
    %v29 = vpop.xlane.xlu0 %28
    %v30 = vadd.f32 %v22, %v23
    %v31 = vadd.f32 %v30, %v24
    %32 = vadd.xlane.f32.xlu0 %v31
    %v33 = vpop.xlane.xlu0 %32
    %v34 = vrcp.pop 384.0
    %v35 = vmul.f32 %v29, %v34
    %v36 = vmul.f32 %v33, %v34
    %v37 = vsub.f32 %v19, %v35
    %v38 = vsub.f32 %v20, %v35
    %v39 = vsub.f32 %v21, %v35
    %v40 = vsub.f32 %v22, %v36
    %v41 = vsub.f32 %v23, %v36
    %v42 = vsub.f32 %v24, %v36
    %v43 = vmul.f32 %v37, %v37
    %v44 = vmul.f32 %v38, %v38
    %v45 = vmul.f32 %v39, %v39
    %v46 = vmul.f32 %v40, %v40
    %v47 = vmul.f32 %v41, %v41
    %v48 = vmul.f32 %v42, %v42
    %v49 = vadd.f32 %v43, %v44
    %v50 = vadd.f32 %v49, %v45
    %51 = vadd.xlane.f32.xlu0 %v50
    %v52 = vpop.xlane.xlu0 %51
    %v53 = vadd.f32 %v46, %v47
    %v54 = vadd.f32 %v53, %v48
    %55 = vadd.xlane.f32.xlu0 %v54
    %v56 = vpop.xlane.xlu0 %55
    %v57 = vmul.f32 %v52, %v34
    %v58 = vmul.f32 %v56, %v34
    %v59 = vadd.f32 %v57, 1e-05
    %v60 = vadd.f32 %v58, 1e-05
    %v61 = vrsqrt.pop %v59
    %v62 = vrsqrt.pop %v60
    %v63 = vmul.f32 %v37, %v61
    %v64 = vmul.f32 %v38, %v61
    %v65 = vmul.f32 %v39, %v61
    %v66 = vmul.f32 %v40, %v62
    %v67 = vmul.f32 %v41, %v62
    %v68 = vmul.f32 %v42, %v62
    %v70 = vlaneseq
    %v71 = vshrl.u32 %v70, 7
    %v72 = vsub.s32 0, %v71
    %v73 = vrot.slane %v25, %v72
    %v74 = vlaneseq
    %v75 = vshrl.u32 %v74, 7
    %v76 = vsub.s32 2, %v75
    %v77 = vrot.slane %v25, %v76
    %v78 = vlaneseq
    %v79 = vshrl.u32 %v78, 7
    %v80 = vsub.s32 4, %v79
    %v81 = vrot.slane %v25, %v80
    %v85 = vlaneseq
    %v86 = vshrl.u32 %v85, 7
    %v87 = vsub.s32 0, %v86
    %v88 = vrot.slane %v73, %v87
    %v89 = vlaneseq
    %v90 = vshrl.u32 %v89, 7
    %v91 = vsub.s32 0, %v90
    %v92 = vrot.slane %v77, %v91
    %v93 = vlaneseq
    %v94 = vshrl.u32 %v93, 7
    %v95 = vsub.s32 0, %v94
    %v96 = vrot.slane %v81, %v95
    %v97 = vmul.f32 %v63, %v88
    %v98 = vmul.f32 %v64, %v92
    %v99 = vmul.f32 %v65, %v96
    %v100 = vmul.f32 %v66, %v88
    %v101 = vmul.f32 %v67, %v92
    %v102 = vmul.f32 %v68, %v96
    %v103 = vlaneseq
    %v104 = vshrl.u32 %v103, 7
    %v105 = vsub.s32 1, %v104
    %v106 = vrot.slane %v25, %v105
    %v107 = vlaneseq
    %v108 = vshrl.u32 %v107, 7
    %v109 = vsub.s32 3, %v108
    %v110 = vrot.slane %v25, %v109
    %v111 = vlaneseq
    %v112 = vshrl.u32 %v111, 7
    %v113 = vsub.s32 5, %v112
    %v114 = vrot.slane %v25, %v113
    %v118 = vlaneseq
    %v119 = vshrl.u32 %v118, 7
    %v120 = vsub.s32 1, %v119
    %v121 = vrot.slane %v106, %v120
    %v122 = vlaneseq
    %v123 = vshrl.u32 %v122, 7
    %v124 = vsub.s32 1, %v123
    %v125 = vrot.slane %v110, %v124
    %v126 = vlaneseq
    %v127 = vshrl.u32 %v126, 7
    %v128 = vsub.s32 1, %v127
    %v129 = vrot.slane %v114, %v128
    %v130 = vadd.f32 %v97, %v121
    %v131 = vadd.f32 %v98, %v125
    %v132 = vadd.f32 %v99, %v129
    %v133 = vadd.f32 %v100, %v121
    %v134 = vadd.f32 %v101, %v125
    %v135 = vadd.f32 %v102, %v129
    %v136 = vpack.c.bf16 %v133, %v130
    %v137 = vpack.c.bf16 %v134, %v131
    %v138 = vpack.c.bf16 %v135, %v132
    %v139 = vld [vmem:[%s2] sm:$0xf]
    %v140 = vld [vmem:[%s2 + $0x4] sm:$0xf]
    %v141 = vld [vmem:[%s2 + $0x8] sm:$0xf]
    %v142 = vld [vmem:[%s2 + $0xc] sm:$0xf]
    %v143 = vld [vmem:[%s2 + $0x10] sm:$0xf]
    %v144 = vld [vmem:[%s2 + $0x14] sm:$0xf]
    %v145 = vld [vmem:[%s2 + $0x18] sm:$0xf]
    %v146 = vld [vmem:[%s2 + $0x1c] sm:$0xf]
    %v147 = vld [vmem:[%s2 + $0x20] sm:$0xf]
    %v148 = vld [vmem:[%s2 + $0x24] sm:$0xf]
    %v149 = vld [vmem:[%s2 + $0x28] sm:$0xf]
    %v150 = vld [vmem:[%s2 + $0x2c] sm:$0xf]
    %v151 = vld [vmem:[%s2 + $0x30] sm:$0xf]
    %v152 = vld [vmem:[%s2 + $0x34] sm:$0xf]
    %v153 = vld [vmem:[%s2 + $0x38] sm:$0xf]
    %v154 = vld [vmem:[%s2 + $0x3c] sm:$0xf]
    %v155 = vld [vmem:[%s2 + $0x40] sm:$0xf]
    %v156 = vld [vmem:[%s2 + $0x44] sm:$0xf]
    %v157 = vld [vmem:[%s2 + $0x48] sm:$0xf]
    %v158 = vld [vmem:[%s2 + $0x4c] sm:$0xf]
    %v159 = vld [vmem:[%s2 + $0x50] sm:$0xf]
    %v160 = vld [vmem:[%s2 + $0x54] sm:$0xf]
    %v161 = vld [vmem:[%s2 + $0x58] sm:$0xf]
    %v162 = vld [vmem:[%s2 + $0x5c] sm:$0xf]
    %v163 = vld [vmem:[%s2 + $0x60] sm:$0xf]
    %v164 = vld [vmem:[%s2 + $0x64] sm:$0xf]
    %v165 = vld [vmem:[%s2 + $0x68] sm:$0xf]
    %v166 = vld [vmem:[%s2 + $0x6c] sm:$0xf]
    %v167 = vld [vmem:[%s2 + $0x70] sm:$0xf]
    %v168 = vld [vmem:[%s2 + $0x74] sm:$0xf]
    %v169 = vld [vmem:[%s2 + $0x78] sm:$0xf]
    %v170 = vld [vmem:[%s2 + $0x7c] sm:$0xf]
    %v171 = vld [vmem:[%s2 + $0x80] sm:$0xf]
    %v172 = vld [vmem:[%s2 + $0x84] sm:$0xf]
    %v173 = vld [vmem:[%s2 + $0x88] sm:$0xf]
    %v174 = vld [vmem:[%s2 + $0x8c] sm:$0xf]
    %v175 = vld [vmem:[%s2 + $0x90] sm:$0xf]
    %v176 = vld [vmem:[%s2 + $0x94] sm:$0xf]
    %v177 = vld [vmem:[%s2 + $0x98] sm:$0xf]
    %v178 = vld [vmem:[%s2 + $0x9c] sm:$0xf]
    %v179 = vld [vmem:[%s2 + $0xa0] sm:$0xf]
    %v180 = vld [vmem:[%s2 + $0xa4] sm:$0xf]
    %v181 = vld [vmem:[%s2 + $0xa8] sm:$0xf]
    %v182 = vld [vmem:[%s2 + $0xac] sm:$0xf]
    %v183 = vld [vmem:[%s2 + $0xb0] sm:$0xf]
    %v184 = vld [vmem:[%s2 + $0xb4] sm:$0xf]
    %v185 = vld [vmem:[%s2 + $0xb8] sm:$0xf]
    %v186 = vld [vmem:[%s2 + $0xbc] sm:$0xf]
    %v187 = vld [vmem:[%s3] sm:$0x1]
    %v189 = vlaneseq
    %v190 = vshrl.u32 %v189, 7
    %v191 = vsub.s32 0, %v190
    %v192 = vrot.slane %v187, %v191
    %v242 = vunpack.c.l.b16 %v139
    %v243 = vunpack.c.l.b16 %v140
    %v244 = vunpack.c.l.b16 %v141
    %v245 = vunpack.c.l.b16 %v142
    %v246 = vunpack.c.l.b16 %v143
    %v247 = vunpack.c.l.b16 %v144
    %v248 = vunpack.c.l.b16 %v145
    %v249 = vunpack.c.l.b16 %v146
    %v250 = vunpack.c.l.b16 %v147
    %v251 = vunpack.c.l.b16 %v148
    %v252 = vunpack.c.l.b16 %v149
    %v253 = vunpack.c.l.b16 %v150
    %v254 = vunpack.c.l.b16 %v151
    %v255 = vunpack.c.l.b16 %v152
    %v256 = vunpack.c.l.b16 %v153
    %v257 = vunpack.c.l.b16 %v154
    %v258 = vunpack.c.l.b16 %v155
    %v259 = vunpack.c.l.b16 %v156
    %v260 = vunpack.c.l.b16 %v157
    %v261 = vunpack.c.l.b16 %v158
    %v262 = vunpack.c.l.b16 %v159
    %v263 = vunpack.c.l.b16 %v160
    %v264 = vunpack.c.l.b16 %v161
    %v265 = vunpack.c.l.b16 %v162
    %v266 = vunpack.c.l.b16 %v163
    %v267 = vunpack.c.l.b16 %v164
    %v268 = vunpack.c.l.b16 %v165
    %v269 = vunpack.c.l.b16 %v166
    %v270 = vunpack.c.l.b16 %v167
    %v271 = vunpack.c.l.b16 %v168
    %v272 = vunpack.c.l.b16 %v169
    %v273 = vunpack.c.l.b16 %v170
    %v274 = vunpack.c.l.b16 %v171
    %v275 = vunpack.c.l.b16 %v172
    %v276 = vunpack.c.l.b16 %v173
    %v277 = vunpack.c.l.b16 %v174
    %v278 = vunpack.c.l.b16 %v175
    %v279 = vunpack.c.l.b16 %v176
    %v280 = vunpack.c.l.b16 %v177
    %v281 = vunpack.c.l.b16 %v178
    %v282 = vunpack.c.l.b16 %v179
    %v283 = vunpack.c.l.b16 %v180
    %v284 = vunpack.c.l.b16 %v181
    %v285 = vunpack.c.l.b16 %v182
    %v286 = vunpack.c.l.b16 %v183
    %v287 = vunpack.c.l.b16 %v184
    %v288 = vunpack.c.l.b16 %v185
    %v289 = vunpack.c.l.b16 %v186
    %v290 = vpack.c.b16 %v243, %v242
    %v291 = vpack.c.b16 %v245, %v244
    %v292 = vpack.c.b16 %v247, %v246
    %v293 = vpack.c.b16 %v249, %v248
    %v294 = vpack.c.b16 %v251, %v250
    %v295 = vpack.c.b16 %v253, %v252
    %v296 = vpack.c.b16 %v255, %v254
    %v297 = vpack.c.b16 %v257, %v256
    %v298 = vpack.c.b16 %v259, %v258
    %v299 = vpack.c.b16 %v261, %v260
    %v300 = vpack.c.b16 %v263, %v262
    %v301 = vpack.c.b16 %v265, %v264
    %v302 = vpack.c.b16 %v267, %v266
    %v303 = vpack.c.b16 %v269, %v268
    %v304 = vpack.c.b16 %v271, %v270
    %v305 = vpack.c.b16 %v273, %v272
    %v306 = vpack.c.b16 %v275, %v274
    %v307 = vpack.c.b16 %v277, %v276
    %v308 = vpack.c.b16 %v279, %v278
    %v309 = vpack.c.b16 %v281, %v280
    %v310 = vpack.c.b16 %v283, %v282
    %v311 = vpack.c.b16 %v285, %v284
    %v312 = vpack.c.b16 %v287, %v286
    %v313 = vpack.c.b16 %v289, %v288
    %338 = vmatprep.subr.bf16.mxu0 0
    %339 = vmatpush1.bf16.msra.mxu0 %v297
    %340 = vmatprep.subr.bf16.mxu0 0
    %341 = vmatpush1.bf16.msra.mxu0 %v296
    %342 = vmatprep.subr.bf16.mxu0 0
    %343 = vmatpush1.bf16.msra.mxu0 %v295
    %344 = vmatprep.subr.bf16.mxu0 0
    %345 = vmatpush1.bf16.msra.mxu0 %v294
    %346 = vmatprep.subr.bf16.mxu0 0
    %347 = vmatpush1.bf16.msra.mxu0 %v293
    %348 = vmatprep.subr.bf16.mxu0 0
    %349 = vmatpush1.bf16.msra.mxu0 %v292
    %350 = vmatprep.subr.bf16.mxu0 0
    %351 = vmatpush1.bf16.msra.mxu0 %v291
    %352 = vmatprep.subr.bf16.mxu0 0
    %353 = vmatpush1.bf16.msra.mxu0 %v290
    %354 = vmatprep.subr.bf16.mxu0 0
    %355 = vmatpush2.bf16.msra.mxu0 %v305
    %356 = vmatprep.subr.bf16.mxu0 0
    %357 = vmatpush2.bf16.msra.mxu0 %v304
    %358 = vmatprep.subr.bf16.mxu0 0
    %359 = vmatpush2.bf16.msra.mxu0 %v303
    %360 = vmatprep.subr.bf16.mxu0 0
    %361 = vmatpush2.bf16.msra.mxu0 %v302
    %362 = vmatprep.subr.bf16.mxu0 0
    %363 = vmatpush2.bf16.msra.mxu0 %v301
    %364 = vmatprep.subr.bf16.mxu0 0
    %365 = vmatpush2.bf16.msra.mxu0 %v300
    %366 = vmatprep.subr.bf16.mxu0 0
    %367 = vmatpush2.bf16.msra.mxu0 %v299
    %368 = vmatprep.subr.bf16.mxu0 0
    %369 = vmatpush2.bf16.msra.mxu0 %v298
    %370 = vmatprep.mubr.bf16.mxu0 %v137
    %371 = vmatmul.mubr.bf16.gmra.mxu0 %v136
    %v372 = vpop.f32.mrf.mxu0
    %v373 = vadd.f32 %v192, %v372
    %v374 = vpop.f32.mrf.mxu0
    %v375 = vpop.f32.mrf.mxu0
    %v376 = vadd.f32 %v192, %v375
    %v377 = vpop.f32.mrf.mxu0
    %378 = vdwg.mxu0
    %379 = vmatprep.subr.bf16.mxu0 0
    %380 = vmatpush1.bf16.msra.mxu0 %v313
    %381 = vmatprep.subr.bf16.mxu0 0
    %382 = vmatpush1.bf16.msra.mxu0 %v312
    %383 = vmatprep.subr.bf16.mxu0 0
    %384 = vmatpush1.bf16.msra.mxu0 %v311
    %385 = vmatprep.subr.bf16.mxu0 0
    %386 = vmatpush1.bf16.msra.mxu0 %v310
    %387 = vmatprep.subr.bf16.mxu0 0
    %388 = vmatpush1.bf16.msra.mxu0 %v309
    %389 = vmatprep.subr.bf16.mxu0 0
    %390 = vmatpush1.bf16.msra.mxu0 %v308
    %391 = vmatprep.subr.bf16.mxu0 0
    %392 = vmatpush1.bf16.msra.mxu0 %v307
    %393 = vmatprep.subr.bf16.mxu0 0
    %394 = vmatpush1.bf16.msra.mxu0 %v306
    %395 = vmatprep.subr.bf16.mxu0 0
    %396 = vmatpush2.bf16.msra.mxu0 0
    %397 = vmatprep.subr.bf16.mxu0 0
    %398 = vmatpush2.bf16.msra.mxu0 0
    %399 = vmatprep.subr.bf16.mxu0 0
    %400 = vmatpush2.bf16.msra.mxu0 0
    %401 = vmatprep.subr.bf16.mxu0 0
    %402 = vmatpush2.bf16.msra.mxu0 0
    %403 = vmatprep.subr.bf16.mxu0 0
    %404 = vmatpush2.bf16.msra.mxu0 0
    %405 = vmatprep.subr.bf16.mxu0 0
    %406 = vmatpush2.bf16.msra.mxu0 0
    %407 = vmatprep.subr.bf16.mxu0 0
    %408 = vmatpush2.bf16.msra.mxu0 0
    %409 = vmatprep.subr.bf16.mxu0 0
    %410 = vmatpush2.bf16.msra.mxu0 0
    %411 = vmatprep.mubr.bf16.mxu0 0
    %412 = vmatmul.mubr.bf16.gmra.mxu0 %v138
    %v413 = vpop.f32.mrf.mxu0
    %v414 = vadd.f32 %v373, %v413
    %v415 = vpop.f32.mrf.mxu0
    %v416 = vpop.f32.mrf.mxu0
    %v417 = vadd.f32 %v376, %v416
    %v418 = vpop.f32.mrf.mxu0
    %419 = vdwg.mxu0
    %420 = vst [vmem:[#allocation2] sm:$0xff] %v414
    %421 = vst [vmem:[#allocation2 + $0x8] sm:$0xff] %v417
    // Predicated region
    $region18: #{_gpt_logits.3} parent=1 // pred_check
      _
    $region19: #{_gpt_logits.3} parent=1 // pred_check_branch
      %423 = sbr.rel (0) target = $region21
    $region20: #{_gpt_logits.3} parent=1 // pred_region
      %s425 = ssub.s32 256, 256
      %426 = vsyncadd [#allocation3], %s425
      %s427 = sshll.u32 [#allocation2], 4
      %s428 = int_to_ptr.vmem [resolvable:$true] %s427
      %433 = dma.vmem_to_hbm [thread:$0]  %s428, 256, %s4, [#allocation3], 128, 128, 8
    $region21: #{_gpt_logits.3} parent=1 // pred_fallthru
      _
    // Predicated region
    $region22: #{_gpt_logits.3} parent=1 // pred_check
      _
    $region23: #{_gpt_logits.3} parent=1 // pred_check_branch
      %435 = sbr.rel (0) target = $region25
    $region24: #{_gpt_logits.3} parent=1 // pred_region
      %436 = dma.done [#allocation3], 256
    $region25: #{_gpt_logits.3} parent=1 // pred_fallthru
      _
    %437 = vsyncpa [#allocation3], 1

// kernel: _gpt_logits.2
$region0: #{_gpt_logits.2}
  #allocation0 [shape = 'u32[]', space=smem, size = 0x4, offset = 0x4, fixed_abs, tag = 'smem constant byte address 0x4 - core index']
  #allocation1 [shape = 'u32[144,128]{1,0:T(1,128)}', space=vmem, size = 0x12000, scoped, tag = 'internal scratch']
  #allocation2 [shape = 'f32[2,8,384]{2,1,0:T(8,128)}', space=vmem, size = 0x6000, scoped, tag = 'scratch operand']
  %s0 = inlined_call_operand.vmem [shape: f32[2,8,384], index: 0, kind: input, shape index: {}]
  %s1 = inlined_call_operand.vmem [shape: f32[2,6,384], index: 1, kind: input, shape index: {}]
  %s2 = inlined_call_operand.hbm [shape: f32[2,1,1536], index: 2, kind: input, shape index: {}]
  %s3 = inlined_call_operand.hbm [shape: bf16[2,384,3072], index: 3, kind: input, shape index: {}]
  %s4 = inlined_call_operand.hbm [shape: bf16[2,1536,384], index: 4, kind: input, shape index: {}]
  %s5 = inlined_call_operand.vmem [shape: f32[2,8,384], index: 5, kind: output, shape index: {}]
  %s6 = sld [smem:[#allocation0]]
  $region73: #{_gpt_logits.2} parent=0
    _
  %s8 = ssub.s32 1, %s6
  %s9 = scalar_select 0, %s8, %s6
  $region1: #{_gpt_logits.2} parent=0
    #allocation3 [shape = 'u8[12288]{0}', space=vmem, size = 0x3000, scoped, tag = 'input window, operand 2']
    #allocation4 [shape = 's32[2]{0}', space=sflag, size = 0x8, scoped, tag = 'scoped memory for _gpt_logits.2']
    #allocation5 [shape = 'u8[4718592]{0}', space=vmem, size = 0x480000, scoped, tag = 'input window, operand 3']
    #allocation6 [shape = 's32[2]{0}', space=sflag, size = 0x8, scoped, tag = 'scoped memory for _gpt_logits.2']
    #allocation7 [shape = 'u8[2359296]{0}', space=vmem, size = 0x240000, scoped, tag = 'input window, operand 4']
    %10 = vsyncpa [#allocation4], 0
    %s11 = scalar_lea.sflag [#allocation4], 1
    %12 = vsyncpa %s11, 0
    %13 = vsyncpa [#allocation6], 0
    %s14 = scalar_lea.sflag [#allocation6], 1
    %15 = vsyncpa %s14, 0
    loop: start=0, step=1, limit=4
    $region2: #{_gpt_logits.2} parent=1 // loop_pre_header
      _
    $region3: #{_gpt_logits.2} parent=1 // loop_header
      %s17 = sphi 0, %s21
      %p18 = scmp.ge.s32.totalorder %s17, 4
      %s24 = sphi 0, %s36
      %s25 = sphi 0, %s32
      %s26 = sphi 0, %s24
      %s27 = sphi 0, %s25
      %s28 = sphi 0, %s26
      %s29 = sphi 0, %s27
      %s39 = sphi 0, %s41
      %s42 = sphi 0, %s39
      %s43 = sphi 0, %s42
      %s59 = sphi 0, %s43
      %s65 = sphi 0, %s67
      %s68 = sphi 0, %s65
      %s69 = sphi 0, %s68
      %s85 = sphi 0, %s69
      %s91 = sphi 0, %s93
      %s94 = sphi 0, %s91
      %s95 = sphi 0, %s94
      %s111 = sphi 0, %s95
      %s117 = sphi 0, %s119
      %s120 = sphi 0, %s117
      %s121 = sphi 0, %s120
      %s137 = sphi 0, %s121
      %s143 = sphi 0, %s145
      %s146 = sphi 0, %s143
      %s147 = sphi 0, %s146
      %s163 = sphi 0, %s147
      %s169 = sphi 0, %s171
      %s172 = sphi 0, %s169
      %s173 = sphi 0, %s172
      %s189 = sphi 0, %s173
    $region4: #{_gpt_logits.2} parent=1 // loop_header_branch
      %20 = sbr.rel (%p18) target = $region8
    $region5: #{_gpt_logits.2} parent=1 // loop_body
      %s22 = ssub.s32 %s17, 1
      %s23 = ssub.s32 %s17, 2
      %s30 = sadd.s32 1, %s25
      %p31 = scmp.ge.s32.totalorder %s30, 2
      %s32 = scalar_select %p31, 0, %s30
      %s33 = sadd.s32 1, %s24
      %s34 = scalar_select %p31, %s33, %s24
      %p35 = scmp.ge.s32.totalorder %s34, 1
      %s36 = scalar_select %p35, 0, %s34
      %s37 = ssub.s32 %s24, %s36
      %p38 = scmp.eq.s32.totalorder %s37, 0
      %s40 = sadd.s32 %s39, 1
      %s41 = scalar_select %p38, %s39, %s40
      %p44 = pneg %p38
      %p45 = scmp.eq.s32.totalorder %s17, 1
      %p46 = por %p44, %p45
      %p47 = scmp.ne.s32.totalorder %s39, %s42
      %p48 = scmp.eq.s32.totalorder %s17, 0
      %p49 = por %p47, %p48
      %p50 = scmp.ne.s32.totalorder %s39, %s42
      %p51 = scmp.eq.s32.totalorder %s22, 1
      %p52 = por %p50, %p51
      %p53 = scmp.ne.s32.totalorder %s42, %s43
      %p54 = scmp.eq.s32.totalorder %s22, 0
      %p55 = por %p53, %p54
      %p56 = scmp.ne.s32.totalorder %s42, %s43
      %p57 = scmp.eq.s32.totalorder %s23, 1
      %p58 = por %p56, %p57
      %p60 = scmp.ne.s32.totalorder %s43, %s59
      %p61 = scmp.eq.s32.totalorder %s23, 0
      %p62 = por %p60, %p61
      %s63 = ssub.s32 %s25, %s32
      %p64 = scmp.eq.s32.totalorder %s63, 0
      %s66 = sadd.s32 %s65, 1
      %s67 = scalar_select %p64, %s65, %s66
      %p70 = pneg %p64
      %p71 = scmp.eq.s32.totalorder %s17, 1
      %p72 = por %p70, %p71
      %p73 = scmp.ne.s32.totalorder %s65, %s68
      %p74 = scmp.eq.s32.totalorder %s17, 0
      %p75 = por %p73, %p74
      %p76 = scmp.ne.s32.totalorder %s65, %s68
      %p77 = scmp.eq.s32.totalorder %s22, 1
      %p78 = por %p76, %p77
      %p79 = scmp.ne.s32.totalorder %s68, %s69
      %p80 = scmp.eq.s32.totalorder %s22, 0
      %p81 = por %p79, %p80
      %p82 = scmp.ne.s32.totalorder %s68, %s69
      %p83 = scmp.eq.s32.totalorder %s23, 1
      %p84 = por %p82, %p83
      %p86 = scmp.ne.s32.totalorder %s69, %s85
      %p87 = scmp.eq.s32.totalorder %s23, 0
      %p88 = por %p86, %p87
      %s89 = ssub.s32 %s25, %s32
      %p90 = scmp.eq.s32.totalorder %s89, 0
      %s92 = sadd.s32 %s91, 1
      %s93 = scalar_select %p90, %s91, %s92
      %p96 = pneg %p90
      %p97 = scmp.eq.s32.totalorder %s17, 1
      %p98 = por %p96, %p97
      %p99 = scmp.ne.s32.totalorder %s91, %s94
      %p100 = scmp.eq.s32.totalorder %s17, 0
      %p101 = por %p99, %p100
      %p102 = scmp.ne.s32.totalorder %s91, %s94
      %p103 = scmp.eq.s32.totalorder %s22, 1
      %p104 = por %p102, %p103
      %p105 = scmp.ne.s32.totalorder %s94, %s95
      %p106 = scmp.eq.s32.totalorder %s22, 0
      %p107 = por %p105, %p106
      %p108 = scmp.ne.s32.totalorder %s94, %s95
      %p109 = scmp.eq.s32.totalorder %s23, 1
      %p110 = por %p108, %p109
      %p112 = scmp.ne.s32.totalorder %s95, %s111
      %p113 = scmp.eq.s32.totalorder %s23, 0
      %p114 = por %p112, %p113
      %s115 = ssub.s32 %s25, %s32
      %p116 = scmp.eq.s32.totalorder %s115, 0
      %s118 = sadd.s32 %s117, 1
      %s119 = scalar_select %p116, %s117, %s118
      %p122 = pneg %p116
      %p123 = scmp.eq.s32.totalorder %s17, 1
      %p124 = por %p122, %p123
      %p125 = scmp.ne.s32.totalorder %s117, %s120
      %p126 = scmp.eq.s32.totalorder %s17, 0
      %p127 = por %p125, %p126
      %p128 = scmp.ne.s32.totalorder %s117, %s120
      %p129 = scmp.eq.s32.totalorder %s22, 1
      %p130 = por %p128, %p129
      %p131 = scmp.ne.s32.totalorder %s120, %s121
      %p132 = scmp.eq.s32.totalorder %s22, 0
      %p133 = por %p131, %p132
      %p134 = scmp.ne.s32.totalorder %s120, %s121
      %p135 = scmp.eq.s32.totalorder %s23, 1
      %p136 = por %p134, %p135
      %p138 = scmp.ne.s32.totalorder %s121, %s137
      %p139 = scmp.eq.s32.totalorder %s23, 0
      %p140 = por %p138, %p139
      %s141 = ssub.s32 %s25, %s32
      %p142 = scmp.eq.s32.totalorder %s141, 0
      %s144 = sadd.s32 %s143, 1
      %s145 = scalar_select %p142, %s143, %s144
      %p148 = pneg %p142
      %p149 = scmp.eq.s32.totalorder %s17, 1
      %p150 = por %p148, %p149
      %p151 = scmp.ne.s32.totalorder %s143, %s146
      %p152 = scmp.eq.s32.totalorder %s17, 0
      %p153 = por %p151, %p152
      %p154 = scmp.ne.s32.totalorder %s143, %s146
      %p155 = scmp.eq.s32.totalorder %s22, 1
      %p156 = por %p154, %p155
      %p157 = scmp.ne.s32.totalorder %s146, %s147
      %p158 = scmp.eq.s32.totalorder %s22, 0
      %p159 = por %p157, %p158
      %p160 = scmp.ne.s32.totalorder %s146, %s147
      %p161 = scmp.eq.s32.totalorder %s23, 1
      %p162 = por %p160, %p161
      %p164 = scmp.ne.s32.totalorder %s147, %s163
      %p165 = scmp.eq.s32.totalorder %s23, 0
      %p166 = por %p164, %p165
      %s167 = ssub.s32 %s24, %s36
      %p168 = scmp.eq.s32.totalorder %s167, 0
      %s170 = sadd.s32 %s169, 1
      %s171 = scalar_select %p168, %s169, %s170
      %p174 = pneg %p168
      %p175 = scmp.eq.s32.totalorder %s17, 1
      %p176 = por %p174, %p175
      %p177 = scmp.ne.s32.totalorder %s169, %s172
      %p178 = scmp.eq.s32.totalorder %s17, 0
      %p179 = por %p177, %p178
      %p180 = scmp.ne.s32.totalorder %s169, %s172
      %p181 = scmp.eq.s32.totalorder %s22, 1
      %p182 = por %p180, %p181
      %p183 = scmp.ne.s32.totalorder %s172, %s173
      %p184 = scmp.eq.s32.totalorder %s22, 0
      %p185 = por %p183, %p184
      %p186 = scmp.ne.s32.totalorder %s172, %s173
      %p187 = scmp.eq.s32.totalorder %s23, 1
      %p188 = por %p186, %p187
      %p190 = scmp.ne.s32.totalorder %s173, %s189
      %p191 = scmp.eq.s32.totalorder %s23, 0
      %p192 = por %p190, %p191
      %p193 = scmp.le.s32.totalorder 1, %s17
      %p194 = scmp.lt.s32.totalorder %s17, 3
      %p195 = pnand %p193, %p194
      %p196 = pneg %p195
      // Predicated region
      $region9: #{_gpt_logits.2} parent=5 // pred_check
        _
      $region10: #{_gpt_logits.2} parent=5 // pred_check_branch
        %198 = sbr.rel (%p195) target = $region12
      $region11: #{_gpt_logits.2} parent=5 // pred_region
        %s199 = ssub.s32 %s17, 1
        // Predicated region
        $region13: #{_gpt_logits.2} parent=11 // pred_check
          %p200 = pneg %p55
        $region14: #{_gpt_logits.2} parent=11 // pred_check_branch
          %202 = sbr.rel (%p200) target = $region16
        $region15: #{_gpt_logits.2} parent=11 // pred_region
          %s203 = smul.u32 2, %s26
          %p204 = scmp.lt.s32.totalorder %s203, 1
          %s205 = scalar_select %p204, %s203, 1
          %s206 = smul.addr %s205, 3
          %s207 = smul.addr %s206, 8
          %s208 = scalar_lea.vmem %s0, %s207
          %s209 = smul.u32 2, %s26
        $region16: #{_gpt_logits.2} parent=11 // pred_fallthru
          _
      $region12: #{_gpt_logits.2} parent=5 // pred_fallthru
        _
      %p210 = scmp.lt.s32.totalorder %s17, 2
      // Predicated region
      $region17: #{_gpt_logits.2} parent=5 // pred_check
        %p211 = pneg %p210
      $region18: #{_gpt_logits.2} parent=5 // pred_check_branch
        %213 = sbr.rel (%p211) target = $region20
      $region19: #{_gpt_logits.2} parent=5 // pred_region
        // Predicated region
        $region21: #{_gpt_logits.2} parent=19 // pred_check
          %p214 = pneg %p75
        $region22: #{_gpt_logits.2} parent=19 // pred_check_branch
          %216 = sbr.rel (%p214) target = $region24
        $region23: #{_gpt_logits.2} parent=19 // pred_region
          %p217 = scmp.lt.s32.totalorder %s25, 1
          %s218 = scalar_select %p217, %s25, 1
          %s219 = smul.addr %s218, 3
          %s220 = smul.addr %s219, 8
          %s221 = scalar_lea.vmem %s1, %s220
        $region24: #{_gpt_logits.2} parent=19 // pred_fallthru
          _
        // Predicated region
        $region25: #{_gpt_logits.2} parent=19 // pred_check
          %p222 = pneg %p101
        $region26: #{_gpt_logits.2} parent=19 // pred_check_branch
          %224 = sbr.rel (%p222) target = $region28
        $region27: #{_gpt_logits.2} parent=19 // pred_region
          %s225 = sand.u32 %s91, 1
          %s226 = scalar_lea.sflag [#allocation4], %s225
          %s227 = sand.u32 %s91, 1
          %s228 = smul.addr %s227, 12
          %s229 = scalar_lea.vmem [#allocation3], %s228
          %s231 = ssub.s32 192, 192
          %232 = vsyncadd %s226, %s231
          %s233 = smul.addr %s25, 12
          %s234 = smul.addr %s233, 16
          %s235 = scalar_lea.hbm %s2, %s234
          %s237 = sshll.u32 %s229, 4
          %s238 = int_to_ptr.vmem [resolvable:$true] %s237
          %240 = dma.hbm_to_vmem [thread:$0]  %s235, 192, %s238, %s226
        $region28: #{_gpt_logits.2} parent=19 // pred_fallthru
          _
        // Predicated region
        $region29: #{_gpt_logits.2} parent=19 // pred_check
          %p241 = pneg %p127
        $region30: #{_gpt_logits.2} parent=19 // pred_check_branch
          %243 = sbr.rel (%p241) target = $region32
        $region31: #{_gpt_logits.2} parent=19 // pred_region
          %s244 = sand.u32 %s17, 1
          %s245 = scalar_lea.sflag [#allocation6], %s244
          %s246 = sand.u32 %s117, 1
          %s247 = smul.addr %s246, 4608
          %s248 = scalar_lea.vmem [#allocation5], %s247
          %s250 = ssub.s32 73728, 73728
          %251 = vsyncadd %s245, %s250
          %s252 = smul.addr %s25, 1152
          %s253 = smul.addr %s252, 64
          %s254 = scalar_lea.hbm %s3, %s253
          %s255 = sshll.u32 %s248, 4
          %s256 = int_to_ptr.vmem [resolvable:$true] %s255
          %261 = dma.hbm_to_vmem [thread:$0]  %s254, 73728, %s256, %s245, 1536, 1536, 96
        $region32: #{_gpt_logits.2} parent=19 // pred_fallthru
          _
        // Predicated region
        $region33: #{_gpt_logits.2} parent=19 // pred_check
          %p262 = pneg %p153
        $region34: #{_gpt_logits.2} parent=19 // pred_check_branch
          %264 = sbr.rel (%p262) target = $region36
        $region35: #{_gpt_logits.2} parent=19 // pred_region
          %s265 = sand.u32 %s17, 1
          %s266 = scalar_lea.sflag [#allocation6], %s265
          %s267 = sand.u32 %s143, 1
          %s268 = smul.addr %s267, 2304
          %s269 = scalar_lea.vmem [#allocation7], %s268
          %s271 = ssub.s32 36864, 36864
          %272 = vsyncadd %s266, %s271
          %s273 = smul.addr %s25, 576
          %s274 = smul.addr %s273, 64
          %s275 = scalar_lea.hbm %s4, %s274
          %s276 = sshll.u32 %s269, 4
          %s277 = int_to_ptr.vmem [resolvable:$true] %s276
          %282 = dma.hbm_to_vmem [thread:$0]  %s275, 36864, %s277, %s266, 192, 192, 12
        $region36: #{_gpt_logits.2} parent=19 // pred_fallthru
          _
      $region20: #{_gpt_logits.2} parent=5 // pred_fallthru
        _
      %p283 = scmp.le.s32.totalorder 1, %s17
      %p284 = scmp.lt.s32.totalorder %s17, 3
      %p285 = pnand %p283, %p284
      %p286 = pneg %p285
      // Predicated region
      $region37: #{_gpt_logits.2} parent=5 // pred_check
        _
      $region38: #{_gpt_logits.2} parent=5 // pred_check_branch
        %288 = sbr.rel (%p285) target = $region40
      $region39: #{_gpt_logits.2} parent=5 // pred_region
        %s289 = ssub.s32 %s17, 1
        %s290 = sand.u32 %s94, 1
        %s291 = scalar_lea.sflag [#allocation4], %s290
        %s292 = sand.u32 %s94, 1
        %s293 = smul.addr %s292, 12
        %s294 = scalar_lea.vmem [#allocation3], %s293
        // Predicated region
        $region41: #{_gpt_logits.2} parent=39 // pred_check
          %p295 = pneg %p107
        $region42: #{_gpt_logits.2} parent=39 // pred_check_branch
          %297 = sbr.rel (%p295) target = $region44
        $region43: #{_gpt_logits.2} parent=39 // pred_region
          %298 = dma.done %s291, 192
        $region44: #{_gpt_logits.2} parent=39 // pred_fallthru
          _
        %s299 = sand.u32 %s22, 1
        %s300 = scalar_lea.sflag [#allocation6], %s299
        %s301 = sand.u32 %s120, 1
        %s302 = smul.addr %s301, 4608
        %s303 = scalar_lea.vmem [#allocation5], %s302
        // Predicated region
        $region45: #{_gpt_logits.2} parent=39 // pred_check
          %p304 = pneg %p133
        $region46: #{_gpt_logits.2} parent=39 // pred_check_branch
          %306 = sbr.rel (%p304) target = $region48
        $region47: #{_gpt_logits.2} parent=39 // pred_region
          %307 = dma.done %s300, 73728
        $region48: #{_gpt_logits.2} parent=39 // pred_fallthru
          _
        %s308 = sand.u32 %s22, 1
        %s309 = scalar_lea.sflag [#allocation6], %s308
        %s310 = sand.u32 %s146, 1
        %s311 = smul.addr %s310, 2304
        %s312 = scalar_lea.vmem [#allocation7], %s311
        // Predicated region
        $region49: #{_gpt_logits.2} parent=39 // pred_check
          %p313 = pneg %p159
        $region50: #{_gpt_logits.2} parent=39 // pred_check_branch
          %315 = sbr.rel (%p313) target = $region52
        $region51: #{_gpt_logits.2} parent=39 // pred_region
          %316 = dma.done %s309, 36864
        $region52: #{_gpt_logits.2} parent=39 // pred_fallthru
          _
        %s317 = smul.u32 2, %s26
        %p318 = scmp.lt.s32.totalorder %s317, 1
        %s319 = scalar_select %p318, %s317, 1
        %s320 = smul.addr %s319, 3
        %s321 = smul.addr %s320, 8
        %s322 = scalar_lea.vmem %s0, %s321
        %p323 = pneg %p55
        %p324 = pneg %p52
        %p325 = scmp.lt.s32.totalorder %s27, 1
        %s326 = scalar_select %p325, %s27, 1
        %s327 = smul.addr %s326, 3
        %s328 = smul.addr %s327, 8
        %s329 = scalar_lea.vmem %s1, %s328
        %p330 = pneg %p81
        %p331 = pneg %p78
        %s332 = sand.u32 %s94, 1
        %s333 = scalar_lea.sflag [#allocation4], %s332
        %s334 = sand.u32 %s94, 1
        %s335 = smul.addr %s334, 12
        %s336 = scalar_lea.vmem [#allocation3], %s335
        %p337 = pneg %p107
        %p338 = pneg %p104
        %s339 = sand.u32 %s22, 1
        %s340 = scalar_lea.sflag [#allocation6], %s339
        %s341 = sand.u32 %s120, 1
        %s342 = smul.addr %s341, 4608
        %s343 = scalar_lea.vmem [#allocation5], %s342
        %p344 = pneg %p133
        %p345 = pneg %p130
        %s346 = sand.u32 %s22, 1
        %s347 = scalar_lea.sflag [#allocation6], %s346
        %s348 = sand.u32 %s146, 1
        %s349 = smul.addr %s348, 2304
        %s350 = scalar_lea.vmem [#allocation7], %s349
        %p351 = pneg %p159
        %p352 = pneg %p156
        %p353 = pneg %p185
        %p354 = pneg %p182
        %s355 = smul.u32 2, %s26
        %p356 = scmp.lt.s32.totalorder %s355, 1
        %s357 = scalar_select %p356, %s355, 1
        %s358 = smul.addr %s357, 3
        %s359 = smul.addr %s358, 8
        %s360 = scalar_lea.vmem %s5, %s359
        %s361 = smul.u32 2, %s26
        %p362 = scmp.lt.s32.totalorder %s361, 1
        %s363 = scalar_select %p362, %s361, 1
        %s364 = smul.addr %s363, 3
        %s365 = smul.addr %s364, 8
        %s366 = scalar_lea.vmem %s0, %s365
        %s367 = smul.u32 2, %s26
        %p368 = scmp.lt.s32.totalorder %s27, 1
        %s369 = scalar_select %p368, %s27, 1
        %s370 = smul.addr %s369, 3
        %s371 = smul.addr %s370, 8
        %s372 = scalar_lea.vmem %s1, %s371
        %s373 = smul.u32 2, %s26
        %p374 = scmp.lt.s32.totalorder %s373, 1
        %s375 = scalar_select %p374, %s373, 1
        %s376 = smul.addr %s375, 3
        %s377 = smul.addr %s376, 8
        %s378 = scalar_lea.vmem %s5, %s377
        %s379 = smul.u32 2, %s26
        %p381 = scmp.eq.s32.totalorder %s27, 0
        // Predicated region
        $region53: #{_gpt_logits.2} parent=39 // pred_check
          %p382 = pneg %p381
        $region54: #{_gpt_logits.2} parent=39 // pred_check_branch
          %384 = sbr.rel (%p382) target = $region56
        $region55: #{_gpt_logits.2} parent=39 // pred_region
          %v385 = vld [vmem:[%s366] sm:$0xff]
          %v386 = vld [vmem:[%s366 + $0x8] sm:$0xff]
          %v387 = vld [vmem:[%s366 + $0x10] sm:$0xff]
          %v388 = vld [vmem:[%s366 + $0x18] sm:$0xff]
          %v389 = vld [vmem:[%s366 + $0x20] sm:$0xff]
          %v390 = vld [vmem:[%s366 + $0x28] sm:$0xff]
          %391 = vst [vmem:[#allocation2] sm:$0xff] %v385
          %392 = vst [vmem:[#allocation2 + $0x8] sm:$0xff] %v386
          %393 = vst [vmem:[#allocation2 + $0x10] sm:$0xff] %v387
          %394 = vst [vmem:[#allocation2 + $0x18] sm:$0xff] %v388
          %395 = vst [vmem:[#allocation2 + $0x20] sm:$0xff] %v389
          %396 = vst [vmem:[#allocation2 + $0x28] sm:$0xff] %v390
        $region56: #{_gpt_logits.2} parent=39 // pred_fallthru
          _
        %v397 = vld [vmem:[#allocation2] sm:$0xff]
        %v398 = vld [vmem:[#allocation2 + $0x8] sm:$0xff]
        %v399 = vld [vmem:[#allocation2 + $0x10] sm:$0xff]
        %v400 = vld [vmem:[#allocation2 + $0x18] sm:$0xff]
        %v401 = vld [vmem:[#allocation2 + $0x20] sm:$0xff]
        %v402 = vld [vmem:[#allocation2 + $0x28] sm:$0xff]
        %v403 = vld [vmem:[%s372] sm:$0x3f]
        %v404 = vld [vmem:[%s372 + $0x8] sm:$0x3f]
        %v405 = vld [vmem:[%s372 + $0x10] sm:$0x3f]
        %v406 = vld [vmem:[%s294] sm:$0xff]
        %v407 = vld [vmem:[%s294 + $0x8] sm:$0xf]
        %v408 = vadd.f32 %v397, %v398
        %v409 = vadd.f32 %v408, %v399
        %410 = vadd.xlane.f32.xlu0 %v409
        %v411 = vpop.xlane.xlu0 %410
        %v412 = vadd.f32 %v400, %v401
        %v413 = vadd.f32 %v412, %v402
        %414 = vadd.xlane.f32.xlu0 %v413
        %v415 = vpop.xlane.xlu0 %414
        %v416 = vrcp.pop 384.0
        %v417 = vmul.f32 %v411, %v416
        %v418 = vmul.f32 %v415, %v416
        %v419 = vsub.f32 %v397, %v417
        %v420 = vsub.f32 %v398, %v417
        %v421 = vsub.f32 %v399, %v417
        %v422 = vsub.f32 %v400, %v418
        %v423 = vsub.f32 %v401, %v418
        %v424 = vsub.f32 %v402, %v418
        %v425 = vmul.f32 %v419, %v419
        %v426 = vmul.f32 %v420, %v420
        %v427 = vmul.f32 %v421, %v421
        %v428 = vmul.f32 %v422, %v422
        %v429 = vmul.f32 %v423, %v423
        %v430 = vmul.f32 %v424, %v424
        %v431 = vadd.f32 %v425, %v426
        %v432 = vadd.f32 %v431, %v427
        %433 = vadd.xlane.f32.xlu0 %v432
        %v434 = vpop.xlane.xlu0 %433
        %v435 = vadd.f32 %v428, %v429
        %v436 = vadd.f32 %v435, %v430
        %437 = vadd.xlane.f32.xlu0 %v436
        %v438 = vpop.xlane.xlu0 %437
        %v439 = vmul.f32 %v434, %v416
        %v440 = vmul.f32 %v438, %v416
        %v441 = vadd.f32 %v439, 1e-05
        %v442 = vadd.f32 %v440, 1e-05
        %v443 = vrsqrt.pop %v441
        %v444 = vrsqrt.pop %v442
        %v445 = vmul.f32 %v419, %v443
        %v446 = vmul.f32 %v420, %v443
        %v447 = vmul.f32 %v421, %v443
        %v448 = vmul.f32 %v422, %v444
        %v449 = vmul.f32 %v423, %v444
        %v450 = vmul.f32 %v424, %v444
        %v451 = vlaneseq
        %v452 = vshrl.u32 %v451, 7
        %v453 = vsub.s32 0, %v452
        %v454 = vrot.slane %v403, %v453
        %v455 = vlaneseq
        %v456 = vshrl.u32 %v455, 7
        %v457 = vsub.s32 0, %v456
        %v458 = vrot.slane %v404, %v457
        %v459 = vlaneseq
        %v460 = vshrl.u32 %v459, 7
        %v461 = vsub.s32 0, %v460
        %v462 = vrot.slane %v405, %v461
        %v463 = vmul.f32 %v445, %v454
        %v464 = vmul.f32 %v446, %v458
        %v465 = vmul.f32 %v447, %v462
        %v466 = vmul.f32 %v448, %v454
        %v467 = vmul.f32 %v449, %v458
        %v468 = vmul.f32 %v450, %v462
        %v469 = vlaneseq
        %v470 = vshrl.u32 %v469, 7
        %v471 = vsub.s32 1, %v470
        %v472 = vrot.slane %v403, %v471
        %v473 = vlaneseq
        %v474 = vshrl.u32 %v473, 7
        %v475 = vsub.s32 1, %v474
        %v476 = vrot.slane %v404, %v475
        %v477 = vlaneseq
        %v478 = vshrl.u32 %v477, 7
        %v479 = vsub.s32 1, %v478
        %v480 = vrot.slane %v405, %v479
        %v481 = vadd.f32 %v463, %v472
        %v482 = vadd.f32 %v464, %v476
        %v483 = vadd.f32 %v465, %v480
        %v484 = vadd.f32 %v466, %v472
        %v485 = vadd.f32 %v467, %v476
        %v486 = vadd.f32 %v468, %v480
        %v487 = vpack.c.bf16 %v484, %v481
        %v488 = vpack.c.bf16 %v485, %v482
        %v489 = vpack.c.bf16 %v486, %v483
        %v490 = vld [vmem:[%s303] sm:$0xff]
        %v491 = vld [vmem:[%s303 + $0x8] sm:$0xff]
        %v492 = vld [vmem:[%s303 + $0x10] sm:$0xff]
        %v493 = vld [vmem:[%s303 + $0x18] sm:$0xff]
        %v494 = vld [vmem:[%s303 + $0x20] sm:$0xf]
        %v495 = vld [vmem:[%s303 + $0x60] sm:$0xff]
        %v496 = vld [vmem:[%s303 + $0x68] sm:$0xff]
        %v497 = vld [vmem:[%s303 + $0x70] sm:$0xff]
        %v498 = vld [vmem:[%s303 + $0x78] sm:$0xff]
        %v499 = vld [vmem:[%s303 + $0x80] sm:$0xf]
        %v500 = vld [vmem:[%s303 + $0xc0] sm:$0xff]
        %v501 = vld [vmem:[%s303 + $0xc8] sm:$0xff]
        %v502 = vld [vmem:[%s303 + $0xd0] sm:$0xff]
        %v503 = vld [vmem:[%s303 + $0xd8] sm:$0xff]
        %v504 = vld [vmem:[%s303 + $0xe0] sm:$0xf]
        %v505 = vld [vmem:[%s303 + $0x120] sm:$0xff]
        %v506 = vld [vmem:[%s303 + $0x128] sm:$0xff]
        %v507 = vld [vmem:[%s303 + $0x130] sm:$0xff]
        %v508 = vld [vmem:[%s303 + $0x138] sm:$0xff]
        %v509 = vld [vmem:[%s303 + $0x140] sm:$0xf]
        %v510 = vld [vmem:[%s303 + $0x180] sm:$0xff]
        %v511 = vld [vmem:[%s303 + $0x188] sm:$0xff]
        %v512 = vld [vmem:[%s303 + $0x190] sm:$0xff]
        %v513 = vld [vmem:[%s303 + $0x198] sm:$0xff]
        %v514 = vld [vmem:[%s303 + $0x1a0] sm:$0xf]
        %v515 = vld [vmem:[%s303 + $0x1e0] sm:$0xff]
        %v516 = vld [vmem:[%s303 + $0x1e8] sm:$0xff]
        %v517 = vld [vmem:[%s303 + $0x1f0] sm:$0xff]
        %v518 = vld [vmem:[%s303 + $0x1f8] sm:$0xff]
        %v519 = vld [vmem:[%s303 + $0x200] sm:$0xf]
        %v520 = vld [vmem:[%s303 + $0x240] sm:$0xff]
        %v521 = vld [vmem:[%s303 + $0x248] sm:$0xff]
        %v522 = vld [vmem:[%s303 + $0x250] sm:$0xff]
        %v523 = vld [vmem:[%s303 + $0x258] sm:$0xff]
        %v524 = vld [vmem:[%s303 + $0x260] sm:$0xf]
        %v525 = vld [vmem:[%s303 + $0x2a0] sm:$0xff]
        %v526 = vld [vmem:[%s303 + $0x2a8] sm:$0xff]
        %v527 = vld [vmem:[%s303 + $0x2b0] sm:$0xff]
        %v528 = vld [vmem:[%s303 + $0x2b8] sm:$0xff]
        %v529 = vld [vmem:[%s303 + $0x2c0] sm:$0xf]
        %v530 = vld [vmem:[%s303 + $0x300] sm:$0xff]
        %v531 = vld [vmem:[%s303 + $0x308] sm:$0xff]
        %v532 = vld [vmem:[%s303 + $0x310] sm:$0xff]
        %v533 = vld [vmem:[%s303 + $0x318] sm:$0xff]
        %v534 = vld [vmem:[%s303 + $0x320] sm:$0xf]
        %v535 = vld [vmem:[%s303 + $0x360] sm:$0xff]
        %v536 = vld [vmem:[%s303 + $0x368] sm:$0xff]
        %v537 = vld [vmem:[%s303 + $0x370] sm:$0xff]
        %v538 = vld [vmem:[%s303 + $0x378] sm:$0xff]
        %v539 = vld [vmem:[%s303 + $0x380] sm:$0xf]
        %v540 = vld [vmem:[%s303 + $0x3c0] sm:$0xff]
        %v541 = vld [vmem:[%s303 + $0x3c8] sm:$0xff]
        %v542 = vld [vmem:[%s303 + $0x3d0] sm:$0xff]
        %v543 = vld [vmem:[%s303 + $0x3d8] sm:$0xff]
        %v544 = vld [vmem:[%s303 + $0x3e0] sm:$0xf]
        %v545 = vld [vmem:[%s303 + $0x420] sm:$0xff]
        %v546 = vld [vmem:[%s303 + $0x428] sm:$0xff]
        %v547 = vld [vmem:[%s303 + $0x430] sm:$0xff]
        %v548 = vld [vmem:[%s303 + $0x438] sm:$0xff]
        %v549 = vld [vmem:[%s303 + $0x440] sm:$0xf]
        %v550 = vld [vmem:[%s303 + $0x480] sm:$0xff]
        %v551 = vld [vmem:[%s303 + $0x488] sm:$0xff]
        %v552 = vld [vmem:[%s303 + $0x490] sm:$0xff]
        %v553 = vld [vmem:[%s303 + $0x498] sm:$0xff]
        %v554 = vld [vmem:[%s303 + $0x4a0] sm:$0xf]
        %v555 = vld [vmem:[%s303 + $0x4e0] sm:$0xff]
        %v556 = vld [vmem:[%s303 + $0x4e8] sm:$0xff]
        %v557 = vld [vmem:[%s303 + $0x4f0] sm:$0xff]
        %v558 = vld [vmem:[%s303 + $0x4f8] sm:$0xff]
        %v559 = vld [vmem:[%s303 + $0x500] sm:$0xf]
        %v560 = vld [vmem:[%s303 + $0x540] sm:$0xff]
        %v561 = vld [vmem:[%s303 + $0x548] sm:$0xff]
        %v562 = vld [vmem:[%s303 + $0x550] sm:$0xff]
        %v563 = vld [vmem:[%s303 + $0x558] sm:$0xff]
        %v564 = vld [vmem:[%s303 + $0x560] sm:$0xf]
        %v565 = vld [vmem:[%s303 + $0x5a0] sm:$0xff]
        %v566 = vld [vmem:[%s303 + $0x5a8] sm:$0xff]
        %v567 = vld [vmem:[%s303 + $0x5b0] sm:$0xff]
        %v568 = vld [vmem:[%s303 + $0x5b8] sm:$0xff]
        %v569 = vld [vmem:[%s303 + $0x5c0] sm:$0xf]
        %v570 = vld [vmem:[%s303 + $0x600] sm:$0xff]
        %v571 = vld [vmem:[%s303 + $0x608] sm:$0xff]
        %v572 = vld [vmem:[%s303 + $0x610] sm:$0xff]
        %v573 = vld [vmem:[%s303 + $0x618] sm:$0xff]
        %v574 = vld [vmem:[%s303 + $0x620] sm:$0xf]
        %v575 = vld [vmem:[%s303 + $0x660] sm:$0xff]
        %v576 = vld [vmem:[%s303 + $0x668] sm:$0xff]
        %v577 = vld [vmem:[%s303 + $0x670] sm:$0xff]
        %v578 = vld [vmem:[%s303 + $0x678] sm:$0xff]
        %v579 = vld [vmem:[%s303 + $0x680] sm:$0xf]
        %v580 = vld [vmem:[%s303 + $0x6c0] sm:$0xff]
        %v581 = vld [vmem:[%s303 + $0x6c8] sm:$0xff]
        %v582 = vld [vmem:[%s303 + $0x6d0] sm:$0xff]
        %v583 = vld [vmem:[%s303 + $0x6d8] sm:$0xff]
        %v584 = vld [vmem:[%s303 + $0x6e0] sm:$0xf]
        %v585 = vld [vmem:[%s303 + $0x720] sm:$0xff]
        %v586 = vld [vmem:[%s303 + $0x728] sm:$0xff]
        %v587 = vld [vmem:[%s303 + $0x730] sm:$0xff]
        %v588 = vld [vmem:[%s303 + $0x738] sm:$0xff]
        %v589 = vld [vmem:[%s303 + $0x740] sm:$0xf]
        %v590 = vld [vmem:[%s303 + $0x780] sm:$0xff]
        %v591 = vld [vmem:[%s303 + $0x788] sm:$0xff]
        %v592 = vld [vmem:[%s303 + $0x790] sm:$0xff]
        %v593 = vld [vmem:[%s303 + $0x798] sm:$0xff]
        %v594 = vld [vmem:[%s303 + $0x7a0] sm:$0xf]
        %v595 = vld [vmem:[%s303 + $0x7e0] sm:$0xff]
        %v596 = vld [vmem:[%s303 + $0x7e8] sm:$0xff]
        %v597 = vld [vmem:[%s303 + $0x7f0] sm:$0xff]
        %v598 = vld [vmem:[%s303 + $0x7f8] sm:$0xff]
        %v599 = vld [vmem:[%s303 + $0x800] sm:$0xf]
        %v600 = vld [vmem:[%s303 + $0x840] sm:$0xff]
        %v601 = vld [vmem:[%s303 + $0x848] sm:$0xff]
        %v602 = vld [vmem:[%s303 + $0x850] sm:$0xff]
        %v603 = vld [vmem:[%s303 + $0x858] sm:$0xff]
        %v604 = vld [vmem:[%s303 + $0x860] sm:$0xf]
        %v605 = vld [vmem:[%s303 + $0x8a0] sm:$0xff]
        %v606 = vld [vmem:[%s303 + $0x8a8] sm:$0xff]
        %v607 = vld [vmem:[%s303 + $0x8b0] sm:$0xff]
        %v608 = vld [vmem:[%s303 + $0x8b8] sm:$0xff]
        %v609 = vld [vmem:[%s303 + $0x8c0] sm:$0xf]
        %v610 = vld [vmem:[%s303 + $0x900] sm:$0xff]
        %v611 = vld [vmem:[%s303 + $0x908] sm:$0xff]
        %v612 = vld [vmem:[%s303 + $0x910] sm:$0xff]
        %v613 = vld [vmem:[%s303 + $0x918] sm:$0xff]
        %v614 = vld [vmem:[%s303 + $0x920] sm:$0xf]
        %v615 = vld [vmem:[%s303 + $0x960] sm:$0xff]
        %v616 = vld [vmem:[%s303 + $0x968] sm:$0xff]
        %v617 = vld [vmem:[%s303 + $0x970] sm:$0xff]
        %v618 = vld [vmem:[%s303 + $0x978] sm:$0xff]
        %v619 = vld [vmem:[%s303 + $0x980] sm:$0xf]
        %v620 = vld [vmem:[%s303 + $0x9c0] sm:$0xff]
        %v621 = vld [vmem:[%s303 + $0x9c8] sm:$0xff]
        %v622 = vld [vmem:[%s303 + $0x9d0] sm:$0xff]
        %v623 = vld [vmem:[%s303 + $0x9d8] sm:$0xff]
        %v624 = vld [vmem:[%s303 + $0x9e0] sm:$0xf]
        %v625 = vld [vmem:[%s303 + $0xa20] sm:$0xff]
        %v626 = vld [vmem:[%s303 + $0xa28] sm:$0xff]
        %v627 = vld [vmem:[%s303 + $0xa30] sm:$0xff]
        %v628 = vld [vmem:[%s303 + $0xa38] sm:$0xff]
        %v629 = vld [vmem:[%s303 + $0xa40] sm:$0xf]
        %v630 = vld [vmem:[%s303 + $0xa80] sm:$0xff]
        %v631 = vld [vmem:[%s303 + $0xa88] sm:$0xff]
        %v632 = vld [vmem:[%s303 + $0xa90] sm:$0xff]
        %v633 = vld [vmem:[%s303 + $0xa98] sm:$0xff]
        %v634 = vld [vmem:[%s303 + $0xaa0] sm:$0xf]
        %v635 = vld [vmem:[%s303 + $0xae0] sm:$0xff]
        %v636 = vld [vmem:[%s303 + $0xae8] sm:$0xff]
        %v637 = vld [vmem:[%s303 + $0xaf0] sm:$0xff]
        %v638 = vld [vmem:[%s303 + $0xaf8] sm:$0xff]
        %v639 = vld [vmem:[%s303 + $0xb00] sm:$0xf]
        %v640 = vld [vmem:[%s303 + $0xb40] sm:$0xff]
        %v641 = vld [vmem:[%s303 + $0xb48] sm:$0xff]
        %v642 = vld [vmem:[%s303 + $0xb50] sm:$0xff]
        %v643 = vld [vmem:[%s303 + $0xb58] sm:$0xff]
        %v644 = vld [vmem:[%s303 + $0xb60] sm:$0xf]
        %v645 = vld [vmem:[%s303 + $0xba0] sm:$0xff]
        %v646 = vld [vmem:[%s303 + $0xba8] sm:$0xff]
        %v647 = vld [vmem:[%s303 + $0xbb0] sm:$0xff]
        %v648 = vld [vmem:[%s303 + $0xbb8] sm:$0xff]
        %v649 = vld [vmem:[%s303 + $0xbc0] sm:$0xf]
        %v650 = vld [vmem:[%s303 + $0xc00] sm:$0xff]
        %v651 = vld [vmem:[%s303 + $0xc08] sm:$0xff]
        %v652 = vld [vmem:[%s303 + $0xc10] sm:$0xff]
        %v653 = vld [vmem:[%s303 + $0xc18] sm:$0xff]
        %v654 = vld [vmem:[%s303 + $0xc20] sm:$0xf]
        %v655 = vld [vmem:[%s303 + $0xc60] sm:$0xff]
        %v656 = vld [vmem:[%s303 + $0xc68] sm:$0xff]
        %v657 = vld [vmem:[%s303 + $0xc70] sm:$0xff]
        %v658 = vld [vmem:[%s303 + $0xc78] sm:$0xff]
        %v659 = vld [vmem:[%s303 + $0xc80] sm:$0xf]
        %v660 = vld [vmem:[%s303 + $0xcc0] sm:$0xff]
        %v661 = vld [vmem:[%s303 + $0xcc8] sm:$0xff]
        %v662 = vld [vmem:[%s303 + $0xcd0] sm:$0xff]
        %v663 = vld [vmem:[%s303 + $0xcd8] sm:$0xff]
        %v664 = vld [vmem:[%s303 + $0xce0] sm:$0xf]
        %v665 = vld [vmem:[%s303 + $0xd20] sm:$0xff]
        %v666 = vld [vmem:[%s303 + $0xd28] sm:$0xff]
        %v667 = vld [vmem:[%s303 + $0xd30] sm:$0xff]
        %v668 = vld [vmem:[%s303 + $0xd38] sm:$0xff]
        %v669 = vld [vmem:[%s303 + $0xd40] sm:$0xf]
        %v670 = vld [vmem:[%s303 + $0xd80] sm:$0xff]
        %v671 = vld [vmem:[%s303 + $0xd88] sm:$0xff]
        %v672 = vld [vmem:[%s303 + $0xd90] sm:$0xff]
        %v673 = vld [vmem:[%s303 + $0xd98] sm:$0xff]
        %v674 = vld [vmem:[%s303 + $0xda0] sm:$0xf]
        %v675 = vld [vmem:[%s303 + $0xde0] sm:$0xff]
        %v676 = vld [vmem:[%s303 + $0xde8] sm:$0xff]
        %v677 = vld [vmem:[%s303 + $0xdf0] sm:$0xff]
        %v678 = vld [vmem:[%s303 + $0xdf8] sm:$0xff]
        %v679 = vld [vmem:[%s303 + $0xe00] sm:$0xf]
        %v680 = vld [vmem:[%s303 + $0xe40] sm:$0xff]
        %v681 = vld [vmem:[%s303 + $0xe48] sm:$0xff]
        %v682 = vld [vmem:[%s303 + $0xe50] sm:$0xff]
        %v683 = vld [vmem:[%s303 + $0xe58] sm:$0xff]
        %v684 = vld [vmem:[%s303 + $0xe60] sm:$0xf]
        %v685 = vld [vmem:[%s303 + $0xea0] sm:$0xff]
        %v686 = vld [vmem:[%s303 + $0xea8] sm:$0xff]
        %v687 = vld [vmem:[%s303 + $0xeb0] sm:$0xff]
        %v688 = vld [vmem:[%s303 + $0xeb8] sm:$0xff]
        %v689 = vld [vmem:[%s303 + $0xec0] sm:$0xf]
        %v690 = vld [vmem:[%s303 + $0xf00] sm:$0xff]
        %v691 = vld [vmem:[%s303 + $0xf08] sm:$0xff]
        %v692 = vld [vmem:[%s303 + $0xf10] sm:$0xff]
        %v693 = vld [vmem:[%s303 + $0xf18] sm:$0xff]
        %v694 = vld [vmem:[%s303 + $0xf20] sm:$0xf]
        %v695 = vld [vmem:[%s303 + $0xf60] sm:$0xff]
        %v696 = vld [vmem:[%s303 + $0xf68] sm:$0xff]
        %v697 = vld [vmem:[%s303 + $0xf70] sm:$0xff]
        %v698 = vld [vmem:[%s303 + $0xf78] sm:$0xff]
        %v699 = vld [vmem:[%s303 + $0xf80] sm:$0xf]
        %v700 = vld [vmem:[%s303 + $0xfc0] sm:$0xff]
        %v701 = vld [vmem:[%s303 + $0xfc8] sm:$0xff]
        %v702 = vld [vmem:[%s303 + $0xfd0] sm:$0xff]
        %v703 = vld [vmem:[%s303 + $0xfd8] sm:$0xff]
        %v704 = vld [vmem:[%s303 + $0xfe0] sm:$0xf]
        %v705 = vld [vmem:[%s303 + $0x1020] sm:$0xff]
        %v706 = vld [vmem:[%s303 + $0x1028] sm:$0xff]
        %v707 = vld [vmem:[%s303 + $0x1030] sm:$0xff]
        %v708 = vld [vmem:[%s303 + $0x1038] sm:$0xff]
        %v709 = vld [vmem:[%s303 + $0x1040] sm:$0xf]
        %v710 = vld [vmem:[%s303 + $0x1080] sm:$0xff]
        %v711 = vld [vmem:[%s303 + $0x1088] sm:$0xff]
        %v712 = vld [vmem:[%s303 + $0x1090] sm:$0xff]
        %v713 = vld [vmem:[%s303 + $0x1098] sm:$0xff]
        %v714 = vld [vmem:[%s303 + $0x10a0] sm:$0xf]
        %v715 = vld [vmem:[%s303 + $0x10e0] sm:$0xff]
        %v716 = vld [vmem:[%s303 + $0x10e8] sm:$0xff]
        %v717 = vld [vmem:[%s303 + $0x10f0] sm:$0xff]
        %v718 = vld [vmem:[%s303 + $0x10f8] sm:$0xff]
        %v719 = vld [vmem:[%s303 + $0x1100] sm:$0xf]
        %v720 = vld [vmem:[%s303 + $0x1140] sm:$0xff]
        %v721 = vld [vmem:[%s303 + $0x1148] sm:$0xff]
        %v722 = vld [vmem:[%s303 + $0x1150] sm:$0xff]
        %v723 = vld [vmem:[%s303 + $0x1158] sm:$0xff]
        %v724 = vld [vmem:[%s303 + $0x1160] sm:$0xf]
        %v725 = vld [vmem:[%s303 + $0x11a0] sm:$0xff]
        %v726 = vld [vmem:[%s303 + $0x11a8] sm:$0xff]
        %v727 = vld [vmem:[%s303 + $0x11b0] sm:$0xff]
        %v728 = vld [vmem:[%s303 + $0x11b8] sm:$0xff]
        %v729 = vld [vmem:[%s303 + $0x11c0] sm:$0xf]
        %v970 = vunpack.c.l.b16 %v490
        %v971 = vunpack.c.h.b16 %v490
        %v972 = vunpack.c.l.b16 %v491
        %v973 = vunpack.c.h.b16 %v491
        %v974 = vunpack.c.l.b16 %v492
        %v975 = vunpack.c.h.b16 %v492
        %v976 = vunpack.c.l.b16 %v493
        %v977 = vunpack.c.h.b16 %v493
        %v978 = vunpack.c.l.b16 %v494
        %v979 = vunpack.c.l.b16 %v495
        %v980 = vunpack.c.h.b16 %v495
        %v981 = vunpack.c.l.b16 %v496
        %v982 = vunpack.c.h.b16 %v496
        %v983 = vunpack.c.l.b16 %v497
        %v984 = vunpack.c.h.b16 %v497
        %v985 = vunpack.c.l.b16 %v498
        %v986 = vunpack.c.h.b16 %v498
        %v987 = vunpack.c.l.b16 %v499
        %v988 = vunpack.c.l.b16 %v500
        %v989 = vunpack.c.h.b16 %v500
        %v990 = vunpack.c.l.b16 %v501
        %v991 = vunpack.c.h.b16 %v501
        %v992 = vunpack.c.l.b16 %v502
        %v993 = vunpack.c.h.b16 %v502
        %v994 = vunpack.c.l.b16 %v503
        %v995 = vunpack.c.h.b16 %v503
        %v996 = vunpack.c.l.b16 %v504
        %v997 = vunpack.c.l.b16 %v505
        %v998 = vunpack.c.h.b16 %v505
        %v999 = vunpack.c.l.b16 %v506
        %v1000 = vunpack.c.h.b16 %v506
        %v1001 = vunpack.c.l.b16 %v507
        %v1002 = vunpack.c.h.b16 %v507
        %v1003 = vunpack.c.l.b16 %v508
        %v1004 = vunpack.c.h.b16 %v508
        %v1005 = vunpack.c.l.b16 %v509
        %v1006 = vunpack.c.l.b16 %v510
        %v1007 = vunpack.c.h.b16 %v510
        %v1008 = vunpack.c.l.b16 %v511
        %v1009 = vunpack.c.h.b16 %v511
        %v1010 = vunpack.c.l.b16 %v512
        %v1011 = vunpack.c.h.b16 %v512
        %v1012 = vunpack.c.l.b16 %v513
        %v1013 = vunpack.c.h.b16 %v513
        %v1014 = vunpack.c.l.b16 %v514
        %v1015 = vunpack.c.l.b16 %v515
        %v1016 = vunpack.c.h.b16 %v515
        %v1017 = vunpack.c.l.b16 %v516
        %v1018 = vunpack.c.h.b16 %v516
        %v1019 = vunpack.c.l.b16 %v517
        %v1020 = vunpack.c.h.b16 %v517
        %v1021 = vunpack.c.l.b16 %v518
        %v1022 = vunpack.c.h.b16 %v518
        %v1023 = vunpack.c.l.b16 %v519
        %v1024 = vunpack.c.l.b16 %v520
        %v1025 = vunpack.c.h.b16 %v520
        %v1026 = vunpack.c.l.b16 %v521
        %v1027 = vunpack.c.h.b16 %v521
        %v1028 = vunpack.c.l.b16 %v522
        %v1029 = vunpack.c.h.b16 %v522
        %v1030 = vunpack.c.l.b16 %v523
        %v1031 = vunpack.c.h.b16 %v523
        %v1032 = vunpack.c.l.b16 %v524
        %v1033 = vunpack.c.l.b16 %v525
        %v1034 = vunpack.c.h.b16 %v525
        %v1035 = vunpack.c.l.b16 %v526
        %v1036 = vunpack.c.h.b16 %v526
        %v1037 = vunpack.c.l.b16 %v527
        %v1038 = vunpack.c.h.b16 %v527
        %v1039 = vunpack.c.l.b16 %v528
        %v1040 = vunpack.c.h.b16 %v528
        %v1041 = vunpack.c.l.b16 %v529
        %v1042 = vunpack.c.l.b16 %v530
        %v1043 = vunpack.c.h.b16 %v530
        %v1044 = vunpack.c.l.b16 %v531
        %v1045 = vunpack.c.h.b16 %v531
        %v1046 = vunpack.c.l.b16 %v532
        %v1047 = vunpack.c.h.b16 %v532
        %v1048 = vunpack.c.l.b16 %v533
        %v1049 = vunpack.c.h.b16 %v533
        %v1050 = vunpack.c.l.b16 %v534
        %v1051 = vunpack.c.l.b16 %v535
        %v1052 = vunpack.c.h.b16 %v535
        %v1053 = vunpack.c.l.b16 %v536
        %v1054 = vunpack.c.h.b16 %v536
        %v1055 = vunpack.c.l.b16 %v537
        %v1056 = vunpack.c.h.b16 %v537
        %v1057 = vunpack.c.l.b16 %v538
        %v1058 = vunpack.c.h.b16 %v538
        %v1059 = vunpack.c.l.b16 %v539
        %v1060 = vunpack.c.l.b16 %v540
        %v1061 = vunpack.c.h.b16 %v540
        %v1062 = vunpack.c.l.b16 %v541
        %v1063 = vunpack.c.h.b16 %v541
        %v1064 = vunpack.c.l.b16 %v542
        %v1065 = vunpack.c.h.b16 %v542
        %v1066 = vunpack.c.l.b16 %v543
        %v1067 = vunpack.c.h.b16 %v543
        %v1068 = vunpack.c.l.b16 %v544
        %v1069 = vunpack.c.l.b16 %v545
        %v1070 = vunpack.c.h.b16 %v545
        %v1071 = vunpack.c.l.b16 %v546
        %v1072 = vunpack.c.h.b16 %v546
        %v1073 = vunpack.c.l.b16 %v547
        %v1074 = vunpack.c.h.b16 %v547
        %v1075 = vunpack.c.l.b16 %v548
        %v1076 = vunpack.c.h.b16 %v548
        %v1077 = vunpack.c.l.b16 %v549
        %v1078 = vunpack.c.l.b16 %v550
        %v1079 = vunpack.c.h.b16 %v550
        %v1080 = vunpack.c.l.b16 %v551
        %v1081 = vunpack.c.h.b16 %v551
        %v1082 = vunpack.c.l.b16 %v552
        %v1083 = vunpack.c.h.b16 %v552
        %v1084 = vunpack.c.l.b16 %v553
        %v1085 = vunpack.c.h.b16 %v553
        %v1086 = vunpack.c.l.b16 %v554
        %v1087 = vunpack.c.l.b16 %v555
        %v1088 = vunpack.c.h.b16 %v555
        %v1089 = vunpack.c.l.b16 %v556
        %v1090 = vunpack.c.h.b16 %v556
        %v1091 = vunpack.c.l.b16 %v557
        %v1092 = vunpack.c.h.b16 %v557
        %v1093 = vunpack.c.l.b16 %v558
        %v1094 = vunpack.c.h.b16 %v558
        %v1095 = vunpack.c.l.b16 %v559
        %v1096 = vunpack.c.l.b16 %v560
        %v1097 = vunpack.c.h.b16 %v560
        %v1098 = vunpack.c.l.b16 %v561
        %v1099 = vunpack.c.h.b16 %v561
        %v1100 = vunpack.c.l.b16 %v562
        %v1101 = vunpack.c.h.b16 %v562
        %v1102 = vunpack.c.l.b16 %v563
        %v1103 = vunpack.c.h.b16 %v563
        %v1104 = vunpack.c.l.b16 %v564
        %v1105 = vunpack.c.l.b16 %v565
        %v1106 = vunpack.c.h.b16 %v565
        %v1107 = vunpack.c.l.b16 %v566
        %v1108 = vunpack.c.h.b16 %v566
        %v1109 = vunpack.c.l.b16 %v567
        %v1110 = vunpack.c.h.b16 %v567
        %v1111 = vunpack.c.l.b16 %v568
        %v1112 = vunpack.c.h.b16 %v568
        %v1113 = vunpack.c.l.b16 %v569
        %v1114 = vunpack.c.l.b16 %v570
        %v1115 = vunpack.c.h.b16 %v570
        %v1116 = vunpack.c.l.b16 %v571
        %v1117 = vunpack.c.h.b16 %v571
        %v1118 = vunpack.c.l.b16 %v572
        %v1119 = vunpack.c.h.b16 %v572
        %v1120 = vunpack.c.l.b16 %v573
        %v1121 = vunpack.c.h.b16 %v573
        %v1122 = vunpack.c.l.b16 %v574
        %v1123 = vunpack.c.l.b16 %v575
        %v1124 = vunpack.c.h.b16 %v575
        %v1125 = vunpack.c.l.b16 %v576
        %v1126 = vunpack.c.h.b16 %v576
        %v1127 = vunpack.c.l.b16 %v577
        %v1128 = vunpack.c.h.b16 %v577
        %v1129 = vunpack.c.l.b16 %v578
        %v1130 = vunpack.c.h.b16 %v578
        %v1131 = vunpack.c.l.b16 %v579
        %v1132 = vunpack.c.l.b16 %v580
        %v1133 = vunpack.c.h.b16 %v580
        %v1134 = vunpack.c.l.b16 %v581
        %v1135 = vunpack.c.h.b16 %v581
        %v1136 = vunpack.c.l.b16 %v582
        %v1137 = vunpack.c.h.b16 %v582
        %v1138 = vunpack.c.l.b16 %v583
        %v1139 = vunpack.c.h.b16 %v583
        %v1140 = vunpack.c.l.b16 %v584
        %v1141 = vunpack.c.l.b16 %v585
        %v1142 = vunpack.c.h.b16 %v585
        %v1143 = vunpack.c.l.b16 %v586
        %v1144 = vunpack.c.h.b16 %v586
        %v1145 = vunpack.c.l.b16 %v587
        %v1146 = vunpack.c.h.b16 %v587
        %v1147 = vunpack.c.l.b16 %v588
        %v1148 = vunpack.c.h.b16 %v588
        %v1149 = vunpack.c.l.b16 %v589
        %v1150 = vunpack.c.l.b16 %v590
        %v1151 = vunpack.c.h.b16 %v590
        %v1152 = vunpack.c.l.b16 %v591
        %v1153 = vunpack.c.h.b16 %v591
        %v1154 = vunpack.c.l.b16 %v592
        %v1155 = vunpack.c.h.b16 %v592
        %v1156 = vunpack.c.l.b16 %v593
        %v1157 = vunpack.c.h.b16 %v593
        %v1158 = vunpack.c.l.b16 %v594
        %v1159 = vunpack.c.l.b16 %v595
        %v1160 = vunpack.c.h.b16 %v595
        %v1161 = vunpack.c.l.b16 %v596
        %v1162 = vunpack.c.h.b16 %v596
        %v1163 = vunpack.c.l.b16 %v597
        %v1164 = vunpack.c.h.b16 %v597
        %v1165 = vunpack.c.l.b16 %v598
        %v1166 = vunpack.c.h.b16 %v598
        %v1167 = vunpack.c.l.b16 %v599
        %v1168 = vunpack.c.l.b16 %v600
        %v1169 = vunpack.c.h.b16 %v600
        %v1170 = vunpack.c.l.b16 %v601
        %v1171 = vunpack.c.h.b16 %v601
        %v1172 = vunpack.c.l.b16 %v602
        %v1173 = vunpack.c.h.b16 %v602
        %v1174 = vunpack.c.l.b16 %v603
        %v1175 = vunpack.c.h.b16 %v603
        %v1176 = vunpack.c.l.b16 %v604
        %v1177 = vunpack.c.l.b16 %v605
        %v1178 = vunpack.c.h.b16 %v605
        %v1179 = vunpack.c.l.b16 %v606
        %v1180 = vunpack.c.h.b16 %v606
        %v1181 = vunpack.c.l.b16 %v607
        %v1182 = vunpack.c.h.b16 %v607
        %v1183 = vunpack.c.l.b16 %v608
        %v1184 = vunpack.c.h.b16 %v608
        %v1185 = vunpack.c.l.b16 %v609
        %v1186 = vunpack.c.l.b16 %v610
        %v1187 = vunpack.c.h.b16 %v610
        %v1188 = vunpack.c.l.b16 %v611
        %v1189 = vunpack.c.h.b16 %v611
        %v1190 = vunpack.c.l.b16 %v612
        %v1191 = vunpack.c.h.b16 %v612
        %v1192 = vunpack.c.l.b16 %v613
        %v1193 = vunpack.c.h.b16 %v613
        %v1194 = vunpack.c.l.b16 %v614
        %v1195 = vunpack.c.l.b16 %v615
        %v1196 = vunpack.c.h.b16 %v615
        %v1197 = vunpack.c.l.b16 %v616
        %v1198 = vunpack.c.h.b16 %v616
        %v1199 = vunpack.c.l.b16 %v617
        %v1200 = vunpack.c.h.b16 %v617
        %v1201 = vunpack.c.l.b16 %v618
        %v1202 = vunpack.c.h.b16 %v618
        %v1203 = vunpack.c.l.b16 %v619
        %v1204 = vunpack.c.l.b16 %v620
        %v1205 = vunpack.c.h.b16 %v620
        %v1206 = vunpack.c.l.b16 %v621
        %v1207 = vunpack.c.h.b16 %v621
        %v1208 = vunpack.c.l.b16 %v622
        %v1209 = vunpack.c.h.b16 %v622
        %v1210 = vunpack.c.l.b16 %v623
        %v1211 = vunpack.c.h.b16 %v623
        %v1212 = vunpack.c.l.b16 %v624
        %v1213 = vunpack.c.l.b16 %v625
        %v1214 = vunpack.c.h.b16 %v625
        %v1215 = vunpack.c.l.b16 %v626
        %v1216 = vunpack.c.h.b16 %v626
        %v1217 = vunpack.c.l.b16 %v627
        %v1218 = vunpack.c.h.b16 %v627
        %v1219 = vunpack.c.l.b16 %v628
        %v1220 = vunpack.c.h.b16 %v628
        %v1221 = vunpack.c.l.b16 %v629
        %v1222 = vunpack.c.l.b16 %v630
        %v1223 = vunpack.c.h.b16 %v630
        %v1224 = vunpack.c.l.b16 %v631
        %v1225 = vunpack.c.h.b16 %v631
        %v1226 = vunpack.c.l.b16 %v632
        %v1227 = vunpack.c.h.b16 %v632
        %v1228 = vunpack.c.l.b16 %v633
        %v1229 = vunpack.c.h.b16 %v633
        %v1230 = vunpack.c.l.b16 %v634
        %v1231 = vunpack.c.l.b16 %v635
        %v1232 = vunpack.c.h.b16 %v635
        %v1233 = vunpack.c.l.b16 %v636
        %v1234 = vunpack.c.h.b16 %v636
        %v1235 = vunpack.c.l.b16 %v637
        %v1236 = vunpack.c.h.b16 %v637
        %v1237 = vunpack.c.l.b16 %v638
        %v1238 = vunpack.c.h.b16 %v638
        %v1239 = vunpack.c.l.b16 %v639
        %v1240 = vunpack.c.l.b16 %v640
        %v1241 = vunpack.c.h.b16 %v640
        %v1242 = vunpack.c.l.b16 %v641
        %v1243 = vunpack.c.h.b16 %v641
        %v1244 = vunpack.c.l.b16 %v642
        %v1245 = vunpack.c.h.b16 %v642
        %v1246 = vunpack.c.l.b16 %v643
        %v1247 = vunpack.c.h.b16 %v643
        %v1248 = vunpack.c.l.b16 %v644
        %v1249 = vunpack.c.l.b16 %v645
        %v1250 = vunpack.c.h.b16 %v645
        %v1251 = vunpack.c.l.b16 %v646
        %v1252 = vunpack.c.h.b16 %v646
        %v1253 = vunpack.c.l.b16 %v647
        %v1254 = vunpack.c.h.b16 %v647
        %v1255 = vunpack.c.l.b16 %v648
        %v1256 = vunpack.c.h.b16 %v648
        %v1257 = vunpack.c.l.b16 %v649
        %v1258 = vunpack.c.l.b16 %v650
        %v1259 = vunpack.c.h.b16 %v650
        %v1260 = vunpack.c.l.b16 %v651
        %v1261 = vunpack.c.h.b16 %v651
        %v1262 = vunpack.c.l.b16 %v652
        %v1263 = vunpack.c.h.b16 %v652
        %v1264 = vunpack.c.l.b16 %v653
        %v1265 = vunpack.c.h.b16 %v653
        %v1266 = vunpack.c.l.b16 %v654
        %v1267 = vunpack.c.l.b16 %v655
        %v1268 = vunpack.c.h.b16 %v655
        %v1269 = vunpack.c.l.b16 %v656
        %v1270 = vunpack.c.h.b16 %v656
        %v1271 = vunpack.c.l.b16 %v657
        %v1272 = vunpack.c.h.b16 %v657
        %v1273 = vunpack.c.l.b16 %v658
        %v1274 = vunpack.c.h.b16 %v658
        %v1275 = vunpack.c.l.b16 %v659
        %v1276 = vunpack.c.l.b16 %v660
        %v1277 = vunpack.c.h.b16 %v660
        %v1278 = vunpack.c.l.b16 %v661
        %v1279 = vunpack.c.h.b16 %v661
        %v1280 = vunpack.c.l.b16 %v662
        %v1281 = vunpack.c.h.b16 %v662
        %v1282 = vunpack.c.l.b16 %v663
        %v1283 = vunpack.c.h.b16 %v663
        %v1284 = vunpack.c.l.b16 %v664
        %v1285 = vunpack.c.l.b16 %v665
        %v1286 = vunpack.c.h.b16 %v665
        %v1287 = vunpack.c.l.b16 %v666
        %v1288 = vunpack.c.h.b16 %v666
        %v1289 = vunpack.c.l.b16 %v667
        %v1290 = vunpack.c.h.b16 %v667
        %v1291 = vunpack.c.l.b16 %v668
        %v1292 = vunpack.c.h.b16 %v668
        %v1293 = vunpack.c.l.b16 %v669
        %v1294 = vunpack.c.l.b16 %v670
        %v1295 = vunpack.c.h.b16 %v670
        %v1296 = vunpack.c.l.b16 %v671
        %v1297 = vunpack.c.h.b16 %v671
        %v1298 = vunpack.c.l.b16 %v672
        %v1299 = vunpack.c.h.b16 %v672
        %v1300 = vunpack.c.l.b16 %v673
        %v1301 = vunpack.c.h.b16 %v673
        %v1302 = vunpack.c.l.b16 %v674
        %v1303 = vunpack.c.l.b16 %v675
        %v1304 = vunpack.c.h.b16 %v675
        %v1305 = vunpack.c.l.b16 %v676
        %v1306 = vunpack.c.h.b16 %v676
        %v1307 = vunpack.c.l.b16 %v677
        %v1308 = vunpack.c.h.b16 %v677
        %v1309 = vunpack.c.l.b16 %v678
        %v1310 = vunpack.c.h.b16 %v678
        %v1311 = vunpack.c.l.b16 %v679
        %v1312 = vunpack.c.l.b16 %v680
        %v1313 = vunpack.c.h.b16 %v680
        %v1314 = vunpack.c.l.b16 %v681
        %v1315 = vunpack.c.h.b16 %v681
        %v1316 = vunpack.c.l.b16 %v682
        %v1317 = vunpack.c.h.b16 %v682
        %v1318 = vunpack.c.l.b16 %v683
        %v1319 = vunpack.c.h.b16 %v683
        %v1320 = vunpack.c.l.b16 %v684
        %v1321 = vunpack.c.l.b16 %v685
        %v1322 = vunpack.c.h.b16 %v685
        %v1323 = vunpack.c.l.b16 %v686
        %v1324 = vunpack.c.h.b16 %v686
        %v1325 = vunpack.c.l.b16 %v687
        %v1326 = vunpack.c.h.b16 %v687
        %v1327 = vunpack.c.l.b16 %v688
        %v1328 = vunpack.c.h.b16 %v688
        %v1329 = vunpack.c.l.b16 %v689
        %v1330 = vunpack.c.l.b16 %v690
        %v1331 = vunpack.c.h.b16 %v690
        %v1332 = vunpack.c.l.b16 %v691
        %v1333 = vunpack.c.h.b16 %v691
        %v1334 = vunpack.c.l.b16 %v692
        %v1335 = vunpack.c.h.b16 %v692
        %v1336 = vunpack.c.l.b16 %v693
        %v1337 = vunpack.c.h.b16 %v693
        %v1338 = vunpack.c.l.b16 %v694
        %v1339 = vunpack.c.l.b16 %v695
        %v1340 = vunpack.c.h.b16 %v695
        %v1341 = vunpack.c.l.b16 %v696
        %v1342 = vunpack.c.h.b16 %v696
        %v1343 = vunpack.c.l.b16 %v697
        %v1344 = vunpack.c.h.b16 %v697
        %v1345 = vunpack.c.l.b16 %v698
        %v1346 = vunpack.c.h.b16 %v698
        %v1347 = vunpack.c.l.b16 %v699
        %v1348 = vunpack.c.l.b16 %v700
        %v1349 = vunpack.c.h.b16 %v700
        %v1350 = vunpack.c.l.b16 %v701
        %v1351 = vunpack.c.h.b16 %v701
        %v1352 = vunpack.c.l.b16 %v702
        %v1353 = vunpack.c.h.b16 %v702
        %v1354 = vunpack.c.l.b16 %v703
        %v1355 = vunpack.c.h.b16 %v703
        %v1356 = vunpack.c.l.b16 %v704
        %v1357 = vunpack.c.l.b16 %v705
        %v1358 = vunpack.c.h.b16 %v705
        %v1359 = vunpack.c.l.b16 %v706
        %v1360 = vunpack.c.h.b16 %v706
        %v1361 = vunpack.c.l.b16 %v707
        %v1362 = vunpack.c.h.b16 %v707
        %v1363 = vunpack.c.l.b16 %v708
        %v1364 = vunpack.c.h.b16 %v708
        %v1365 = vunpack.c.l.b16 %v709
        %v1366 = vunpack.c.l.b16 %v710
        %v1367 = vunpack.c.h.b16 %v710
        %v1368 = vunpack.c.l.b16 %v711
        %v1369 = vunpack.c.h.b16 %v711
        %v1370 = vunpack.c.l.b16 %v712
        %v1371 = vunpack.c.h.b16 %v712
        %v1372 = vunpack.c.l.b16 %v713
        %v1373 = vunpack.c.h.b16 %v713
        %v1374 = vunpack.c.l.b16 %v714
        %v1375 = vunpack.c.l.b16 %v715
        %v1376 = vunpack.c.h.b16 %v715
        %v1377 = vunpack.c.l.b16 %v716
        %v1378 = vunpack.c.h.b16 %v716
        %v1379 = vunpack.c.l.b16 %v717
        %v1380 = vunpack.c.h.b16 %v717
        %v1381 = vunpack.c.l.b16 %v718
        %v1382 = vunpack.c.h.b16 %v718
        %v1383 = vunpack.c.l.b16 %v719
        %v1384 = vunpack.c.l.b16 %v720
        %v1385 = vunpack.c.h.b16 %v720
        %v1386 = vunpack.c.l.b16 %v721
        %v1387 = vunpack.c.h.b16 %v721
        %v1388 = vunpack.c.l.b16 %v722
        %v1389 = vunpack.c.h.b16 %v722
        %v1390 = vunpack.c.l.b16 %v723
        %v1391 = vunpack.c.h.b16 %v723
        %v1392 = vunpack.c.l.b16 %v724
        %v1393 = vunpack.c.l.b16 %v725
        %v1394 = vunpack.c.h.b16 %v725
        %v1395 = vunpack.c.l.b16 %v726
        %v1396 = vunpack.c.h.b16 %v726
        %v1397 = vunpack.c.l.b16 %v727
        %v1398 = vunpack.c.h.b16 %v727
        %v1399 = vunpack.c.l.b16 %v728
        %v1400 = vunpack.c.h.b16 %v728
        %v1401 = vunpack.c.l.b16 %v729
        %v1402 = vpack.c.b16 %v979, %v970
        %v1403 = vpack.c.b16 %v980, %v971
        %v1404 = vpack.c.b16 %v981, %v972
        %v1405 = vpack.c.b16 %v982, %v973
        %v1406 = vpack.c.b16 %v983, %v974
        %v1407 = vpack.c.b16 %v984, %v975
        %v1408 = vpack.c.b16 %v985, %v976
        %v1409 = vpack.c.b16 %v986, %v977
        %v1410 = vpack.c.b16 %v987, %v978
        %v1411 = vpack.c.b16 %v997, %v988
        %v1412 = vpack.c.b16 %v998, %v989
        %v1413 = vpack.c.b16 %v999, %v990
        %v1414 = vpack.c.b16 %v1000, %v991
        %v1415 = vpack.c.b16 %v1001, %v992
        %v1416 = vpack.c.b16 %v1002, %v993
        %v1417 = vpack.c.b16 %v1003, %v994
        %v1418 = vpack.c.b16 %v1004, %v995
        %v1419 = vpack.c.b16 %v1005, %v996
        %v1420 = vpack.c.b16 %v1015, %v1006
        %v1421 = vpack.c.b16 %v1016, %v1007
        %v1422 = vpack.c.b16 %v1017, %v1008
        %v1423 = vpack.c.b16 %v1018, %v1009
        %v1424 = vpack.c.b16 %v1019, %v1010
        %v1425 = vpack.c.b16 %v1020, %v1011
        %v1426 = vpack.c.b16 %v1021, %v1012
        %v1427 = vpack.c.b16 %v1022, %v1013
        %v1428 = vpack.c.b16 %v1023, %v1014
        %v1429 = vpack.c.b16 %v1033, %v1024
        %v1430 = vpack.c.b16 %v1034, %v1025
        %v1431 = vpack.c.b16 %v1035, %v1026
        %v1432 = vpack.c.b16 %v1036, %v1027
        %v1433 = vpack.c.b16 %v1037, %v1028
        %v1434 = vpack.c.b16 %v1038, %v1029
        %v1435 = vpack.c.b16 %v1039, %v1030
        %v1436 = vpack.c.b16 %v1040, %v1031
        %v1437 = vpack.c.b16 %v1041, %v1032
        %v1438 = vpack.c.b16 %v1051, %v1042
        %v1439 = vpack.c.b16 %v1052, %v1043
        %v1440 = vpack.c.b16 %v1053, %v1044
        %v1441 = vpack.c.b16 %v1054, %v1045
        %v1442 = vpack.c.b16 %v1055, %v1046
        %v1443 = vpack.c.b16 %v1056, %v1047
        %v1444 = vpack.c.b16 %v1057, %v1048
        %v1445 = vpack.c.b16 %v1058, %v1049
        %v1446 = vpack.c.b16 %v1059, %v1050
        %v1447 = vpack.c.b16 %v1069, %v1060
        %v1448 = vpack.c.b16 %v1070, %v1061
        %v1449 = vpack.c.b16 %v1071, %v1062
        %v1450 = vpack.c.b16 %v1072, %v1063
        %v1451 = vpack.c.b16 %v1073, %v1064
        %v1452 = vpack.c.b16 %v1074, %v1065
        %v1453 = vpack.c.b16 %v1075, %v1066
        %v1454 = vpack.c.b16 %v1076, %v1067
        %v1455 = vpack.c.b16 %v1077, %v1068
        %v1456 = vpack.c.b16 %v1087, %v1078
        %v1457 = vpack.c.b16 %v1088, %v1079
        %v1458 = vpack.c.b16 %v1089, %v1080
        %v1459 = vpack.c.b16 %v1090, %v1081
        %v1460 = vpack.c.b16 %v1091, %v1082
        %v1461 = vpack.c.b16 %v1092, %v1083
        %v1462 = vpack.c.b16 %v1093, %v1084
        %v1463 = vpack.c.b16 %v1094, %v1085
        %v1464 = vpack.c.b16 %v1095, %v1086
        %v1465 = vpack.c.b16 %v1105, %v1096
        %v1466 = vpack.c.b16 %v1106, %v1097
        %v1467 = vpack.c.b16 %v1107, %v1098
        %v1468 = vpack.c.b16 %v1108, %v1099
        %v1469 = vpack.c.b16 %v1109, %v1100
        %v1470 = vpack.c.b16 %v1110, %v1101
        %v1471 = vpack.c.b16 %v1111, %v1102
        %v1472 = vpack.c.b16 %v1112, %v1103
        %v1473 = vpack.c.b16 %v1113, %v1104
        %v1474 = vpack.c.b16 %v1123, %v1114
        %v1475 = vpack.c.b16 %v1124, %v1115
        %v1476 = vpack.c.b16 %v1125, %v1116
        %v1477 = vpack.c.b16 %v1126, %v1117
        %v1478 = vpack.c.b16 %v1127, %v1118
        %v1479 = vpack.c.b16 %v1128, %v1119
        %v1480 = vpack.c.b16 %v1129, %v1120
        %v1481 = vpack.c.b16 %v1130, %v1121
        %v1482 = vpack.c.b16 %v1131, %v1122
        %v1483 = vpack.c.b16 %v1141, %v1132
        %v1484 = vpack.c.b16 %v1142, %v1133
        %v1485 = vpack.c.b16 %v1143, %v1134
        %v1486 = vpack.c.b16 %v1144, %v1135
        %v1487 = vpack.c.b16 %v1145, %v1136
        %v1488 = vpack.c.b16 %v1146, %v1137
        %v1489 = vpack.c.b16 %v1147, %v1138
        %v1490 = vpack.c.b16 %v1148, %v1139
        %v1491 = vpack.c.b16 %v1149, %v1140
        %v1492 = vpack.c.b16 %v1159, %v1150
        %v1493 = vpack.c.b16 %v1160, %v1151
        %v1494 = vpack.c.b16 %v1161, %v1152
        %v1495 = vpack.c.b16 %v1162, %v1153
        %v1496 = vpack.c.b16 %v1163, %v1154
        %v1497 = vpack.c.b16 %v1164, %v1155
        %v1498 = vpack.c.b16 %v1165, %v1156
        %v1499 = vpack.c.b16 %v1166, %v1157
        %v1500 = vpack.c.b16 %v1167, %v1158
        %v1501 = vpack.c.b16 %v1177, %v1168
        %v1502 = vpack.c.b16 %v1178, %v1169
        %v1503 = vpack.c.b16 %v1179, %v1170
        %v1504 = vpack.c.b16 %v1180, %v1171
        %v1505 = vpack.c.b16 %v1181, %v1172
        %v1506 = vpack.c.b16 %v1182, %v1173
        %v1507 = vpack.c.b16 %v1183, %v1174
        %v1508 = vpack.c.b16 %v1184, %v1175
        %v1509 = vpack.c.b16 %v1185, %v1176
        %v1510 = vpack.c.b16 %v1195, %v1186
        %v1511 = vpack.c.b16 %v1196, %v1187
        %v1512 = vpack.c.b16 %v1197, %v1188
        %v1513 = vpack.c.b16 %v1198, %v1189
        %v1514 = vpack.c.b16 %v1199, %v1190
        %v1515 = vpack.c.b16 %v1200, %v1191
        %v1516 = vpack.c.b16 %v1201, %v1192
        %v1517 = vpack.c.b16 %v1202, %v1193
        %v1518 = vpack.c.b16 %v1203, %v1194
        %v1519 = vpack.c.b16 %v1213, %v1204
        %v1520 = vpack.c.b16 %v1214, %v1205
        %v1521 = vpack.c.b16 %v1215, %v1206
        %v1522 = vpack.c.b16 %v1216, %v1207
        %v1523 = vpack.c.b16 %v1217, %v1208
        %v1524 = vpack.c.b16 %v1218, %v1209
        %v1525 = vpack.c.b16 %v1219, %v1210
        %v1526 = vpack.c.b16 %v1220, %v1211
        %v1527 = vpack.c.b16 %v1221, %v1212
        %v1528 = vpack.c.b16 %v1231, %v1222
        %v1529 = vpack.c.b16 %v1232, %v1223
        %v1530 = vpack.c.b16 %v1233, %v1224
        %v1531 = vpack.c.b16 %v1234, %v1225
        %v1532 = vpack.c.b16 %v1235, %v1226
        %v1533 = vpack.c.b16 %v1236, %v1227
        %v1534 = vpack.c.b16 %v1237, %v1228
        %v1535 = vpack.c.b16 %v1238, %v1229
        %v1536 = vpack.c.b16 %v1239, %v1230
        %v1537 = vpack.c.b16 %v1249, %v1240
        %v1538 = vpack.c.b16 %v1250, %v1241
        %v1539 = vpack.c.b16 %v1251, %v1242
        %v1540 = vpack.c.b16 %v1252, %v1243
        %v1541 = vpack.c.b16 %v1253, %v1244
        %v1542 = vpack.c.b16 %v1254, %v1245
        %v1543 = vpack.c.b16 %v1255, %v1246
        %v1544 = vpack.c.b16 %v1256, %v1247
        %v1545 = vpack.c.b16 %v1257, %v1248
        %v1546 = vpack.c.b16 %v1267, %v1258
        %v1547 = vpack.c.b16 %v1268, %v1259
        %v1548 = vpack.c.b16 %v1269, %v1260
        %v1549 = vpack.c.b16 %v1270, %v1261
        %v1550 = vpack.c.b16 %v1271, %v1262
        %v1551 = vpack.c.b16 %v1272, %v1263
        %v1552 = vpack.c.b16 %v1273, %v1264
        %v1553 = vpack.c.b16 %v1274, %v1265
        %v1554 = vpack.c.b16 %v1275, %v1266
        %v1555 = vpack.c.b16 %v1285, %v1276
        %v1556 = vpack.c.b16 %v1286, %v1277
        %v1557 = vpack.c.b16 %v1287, %v1278
        %v1558 = vpack.c.b16 %v1288, %v1279
        %v1559 = vpack.c.b16 %v1289, %v1280
        %v1560 = vpack.c.b16 %v1290, %v1281
        %v1561 = vpack.c.b16 %v1291, %v1282
        %v1562 = vpack.c.b16 %v1292, %v1283
        %v1563 = vpack.c.b16 %v1293, %v1284
        %v1564 = vpack.c.b16 %v1303, %v1294
        %v1565 = vpack.c.b16 %v1304, %v1295
        %v1566 = vpack.c.b16 %v1305, %v1296
        %v1567 = vpack.c.b16 %v1306, %v1297
        %v1568 = vpack.c.b16 %v1307, %v1298
        %v1569 = vpack.c.b16 %v1308, %v1299
        %v1570 = vpack.c.b16 %v1309, %v1300
        %v1571 = vpack.c.b16 %v1310, %v1301
        %v1572 = vpack.c.b16 %v1311, %v1302
        %v1573 = vpack.c.b16 %v1321, %v1312
        %v1574 = vpack.c.b16 %v1322, %v1313
        %v1575 = vpack.c.b16 %v1323, %v1314
        %v1576 = vpack.c.b16 %v1324, %v1315
        %v1577 = vpack.c.b16 %v1325, %v1316
        %v1578 = vpack.c.b16 %v1326, %v1317
        %v1579 = vpack.c.b16 %v1327, %v1318
        %v1580 = vpack.c.b16 %v1328, %v1319
        %v1581 = vpack.c.b16 %v1329, %v1320
        %v1582 = vpack.c.b16 %v1339, %v1330
        %v1583 = vpack.c.b16 %v1340, %v1331
        %v1584 = vpack.c.b16 %v1341, %v1332
        %v1585 = vpack.c.b16 %v1342, %v1333
        %v1586 = vpack.c.b16 %v1343, %v1334
        %v1587 = vpack.c.b16 %v1344, %v1335
        %v1588 = vpack.c.b16 %v1345, %v1336
        %v1589 = vpack.c.b16 %v1346, %v1337
        %v1590 = vpack.c.b16 %v1347, %v1338
        %v1591 = vpack.c.b16 %v1357, %v1348
        %v1592 = vpack.c.b16 %v1358, %v1349
        %v1593 = vpack.c.b16 %v1359, %v1350
        %v1594 = vpack.c.b16 %v1360, %v1351
        %v1595 = vpack.c.b16 %v1361, %v1352
        %v1596 = vpack.c.b16 %v1362, %v1353
        %v1597 = vpack.c.b16 %v1363, %v1354
        %v1598 = vpack.c.b16 %v1364, %v1355
        %v1599 = vpack.c.b16 %v1365, %v1356
        %v1600 = vpack.c.b16 %v1375, %v1366
        %v1601 = vpack.c.b16 %v1376, %v1367
        %v1602 = vpack.c.b16 %v1377, %v1368
        %v1603 = vpack.c.b16 %v1378, %v1369
        %v1604 = vpack.c.b16 %v1379, %v1370
        %v1605 = vpack.c.b16 %v1380, %v1371
        %v1606 = vpack.c.b16 %v1381, %v1372
        %v1607 = vpack.c.b16 %v1382, %v1373
        %v1608 = vpack.c.b16 %v1383, %v1374
        %v1609 = vpack.c.b16 %v1393, %v1384
        %v1610 = vpack.c.b16 %v1394, %v1385
        %v1611 = vpack.c.b16 %v1395, %v1386
        %v1612 = vpack.c.b16 %v1396, %v1387
        %v1613 = vpack.c.b16 %v1397, %v1388
        %v1614 = vpack.c.b16 %v1398, %v1389
        %v1615 = vpack.c.b16 %v1399, %v1390
        %v1616 = vpack.c.b16 %v1400, %v1391
        %v1617 = vpack.c.b16 %v1401, %v1392
        %1834 = vmatprep.subr.bf16.mxu0 %v1466
        %1835 = vmatpush1.bf16.msra.mxu0 %v1465
        %1836 = vmatprep.subr.bf16.mxu0 %v1457
        %1837 = vmatpush1.bf16.msra.mxu0 %v1456
        %1838 = vmatprep.subr.bf16.mxu0 %v1448
        %1839 = vmatpush1.bf16.msra.mxu0 %v1447
        %1840 = vmatprep.subr.bf16.mxu0 %v1439
        %1841 = vmatpush1.bf16.msra.mxu0 %v1438
        %1842 = vmatprep.subr.bf16.mxu0 %v1430
        %1843 = vmatpush1.bf16.msra.mxu0 %v1429
        %1844 = vmatprep.subr.bf16.mxu0 %v1421
        %1845 = vmatpush1.bf16.msra.mxu0 %v1420
        %1846 = vmatprep.subr.bf16.mxu0 %v1412
        %1847 = vmatpush1.bf16.msra.mxu0 %v1411
        %1848 = vmatprep.subr.bf16.mxu0 %v1403
        %1849 = vmatpush1.bf16.msra.mxu0 %v1402
        %1850 = vmatprep.subr.bf16.mxu0 %v1538
        %1851 = vmatpush2.bf16.msra.mxu0 %v1537
        %1852 = vmatprep.subr.bf16.mxu0 %v1529
        %1853 = vmatpush2.bf16.msra.mxu0 %v1528
        %1854 = vmatprep.subr.bf16.mxu0 %v1520
        %1855 = vmatpush2.bf16.msra.mxu0 %v1519
        %1856 = vmatprep.subr.bf16.mxu0 %v1511
        %1857 = vmatpush2.bf16.msra.mxu0 %v1510
        %1858 = vmatprep.subr.bf16.mxu0 %v1502
        %1859 = vmatpush2.bf16.msra.mxu0 %v1501
        %1860 = vmatprep.subr.bf16.mxu0 %v1493
        %1861 = vmatpush2.bf16.msra.mxu0 %v1492
        %1862 = vmatprep.subr.bf16.mxu0 %v1484
        %1863 = vmatpush2.bf16.msra.mxu0 %v1483
        %1864 = vmatprep.subr.bf16.mxu0 %v1475
        %1865 = vmatpush2.bf16.msra.mxu0 %v1474
        %1866 = vmatprep.mubr.bf16.mxu0 %v488
        %1867 = vmatmul.mubr.bf16.gmra.mxu0 %v487
        %v1868 = vpop.f32.mrf.mxu0
        %v1869 = vadd.f32 0.0, %v1868
        %v1870 = vpop.f32.mrf.mxu0
        %v1871 = vadd.f32 0.0, %v1870
        %v1872 = vpop.f32.mrf.mxu0
        %v1873 = vadd.f32 0.0, %v1872
        %v1874 = vpop.f32.mrf.mxu0
        %v1875 = vadd.f32 0.0, %v1874
        %1876 = vdwg.mxu0
        %1877 = vmatprep.subr.bf16.mxu0 %v1610
        %1878 = vmatpush1.bf16.msra.mxu0 %v1609
        %1879 = vmatprep.subr.bf16.mxu0 %v1601
        %1880 = vmatpush1.bf16.msra.mxu0 %v1600
        %1881 = vmatprep.subr.bf16.mxu0 %v1592
        %1882 = vmatpush1.bf16.msra.mxu0 %v1591
        %1883 = vmatprep.subr.bf16.mxu0 %v1583
        %1884 = vmatpush1.bf16.msra.mxu0 %v1582
        %1885 = vmatprep.subr.bf16.mxu0 %v1574
        %1886 = vmatpush1.bf16.msra.mxu0 %v1573
        %1887 = vmatprep.subr.bf16.mxu0 %v1565
        %1888 = vmatpush1.bf16.msra.mxu0 %v1564
        %1889 = vmatprep.subr.bf16.mxu0 %v1556
        %1890 = vmatpush1.bf16.msra.mxu0 %v1555
        %1891 = vmatprep.subr.bf16.mxu0 %v1547
        %1892 = vmatpush1.bf16.msra.mxu0 %v1546
        %1893 = vmatprep.subr.bf16.mxu0 0
        %1894 = vmatpush2.bf16.msra.mxu0 0
        %1895 = vmatprep.subr.bf16.mxu0 0
        %1896 = vmatpush2.bf16.msra.mxu0 0
        %1897 = vmatprep.subr.bf16.mxu0 0
        %1898 = vmatpush2.bf16.msra.mxu0 0
        %1899 = vmatprep.subr.bf16.mxu0 0
        %1900 = vmatpush2.bf16.msra.mxu0 0
        %1901 = vmatprep.subr.bf16.mxu0 0
        %1902 = vmatpush2.bf16.msra.mxu0 0
        %1903 = vmatprep.subr.bf16.mxu0 0
        %1904 = vmatpush2.bf16.msra.mxu0 0
        %1905 = vmatprep.subr.bf16.mxu0 0
        %1906 = vmatpush2.bf16.msra.mxu0 0
        %1907 = vmatprep.subr.bf16.mxu0 0
        %1908 = vmatpush2.bf16.msra.mxu0 0
        %1909 = vmatprep.mubr.bf16.mxu0 0
        %1910 = vmatmul.mubr.bf16.gmra.mxu0 %v489
        %v1911 = vpop.f32.mrf.mxu0
        %v1912 = vadd.f32 %v1869, %v1911
        %v1913 = vpop.f32.mrf.mxu0
        %v1914 = vadd.f32 %v1871, %v1913
        %v1915 = vpop.f32.mrf.mxu0
        %v1916 = vadd.f32 %v1873, %v1915
        %v1917 = vpop.f32.mrf.mxu0
        %v1918 = vadd.f32 %v1875, %v1917
        %1919 = vdwg.mxu0
        %1920 = vmatprep.subr.bf16.mxu0 %v1468
        %1921 = vmatpush1.bf16.msra.mxu0 %v1467
        %1922 = vmatprep.subr.bf16.mxu0 %v1459
        %1923 = vmatpush1.bf16.msra.mxu0 %v1458
        %1924 = vmatprep.subr.bf16.mxu0 %v1450
        %1925 = vmatpush1.bf16.msra.mxu0 %v1449
        %1926 = vmatprep.subr.bf16.mxu0 %v1441
        %1927 = vmatpush1.bf16.msra.mxu0 %v1440
        %1928 = vmatprep.subr.bf16.mxu0 %v1432
        %1929 = vmatpush1.bf16.msra.mxu0 %v1431
        %1930 = vmatprep.subr.bf16.mxu0 %v1423
        %1931 = vmatpush1.bf16.msra.mxu0 %v1422
        %1932 = vmatprep.subr.bf16.mxu0 %v1414
        %1933 = vmatpush1.bf16.msra.mxu0 %v1413
        %1934 = vmatprep.subr.bf16.mxu0 %v1405
        %1935 = vmatpush1.bf16.msra.mxu0 %v1404
        %1936 = vmatprep.subr.bf16.mxu0 %v1540
        %1937 = vmatpush2.bf16.msra.mxu0 %v1539
        %1938 = vmatprep.subr.bf16.mxu0 %v1531
        %1939 = vmatpush2.bf16.msra.mxu0 %v1530
        %1940 = vmatprep.subr.bf16.mxu0 %v1522
        %1941 = vmatpush2.bf16.msra.mxu0 %v1521
        %1942 = vmatprep.subr.bf16.mxu0 %v1513
        %1943 = vmatpush2.bf16.msra.mxu0 %v1512
        %1944 = vmatprep.subr.bf16.mxu0 %v1504
        %1945 = vmatpush2.bf16.msra.mxu0 %v1503
        %1946 = vmatprep.subr.bf16.mxu0 %v1495
        %1947 = vmatpush2.bf16.msra.mxu0 %v1494
        %1948 = vmatprep.subr.bf16.mxu0 %v1486
        %1949 = vmatpush2.bf16.msra.mxu0 %v1485
        %1950 = vmatprep.subr.bf16.mxu0 %v1477
        %1951 = vmatpush2.bf16.msra.mxu0 %v1476
        %1952 = vmatprep.mubr.bf16.mxu0 %v488
        %1953 = vmatmul.mubr.bf16.gmra.mxu0 %v487
        %v1954 = vpop.f32.mrf.mxu0
        %v1955 = vadd.f32 0.0, %v1954
        %v1956 = vpop.f32.mrf.mxu0
        %v1957 = vadd.f32 0.0, %v1956
        %v1958 = vpop.f32.mrf.mxu0
        %v1959 = vadd.f32 0.0, %v1958
        %v1960 = vpop.f32.mrf.mxu0
        %v1961 = vadd.f32 0.0, %v1960
        %1962 = vdwg.mxu0
        %1963 = vmatprep.subr.bf16.mxu0 %v1612
        %1964 = vmatpush1.bf16.msra.mxu0 %v1611
        %1965 = vmatprep.subr.bf16.mxu0 %v1603
        %1966 = vmatpush1.bf16.msra.mxu0 %v1602
        %1967 = vmatprep.subr.bf16.mxu0 %v1594
        %1968 = vmatpush1.bf16.msra.mxu0 %v1593
        %1969 = vmatprep.subr.bf16.mxu0 %v1585
        %1970 = vmatpush1.bf16.msra.mxu0 %v1584
        %1971 = vmatprep.subr.bf16.mxu0 %v1576
        %1972 = vmatpush1.bf16.msra.mxu0 %v1575
        %1973 = vmatprep.subr.bf16.mxu0 %v1567
        %1974 = vmatpush1.bf16.msra.mxu0 %v1566
        %1975 = vmatprep.subr.bf16.mxu0 %v1558
        %1976 = vmatpush1.bf16.msra.mxu0 %v1557
        %1977 = vmatprep.subr.bf16.mxu0 %v1549
        %1978 = vmatpush1.bf16.msra.mxu0 %v1548
        %1979 = vmatprep.subr.bf16.mxu0 0
        %1980 = vmatpush2.bf16.msra.mxu0 0
        %1981 = vmatprep.subr.bf16.mxu0 0
        %1982 = vmatpush2.bf16.msra.mxu0 0
        %1983 = vmatprep.subr.bf16.mxu0 0
        %1984 = vmatpush2.bf16.msra.mxu0 0
        %1985 = vmatprep.subr.bf16.mxu0 0
        %1986 = vmatpush2.bf16.msra.mxu0 0
        %1987 = vmatprep.subr.bf16.mxu0 0
        %1988 = vmatpush2.bf16.msra.mxu0 0
        %1989 = vmatprep.subr.bf16.mxu0 0
        %1990 = vmatpush2.bf16.msra.mxu0 0
        %1991 = vmatprep.subr.bf16.mxu0 0
        %1992 = vmatpush2.bf16.msra.mxu0 0
        %1993 = vmatprep.subr.bf16.mxu0 0
        %1994 = vmatpush2.bf16.msra.mxu0 0
        %1995 = vmatprep.mubr.bf16.mxu0 0
        %1996 = vmatmul.mubr.bf16.gmra.mxu0 %v489
        %v1997 = vpop.f32.mrf.mxu0
        %v1998 = vadd.f32 %v1955, %v1997
        %v1999 = vpop.f32.mrf.mxu0
        %v2000 = vadd.f32 %v1957, %v1999
        %v2001 = vpop.f32.mrf.mxu0
        %v2002 = vadd.f32 %v1959, %v2001
        %v2003 = vpop.f32.mrf.mxu0
        %v2004 = vadd.f32 %v1961, %v2003
        %2005 = vdwg.mxu0
        %2006 = vmatprep.subr.bf16.mxu0 %v1470
        %2007 = vmatpush1.bf16.msra.mxu0 %v1469
        %2008 = vmatprep.subr.bf16.mxu0 %v1461
        %2009 = vmatpush1.bf16.msra.mxu0 %v1460
        %2010 = vmatprep.subr.bf16.mxu0 %v1452
        %2011 = vmatpush1.bf16.msra.mxu0 %v1451
        %2012 = vmatprep.subr.bf16.mxu0 %v1443
        %2013 = vmatpush1.bf16.msra.mxu0 %v1442
        %2014 = vmatprep.subr.bf16.mxu0 %v1434
        %2015 = vmatpush1.bf16.msra.mxu0 %v1433
        %2016 = vmatprep.subr.bf16.mxu0 %v1425
        %2017 = vmatpush1.bf16.msra.mxu0 %v1424
        %2018 = vmatprep.subr.bf16.mxu0 %v1416
        %2019 = vmatpush1.bf16.msra.mxu0 %v1415
        %2020 = vmatprep.subr.bf16.mxu0 %v1407
        %2021 = vmatpush1.bf16.msra.mxu0 %v1406
        %2022 = vmatprep.subr.bf16.mxu0 %v1542
        %2023 = vmatpush2.bf16.msra.mxu0 %v1541
        %2024 = vmatprep.subr.bf16.mxu0 %v1533
        %2025 = vmatpush2.bf16.msra.mxu0 %v1532
        %2026 = vmatprep.subr.bf16.mxu0 %v1524
        %2027 = vmatpush2.bf16.msra.mxu0 %v1523
        %2028 = vmatprep.subr.bf16.mxu0 %v1515
        %2029 = vmatpush2.bf16.msra.mxu0 %v1514
        %2030 = vmatprep.subr.bf16.mxu0 %v1506
        %2031 = vmatpush2.bf16.msra.mxu0 %v1505
        %2032 = vmatprep.subr.bf16.mxu0 %v1497
        %2033 = vmatpush2.bf16.msra.mxu0 %v1496
        %2034 = vmatprep.subr.bf16.mxu0 %v1488
        %2035 = vmatpush2.bf16.msra.mxu0 %v1487
        %2036 = vmatprep.subr.bf16.mxu0 %v1479
        %2037 = vmatpush2.bf16.msra.mxu0 %v1478
        %2038 = vmatprep.mubr.bf16.mxu0 %v488
        %2039 = vmatmul.mubr.bf16.gmra.mxu0 %v487
        %v2040 = vpop.f32.mrf.mxu0
        %v2041 = vadd.f32 0.0, %v2040
        %v2042 = vpop.f32.mrf.mxu0
        %v2043 = vadd.f32 0.0, %v2042
        %v2044 = vpop.f32.mrf.mxu0
        %v2045 = vadd.f32 0.0, %v2044
        %v2046 = vpop.f32.mrf.mxu0
        %v2047 = vadd.f32 0.0, %v2046
        %2048 = vdwg.mxu0
        %2049 = vmatprep.subr.bf16.mxu0 %v1614
        %2050 = vmatpush1.bf16.msra.mxu0 %v1613
        %2051 = vmatprep.subr.bf16.mxu0 %v1605
        %2052 = vmatpush1.bf16.msra.mxu0 %v1604
        %2053 = vmatprep.subr.bf16.mxu0 %v1596
        %2054 = vmatpush1.bf16.msra.mxu0 %v1595
        %2055 = vmatprep.subr.bf16.mxu0 %v1587
        %2056 = vmatpush1.bf16.msra.mxu0 %v1586
        %2057 = vmatprep.subr.bf16.mxu0 %v1578
        %2058 = vmatpush1.bf16.msra.mxu0 %v1577
        %2059 = vmatprep.subr.bf16.mxu0 %v1569
        %2060 = vmatpush1.bf16.msra.mxu0 %v1568
        %2061 = vmatprep.subr.bf16.mxu0 %v1560
        %2062 = vmatpush1.bf16.msra.mxu0 %v1559
        %2063 = vmatprep.subr.bf16.mxu0 %v1551
        %2064 = vmatpush1.bf16.msra.mxu0 %v1550
        %2065 = vmatprep.subr.bf16.mxu0 0
        %2066 = vmatpush2.bf16.msra.mxu0 0
        %2067 = vmatprep.subr.bf16.mxu0 0
        %2068 = vmatpush2.bf16.msra.mxu0 0
        %2069 = vmatprep.subr.bf16.mxu0 0
        %2070 = vmatpush2.bf16.msra.mxu0 0
        %2071 = vmatprep.subr.bf16.mxu0 0
        %2072 = vmatpush2.bf16.msra.mxu0 0
        %2073 = vmatprep.subr.bf16.mxu0 0
        %2074 = vmatpush2.bf16.msra.mxu0 0
        %2075 = vmatprep.subr.bf16.mxu0 0
        %2076 = vmatpush2.bf16.msra.mxu0 0
        %2077 = vmatprep.subr.bf16.mxu0 0
        %2078 = vmatpush2.bf16.msra.mxu0 0
        %2079 = vmatprep.subr.bf16.mxu0 0
        %2080 = vmatpush2.bf16.msra.mxu0 0
        %2081 = vmatprep.mubr.bf16.mxu0 0
        %2082 = vmatmul.mubr.bf16.gmra.mxu0 %v489
        %v2083 = vpop.f32.mrf.mxu0
        %v2084 = vadd.f32 %v2041, %v2083
        %v2085 = vpop.f32.mrf.mxu0
        %v2086 = vadd.f32 %v2043, %v2085
        %v2087 = vpop.f32.mrf.mxu0
        %v2088 = vadd.f32 %v2045, %v2087
        %v2089 = vpop.f32.mrf.mxu0
        %v2090 = vadd.f32 %v2047, %v2089
        %2091 = vdwg.mxu0
        %2092 = vmatprep.subr.bf16.mxu0 %v1472
        %2093 = vmatpush1.bf16.msra.mxu0 %v1471
        %2094 = vmatprep.subr.bf16.mxu0 %v1463
        %2095 = vmatpush1.bf16.msra.mxu0 %v1462
        %2096 = vmatprep.subr.bf16.mxu0 %v1454
        %2097 = vmatpush1.bf16.msra.mxu0 %v1453
        %2098 = vmatprep.subr.bf16.mxu0 %v1445
        %2099 = vmatpush1.bf16.msra.mxu0 %v1444
        %2100 = vmatprep.subr.bf16.mxu0 %v1436
        %2101 = vmatpush1.bf16.msra.mxu0 %v1435
        %2102 = vmatprep.subr.bf16.mxu0 %v1427
        %2103 = vmatpush1.bf16.msra.mxu0 %v1426
        %2104 = vmatprep.subr.bf16.mxu0 %v1418
        %2105 = vmatpush1.bf16.msra.mxu0 %v1417
        %2106 = vmatprep.subr.bf16.mxu0 %v1409
        %2107 = vmatpush1.bf16.msra.mxu0 %v1408
        %2108 = vmatprep.subr.bf16.mxu0 %v1544
        %2109 = vmatpush2.bf16.msra.mxu0 %v1543
        %2110 = vmatprep.subr.bf16.mxu0 %v1535
        %2111 = vmatpush2.bf16.msra.mxu0 %v1534
        %2112 = vmatprep.subr.bf16.mxu0 %v1526
        %2113 = vmatpush2.bf16.msra.mxu0 %v1525
        %2114 = vmatprep.subr.bf16.mxu0 %v1517
        %2115 = vmatpush2.bf16.msra.mxu0 %v1516
        %2116 = vmatprep.subr.bf16.mxu0 %v1508
        %2117 = vmatpush2.bf16.msra.mxu0 %v1507
        %2118 = vmatprep.subr.bf16.mxu0 %v1499
        %2119 = vmatpush2.bf16.msra.mxu0 %v1498
        %2120 = vmatprep.subr.bf16.mxu0 %v1490
        %2121 = vmatpush2.bf16.msra.mxu0 %v1489
        %2122 = vmatprep.subr.bf16.mxu0 %v1481
        %2123 = vmatpush2.bf16.msra.mxu0 %v1480
        %2124 = vmatprep.mubr.bf16.mxu0 %v488
        %2125 = vmatmul.mubr.bf16.gmra.mxu0 %v487
        %v2126 = vpop.f32.mrf.mxu0
        %v2127 = vadd.f32 0.0, %v2126
        %v2128 = vpop.f32.mrf.mxu0
        %v2129 = vadd.f32 0.0, %v2128
        %v2130 = vpop.f32.mrf.mxu0
        %v2131 = vadd.f32 0.0, %v2130
        %v2132 = vpop.f32.mrf.mxu0
        %v2133 = vadd.f32 0.0, %v2132
        %2134 = vdwg.mxu0
        %2135 = vmatprep.subr.bf16.mxu0 %v1616
        %2136 = vmatpush1.bf16.msra.mxu0 %v1615
        %2137 = vmatprep.subr.bf16.mxu0 %v1607
        %2138 = vmatpush1.bf16.msra.mxu0 %v1606
        %2139 = vmatprep.subr.bf16.mxu0 %v1598
        %2140 = vmatpush1.bf16.msra.mxu0 %v1597
        %2141 = vmatprep.subr.bf16.mxu0 %v1589
        %2142 = vmatpush1.bf16.msra.mxu0 %v1588
        %2143 = vmatprep.subr.bf16.mxu0 %v1580
        %2144 = vmatpush1.bf16.msra.mxu0 %v1579
        %2145 = vmatprep.subr.bf16.mxu0 %v1571
        %2146 = vmatpush1.bf16.msra.mxu0 %v1570
        %2147 = vmatprep.subr.bf16.mxu0 %v1562
        %2148 = vmatpush1.bf16.msra.mxu0 %v1561
        %2149 = vmatprep.subr.bf16.mxu0 %v1553
        %2150 = vmatpush1.bf16.msra.mxu0 %v1552
        %2151 = vmatprep.subr.bf16.mxu0 0
        %2152 = vmatpush2.bf16.msra.mxu0 0
        %2153 = vmatprep.subr.bf16.mxu0 0
        %2154 = vmatpush2.bf16.msra.mxu0 0
        %2155 = vmatprep.subr.bf16.mxu0 0
        %2156 = vmatpush2.bf16.msra.mxu0 0
        %2157 = vmatprep.subr.bf16.mxu0 0
        %2158 = vmatpush2.bf16.msra.mxu0 0
        %2159 = vmatprep.subr.bf16.mxu0 0
        %2160 = vmatpush2.bf16.msra.mxu0 0
        %2161 = vmatprep.subr.bf16.mxu0 0
        %2162 = vmatpush2.bf16.msra.mxu0 0
        %2163 = vmatprep.subr.bf16.mxu0 0
        %2164 = vmatpush2.bf16.msra.mxu0 0
        %2165 = vmatprep.subr.bf16.mxu0 0
        %2166 = vmatpush2.bf16.msra.mxu0 0
        %2167 = vmatprep.mubr.bf16.mxu0 0
        %2168 = vmatmul.mubr.bf16.gmra.mxu0 %v489
        %v2169 = vpop.f32.mrf.mxu0
        %v2170 = vadd.f32 %v2127, %v2169
        %v2171 = vpop.f32.mrf.mxu0
        %v2172 = vadd.f32 %v2129, %v2171
        %v2173 = vpop.f32.mrf.mxu0
        %v2174 = vadd.f32 %v2131, %v2173
        %v2175 = vpop.f32.mrf.mxu0
        %v2176 = vadd.f32 %v2133, %v2175
        %2177 = vdwg.mxu0
        %2178 = vmatprep.subr.bf16.mxu0 0
        %2179 = vmatpush1.bf16.msra.mxu0 %v1473
        %2180 = vmatprep.subr.bf16.mxu0 0
        %2181 = vmatpush1.bf16.msra.mxu0 %v1464
        %2182 = vmatprep.subr.bf16.mxu0 0
        %2183 = vmatpush1.bf16.msra.mxu0 %v1455
        %2184 = vmatprep.subr.bf16.mxu0 0
        %2185 = vmatpush1.bf16.msra.mxu0 %v1446
        %2186 = vmatprep.subr.bf16.mxu0 0
        %2187 = vmatpush1.bf16.msra.mxu0 %v1437
        %2188 = vmatprep.subr.bf16.mxu0 0
        %2189 = vmatpush1.bf16.msra.mxu0 %v1428
        %2190 = vmatprep.subr.bf16.mxu0 0
        %2191 = vmatpush1.bf16.msra.mxu0 %v1419
        %2192 = vmatprep.subr.bf16.mxu0 0
        %2193 = vmatpush1.bf16.msra.mxu0 %v1410
        %2194 = vmatprep.subr.bf16.mxu0 0
        %2195 = vmatpush2.bf16.msra.mxu0 %v1545
        %2196 = vmatprep.subr.bf16.mxu0 0
        %2197 = vmatpush2.bf16.msra.mxu0 %v1536
        %2198 = vmatprep.subr.bf16.mxu0 0
        %2199 = vmatpush2.bf16.msra.mxu0 %v1527
        %2200 = vmatprep.subr.bf16.mxu0 0
        %2201 = vmatpush2.bf16.msra.mxu0 %v1518
        %2202 = vmatprep.subr.bf16.mxu0 0
        %2203 = vmatpush2.bf16.msra.mxu0 %v1509
        %2204 = vmatprep.subr.bf16.mxu0 0
        %2205 = vmatpush2.bf16.msra.mxu0 %v1500
        %2206 = vmatprep.subr.bf16.mxu0 0
        %2207 = vmatpush2.bf16.msra.mxu0 %v1491
        %2208 = vmatprep.subr.bf16.mxu0 0
        %2209 = vmatpush2.bf16.msra.mxu0 %v1482
        %2210 = vmatprep.mubr.bf16.mxu0 %v488
        %2211 = vmatmul.mubr.bf16.gmra.mxu0 %v487
        %v2212 = vpop.f32.mrf.mxu0
        %v2213 = vadd.f32 0.0, %v2212
        %v2214 = vpop.f32.mrf.mxu0
        %v2215 = vpop.f32.mrf.mxu0
        %v2216 = vadd.f32 0.0, %v2215
        %v2217 = vpop.f32.mrf.mxu0
        %2218 = vdwg.mxu0
        %2219 = vmatprep.subr.bf16.mxu0 0
        %2220 = vmatpush1.bf16.msra.mxu0 %v1617
        %2221 = vmatprep.subr.bf16.mxu0 0
        %2222 = vmatpush1.bf16.msra.mxu0 %v1608
        %2223 = vmatprep.subr.bf16.mxu0 0
        %2224 = vmatpush1.bf16.msra.mxu0 %v1599
        %2225 = vmatprep.subr.bf16.mxu0 0
        %2226 = vmatpush1.bf16.msra.mxu0 %v1590
        %2227 = vmatprep.subr.bf16.mxu0 0
        %2228 = vmatpush1.bf16.msra.mxu0 %v1581
        %2229 = vmatprep.subr.bf16.mxu0 0
        %2230 = vmatpush1.bf16.msra.mxu0 %v1572
        %2231 = vmatprep.subr.bf16.mxu0 0
        %2232 = vmatpush1.bf16.msra.mxu0 %v1563
        %2233 = vmatprep.subr.bf16.mxu0 0
        %2234 = vmatpush1.bf16.msra.mxu0 %v1554
        %2235 = vmatprep.subr.bf16.mxu0 0
        %2236 = vmatpush2.bf16.msra.mxu0 0
        %2237 = vmatprep.subr.bf16.mxu0 0
        %2238 = vmatpush2.bf16.msra.mxu0 0
        %2239 = vmatprep.subr.bf16.mxu0 0
        %2240 = vmatpush2.bf16.msra.mxu0 0
        %2241 = vmatprep.subr.bf16.mxu0 0
        %2242 = vmatpush2.bf16.msra.mxu0 0
        %2243 = vmatprep.subr.bf16.mxu0 0
        %2244 = vmatpush2.bf16.msra.mxu0 0
        %2245 = vmatprep.subr.bf16.mxu0 0
        %2246 = vmatpush2.bf16.msra.mxu0 0
        %2247 = vmatprep.subr.bf16.mxu0 0
        %2248 = vmatpush2.bf16.msra.mxu0 0
        %2249 = vmatprep.subr.bf16.mxu0 0
        %2250 = vmatpush2.bf16.msra.mxu0 0
        %2251 = vmatprep.mubr.bf16.mxu0 0
        %2252 = vmatmul.mubr.bf16.gmra.mxu0 %v489
        %v2253 = vpop.f32.mrf.mxu0
        %v2254 = vadd.f32 %v2213, %v2253
        %v2255 = vpop.f32.mrf.mxu0
        %v2256 = vpop.f32.mrf.mxu0
        %v2257 = vadd.f32 %v2216, %v2256
        %v2258 = vpop.f32.mrf.mxu0
        %2259 = vdwg.mxu0
        %v2260 = vmul.f32 %v1912, 0.125
        %v2261 = vmul.f32 %v1914, 0.125
        %v2262 = vmul.f32 %v1998, 0.125
        %v2263 = vmul.f32 %v1916, 0.125
        %v2264 = vmul.f32 %v1918, 0.125
        %v2265 = vmul.f32 %v2002, 0.125
        %v2266 = vpack.c.bf16 %v2260, %v2260
        %v2267 = vpack.c.bf16 %v2261, %v2261
        %v2268 = vpack.c.bf16 %v2262, %v2262
        %v2269 = vpack.c.bf16 %v2263, %v2263
        %v2270 = vpack.c.bf16 %v2264, %v2264
        %v2271 = vpack.c.bf16 %v2265, %v2265
        %v2272 = vpack.c.bf16 %v2000, %v2000
        %v2273 = vpack.c.bf16 %v2084, %v2084
        %v2274 = vpack.c.bf16 %v2086, %v2086
        %v2275 = vpack.c.bf16 %v2004, %v2004
        %v2276 = vpack.c.bf16 %v2088, %v2088
        %v2277 = vpack.c.bf16 %v2090, %v2090
        %v2278 = vpack.c.bf16 %v2170, %v2170
        %v2279 = vpack.c.bf16 %v2172, %v2172
        %v2280 = vpack.c.bf16 %v2254, %v2254
        %v2281 = vpack.c.bf16 %v2174, %v2174
        %v2282 = vpack.c.bf16 %v2176, %v2176
        %v2283 = vpack.c.bf16 %v2257, %v2257
        %v2284 = vlaneseq
        %v2285 = vshrl.u32 %v2284, 7
        %v2286 = vlaneseq
        %v2287 = vand.u32 %v2286, 127
        %vm2288 = vcmp.le.s32.totalorder %v2287, %v2285
        %vm2289 = vcmask 523264
        %v2291 = vsel %vm2289, %v2266, 0
        %v2294 = vsel %vm2289, %v2272, 0
        %2296 = vmatprep.subr.bf16.mxu0 0
        %2297 = vmatpush1.bf16.xpose.msra.mxu0 0
        %2298 = vmatprep.subr.bf16.mxu0 0
        %2299 = vmatpush1.bf16.xpose.msra.mxu0 0
        %2300 = vmatprep.subr.bf16.mxu0 0
        %2301 = vmatpush1.bf16.xpose.msra.mxu0 0
        %2302 = vmatprep.subr.bf16.mxu0 0
        %2303 = vmatpush1.bf16.xpose.msra.mxu0 0
        %2304 = vmatprep.subr.bf16.mxu0 0
        %2305 = vmatpush1.bf16.xpose.msra.mxu0 0
        %2306 = vmatprep.subr.bf16.mxu0 0
        %2307 = vmatpush1.bf16.xpose.msra.mxu0 0
        %2308 = vmatprep.subr.bf16.mxu0 0
        %2309 = vmatpush1.bf16.xpose.msra.mxu0 0
        %2310 = vmatprep.subr.bf16.mxu0 0
        %2311 = vmatpush1.bf16.xpose.msra.mxu0 %v2294
        %2312 = vmatprep.subr.bf16.mxu0 0
        %2313 = vmatpush2.bf16.xpose.msra.mxu0 0
        %2314 = vmatprep.subr.bf16.mxu0 0
        %2315 = vmatpush2.bf16.xpose.msra.mxu0 0
        %2316 = vmatprep.subr.bf16.mxu0 0
        %2317 = vmatpush2.bf16.xpose.msra.mxu0 0
        %2318 = vmatprep.subr.bf16.mxu0 0
        %2319 = vmatpush2.bf16.xpose.msra.mxu0 0
        %2320 = vmatprep.subr.bf16.mxu0 0
        %2321 = vmatpush2.bf16.xpose.msra.mxu0 0
        %2322 = vmatprep.subr.bf16.mxu0 0
        %2323 = vmatpush2.bf16.xpose.msra.mxu0 0
        %2324 = vmatprep.subr.bf16.mxu0 0
        %2325 = vmatpush2.bf16.xpose.msra.mxu0 0
        %2326 = vmatprep.subr.bf16.mxu0 0
        %2327 = vmatpush2.bf16.xpose.msra.mxu0 0
        %2328 = vmatprep.mubr.bf16.mxu0 0
        %2329 = vmatmul.mubr.bf16.gmra.mxu0 %v2291
        %v2330 = vpop.f32.mrf.mxu0
        %v2331 = vadd.f32 0.0, %v2330
        %v2332 = vpop.f32.mrf.mxu0
        %v2333 = vpop.f32.mrf.mxu0
        %v2334 = vpop.f32.mrf.mxu0
        %2335 = vdwg.mxu0
        %v2337 = vsel %vm2289, %v2269, 0
        %v2340 = vsel %vm2289, %v2275, 0
        %2342 = vmatprep.subr.bf16.mxu0 0
        %2343 = vmatpush1.bf16.xpose.msra.mxu0 0
        %2344 = vmatprep.subr.bf16.mxu0 0
        %2345 = vmatpush1.bf16.xpose.msra.mxu0 0
        %2346 = vmatprep.subr.bf16.mxu0 0
        %2347 = vmatpush1.bf16.xpose.msra.mxu0 0
        %2348 = vmatprep.subr.bf16.mxu0 0
        %2349 = vmatpush1.bf16.xpose.msra.mxu0 0
        %2350 = vmatprep.subr.bf16.mxu0 0
        %2351 = vmatpush1.bf16.xpose.msra.mxu0 0
        %2352 = vmatprep.subr.bf16.mxu0 0
        %2353 = vmatpush1.bf16.xpose.msra.mxu0 0
        %2354 = vmatprep.subr.bf16.mxu0 0
        %2355 = vmatpush1.bf16.xpose.msra.mxu0 0
        %2356 = vmatprep.subr.bf16.mxu0 0
        %2357 = vmatpush1.bf16.xpose.msra.mxu0 %v2340
        %2358 = vmatprep.subr.bf16.mxu0 0
        %2359 = vmatpush2.bf16.xpose.msra.mxu0 0
        %2360 = vmatprep.subr.bf16.mxu0 0
        %2361 = vmatpush2.bf16.xpose.msra.mxu0 0
        %2362 = vmatprep.subr.bf16.mxu0 0
        %2363 = vmatpush2.bf16.xpose.msra.mxu0 0
        %2364 = vmatprep.subr.bf16.mxu0 0
        %2365 = vmatpush2.bf16.xpose.msra.mxu0 0
        %2366 = vmatprep.subr.bf16.mxu0 0
        %2367 = vmatpush2.bf16.xpose.msra.mxu0 0
        %2368 = vmatprep.subr.bf16.mxu0 0
        %2369 = vmatpush2.bf16.xpose.msra.mxu0 0
        %2370 = vmatprep.subr.bf16.mxu0 0
        %2371 = vmatpush2.bf16.xpose.msra.mxu0 0
        %2372 = vmatprep.subr.bf16.mxu0 0
        %2373 = vmatpush2.bf16.xpose.msra.mxu0 0
        %2374 = vmatprep.mubr.bf16.mxu0 0
        %2375 = vmatmul.mubr.bf16.gmra.mxu0 %v2337
        %v2376 = vpop.f32.mrf.mxu0
        %v2377 = vadd.f32 0.0, %v2376
        %v2378 = vpop.f32.mrf.mxu0
        %v2379 = vpop.f32.mrf.mxu0
        %v2380 = vpop.f32.mrf.mxu0
        %2381 = vdwg.mxu0
        %v2382 = vsel %vm2288, 1, 0
        %vm2383 = vcmp.eq.s32.totalorder %v2382, 1
        %v2384 = vsel %vm2383, %v2331, -inf
        %v2385 = vsel %vm2383, %v2377, -inf
        %vm2386 = vcmask 64512
        %v2387 = vsel %vm2386, %v2384, -inf
        %2388 = vmax.xlane.f32.xlu0 %v2387
        %v2389 = vpop.xlane.xlu0 %2388
        %v2390 = vsel %vm2386, %v2385, -inf
        %2391 = vmax.xlane.f32.xlu0 %v2390
        %v2392 = vpop.xlane.xlu0 %2391
        %v2393 = vsub.f32 %v2384, %v2389
        %v2394 = vsub.f32 %v2385, %v2392
        %v2395 = vmul.f32 %v2393, 1.442695
        %v2396 = vpow.pop %v2395
        %v2397 = vmul.f32 %v2394, 1.442695
        %v2398 = vpow.pop %v2397
        %v2399 = vsel %vm2386, %v2396, 0.0
        %2400 = vadd.xlane.f32.xlu0 %v2399
        %v2401 = vpop.xlane.xlu0 %2400
        %v2402 = vsel %vm2386, %v2398, 0.0
        %2403 = vadd.xlane.f32.xlu0 %v2402
        %v2404 = vpop.xlane.xlu0 %2403
        %v2405 = vrcp.pop %v2401
        %v2406 = vrcp.pop %v2404
        %v2407 = vmul.f32 %v2396, %v2405
        %v2408 = vmul.f32 %v2398, %v2406
        %v2409 = vpack.c.bf16 %v2407, %v2407
        %v2410 = vpack.c.bf16 %v2408, %v2408
        %v2412 = vsel %vm2386, %v2409, 0
        %vm2414 = vcmask 1043456
        %v2416 = vsel %vm2414, %v2278, 0
        %2418 = vmatprep.subr.bf16.mxu0 0
        %2419 = vmatpush1.bf16.msra.mxu0 0
        %2420 = vmatprep.subr.bf16.mxu0 0
        %2421 = vmatpush1.bf16.msra.mxu0 0
        %2422 = vmatprep.subr.bf16.mxu0 0
        %2423 = vmatpush1.bf16.msra.mxu0 0
        %2424 = vmatprep.subr.bf16.mxu0 0
        %2425 = vmatpush1.bf16.msra.mxu0 0
        %2426 = vmatprep.subr.bf16.mxu0 0
        %2427 = vmatpush1.bf16.msra.mxu0 0
        %2428 = vmatprep.subr.bf16.mxu0 0
        %2429 = vmatpush1.bf16.msra.mxu0 0
        %2430 = vmatprep.subr.bf16.mxu0 0
        %2431 = vmatpush1.bf16.msra.mxu0 0
        %2432 = vmatprep.subr.bf16.mxu0 0
        %2433 = vmatpush1.bf16.msra.mxu0 %v2416
        %2434 = vmatprep.subr.bf16.mxu0 0
        %2435 = vmatpush2.bf16.msra.mxu0 0
        %2436 = vmatprep.subr.bf16.mxu0 0
        %2437 = vmatpush2.bf16.msra.mxu0 0
        %2438 = vmatprep.subr.bf16.mxu0 0
        %2439 = vmatpush2.bf16.msra.mxu0 0
        %2440 = vmatprep.subr.bf16.mxu0 0
        %2441 = vmatpush2.bf16.msra.mxu0 0
        %2442 = vmatprep.subr.bf16.mxu0 0
        %2443 = vmatpush2.bf16.msra.mxu0 0
        %2444 = vmatprep.subr.bf16.mxu0 0
        %2445 = vmatpush2.bf16.msra.mxu0 0
        %2446 = vmatprep.subr.bf16.mxu0 0
        %2447 = vmatpush2.bf16.msra.mxu0 0
        %2448 = vmatprep.subr.bf16.mxu0 0
        %2449 = vmatpush2.bf16.msra.mxu0 0
        %2450 = vmatprep.mubr.bf16.mxu0 0
        %2451 = vmatmul.mubr.bf16.gmra.mxu0 %v2412
        %v2452 = vpop.f32.mrf.mxu0
        %v2453 = vadd.f32 0.0, %v2452
        %v2454 = vpop.f32.mrf.mxu0
        %v2455 = vpop.f32.mrf.mxu0
        %v2456 = vpop.f32.mrf.mxu0
        %2457 = vdwg.mxu0
        %v2459 = vsel %vm2386, %v2410, 0
        %v2462 = vsel %vm2414, %v2281, 0
        %2464 = vmatprep.subr.bf16.mxu0 0
        %2465 = vmatpush1.bf16.msra.mxu0 0
        %2466 = vmatprep.subr.bf16.mxu0 0
        %2467 = vmatpush1.bf16.msra.mxu0 0
        %2468 = vmatprep.subr.bf16.mxu0 0
        %2469 = vmatpush1.bf16.msra.mxu0 0
        %2470 = vmatprep.subr.bf16.mxu0 0
        %2471 = vmatpush1.bf16.msra.mxu0 0
        %2472 = vmatprep.subr.bf16.mxu0 0
        %2473 = vmatpush1.bf16.msra.mxu0 0
        %2474 = vmatprep.subr.bf16.mxu0 0
        %2475 = vmatpush1.bf16.msra.mxu0 0
        %2476 = vmatprep.subr.bf16.mxu0 0
        %2477 = vmatpush1.bf16.msra.mxu0 0
        %2478 = vmatprep.subr.bf16.mxu0 0
        %2479 = vmatpush1.bf16.msra.mxu0 %v2462
        %2480 = vmatprep.subr.bf16.mxu0 0
        %2481 = vmatpush2.bf16.msra.mxu0 0
        %2482 = vmatprep.subr.bf16.mxu0 0
        %2483 = vmatpush2.bf16.msra.mxu0 0
        %2484 = vmatprep.subr.bf16.mxu0 0
        %2485 = vmatpush2.bf16.msra.mxu0 0
        %2486 = vmatprep.subr.bf16.mxu0 0
        %2487 = vmatpush2.bf16.msra.mxu0 0
        %2488 = vmatprep.subr.bf16.mxu0 0
        %2489 = vmatpush2.bf16.msra.mxu0 0
        %2490 = vmatprep.subr.bf16.mxu0 0
        %2491 = vmatpush2.bf16.msra.mxu0 0
        %2492 = vmatprep.subr.bf16.mxu0 0
        %2493 = vmatpush2.bf16.msra.mxu0 0
        %2494 = vmatprep.subr.bf16.mxu0 0
        %2495 = vmatpush2.bf16.msra.mxu0 0
        %2496 = vmatprep.mubr.bf16.mxu0 0
        %2497 = vmatmul.mubr.bf16.gmra.mxu0 %v2459
        %v2498 = vpop.f32.mrf.mxu0
        %v2499 = vadd.f32 0.0, %v2498
        %v2500 = vpop.f32.mrf.mxu0
        %v2501 = vpop.f32.mrf.mxu0
        %v2502 = vpop.f32.mrf.mxu0
        %2503 = vdwg.mxu0
        %v2504 = vld [vmem:[%s303 + $0x24] sm:$0xff]
        %v2505 = vld [vmem:[%s303 + $0x2c] sm:$0xf]
        %v2506 = vld [vmem:[%s303 + $0x84] sm:$0xff]
        %v2507 = vld [vmem:[%s303 + $0x8c] sm:$0xf]
        %v2508 = vld [vmem:[%s303 + $0xe4] sm:$0xff]
        %v2509 = vld [vmem:[%s303 + $0xec] sm:$0xf]
        %v2510 = vld [vmem:[%s303 + $0x144] sm:$0xff]
        %v2511 = vld [vmem:[%s303 + $0x14c] sm:$0xf]
        %v2512 = vld [vmem:[%s303 + $0x1a4] sm:$0xff]
        %v2513 = vld [vmem:[%s303 + $0x1ac] sm:$0xf]
        %v2514 = vld [vmem:[%s303 + $0x204] sm:$0xff]
        %v2515 = vld [vmem:[%s303 + $0x20c] sm:$0xf]
        %v2516 = vld [vmem:[%s303 + $0x264] sm:$0xff]
        %v2517 = vld [vmem:[%s303 + $0x26c] sm:$0xf]
        %v2518 = vld [vmem:[%s303 + $0x2c4] sm:$0xff]
        %v2519 = vld [vmem:[%s303 + $0x2cc] sm:$0xf]
        %v2520 = vpack.c.bf16 %v2499, %v2453
        %2522 = vrot.lane.b32.xlu0 %v2266, 64
        %v2523 = vpop.permute.xlu0 %2522
        %2525 = vrot.lane.b32.xlu0 %v2272, 64
        %v2526 = vpop.permute.xlu0 %2525
        %v2528 = vsel %vm2289, %v2523, 0
        %v2531 = vsel %vm2289, %v2526, 0
        %2533 = vmatprep.subr.bf16.mxu0 0
        %2534 = vmatpush1.bf16.xpose.msra.mxu0 0
        %2535 = vmatprep.subr.bf16.mxu0 0
        %2536 = vmatpush1.bf16.xpose.msra.mxu0 0
        %2537 = vmatprep.subr.bf16.mxu0 0
        %2538 = vmatpush1.bf16.xpose.msra.mxu0 0
        %2539 = vmatprep.subr.bf16.mxu0 0
        %2540 = vmatpush1.bf16.xpose.msra.mxu0 0
        %2541 = vmatprep.subr.bf16.mxu0 0
        %2542 = vmatpush1.bf16.xpose.msra.mxu0 0
        %2543 = vmatprep.subr.bf16.mxu0 0
        %2544 = vmatpush1.bf16.xpose.msra.mxu0 0
        %2545 = vmatprep.subr.bf16.mxu0 0
        %2546 = vmatpush1.bf16.xpose.msra.mxu0 0
        %2547 = vmatprep.subr.bf16.mxu0 0
        %2548 = vmatpush1.bf16.xpose.msra.mxu0 %v2531
        %2549 = vmatprep.subr.bf16.mxu0 0
        %2550 = vmatpush2.bf16.xpose.msra.mxu0 0
        %2551 = vmatprep.subr.bf16.mxu0 0
        %2552 = vmatpush2.bf16.xpose.msra.mxu0 0
        %2553 = vmatprep.subr.bf16.mxu0 0
        %2554 = vmatpush2.bf16.xpose.msra.mxu0 0
        %2555 = vmatprep.subr.bf16.mxu0 0
        %2556 = vmatpush2.bf16.xpose.msra.mxu0 0
        %2557 = vmatprep.subr.bf16.mxu0 0
        %2558 = vmatpush2.bf16.xpose.msra.mxu0 0
        %2559 = vmatprep.subr.bf16.mxu0 0
        %2560 = vmatpush2.bf16.xpose.msra.mxu0 0
        %2561 = vmatprep.subr.bf16.mxu0 0
        %2562 = vmatpush2.bf16.xpose.msra.mxu0 0
        %2563 = vmatprep.subr.bf16.mxu0 0
        %2564 = vmatpush2.bf16.xpose.msra.mxu0 0
        %2565 = vmatprep.mubr.bf16.mxu0 0
        %2566 = vmatmul.mubr.bf16.gmra.mxu0 %v2528
        %v2567 = vpop.f32.mrf.mxu0
        %v2568 = vadd.f32 0.0, %v2567
        %v2569 = vpop.f32.mrf.mxu0
        %v2570 = vpop.f32.mrf.mxu0
        %v2571 = vpop.f32.mrf.mxu0
        %2572 = vdwg.mxu0
        %2574 = vrot.lane.b32.xlu0 %v2269, 64
        %v2575 = vpop.permute.xlu0 %2574
        %2577 = vrot.lane.b32.xlu0 %v2275, 64
        %v2578 = vpop.permute.xlu0 %2577
        %v2580 = vsel %vm2289, %v2575, 0
        %v2583 = vsel %vm2289, %v2578, 0
        %2585 = vmatprep.subr.bf16.mxu0 0
        %2586 = vmatpush1.bf16.xpose.msra.mxu0 0
        %2587 = vmatprep.subr.bf16.mxu0 0
        %2588 = vmatpush1.bf16.xpose.msra.mxu0 0
        %2589 = vmatprep.subr.bf16.mxu0 0
        %2590 = vmatpush1.bf16.xpose.msra.mxu0 0
        %2591 = vmatprep.subr.bf16.mxu0 0
        %2592 = vmatpush1.bf16.xpose.msra.mxu0 0
        %2593 = vmatprep.subr.bf16.mxu0 0
        %2594 = vmatpush1.bf16.xpose.msra.mxu0 0
        %2595 = vmatprep.subr.bf16.mxu0 0
        %2596 = vmatpush1.bf16.xpose.msra.mxu0 0
        %2597 = vmatprep.subr.bf16.mxu0 0
        %2598 = vmatpush1.bf16.xpose.msra.mxu0 0
        %2599 = vmatprep.subr.bf16.mxu0 0
        %2600 = vmatpush1.bf16.xpose.msra.mxu0 %v2583
        %2601 = vmatprep.subr.bf16.mxu0 0
        %2602 = vmatpush2.bf16.xpose.msra.mxu0 0
        %2603 = vmatprep.subr.bf16.mxu0 0
        %2604 = vmatpush2.bf16.xpose.msra.mxu0 0
        %2605 = vmatprep.subr.bf16.mxu0 0
        %2606 = vmatpush2.bf16.xpose.msra.mxu0 0
        %2607 = vmatprep.subr.bf16.mxu0 0
        %2608 = vmatpush2.bf16.xpose.msra.mxu0 0
        %2609 = vmatprep.subr.bf16.mxu0 0
        %2610 = vmatpush2.bf16.xpose.msra.mxu0 0
        %2611 = vmatprep.subr.bf16.mxu0 0
        %2612 = vmatpush2.bf16.xpose.msra.mxu0 0
        %2613 = vmatprep.subr.bf16.mxu0 0
        %2614 = vmatpush2.bf16.xpose.msra.mxu0 0
        %2615 = vmatprep.subr.bf16.mxu0 0
        %2616 = vmatpush2.bf16.xpose.msra.mxu0 0
        %2617 = vmatprep.mubr.bf16.mxu0 0
        %2618 = vmatmul.mubr.bf16.gmra.mxu0 %v2580
        %v2619 = vpop.f32.mrf.mxu0
        %v2620 = vadd.f32 0.0, %v2619
        %v2621 = vpop.f32.mrf.mxu0
        %v2622 = vpop.f32.mrf.mxu0
        %v2623 = vpop.f32.mrf.mxu0
        %2624 = vdwg.mxu0
        %v2625 = vsel %vm2383, %v2568, -inf
        %v2626 = vsel %vm2383, %v2620, -inf
        %v2627 = vsel %vm2386, %v2625, -inf
        %2628 = vmax.xlane.f32.xlu0 %v2627
        %v2629 = vpop.xlane.xlu0 %2628
        %v2630 = vsel %vm2386, %v2626, -inf
        %2631 = vmax.xlane.f32.xlu0 %v2630
        %v2632 = vpop.xlane.xlu0 %2631
        %v2633 = vsub.f32 %v2625, %v2629
        %v2634 = vsub.f32 %v2626, %v2632
        %v2635 = vmul.f32 %v2633, 1.442695
        %v2636 = vpow.pop %v2635
        %v2637 = vmul.f32 %v2634, 1.442695
        %v2638 = vpow.pop %v2637
        %v2639 = vsel %vm2386, %v2636, 0.0
        %2640 = vadd.xlane.f32.xlu0 %v2639
        %v2641 = vpop.xlane.xlu0 %2640
        %v2642 = vsel %vm2386, %v2638, 0.0
        %2643 = vadd.xlane.f32.xlu0 %v2642
        %v2644 = vpop.xlane.xlu0 %2643
        %v2645 = vrcp.pop %v2641
        %v2646 = vrcp.pop %v2644
        %v2647 = vmul.f32 %v2636, %v2645
        %v2648 = vmul.f32 %v2638, %v2646
        %v2649 = vpack.c.bf16 %v2647, %v2647
        %v2650 = vpack.c.bf16 %v2648, %v2648
        %2652 = vrot.lane.b32.xlu0 %v2278, 64
        %v2653 = vpop.permute.xlu0 %2652
        %v2655 = vsel %vm2386, %v2649, 0
        %v2658 = vsel %vm2414, %v2653, 0
        %2660 = vmatprep.subr.bf16.mxu0 0
        %2661 = vmatpush1.bf16.msra.mxu0 0
        %2662 = vmatprep.subr.bf16.mxu0 0
        %2663 = vmatpush1.bf16.msra.mxu0 0
        %2664 = vmatprep.subr.bf16.mxu0 0
        %2665 = vmatpush1.bf16.msra.mxu0 0
        %2666 = vmatprep.subr.bf16.mxu0 0
        %2667 = vmatpush1.bf16.msra.mxu0 0
        %2668 = vmatprep.subr.bf16.mxu0 0
        %2669 = vmatpush1.bf16.msra.mxu0 0
        %2670 = vmatprep.subr.bf16.mxu0 0
        %2671 = vmatpush1.bf16.msra.mxu0 0
        %2672 = vmatprep.subr.bf16.mxu0 0
        %2673 = vmatpush1.bf16.msra.mxu0 0
        %2674 = vmatprep.subr.bf16.mxu0 0
        %2675 = vmatpush1.bf16.msra.mxu0 %v2658
        %2676 = vmatprep.subr.bf16.mxu0 0
        %2677 = vmatpush2.bf16.msra.mxu0 0
        %2678 = vmatprep.subr.bf16.mxu0 0
        %2679 = vmatpush2.bf16.msra.mxu0 0
        %2680 = vmatprep.subr.bf16.mxu0 0
        %2681 = vmatpush2.bf16.msra.mxu0 0
        %2682 = vmatprep.subr.bf16.mxu0 0
        %2683 = vmatpush2.bf16.msra.mxu0 0
        %2684 = vmatprep.subr.bf16.mxu0 0
        %2685 = vmatpush2.bf16.msra.mxu0 0
        %2686 = vmatprep.subr.bf16.mxu0 0
        %2687 = vmatpush2.bf16.msra.mxu0 0
        %2688 = vmatprep.subr.bf16.mxu0 0
        %2689 = vmatpush2.bf16.msra.mxu0 0
        %2690 = vmatprep.subr.bf16.mxu0 0
        %2691 = vmatpush2.bf16.msra.mxu0 0
        %2692 = vmatprep.mubr.bf16.mxu0 0
        %2693 = vmatmul.mubr.bf16.gmra.mxu0 %v2655
        %v2694 = vpop.f32.mrf.mxu0
        %v2695 = vadd.f32 0.0, %v2694
        %v2696 = vpop.f32.mrf.mxu0
        %v2697 = vpop.f32.mrf.mxu0
        %v2698 = vpop.f32.mrf.mxu0
        %2699 = vdwg.mxu0
        %2701 = vrot.lane.b32.xlu0 %v2281, 64
        %v2702 = vpop.permute.xlu0 %2701
        %v2704 = vsel %vm2386, %v2650, 0
        %v2707 = vsel %vm2414, %v2702, 0
        %2709 = vmatprep.subr.bf16.mxu0 0
        %2710 = vmatpush1.bf16.msra.mxu0 0
        %2711 = vmatprep.subr.bf16.mxu0 0
        %2712 = vmatpush1.bf16.msra.mxu0 0
        %2713 = vmatprep.subr.bf16.mxu0 0
        %2714 = vmatpush1.bf16.msra.mxu0 0
        %2715 = vmatprep.subr.bf16.mxu0 0
        %2716 = vmatpush1.bf16.msra.mxu0 0
        %2717 = vmatprep.subr.bf16.mxu0 0
        %2718 = vmatpush1.bf16.msra.mxu0 0
        %2719 = vmatprep.subr.bf16.mxu0 0
        %2720 = vmatpush1.bf16.msra.mxu0 0
        %2721 = vmatprep.subr.bf16.mxu0 0
        %2722 = vmatpush1.bf16.msra.mxu0 0
        %2723 = vmatprep.subr.bf16.mxu0 0
        %2724 = vmatpush1.bf16.msra.mxu0 %v2707
        %2725 = vmatprep.subr.bf16.mxu0 0
        %2726 = vmatpush2.bf16.msra.mxu0 0
        %2727 = vmatprep.subr.bf16.mxu0 0
        %2728 = vmatpush2.bf16.msra.mxu0 0
        %2729 = vmatprep.subr.bf16.mxu0 0
        %2730 = vmatpush2.bf16.msra.mxu0 0
        %2731 = vmatprep.subr.bf16.mxu0 0
        %2732 = vmatpush2.bf16.msra.mxu0 0
        %2733 = vmatprep.subr.bf16.mxu0 0
        %2734 = vmatpush2.bf16.msra.mxu0 0
        %2735 = vmatprep.subr.bf16.mxu0 0
        %2736 = vmatpush2.bf16.msra.mxu0 0
        %2737 = vmatprep.subr.bf16.mxu0 0
        %2738 = vmatpush2.bf16.msra.mxu0 0
        %2739 = vmatprep.subr.bf16.mxu0 0
        %2740 = vmatpush2.bf16.msra.mxu0 0
        %2741 = vmatprep.mubr.bf16.mxu0 0
        %2742 = vmatmul.mubr.bf16.gmra.mxu0 %v2704
        %v2743 = vpop.f32.mrf.mxu0
        %v2744 = vadd.f32 0.0, %v2743
        %v2745 = vpop.f32.mrf.mxu0
        %v2746 = vpop.f32.mrf.mxu0
        %v2747 = vpop.f32.mrf.mxu0
        %2748 = vdwg.mxu0
        %v2749 = vld [vmem:[%s303 + $0x324] sm:$0xff]
        %v2750 = vld [vmem:[%s303 + $0x32c] sm:$0xf]
        %v2751 = vld [vmem:[%s303 + $0x384] sm:$0xff]
        %v2752 = vld [vmem:[%s303 + $0x38c] sm:$0xf]
        %v2753 = vld [vmem:[%s303 + $0x3e4] sm:$0xff]
        %v2754 = vld [vmem:[%s303 + $0x3ec] sm:$0xf]
        %v2755 = vld [vmem:[%s303 + $0x444] sm:$0xff]
        %v2756 = vld [vmem:[%s303 + $0x44c] sm:$0xf]
        %v2757 = vld [vmem:[%s303 + $0x4a4] sm:$0xff]
        %v2758 = vld [vmem:[%s303 + $0x4ac] sm:$0xf]
        %v2759 = vld [vmem:[%s303 + $0x504] sm:$0xff]
        %v2760 = vld [vmem:[%s303 + $0x50c] sm:$0xf]
        %v2761 = vld [vmem:[%s303 + $0x564] sm:$0xff]
        %v2762 = vld [vmem:[%s303 + $0x56c] sm:$0xf]
        %v2763 = vld [vmem:[%s303 + $0x5c4] sm:$0xff]
        %v2764 = vld [vmem:[%s303 + $0x5cc] sm:$0xf]
        %v2765 = vpack.c.bf16 %v2744, %v2695
        %v2782 = vunpack.c.l.b16 %v2749
        %v2783 = vunpack.c.h.b16 %v2749
        %v2784 = vunpack.c.l.b16 %v2750
        %v2785 = vunpack.c.l.b16 %v2751
        %v2786 = vunpack.c.h.b16 %v2751
        %v2787 = vunpack.c.l.b16 %v2752
        %v2788 = vunpack.c.l.b16 %v2753
        %v2789 = vunpack.c.h.b16 %v2753
        %v2790 = vunpack.c.l.b16 %v2754
        %v2791 = vunpack.c.l.b16 %v2755
        %v2792 = vunpack.c.h.b16 %v2755
        %v2793 = vunpack.c.l.b16 %v2756
        %v2794 = vunpack.c.l.b16 %v2757
        %v2795 = vunpack.c.h.b16 %v2757
        %v2796 = vunpack.c.l.b16 %v2758
        %v2797 = vunpack.c.l.b16 %v2759
        %v2798 = vunpack.c.h.b16 %v2759
        %v2799 = vunpack.c.l.b16 %v2760
        %v2800 = vunpack.c.l.b16 %v2761
        %v2801 = vunpack.c.h.b16 %v2761
        %v2802 = vunpack.c.l.b16 %v2762
        %v2803 = vunpack.c.l.b16 %v2763
        %v2804 = vunpack.c.h.b16 %v2763
        %v2805 = vunpack.c.l.b16 %v2764
        %v2806 = vpack.c.b16 %v2785, %v2782
        %v2807 = vpack.c.b16 %v2786, %v2783
        %v2808 = vpack.c.b16 %v2787, %v2784
        %v2809 = vpack.c.b16 %v2791, %v2788
        %v2810 = vpack.c.b16 %v2792, %v2789
        %v2811 = vpack.c.b16 %v2793, %v2790
        %v2812 = vpack.c.b16 %v2797, %v2794
        %v2813 = vpack.c.b16 %v2798, %v2795
        %v2814 = vpack.c.b16 %v2799, %v2796
        %v2815 = vpack.c.b16 %v2803, %v2800
        %v2816 = vpack.c.b16 %v2804, %v2801
        %v2817 = vpack.c.b16 %v2805, %v2802
        %v2831 = vsel %vm2289, %v2765, 0
        %2833 = vmatprep.subr.bf16.mxu0 0
        %2834 = vmatpush1.bf16.msra.mxu0 0
        %2835 = vmatprep.subr.bf16.mxu0 0
        %2836 = vmatpush1.bf16.msra.mxu0 0
        %2837 = vmatprep.subr.bf16.mxu0 0
        %2838 = vmatpush1.bf16.msra.mxu0 0
        %2839 = vmatprep.subr.bf16.mxu0 0
        %2840 = vmatpush1.bf16.msra.mxu0 0
        %2841 = vmatprep.subr.bf16.mxu0 %v2816
        %2842 = vmatpush1.bf16.msra.mxu0 %v2815
        %2843 = vmatprep.subr.bf16.mxu0 %v2813
        %2844 = vmatpush1.bf16.msra.mxu0 %v2812
        %2845 = vmatprep.subr.bf16.mxu0 %v2810
        %2846 = vmatpush1.bf16.msra.mxu0 %v2809
        %2847 = vmatprep.subr.bf16.mxu0 %v2807
        %2848 = vmatpush1.bf16.msra.mxu0 %v2806
        %2849 = vmatprep.subr.bf16.mxu0 0
        %2850 = vmatpush2.bf16.msra.mxu0 0
        %2851 = vmatprep.subr.bf16.mxu0 0
        %2852 = vmatpush2.bf16.msra.mxu0 0
        %2853 = vmatprep.subr.bf16.mxu0 0
        %2854 = vmatpush2.bf16.msra.mxu0 0
        %2855 = vmatprep.subr.bf16.mxu0 0
        %2856 = vmatpush2.bf16.msra.mxu0 0
        %2857 = vmatprep.subr.bf16.mxu0 0
        %2858 = vmatpush2.bf16.msra.mxu0 0
        %2859 = vmatprep.subr.bf16.mxu0 0
        %2860 = vmatpush2.bf16.msra.mxu0 0
        %2861 = vmatprep.subr.bf16.mxu0 0
        %2862 = vmatpush2.bf16.msra.mxu0 0
        %2863 = vmatprep.subr.bf16.mxu0 0
        %2864 = vmatpush2.bf16.msra.mxu0 0
        %2865 = vmatprep.mubr.bf16.mxu0 0
        %2866 = vmatmul.mubr.bf16.gmra.mxu0 %v2831
        %v2867 = vpop.f32.mrf.mxu0
        %v2868 = vadd.f32 0.0, %v2867
        %v2869 = vpop.f32.mrf.mxu0
        %v2870 = vadd.f32 0.0, %v2869
        %v2871 = vpop.f32.mrf.mxu0
        %v2872 = vadd.f32 0.0, %v2871
        %v2873 = vpop.f32.mrf.mxu0
        %v2874 = vadd.f32 0.0, %v2873
        %2875 = vdwg.mxu0
        %2876 = vmatprep.subr.bf16.mxu0 0
        %2877 = vmatpush1.bf16.msra.mxu0 0
        %2878 = vmatprep.subr.bf16.mxu0 0
        %2879 = vmatpush1.bf16.msra.mxu0 0
        %2880 = vmatprep.subr.bf16.mxu0 0
        %2881 = vmatpush1.bf16.msra.mxu0 0
        %2882 = vmatprep.subr.bf16.mxu0 0
        %2883 = vmatpush1.bf16.msra.mxu0 0
        %2884 = vmatprep.subr.bf16.mxu0 0
        %2885 = vmatpush1.bf16.msra.mxu0 %v2817
        %2886 = vmatprep.subr.bf16.mxu0 0
        %2887 = vmatpush1.bf16.msra.mxu0 %v2814
        %2888 = vmatprep.subr.bf16.mxu0 0
        %2889 = vmatpush1.bf16.msra.mxu0 %v2811
        %2890 = vmatprep.subr.bf16.mxu0 0
        %2891 = vmatpush1.bf16.msra.mxu0 %v2808
        %2892 = vmatprep.subr.bf16.mxu0 0
        %2893 = vmatpush2.bf16.msra.mxu0 0
        %2894 = vmatprep.subr.bf16.mxu0 0
        %2895 = vmatpush2.bf16.msra.mxu0 0
        %2896 = vmatprep.subr.bf16.mxu0 0
        %2897 = vmatpush2.bf16.msra.mxu0 0
        %2898 = vmatprep.subr.bf16.mxu0 0
        %2899 = vmatpush2.bf16.msra.mxu0 0
        %2900 = vmatprep.subr.bf16.mxu0 0
        %2901 = vmatpush2.bf16.msra.mxu0 0
        %2902 = vmatprep.subr.bf16.mxu0 0
        %2903 = vmatpush2.bf16.msra.mxu0 0
        %2904 = vmatprep.subr.bf16.mxu0 0
        %2905 = vmatpush2.bf16.msra.mxu0 0
        %2906 = vmatprep.subr.bf16.mxu0 0
        %2907 = vmatpush2.bf16.msra.mxu0 0
        %2908 = vmatprep.mubr.bf16.mxu0 0
        %2909 = vmatmul.mubr.bf16.gmra.mxu0 %v2831
        %v2910 = vpop.f32.mrf.mxu0
        %v2911 = vadd.f32 0.0, %v2910
        %v2912 = vpop.f32.mrf.mxu0
        %v2913 = vpop.f32.mrf.mxu0
        %v2914 = vadd.f32 0.0, %v2913
        %v2915 = vpop.f32.mrf.mxu0
        %2916 = vdwg.mxu0
        %v2933 = vunpack.c.l.b16 %v2504
        %v2934 = vunpack.c.h.b16 %v2504
        %v2935 = vunpack.c.l.b16 %v2505
        %v2936 = vunpack.c.l.b16 %v2506
        %v2937 = vunpack.c.h.b16 %v2506
        %v2938 = vunpack.c.l.b16 %v2507
        %v2939 = vunpack.c.l.b16 %v2508
        %v2940 = vunpack.c.h.b16 %v2508
        %v2941 = vunpack.c.l.b16 %v2509
        %v2942 = vunpack.c.l.b16 %v2510
        %v2943 = vunpack.c.h.b16 %v2510
        %v2944 = vunpack.c.l.b16 %v2511
        %v2945 = vunpack.c.l.b16 %v2512
        %v2946 = vunpack.c.h.b16 %v2512
        %v2947 = vunpack.c.l.b16 %v2513
        %v2948 = vunpack.c.l.b16 %v2514
        %v2949 = vunpack.c.h.b16 %v2514
        %v2950 = vunpack.c.l.b16 %v2515
        %v2951 = vunpack.c.l.b16 %v2516
        %v2952 = vunpack.c.h.b16 %v2516
        %v2953 = vunpack.c.l.b16 %v2517
        %v2954 = vunpack.c.l.b16 %v2518
        %v2955 = vunpack.c.h.b16 %v2518
        %v2956 = vunpack.c.l.b16 %v2519
        %v2957 = vpack.c.b16 %v2936, %v2933
        %v2958 = vpack.c.b16 %v2937, %v2934
        %v2959 = vpack.c.b16 %v2938, %v2935
        %v2960 = vpack.c.b16 %v2942, %v2939
        %v2961 = vpack.c.b16 %v2943, %v2940
        %v2962 = vpack.c.b16 %v2944, %v2941
        %v2963 = vpack.c.b16 %v2948, %v2945
        %v2964 = vpack.c.b16 %v2949, %v2946
        %v2965 = vpack.c.b16 %v2950, %v2947
        %v2966 = vpack.c.b16 %v2954, %v2951
        %v2967 = vpack.c.b16 %v2955, %v2952
        %v2968 = vpack.c.b16 %v2956, %v2953
        %v2982 = vsel %vm2289, %v2520, 0
        %2984 = vmatprep.subr.bf16.mxu0 0
        %2985 = vmatpush1.bf16.msra.mxu0 0
        %2986 = vmatprep.subr.bf16.mxu0 0
        %2987 = vmatpush1.bf16.msra.mxu0 0
        %2988 = vmatprep.subr.bf16.mxu0 0
        %2989 = vmatpush1.bf16.msra.mxu0 0
        %2990 = vmatprep.subr.bf16.mxu0 0
        %2991 = vmatpush1.bf16.msra.mxu0 0
        %2992 = vmatprep.subr.bf16.mxu0 %v2967
        %2993 = vmatpush1.bf16.msra.mxu0 %v2966
        %2994 = vmatprep.subr.bf16.mxu0 %v2964
        %2995 = vmatpush1.bf16.msra.mxu0 %v2963
        %2996 = vmatprep.subr.bf16.mxu0 %v2961
        %2997 = vmatpush1.bf16.msra.mxu0 %v2960
        %2998 = vmatprep.subr.bf16.mxu0 %v2958
        %2999 = vmatpush1.bf16.msra.mxu0 %v2957
        %3000 = vmatprep.subr.bf16.mxu0 0
        %3001 = vmatpush2.bf16.msra.mxu0 0
        %3002 = vmatprep.subr.bf16.mxu0 0
        %3003 = vmatpush2.bf16.msra.mxu0 0
        %3004 = vmatprep.subr.bf16.mxu0 0
        %3005 = vmatpush2.bf16.msra.mxu0 0
        %3006 = vmatprep.subr.bf16.mxu0 0
        %3007 = vmatpush2.bf16.msra.mxu0 0
        %3008 = vmatprep.subr.bf16.mxu0 0
        %3009 = vmatpush2.bf16.msra.mxu0 0
        %3010 = vmatprep.subr.bf16.mxu0 0
        %3011 = vmatpush2.bf16.msra.mxu0 0
        %3012 = vmatprep.subr.bf16.mxu0 0
        %3013 = vmatpush2.bf16.msra.mxu0 0
        %3014 = vmatprep.subr.bf16.mxu0 0
        %3015 = vmatpush2.bf16.msra.mxu0 0
        %3016 = vmatprep.mubr.bf16.mxu0 0
        %3017 = vmatmul.mubr.bf16.gmra.mxu0 %v2982
        %v3018 = vpop.f32.mrf.mxu0
        %v3019 = vadd.f32 %v2868, %v3018
        %v3020 = vpop.f32.mrf.mxu0
        %v3021 = vadd.f32 %v2870, %v3020
        %v3022 = vpop.f32.mrf.mxu0
        %v3023 = vadd.f32 %v2872, %v3022
        %v3024 = vpop.f32.mrf.mxu0
        %v3025 = vadd.f32 %v2874, %v3024
        %3026 = vdwg.mxu0
        %3027 = vmatprep.subr.bf16.mxu0 0
        %3028 = vmatpush1.bf16.msra.mxu0 0
        %3029 = vmatprep.subr.bf16.mxu0 0
        %3030 = vmatpush1.bf16.msra.mxu0 0
        %3031 = vmatprep.subr.bf16.mxu0 0
        %3032 = vmatpush1.bf16.msra.mxu0 0
        %3033 = vmatprep.subr.bf16.mxu0 0
        %3034 = vmatpush1.bf16.msra.mxu0 0
        %3035 = vmatprep.subr.bf16.mxu0 0
        %3036 = vmatpush1.bf16.msra.mxu0 %v2968
        %3037 = vmatprep.subr.bf16.mxu0 0
        %3038 = vmatpush1.bf16.msra.mxu0 %v2965
        %3039 = vmatprep.subr.bf16.mxu0 0
        %3040 = vmatpush1.bf16.msra.mxu0 %v2962
        %3041 = vmatprep.subr.bf16.mxu0 0
        %3042 = vmatpush1.bf16.msra.mxu0 %v2959
        %3043 = vmatprep.subr.bf16.mxu0 0
        %3044 = vmatpush2.bf16.msra.mxu0 0
        %3045 = vmatprep.subr.bf16.mxu0 0
        %3046 = vmatpush2.bf16.msra.mxu0 0
        %3047 = vmatprep.subr.bf16.mxu0 0
        %3048 = vmatpush2.bf16.msra.mxu0 0
        %3049 = vmatprep.subr.bf16.mxu0 0
        %3050 = vmatpush2.bf16.msra.mxu0 0
        %3051 = vmatprep.subr.bf16.mxu0 0
        %3052 = vmatpush2.bf16.msra.mxu0 0
        %3053 = vmatprep.subr.bf16.mxu0 0
        %3054 = vmatpush2.bf16.msra.mxu0 0
        %3055 = vmatprep.subr.bf16.mxu0 0
        %3056 = vmatpush2.bf16.msra.mxu0 0
        %3057 = vmatprep.subr.bf16.mxu0 0
        %3058 = vmatpush2.bf16.msra.mxu0 0
        %3059 = vmatprep.mubr.bf16.mxu0 0
        %3060 = vmatmul.mubr.bf16.gmra.mxu0 %v2982
        %v3061 = vpop.f32.mrf.mxu0
        %v3062 = vadd.f32 %v2911, %v3061
        %v3063 = vpop.f32.mrf.mxu0
        %v3064 = vpop.f32.mrf.mxu0
        %v3065 = vadd.f32 %v2914, %v3064
        %v3066 = vpop.f32.mrf.mxu0
        %3067 = vdwg.mxu0
        %v3069 = vsel %vm2289, %v2267, 0
        %v3072 = vsel %vm2289, %v2273, 0
        %3074 = vmatprep.subr.bf16.mxu0 0
        %3075 = vmatpush1.bf16.xpose.msra.mxu0 0
        %3076 = vmatprep.subr.bf16.mxu0 0
        %3077 = vmatpush1.bf16.xpose.msra.mxu0 0
        %3078 = vmatprep.subr.bf16.mxu0 0
        %3079 = vmatpush1.bf16.xpose.msra.mxu0 0
        %3080 = vmatprep.subr.bf16.mxu0 0
        %3081 = vmatpush1.bf16.xpose.msra.mxu0 0
        %3082 = vmatprep.subr.bf16.mxu0 0
        %3083 = vmatpush1.bf16.xpose.msra.mxu0 0
        %3084 = vmatprep.subr.bf16.mxu0 0
        %3085 = vmatpush1.bf16.xpose.msra.mxu0 0
        %3086 = vmatprep.subr.bf16.mxu0 0
        %3087 = vmatpush1.bf16.xpose.msra.mxu0 0
        %3088 = vmatprep.subr.bf16.mxu0 0
        %3089 = vmatpush1.bf16.xpose.msra.mxu0 %v3072
        %3090 = vmatprep.subr.bf16.mxu0 0
        %3091 = vmatpush2.bf16.xpose.msra.mxu0 0
        %3092 = vmatprep.subr.bf16.mxu0 0
        %3093 = vmatpush2.bf16.xpose.msra.mxu0 0
        %3094 = vmatprep.subr.bf16.mxu0 0
        %3095 = vmatpush2.bf16.xpose.msra.mxu0 0
        %3096 = vmatprep.subr.bf16.mxu0 0
        %3097 = vmatpush2.bf16.xpose.msra.mxu0 0
        %3098 = vmatprep.subr.bf16.mxu0 0
        %3099 = vmatpush2.bf16.xpose.msra.mxu0 0
        %3100 = vmatprep.subr.bf16.mxu0 0
        %3101 = vmatpush2.bf16.xpose.msra.mxu0 0
        %3102 = vmatprep.subr.bf16.mxu0 0
        %3103 = vmatpush2.bf16.xpose.msra.mxu0 0
        %3104 = vmatprep.subr.bf16.mxu0 0
        %3105 = vmatpush2.bf16.xpose.msra.mxu0 0
        %3106 = vmatprep.mubr.bf16.mxu0 0
        %3107 = vmatmul.mubr.bf16.gmra.mxu0 %v3069
        %v3108 = vpop.f32.mrf.mxu0
        %v3109 = vadd.f32 0.0, %v3108
        %v3110 = vpop.f32.mrf.mxu0
        %v3111 = vpop.f32.mrf.mxu0
        %v3112 = vpop.f32.mrf.mxu0
        %3113 = vdwg.mxu0
        %v3115 = vsel %vm2289, %v2270, 0
        %v3118 = vsel %vm2289, %v2276, 0
        %3120 = vmatprep.subr.bf16.mxu0 0
        %3121 = vmatpush1.bf16.xpose.msra.mxu0 0
        %3122 = vmatprep.subr.bf16.mxu0 0
        %3123 = vmatpush1.bf16.xpose.msra.mxu0 0
        %3124 = vmatprep.subr.bf16.mxu0 0
        %3125 = vmatpush1.bf16.xpose.msra.mxu0 0
        %3126 = vmatprep.subr.bf16.mxu0 0
        %3127 = vmatpush1.bf16.xpose.msra.mxu0 0
        %3128 = vmatprep.subr.bf16.mxu0 0
        %3129 = vmatpush1.bf16.xpose.msra.mxu0 0
        %3130 = vmatprep.subr.bf16.mxu0 0
        %3131 = vmatpush1.bf16.xpose.msra.mxu0 0
        %3132 = vmatprep.subr.bf16.mxu0 0
        %3133 = vmatpush1.bf16.xpose.msra.mxu0 0
        %3134 = vmatprep.subr.bf16.mxu0 0
        %3135 = vmatpush1.bf16.xpose.msra.mxu0 %v3118
        %3136 = vmatprep.subr.bf16.mxu0 0
        %3137 = vmatpush2.bf16.xpose.msra.mxu0 0
        %3138 = vmatprep.subr.bf16.mxu0 0
        %3139 = vmatpush2.bf16.xpose.msra.mxu0 0
        %3140 = vmatprep.subr.bf16.mxu0 0
        %3141 = vmatpush2.bf16.xpose.msra.mxu0 0
        %3142 = vmatprep.subr.bf16.mxu0 0
        %3143 = vmatpush2.bf16.xpose.msra.mxu0 0
        %3144 = vmatprep.subr.bf16.mxu0 0
        %3145 = vmatpush2.bf16.xpose.msra.mxu0 0
        %3146 = vmatprep.subr.bf16.mxu0 0
        %3147 = vmatpush2.bf16.xpose.msra.mxu0 0
        %3148 = vmatprep.subr.bf16.mxu0 0
        %3149 = vmatpush2.bf16.xpose.msra.mxu0 0
        %3150 = vmatprep.subr.bf16.mxu0 0
        %3151 = vmatpush2.bf16.xpose.msra.mxu0 0
        %3152 = vmatprep.mubr.bf16.mxu0 0
        %3153 = vmatmul.mubr.bf16.gmra.mxu0 %v3115
        %v3154 = vpop.f32.mrf.mxu0
        %v3155 = vadd.f32 0.0, %v3154
        %v3156 = vpop.f32.mrf.mxu0
        %v3157 = vpop.f32.mrf.mxu0
        %v3158 = vpop.f32.mrf.mxu0
        %3159 = vdwg.mxu0
        %v3160 = vsel %vm2383, %v3109, -inf
        %v3161 = vsel %vm2383, %v3155, -inf
        %v3162 = vsel %vm2386, %v3160, -inf
        %3163 = vmax.xlane.f32.xlu0 %v3162
        %v3164 = vpop.xlane.xlu0 %3163
        %v3165 = vsel %vm2386, %v3161, -inf
        %3166 = vmax.xlane.f32.xlu0 %v3165
        %v3167 = vpop.xlane.xlu0 %3166
        %v3168 = vsub.f32 %v3160, %v3164
        %v3169 = vsub.f32 %v3161, %v3167
        %v3170 = vmul.f32 %v3168, 1.442695
        %v3171 = vpow.pop %v3170
        %v3172 = vmul.f32 %v3169, 1.442695
        %v3173 = vpow.pop %v3172
        %v3174 = vsel %vm2386, %v3171, 0.0
        %3175 = vadd.xlane.f32.xlu0 %v3174
        %v3176 = vpop.xlane.xlu0 %3175
        %v3177 = vsel %vm2386, %v3173, 0.0
        %3178 = vadd.xlane.f32.xlu0 %v3177
        %v3179 = vpop.xlane.xlu0 %3178
        %v3180 = vrcp.pop %v3176
        %v3181 = vrcp.pop %v3179
        %v3182 = vmul.f32 %v3171, %v3180
        %v3183 = vmul.f32 %v3173, %v3181
        %v3184 = vpack.c.bf16 %v3182, %v3182
        %v3185 = vpack.c.bf16 %v3183, %v3183
        %v3187 = vsel %vm2386, %v3184, 0
        %v3190 = vsel %vm2414, %v2279, 0
        %3192 = vmatprep.subr.bf16.mxu0 0
        %3193 = vmatpush1.bf16.msra.mxu0 0
        %3194 = vmatprep.subr.bf16.mxu0 0
        %3195 = vmatpush1.bf16.msra.mxu0 0
        %3196 = vmatprep.subr.bf16.mxu0 0
        %3197 = vmatpush1.bf16.msra.mxu0 0
        %3198 = vmatprep.subr.bf16.mxu0 0
        %3199 = vmatpush1.bf16.msra.mxu0 0
        %3200 = vmatprep.subr.bf16.mxu0 0
        %3201 = vmatpush1.bf16.msra.mxu0 0
        %3202 = vmatprep.subr.bf16.mxu0 0
        %3203 = vmatpush1.bf16.msra.mxu0 0
        %3204 = vmatprep.subr.bf16.mxu0 0
        %3205 = vmatpush1.bf16.msra.mxu0 0
        %3206 = vmatprep.subr.bf16.mxu0 0
        %3207 = vmatpush1.bf16.msra.mxu0 %v3190
        %3208 = vmatprep.subr.bf16.mxu0 0
        %3209 = vmatpush2.bf16.msra.mxu0 0
        %3210 = vmatprep.subr.bf16.mxu0 0
        %3211 = vmatpush2.bf16.msra.mxu0 0
        %3212 = vmatprep.subr.bf16.mxu0 0
        %3213 = vmatpush2.bf16.msra.mxu0 0
        %3214 = vmatprep.subr.bf16.mxu0 0
        %3215 = vmatpush2.bf16.msra.mxu0 0
        %3216 = vmatprep.subr.bf16.mxu0 0
        %3217 = vmatpush2.bf16.msra.mxu0 0
        %3218 = vmatprep.subr.bf16.mxu0 0
        %3219 = vmatpush2.bf16.msra.mxu0 0
        %3220 = vmatprep.subr.bf16.mxu0 0
        %3221 = vmatpush2.bf16.msra.mxu0 0
        %3222 = vmatprep.subr.bf16.mxu0 0
        %3223 = vmatpush2.bf16.msra.mxu0 0
        %3224 = vmatprep.mubr.bf16.mxu0 0
        %3225 = vmatmul.mubr.bf16.gmra.mxu0 %v3187
        %v3226 = vpop.f32.mrf.mxu0
        %v3227 = vadd.f32 0.0, %v3226
        %v3228 = vpop.f32.mrf.mxu0
        %v3229 = vpop.f32.mrf.mxu0
        %v3230 = vpop.f32.mrf.mxu0
        %3231 = vdwg.mxu0
        %v3233 = vsel %vm2386, %v3185, 0
        %v3236 = vsel %vm2414, %v2282, 0
        %3238 = vmatprep.subr.bf16.mxu0 0
        %3239 = vmatpush1.bf16.msra.mxu0 0
        %3240 = vmatprep.subr.bf16.mxu0 0
        %3241 = vmatpush1.bf16.msra.mxu0 0
        %3242 = vmatprep.subr.bf16.mxu0 0
        %3243 = vmatpush1.bf16.msra.mxu0 0
        %3244 = vmatprep.subr.bf16.mxu0 0
        %3245 = vmatpush1.bf16.msra.mxu0 0
        %3246 = vmatprep.subr.bf16.mxu0 0
        %3247 = vmatpush1.bf16.msra.mxu0 0
        %3248 = vmatprep.subr.bf16.mxu0 0
        %3249 = vmatpush1.bf16.msra.mxu0 0
        %3250 = vmatprep.subr.bf16.mxu0 0
        %3251 = vmatpush1.bf16.msra.mxu0 0
        %3252 = vmatprep.subr.bf16.mxu0 0
        %3253 = vmatpush1.bf16.msra.mxu0 %v3236
        %3254 = vmatprep.subr.bf16.mxu0 0
        %3255 = vmatpush2.bf16.msra.mxu0 0
        %3256 = vmatprep.subr.bf16.mxu0 0
        %3257 = vmatpush2.bf16.msra.mxu0 0
        %3258 = vmatprep.subr.bf16.mxu0 0
        %3259 = vmatpush2.bf16.msra.mxu0 0
        %3260 = vmatprep.subr.bf16.mxu0 0
        %3261 = vmatpush2.bf16.msra.mxu0 0
        %3262 = vmatprep.subr.bf16.mxu0 0
        %3263 = vmatpush2.bf16.msra.mxu0 0
        %3264 = vmatprep.subr.bf16.mxu0 0
        %3265 = vmatpush2.bf16.msra.mxu0 0
        %3266 = vmatprep.subr.bf16.mxu0 0
        %3267 = vmatpush2.bf16.msra.mxu0 0
        %3268 = vmatprep.subr.bf16.mxu0 0
        %3269 = vmatpush2.bf16.msra.mxu0 0
        %3270 = vmatprep.mubr.bf16.mxu0 0
        %3271 = vmatmul.mubr.bf16.gmra.mxu0 %v3233
        %v3272 = vpop.f32.mrf.mxu0
        %v3273 = vadd.f32 0.0, %v3272
        %v3274 = vpop.f32.mrf.mxu0
        %v3275 = vpop.f32.mrf.mxu0
        %v3276 = vpop.f32.mrf.mxu0
        %3277 = vdwg.mxu0
        %v3278 = vld [vmem:[%s303 + $0x624] sm:$0xff]
        %v3279 = vld [vmem:[%s303 + $0x62c] sm:$0xf]
        %v3280 = vld [vmem:[%s303 + $0x684] sm:$0xff]
        %v3281 = vld [vmem:[%s303 + $0x68c] sm:$0xf]
        %v3282 = vld [vmem:[%s303 + $0x6e4] sm:$0xff]
        %v3283 = vld [vmem:[%s303 + $0x6ec] sm:$0xf]
        %v3284 = vld [vmem:[%s303 + $0x744] sm:$0xff]
        %v3285 = vld [vmem:[%s303 + $0x74c] sm:$0xf]
        %v3286 = vld [vmem:[%s303 + $0x7a4] sm:$0xff]
        %v3287 = vld [vmem:[%s303 + $0x7ac] sm:$0xf]
        %v3288 = vld [vmem:[%s303 + $0x804] sm:$0xff]
        %v3289 = vld [vmem:[%s303 + $0x80c] sm:$0xf]
        %v3290 = vld [vmem:[%s303 + $0x864] sm:$0xff]
        %v3291 = vld [vmem:[%s303 + $0x86c] sm:$0xf]
        %v3292 = vld [vmem:[%s303 + $0x8c4] sm:$0xff]
        %v3293 = vld [vmem:[%s303 + $0x8cc] sm:$0xf]
        %v3294 = vpack.c.bf16 %v3273, %v3227
        %v3311 = vunpack.c.l.b16 %v3278
        %v3312 = vunpack.c.h.b16 %v3278
        %v3313 = vunpack.c.l.b16 %v3279
        %v3314 = vunpack.c.l.b16 %v3280
        %v3315 = vunpack.c.h.b16 %v3280
        %v3316 = vunpack.c.l.b16 %v3281
        %v3317 = vunpack.c.l.b16 %v3282
        %v3318 = vunpack.c.h.b16 %v3282
        %v3319 = vunpack.c.l.b16 %v3283
        %v3320 = vunpack.c.l.b16 %v3284
        %v3321 = vunpack.c.h.b16 %v3284
        %v3322 = vunpack.c.l.b16 %v3285
        %v3323 = vunpack.c.l.b16 %v3286
        %v3324 = vunpack.c.h.b16 %v3286
        %v3325 = vunpack.c.l.b16 %v3287
        %v3326 = vunpack.c.l.b16 %v3288
        %v3327 = vunpack.c.h.b16 %v3288
        %v3328 = vunpack.c.l.b16 %v3289
        %v3329 = vunpack.c.l.b16 %v3290
        %v3330 = vunpack.c.h.b16 %v3290
        %v3331 = vunpack.c.l.b16 %v3291
        %v3332 = vunpack.c.l.b16 %v3292
        %v3333 = vunpack.c.h.b16 %v3292
        %v3334 = vunpack.c.l.b16 %v3293
        %v3335 = vpack.c.b16 %v3314, %v3311
        %v3336 = vpack.c.b16 %v3315, %v3312
        %v3337 = vpack.c.b16 %v3316, %v3313
        %v3338 = vpack.c.b16 %v3320, %v3317
        %v3339 = vpack.c.b16 %v3321, %v3318
        %v3340 = vpack.c.b16 %v3322, %v3319
        %v3341 = vpack.c.b16 %v3326, %v3323
        %v3342 = vpack.c.b16 %v3327, %v3324
        %v3343 = vpack.c.b16 %v3328, %v3325
        %v3344 = vpack.c.b16 %v3332, %v3329
        %v3345 = vpack.c.b16 %v3333, %v3330
        %v3346 = vpack.c.b16 %v3334, %v3331
        %v3360 = vsel %vm2289, %v3294, 0
        %3362 = vmatprep.subr.bf16.mxu0 0
        %3363 = vmatpush1.bf16.msra.mxu0 0
        %3364 = vmatprep.subr.bf16.mxu0 0
        %3365 = vmatpush1.bf16.msra.mxu0 0
        %3366 = vmatprep.subr.bf16.mxu0 0
        %3367 = vmatpush1.bf16.msra.mxu0 0
        %3368 = vmatprep.subr.bf16.mxu0 0
        %3369 = vmatpush1.bf16.msra.mxu0 0
        %3370 = vmatprep.subr.bf16.mxu0 %v3345
        %3371 = vmatpush1.bf16.msra.mxu0 %v3344
        %3372 = vmatprep.subr.bf16.mxu0 %v3342
        %3373 = vmatpush1.bf16.msra.mxu0 %v3341
        %3374 = vmatprep.subr.bf16.mxu0 %v3339
        %3375 = vmatpush1.bf16.msra.mxu0 %v3338
        %3376 = vmatprep.subr.bf16.mxu0 %v3336
        %3377 = vmatpush1.bf16.msra.mxu0 %v3335
        %3378 = vmatprep.subr.bf16.mxu0 0
        %3379 = vmatpush2.bf16.msra.mxu0 0
        %3380 = vmatprep.subr.bf16.mxu0 0
        %3381 = vmatpush2.bf16.msra.mxu0 0
        %3382 = vmatprep.subr.bf16.mxu0 0
        %3383 = vmatpush2.bf16.msra.mxu0 0
        %3384 = vmatprep.subr.bf16.mxu0 0
        %3385 = vmatpush2.bf16.msra.mxu0 0
        %3386 = vmatprep.subr.bf16.mxu0 0
        %3387 = vmatpush2.bf16.msra.mxu0 0
        %3388 = vmatprep.subr.bf16.mxu0 0
        %3389 = vmatpush2.bf16.msra.mxu0 0
        %3390 = vmatprep.subr.bf16.mxu0 0
        %3391 = vmatpush2.bf16.msra.mxu0 0
        %3392 = vmatprep.subr.bf16.mxu0 0
        %3393 = vmatpush2.bf16.msra.mxu0 0
        %3394 = vmatprep.mubr.bf16.mxu0 0
        %3395 = vmatmul.mubr.bf16.gmra.mxu0 %v3360
        %v3396 = vpop.f32.mrf.mxu0
        %v3397 = vadd.f32 0.0, %v3396
        %v3398 = vpop.f32.mrf.mxu0
        %v3399 = vadd.f32 0.0, %v3398
        %v3400 = vpop.f32.mrf.mxu0
        %v3401 = vadd.f32 0.0, %v3400
        %v3402 = vpop.f32.mrf.mxu0
        %v3403 = vadd.f32 0.0, %v3402
        %3404 = vdwg.mxu0
        %3405 = vmatprep.subr.bf16.mxu0 0
        %3406 = vmatpush1.bf16.msra.mxu0 0
        %3407 = vmatprep.subr.bf16.mxu0 0
        %3408 = vmatpush1.bf16.msra.mxu0 0
        %3409 = vmatprep.subr.bf16.mxu0 0
        %3410 = vmatpush1.bf16.msra.mxu0 0
        %3411 = vmatprep.subr.bf16.mxu0 0
        %3412 = vmatpush1.bf16.msra.mxu0 0
        %3413 = vmatprep.subr.bf16.mxu0 0
        %3414 = vmatpush1.bf16.msra.mxu0 %v3346
        %3415 = vmatprep.subr.bf16.mxu0 0
        %3416 = vmatpush1.bf16.msra.mxu0 %v3343
        %3417 = vmatprep.subr.bf16.mxu0 0
        %3418 = vmatpush1.bf16.msra.mxu0 %v3340
        %3419 = vmatprep.subr.bf16.mxu0 0
        %3420 = vmatpush1.bf16.msra.mxu0 %v3337
        %3421 = vmatprep.subr.bf16.mxu0 0
        %3422 = vmatpush2.bf16.msra.mxu0 0
        %3423 = vmatprep.subr.bf16.mxu0 0
        %3424 = vmatpush2.bf16.msra.mxu0 0
        %3425 = vmatprep.subr.bf16.mxu0 0
        %3426 = vmatpush2.bf16.msra.mxu0 0
        %3427 = vmatprep.subr.bf16.mxu0 0
        %3428 = vmatpush2.bf16.msra.mxu0 0
        %3429 = vmatprep.subr.bf16.mxu0 0
        %3430 = vmatpush2.bf16.msra.mxu0 0
        %3431 = vmatprep.subr.bf16.mxu0 0
        %3432 = vmatpush2.bf16.msra.mxu0 0
        %3433 = vmatprep.subr.bf16.mxu0 0
        %3434 = vmatpush2.bf16.msra.mxu0 0
        %3435 = vmatprep.subr.bf16.mxu0 0
        %3436 = vmatpush2.bf16.msra.mxu0 0
        %3437 = vmatprep.mubr.bf16.mxu0 0
        %3438 = vmatmul.mubr.bf16.gmra.mxu0 %v3360
        %v3439 = vpop.f32.mrf.mxu0
        %v3440 = vadd.f32 0.0, %v3439
        %v3441 = vpop.f32.mrf.mxu0
        %v3442 = vpop.f32.mrf.mxu0
        %v3443 = vadd.f32 0.0, %v3442
        %v3444 = vpop.f32.mrf.mxu0
        %3445 = vdwg.mxu0
        %v3446 = vadd.f32 %v3019, %v3397
        %v3447 = vadd.f32 %v3021, %v3399
        %v3448 = vadd.f32 %v3062, %v3440
        %v3449 = vadd.f32 %v3023, %v3401
        %v3450 = vadd.f32 %v3025, %v3403
        %v3451 = vadd.f32 %v3065, %v3443
        %3453 = vrot.lane.b32.xlu0 %v2267, 64
        %v3454 = vpop.permute.xlu0 %3453
        %3456 = vrot.lane.b32.xlu0 %v2273, 64
        %v3457 = vpop.permute.xlu0 %3456
        %v3459 = vsel %vm2289, %v3454, 0
        %v3462 = vsel %vm2289, %v3457, 0
        %3464 = vmatprep.subr.bf16.mxu0 0
        %3465 = vmatpush1.bf16.xpose.msra.mxu0 0
        %3466 = vmatprep.subr.bf16.mxu0 0
        %3467 = vmatpush1.bf16.xpose.msra.mxu0 0
        %3468 = vmatprep.subr.bf16.mxu0 0
        %3469 = vmatpush1.bf16.xpose.msra.mxu0 0
        %3470 = vmatprep.subr.bf16.mxu0 0
        %3471 = vmatpush1.bf16.xpose.msra.mxu0 0
        %3472 = vmatprep.subr.bf16.mxu0 0
        %3473 = vmatpush1.bf16.xpose.msra.mxu0 0
        %3474 = vmatprep.subr.bf16.mxu0 0
        %3475 = vmatpush1.bf16.xpose.msra.mxu0 0
        %3476 = vmatprep.subr.bf16.mxu0 0
        %3477 = vmatpush1.bf16.xpose.msra.mxu0 0
        %3478 = vmatprep.subr.bf16.mxu0 0
        %3479 = vmatpush1.bf16.xpose.msra.mxu0 %v3462
        %3480 = vmatprep.subr.bf16.mxu0 0
        %3481 = vmatpush2.bf16.xpose.msra.mxu0 0
        %3482 = vmatprep.subr.bf16.mxu0 0
        %3483 = vmatpush2.bf16.xpose.msra.mxu0 0
        %3484 = vmatprep.subr.bf16.mxu0 0
        %3485 = vmatpush2.bf16.xpose.msra.mxu0 0
        %3486 = vmatprep.subr.bf16.mxu0 0
        %3487 = vmatpush2.bf16.xpose.msra.mxu0 0
        %3488 = vmatprep.subr.bf16.mxu0 0
        %3489 = vmatpush2.bf16.xpose.msra.mxu0 0
        %3490 = vmatprep.subr.bf16.mxu0 0
        %3491 = vmatpush2.bf16.xpose.msra.mxu0 0
        %3492 = vmatprep.subr.bf16.mxu0 0
        %3493 = vmatpush2.bf16.xpose.msra.mxu0 0
        %3494 = vmatprep.subr.bf16.mxu0 0
        %3495 = vmatpush2.bf16.xpose.msra.mxu0 0
        %3496 = vmatprep.mubr.bf16.mxu0 0
        %3497 = vmatmul.mubr.bf16.gmra.mxu0 %v3459
        %v3498 = vpop.f32.mrf.mxu0
        %v3499 = vadd.f32 0.0, %v3498
        %v3500 = vpop.f32.mrf.mxu0
        %v3501 = vpop.f32.mrf.mxu0
        %v3502 = vpop.f32.mrf.mxu0
        %3503 = vdwg.mxu0
        %3505 = vrot.lane.b32.xlu0 %v2270, 64
        %v3506 = vpop.permute.xlu0 %3505
        %3508 = vrot.lane.b32.xlu0 %v2276, 64
        %v3509 = vpop.permute.xlu0 %3508
        %v3511 = vsel %vm2289, %v3506, 0
        %v3514 = vsel %vm2289, %v3509, 0
        %3516 = vmatprep.subr.bf16.mxu0 0
        %3517 = vmatpush1.bf16.xpose.msra.mxu0 0
        %3518 = vmatprep.subr.bf16.mxu0 0
        %3519 = vmatpush1.bf16.xpose.msra.mxu0 0
        %3520 = vmatprep.subr.bf16.mxu0 0
        %3521 = vmatpush1.bf16.xpose.msra.mxu0 0
        %3522 = vmatprep.subr.bf16.mxu0 0
        %3523 = vmatpush1.bf16.xpose.msra.mxu0 0
        %3524 = vmatprep.subr.bf16.mxu0 0
        %3525 = vmatpush1.bf16.xpose.msra.mxu0 0
        %3526 = vmatprep.subr.bf16.mxu0 0
        %3527 = vmatpush1.bf16.xpose.msra.mxu0 0
        %3528 = vmatprep.subr.bf16.mxu0 0
        %3529 = vmatpush1.bf16.xpose.msra.mxu0 0
        %3530 = vmatprep.subr.bf16.mxu0 0
        %3531 = vmatpush1.bf16.xpose.msra.mxu0 %v3514
        %3532 = vmatprep.subr.bf16.mxu0 0
        %3533 = vmatpush2.bf16.xpose.msra.mxu0 0
        %3534 = vmatprep.subr.bf16.mxu0 0
        %3535 = vmatpush2.bf16.xpose.msra.mxu0 0
        %3536 = vmatprep.subr.bf16.mxu0 0
        %3537 = vmatpush2.bf16.xpose.msra.mxu0 0
        %3538 = vmatprep.subr.bf16.mxu0 0
        %3539 = vmatpush2.bf16.xpose.msra.mxu0 0
        %3540 = vmatprep.subr.bf16.mxu0 0
        %3541 = vmatpush2.bf16.xpose.msra.mxu0 0
        %3542 = vmatprep.subr.bf16.mxu0 0
        %3543 = vmatpush2.bf16.xpose.msra.mxu0 0
        %3544 = vmatprep.subr.bf16.mxu0 0
        %3545 = vmatpush2.bf16.xpose.msra.mxu0 0
        %3546 = vmatprep.subr.bf16.mxu0 0
        %3547 = vmatpush2.bf16.xpose.msra.mxu0 0
        %3548 = vmatprep.mubr.bf16.mxu0 0
        %3549 = vmatmul.mubr.bf16.gmra.mxu0 %v3511
        %v3550 = vpop.f32.mrf.mxu0
        %v3551 = vadd.f32 0.0, %v3550
        %v3552 = vpop.f32.mrf.mxu0
        %v3553 = vpop.f32.mrf.mxu0
        %v3554 = vpop.f32.mrf.mxu0
        %3555 = vdwg.mxu0
        %v3556 = vsel %vm2383, %v3499, -inf
        %v3557 = vsel %vm2383, %v3551, -inf
        %v3558 = vsel %vm2386, %v3556, -inf
        %3559 = vmax.xlane.f32.xlu0 %v3558
        %v3560 = vpop.xlane.xlu0 %3559
        %v3561 = vsel %vm2386, %v3557, -inf
        %3562 = vmax.xlane.f32.xlu0 %v3561
        %v3563 = vpop.xlane.xlu0 %3562
        %v3564 = vsub.f32 %v3556, %v3560
        %v3565 = vsub.f32 %v3557, %v3563
        %v3566 = vmul.f32 %v3564, 1.442695
        %v3567 = vpow.pop %v3566
        %v3568 = vmul.f32 %v3565, 1.442695
        %v3569 = vpow.pop %v3568
        %v3570 = vsel %vm2386, %v3567, 0.0
        %3571 = vadd.xlane.f32.xlu0 %v3570
        %v3572 = vpop.xlane.xlu0 %3571
        %v3573 = vsel %vm2386, %v3569, 0.0
        %3574 = vadd.xlane.f32.xlu0 %v3573
        %v3575 = vpop.xlane.xlu0 %3574
        %v3576 = vrcp.pop %v3572
        %v3577 = vrcp.pop %v3575
        %v3578 = vmul.f32 %v3567, %v3576
        %v3579 = vmul.f32 %v3569, %v3577
        %v3580 = vpack.c.bf16 %v3578, %v3578
        %v3581 = vpack.c.bf16 %v3579, %v3579
        %3583 = vrot.lane.b32.xlu0 %v2279, 64
        %v3584 = vpop.permute.xlu0 %3583
        %v3586 = vsel %vm2386, %v3580, 0
        %v3589 = vsel %vm2414, %v3584, 0
        %3591 = vmatprep.subr.bf16.mxu0 0
        %3592 = vmatpush1.bf16.msra.mxu0 0
        %3593 = vmatprep.subr.bf16.mxu0 0
        %3594 = vmatpush1.bf16.msra.mxu0 0
        %3595 = vmatprep.subr.bf16.mxu0 0
        %3596 = vmatpush1.bf16.msra.mxu0 0
        %3597 = vmatprep.subr.bf16.mxu0 0
        %3598 = vmatpush1.bf16.msra.mxu0 0
        %3599 = vmatprep.subr.bf16.mxu0 0
        %3600 = vmatpush1.bf16.msra.mxu0 0
        %3601 = vmatprep.subr.bf16.mxu0 0
        %3602 = vmatpush1.bf16.msra.mxu0 0
        %3603 = vmatprep.subr.bf16.mxu0 0
        %3604 = vmatpush1.bf16.msra.mxu0 0
        %3605 = vmatprep.subr.bf16.mxu0 0
        %3606 = vmatpush1.bf16.msra.mxu0 %v3589
        %3607 = vmatprep.subr.bf16.mxu0 0
        %3608 = vmatpush2.bf16.msra.mxu0 0
        %3609 = vmatprep.subr.bf16.mxu0 0
        %3610 = vmatpush2.bf16.msra.mxu0 0
        %3611 = vmatprep.subr.bf16.mxu0 0
        %3612 = vmatpush2.bf16.msra.mxu0 0
        %3613 = vmatprep.subr.bf16.mxu0 0
        %3614 = vmatpush2.bf16.msra.mxu0 0
        %3615 = vmatprep.subr.bf16.mxu0 0
        %3616 = vmatpush2.bf16.msra.mxu0 0
        %3617 = vmatprep.subr.bf16.mxu0 0
        %3618 = vmatpush2.bf16.msra.mxu0 0
        %3619 = vmatprep.subr.bf16.mxu0 0
        %3620 = vmatpush2.bf16.msra.mxu0 0
        %3621 = vmatprep.subr.bf16.mxu0 0
        %3622 = vmatpush2.bf16.msra.mxu0 0
        %3623 = vmatprep.mubr.bf16.mxu0 0
        %3624 = vmatmul.mubr.bf16.gmra.mxu0 %v3586
        %v3625 = vpop.f32.mrf.mxu0
        %v3626 = vadd.f32 0.0, %v3625
        %v3627 = vpop.f32.mrf.mxu0
        %v3628 = vpop.f32.mrf.mxu0
        %v3629 = vpop.f32.mrf.mxu0
        %3630 = vdwg.mxu0
        %3632 = vrot.lane.b32.xlu0 %v2282, 64
        %v3633 = vpop.permute.xlu0 %3632
        %v3635 = vsel %vm2386, %v3581, 0
        %v3638 = vsel %vm2414, %v3633, 0
        %3640 = vmatprep.subr.bf16.mxu0 0
        %3641 = vmatpush1.bf16.msra.mxu0 0
        %3642 = vmatprep.subr.bf16.mxu0 0
        %3643 = vmatpush1.bf16.msra.mxu0 0
        %3644 = vmatprep.subr.bf16.mxu0 0
        %3645 = vmatpush1.bf16.msra.mxu0 0
        %3646 = vmatprep.subr.bf16.mxu0 0
        %3647 = vmatpush1.bf16.msra.mxu0 0
        %3648 = vmatprep.subr.bf16.mxu0 0
        %3649 = vmatpush1.bf16.msra.mxu0 0
        %3650 = vmatprep.subr.bf16.mxu0 0
        %3651 = vmatpush1.bf16.msra.mxu0 0
        %3652 = vmatprep.subr.bf16.mxu0 0
        %3653 = vmatpush1.bf16.msra.mxu0 0
        %3654 = vmatprep.subr.bf16.mxu0 0
        %3655 = vmatpush1.bf16.msra.mxu0 %v3638
        %3656 = vmatprep.subr.bf16.mxu0 0
        %3657 = vmatpush2.bf16.msra.mxu0 0
        %3658 = vmatprep.subr.bf16.mxu0 0
        %3659 = vmatpush2.bf16.msra.mxu0 0
        %3660 = vmatprep.subr.bf16.mxu0 0
        %3661 = vmatpush2.bf16.msra.mxu0 0
        %3662 = vmatprep.subr.bf16.mxu0 0
        %3663 = vmatpush2.bf16.msra.mxu0 0
        %3664 = vmatprep.subr.bf16.mxu0 0
        %3665 = vmatpush2.bf16.msra.mxu0 0
        %3666 = vmatprep.subr.bf16.mxu0 0
        %3667 = vmatpush2.bf16.msra.mxu0 0
        %3668 = vmatprep.subr.bf16.mxu0 0
        %3669 = vmatpush2.bf16.msra.mxu0 0
        %3670 = vmatprep.subr.bf16.mxu0 0
        %3671 = vmatpush2.bf16.msra.mxu0 0
        %3672 = vmatprep.mubr.bf16.mxu0 0
        %3673 = vmatmul.mubr.bf16.gmra.mxu0 %v3635
        %v3674 = vpop.f32.mrf.mxu0
        %v3675 = vadd.f32 0.0, %v3674
        %v3676 = vpop.f32.mrf.mxu0
        %v3677 = vpop.f32.mrf.mxu0
        %v3678 = vpop.f32.mrf.mxu0
        %3679 = vdwg.mxu0
        %v3680 = vld [vmem:[%s303 + $0x924] sm:$0xff]
        %v3681 = vld [vmem:[%s303 + $0x92c] sm:$0xf]
        %v3682 = vld [vmem:[%s303 + $0x984] sm:$0xff]
        %v3683 = vld [vmem:[%s303 + $0x98c] sm:$0xf]
        %v3684 = vld [vmem:[%s303 + $0x9e4] sm:$0xff]
        %v3685 = vld [vmem:[%s303 + $0x9ec] sm:$0xf]
        %v3686 = vld [vmem:[%s303 + $0xa44] sm:$0xff]
        %v3687 = vld [vmem:[%s303 + $0xa4c] sm:$0xf]
        %v3688 = vld [vmem:[%s303 + $0xaa4] sm:$0xff]
        %v3689 = vld [vmem:[%s303 + $0xaac] sm:$0xf]
        %v3690 = vld [vmem:[%s303 + $0xb04] sm:$0xff]
        %v3691 = vld [vmem:[%s303 + $0xb0c] sm:$0xf]
        %v3692 = vld [vmem:[%s303 + $0xb64] sm:$0xff]
        %v3693 = vld [vmem:[%s303 + $0xb6c] sm:$0xf]
        %v3694 = vld [vmem:[%s303 + $0xbc4] sm:$0xff]
        %v3695 = vld [vmem:[%s303 + $0xbcc] sm:$0xf]
        %v3696 = vpack.c.bf16 %v3675, %v3626
        %v3713 = vunpack.c.l.b16 %v3680
        %v3714 = vunpack.c.h.b16 %v3680
        %v3715 = vunpack.c.l.b16 %v3681
        %v3716 = vunpack.c.l.b16 %v3682
        %v3717 = vunpack.c.h.b16 %v3682
        %v3718 = vunpack.c.l.b16 %v3683
        %v3719 = vunpack.c.l.b16 %v3684
        %v3720 = vunpack.c.h.b16 %v3684
        %v3721 = vunpack.c.l.b16 %v3685
        %v3722 = vunpack.c.l.b16 %v3686
        %v3723 = vunpack.c.h.b16 %v3686
        %v3724 = vunpack.c.l.b16 %v3687
        %v3725 = vunpack.c.l.b16 %v3688
        %v3726 = vunpack.c.h.b16 %v3688
        %v3727 = vunpack.c.l.b16 %v3689
        %v3728 = vunpack.c.l.b16 %v3690
        %v3729 = vunpack.c.h.b16 %v3690
        %v3730 = vunpack.c.l.b16 %v3691
        %v3731 = vunpack.c.l.b16 %v3692
        %v3732 = vunpack.c.h.b16 %v3692
        %v3733 = vunpack.c.l.b16 %v3693
        %v3734 = vunpack.c.l.b16 %v3694
        %v3735 = vunpack.c.h.b16 %v3694
        %v3736 = vunpack.c.l.b16 %v3695
        %v3737 = vpack.c.b16 %v3716, %v3713
        %v3738 = vpack.c.b16 %v3717, %v3714
        %v3739 = vpack.c.b16 %v3718, %v3715
        %v3740 = vpack.c.b16 %v3722, %v3719
        %v3741 = vpack.c.b16 %v3723, %v3720
        %v3742 = vpack.c.b16 %v3724, %v3721
        %v3743 = vpack.c.b16 %v3728, %v3725
        %v3744 = vpack.c.b16 %v3729, %v3726
        %v3745 = vpack.c.b16 %v3730, %v3727
        %v3746 = vpack.c.b16 %v3734, %v3731
        %v3747 = vpack.c.b16 %v3735, %v3732
        %v3748 = vpack.c.b16 %v3736, %v3733
        %v3762 = vsel %vm2289, %v3696, 0
        %3764 = vmatprep.subr.bf16.mxu0 0
        %3765 = vmatpush1.bf16.msra.mxu0 0
        %3766 = vmatprep.subr.bf16.mxu0 0
        %3767 = vmatpush1.bf16.msra.mxu0 0
        %3768 = vmatprep.subr.bf16.mxu0 0
        %3769 = vmatpush1.bf16.msra.mxu0 0
        %3770 = vmatprep.subr.bf16.mxu0 0
        %3771 = vmatpush1.bf16.msra.mxu0 0
        %3772 = vmatprep.subr.bf16.mxu0 %v3747
        %3773 = vmatpush1.bf16.msra.mxu0 %v3746
        %3774 = vmatprep.subr.bf16.mxu0 %v3744
        %3775 = vmatpush1.bf16.msra.mxu0 %v3743
        %3776 = vmatprep.subr.bf16.mxu0 %v3741
        %3777 = vmatpush1.bf16.msra.mxu0 %v3740
        %3778 = vmatprep.subr.bf16.mxu0 %v3738
        %3779 = vmatpush1.bf16.msra.mxu0 %v3737
        %3780 = vmatprep.subr.bf16.mxu0 0
        %3781 = vmatpush2.bf16.msra.mxu0 0
        %3782 = vmatprep.subr.bf16.mxu0 0
        %3783 = vmatpush2.bf16.msra.mxu0 0
        %3784 = vmatprep.subr.bf16.mxu0 0
        %3785 = vmatpush2.bf16.msra.mxu0 0
        %3786 = vmatprep.subr.bf16.mxu0 0
        %3787 = vmatpush2.bf16.msra.mxu0 0
        %3788 = vmatprep.subr.bf16.mxu0 0
        %3789 = vmatpush2.bf16.msra.mxu0 0
        %3790 = vmatprep.subr.bf16.mxu0 0
        %3791 = vmatpush2.bf16.msra.mxu0 0
        %3792 = vmatprep.subr.bf16.mxu0 0
        %3793 = vmatpush2.bf16.msra.mxu0 0
        %3794 = vmatprep.subr.bf16.mxu0 0
        %3795 = vmatpush2.bf16.msra.mxu0 0
        %3796 = vmatprep.mubr.bf16.mxu0 0
        %3797 = vmatmul.mubr.bf16.gmra.mxu0 %v3762
        %v3798 = vpop.f32.mrf.mxu0
        %v3799 = vadd.f32 0.0, %v3798
        %v3800 = vpop.f32.mrf.mxu0
        %v3801 = vadd.f32 0.0, %v3800
        %v3802 = vpop.f32.mrf.mxu0
        %v3803 = vadd.f32 0.0, %v3802
        %v3804 = vpop.f32.mrf.mxu0
        %v3805 = vadd.f32 0.0, %v3804
        %3806 = vdwg.mxu0
        %3807 = vmatprep.subr.bf16.mxu0 0
        %3808 = vmatpush1.bf16.msra.mxu0 0
        %3809 = vmatprep.subr.bf16.mxu0 0
        %3810 = vmatpush1.bf16.msra.mxu0 0
        %3811 = vmatprep.subr.bf16.mxu0 0
        %3812 = vmatpush1.bf16.msra.mxu0 0
        %3813 = vmatprep.subr.bf16.mxu0 0
        %3814 = vmatpush1.bf16.msra.mxu0 0
        %3815 = vmatprep.subr.bf16.mxu0 0
        %3816 = vmatpush1.bf16.msra.mxu0 %v3748
        %3817 = vmatprep.subr.bf16.mxu0 0
        %3818 = vmatpush1.bf16.msra.mxu0 %v3745
        %3819 = vmatprep.subr.bf16.mxu0 0
        %3820 = vmatpush1.bf16.msra.mxu0 %v3742
        %3821 = vmatprep.subr.bf16.mxu0 0
        %3822 = vmatpush1.bf16.msra.mxu0 %v3739
        %3823 = vmatprep.subr.bf16.mxu0 0
        %3824 = vmatpush2.bf16.msra.mxu0 0
        %3825 = vmatprep.subr.bf16.mxu0 0
        %3826 = vmatpush2.bf16.msra.mxu0 0
        %3827 = vmatprep.subr.bf16.mxu0 0
        %3828 = vmatpush2.bf16.msra.mxu0 0
        %3829 = vmatprep.subr.bf16.mxu0 0
        %3830 = vmatpush2.bf16.msra.mxu0 0
        %3831 = vmatprep.subr.bf16.mxu0 0
        %3832 = vmatpush2.bf16.msra.mxu0 0
        %3833 = vmatprep.subr.bf16.mxu0 0
        %3834 = vmatpush2.bf16.msra.mxu0 0
        %3835 = vmatprep.subr.bf16.mxu0 0
        %3836 = vmatpush2.bf16.msra.mxu0 0
        %3837 = vmatprep.subr.bf16.mxu0 0
        %3838 = vmatpush2.bf16.msra.mxu0 0
        %3839 = vmatprep.mubr.bf16.mxu0 0
        %3840 = vmatmul.mubr.bf16.gmra.mxu0 %v3762
        %v3841 = vpop.f32.mrf.mxu0
        %v3842 = vadd.f32 0.0, %v3841
        %v3843 = vpop.f32.mrf.mxu0
        %v3844 = vpop.f32.mrf.mxu0
        %v3845 = vadd.f32 0.0, %v3844
        %v3846 = vpop.f32.mrf.mxu0
        %3847 = vdwg.mxu0
        %v3848 = vadd.f32 %v3446, %v3799
        %v3849 = vadd.f32 %v3447, %v3801
        %v3850 = vadd.f32 %v3448, %v3842
        %v3851 = vadd.f32 %v3449, %v3803
        %v3852 = vadd.f32 %v3450, %v3805
        %v3853 = vadd.f32 %v3451, %v3845
        %v3855 = vsel %vm2289, %v2268, 0
        %v3858 = vsel %vm2289, %v2274, 0
        %3860 = vmatprep.subr.bf16.mxu0 0
        %3861 = vmatpush1.bf16.xpose.msra.mxu0 0
        %3862 = vmatprep.subr.bf16.mxu0 0
        %3863 = vmatpush1.bf16.xpose.msra.mxu0 0
        %3864 = vmatprep.subr.bf16.mxu0 0
        %3865 = vmatpush1.bf16.xpose.msra.mxu0 0
        %3866 = vmatprep.subr.bf16.mxu0 0
        %3867 = vmatpush1.bf16.xpose.msra.mxu0 0
        %3868 = vmatprep.subr.bf16.mxu0 0
        %3869 = vmatpush1.bf16.xpose.msra.mxu0 0
        %3870 = vmatprep.subr.bf16.mxu0 0
        %3871 = vmatpush1.bf16.xpose.msra.mxu0 0
        %3872 = vmatprep.subr.bf16.mxu0 0
        %3873 = vmatpush1.bf16.xpose.msra.mxu0 0
        %3874 = vmatprep.subr.bf16.mxu0 0
        %3875 = vmatpush1.bf16.xpose.msra.mxu0 %v3858
        %3876 = vmatprep.subr.bf16.mxu0 0
        %3877 = vmatpush2.bf16.xpose.msra.mxu0 0
        %3878 = vmatprep.subr.bf16.mxu0 0
        %3879 = vmatpush2.bf16.xpose.msra.mxu0 0
        %3880 = vmatprep.subr.bf16.mxu0 0
        %3881 = vmatpush2.bf16.xpose.msra.mxu0 0
        %3882 = vmatprep.subr.bf16.mxu0 0
        %3883 = vmatpush2.bf16.xpose.msra.mxu0 0
        %3884 = vmatprep.subr.bf16.mxu0 0
        %3885 = vmatpush2.bf16.xpose.msra.mxu0 0
        %3886 = vmatprep.subr.bf16.mxu0 0
        %3887 = vmatpush2.bf16.xpose.msra.mxu0 0
        %3888 = vmatprep.subr.bf16.mxu0 0
        %3889 = vmatpush2.bf16.xpose.msra.mxu0 0
        %3890 = vmatprep.subr.bf16.mxu0 0
        %3891 = vmatpush2.bf16.xpose.msra.mxu0 0
        %3892 = vmatprep.mubr.bf16.mxu0 0
        %3893 = vmatmul.mubr.bf16.gmra.mxu0 %v3855
        %v3894 = vpop.f32.mrf.mxu0
        %v3895 = vadd.f32 0.0, %v3894
        %v3896 = vpop.f32.mrf.mxu0
        %v3897 = vpop.f32.mrf.mxu0
        %v3898 = vpop.f32.mrf.mxu0
        %3899 = vdwg.mxu0
        %v3901 = vsel %vm2289, %v2271, 0
        %v3904 = vsel %vm2289, %v2277, 0
        %3906 = vmatprep.subr.bf16.mxu0 0
        %3907 = vmatpush1.bf16.xpose.msra.mxu0 0
        %3908 = vmatprep.subr.bf16.mxu0 0
        %3909 = vmatpush1.bf16.xpose.msra.mxu0 0
        %3910 = vmatprep.subr.bf16.mxu0 0
        %3911 = vmatpush1.bf16.xpose.msra.mxu0 0
        %3912 = vmatprep.subr.bf16.mxu0 0
        %3913 = vmatpush1.bf16.xpose.msra.mxu0 0
        %3914 = vmatprep.subr.bf16.mxu0 0
        %3915 = vmatpush1.bf16.xpose.msra.mxu0 0
        %3916 = vmatprep.subr.bf16.mxu0 0
        %3917 = vmatpush1.bf16.xpose.msra.mxu0 0
        %3918 = vmatprep.subr.bf16.mxu0 0
        %3919 = vmatpush1.bf16.xpose.msra.mxu0 0
        %3920 = vmatprep.subr.bf16.mxu0 0
        %3921 = vmatpush1.bf16.xpose.msra.mxu0 %v3904
        %3922 = vmatprep.subr.bf16.mxu0 0
        %3923 = vmatpush2.bf16.xpose.msra.mxu0 0
        %3924 = vmatprep.subr.bf16.mxu0 0
        %3925 = vmatpush2.bf16.xpose.msra.mxu0 0
        %3926 = vmatprep.subr.bf16.mxu0 0
        %3927 = vmatpush2.bf16.xpose.msra.mxu0 0
        %3928 = vmatprep.subr.bf16.mxu0 0
        %3929 = vmatpush2.bf16.xpose.msra.mxu0 0
        %3930 = vmatprep.subr.bf16.mxu0 0
        %3931 = vmatpush2.bf16.xpose.msra.mxu0 0
        %3932 = vmatprep.subr.bf16.mxu0 0
        %3933 = vmatpush2.bf16.xpose.msra.mxu0 0
        %3934 = vmatprep.subr.bf16.mxu0 0
        %3935 = vmatpush2.bf16.xpose.msra.mxu0 0
        %3936 = vmatprep.subr.bf16.mxu0 0
        %3937 = vmatpush2.bf16.xpose.msra.mxu0 0
        %3938 = vmatprep.mubr.bf16.mxu0 0
        %3939 = vmatmul.mubr.bf16.gmra.mxu0 %v3901
        %v3940 = vpop.f32.mrf.mxu0
        %v3941 = vadd.f32 0.0, %v3940
        %v3942 = vpop.f32.mrf.mxu0
        %v3943 = vpop.f32.mrf.mxu0
        %v3944 = vpop.f32.mrf.mxu0
        %3945 = vdwg.mxu0
        %v3946 = vsel %vm2383, %v3895, -inf
        %v3947 = vsel %vm2383, %v3941, -inf
        %v3948 = vsel %vm2386, %v3946, -inf
        %3949 = vmax.xlane.f32.xlu0 %v3948
        %v3950 = vpop.xlane.xlu0 %3949
        %v3951 = vsel %vm2386, %v3947, -inf
        %3952 = vmax.xlane.f32.xlu0 %v3951
        %v3953 = vpop.xlane.xlu0 %3952
        %v3954 = vsub.f32 %v3946, %v3950
        %v3955 = vsub.f32 %v3947, %v3953
        %v3956 = vmul.f32 %v3954, 1.442695
        %v3957 = vpow.pop %v3956
        %v3958 = vmul.f32 %v3955, 1.442695
        %v3959 = vpow.pop %v3958
        %v3960 = vsel %vm2386, %v3957, 0.0
        %3961 = vadd.xlane.f32.xlu0 %v3960
        %v3962 = vpop.xlane.xlu0 %3961
        %v3963 = vsel %vm2386, %v3959, 0.0
        %3964 = vadd.xlane.f32.xlu0 %v3963
        %v3965 = vpop.xlane.xlu0 %3964
        %v3966 = vrcp.pop %v3962
        %v3967 = vrcp.pop %v3965
        %v3968 = vmul.f32 %v3957, %v3966
        %v3969 = vmul.f32 %v3959, %v3967
        %v3970 = vpack.c.bf16 %v3968, %v3968
        %v3971 = vpack.c.bf16 %v3969, %v3969
        %v3973 = vsel %vm2386, %v3970, 0
        %v3976 = vsel %vm2414, %v2280, 0
        %3978 = vmatprep.subr.bf16.mxu0 0
        %3979 = vmatpush1.bf16.msra.mxu0 0
        %3980 = vmatprep.subr.bf16.mxu0 0
        %3981 = vmatpush1.bf16.msra.mxu0 0
        %3982 = vmatprep.subr.bf16.mxu0 0
        %3983 = vmatpush1.bf16.msra.mxu0 0
        %3984 = vmatprep.subr.bf16.mxu0 0
        %3985 = vmatpush1.bf16.msra.mxu0 0
        %3986 = vmatprep.subr.bf16.mxu0 0
        %3987 = vmatpush1.bf16.msra.mxu0 0
        %3988 = vmatprep.subr.bf16.mxu0 0
        %3989 = vmatpush1.bf16.msra.mxu0 0
        %3990 = vmatprep.subr.bf16.mxu0 0
        %3991 = vmatpush1.bf16.msra.mxu0 0
        %3992 = vmatprep.subr.bf16.mxu0 0
        %3993 = vmatpush1.bf16.msra.mxu0 %v3976
        %3994 = vmatprep.subr.bf16.mxu0 0
        %3995 = vmatpush2.bf16.msra.mxu0 0
        %3996 = vmatprep.subr.bf16.mxu0 0
        %3997 = vmatpush2.bf16.msra.mxu0 0
        %3998 = vmatprep.subr.bf16.mxu0 0
        %3999 = vmatpush2.bf16.msra.mxu0 0
        %4000 = vmatprep.subr.bf16.mxu0 0
        %4001 = vmatpush2.bf16.msra.mxu0 0
        %4002 = vmatprep.subr.bf16.mxu0 0
        %4003 = vmatpush2.bf16.msra.mxu0 0
        %4004 = vmatprep.subr.bf16.mxu0 0
        %4005 = vmatpush2.bf16.msra.mxu0 0
        %4006 = vmatprep.subr.bf16.mxu0 0
        %4007 = vmatpush2.bf16.msra.mxu0 0
        %4008 = vmatprep.subr.bf16.mxu0 0
        %4009 = vmatpush2.bf16.msra.mxu0 0
        %4010 = vmatprep.mubr.bf16.mxu0 0
        %4011 = vmatmul.mubr.bf16.gmra.mxu0 %v3973
        %v4012 = vpop.f32.mrf.mxu0
        %v4013 = vadd.f32 0.0, %v4012
        %v4014 = vpop.f32.mrf.mxu0
        %v4015 = vpop.f32.mrf.mxu0
        %v4016 = vpop.f32.mrf.mxu0
        %4017 = vdwg.mxu0
        %v4019 = vsel %vm2386, %v3971, 0
        %v4022 = vsel %vm2414, %v2283, 0
        %4024 = vmatprep.subr.bf16.mxu0 0
        %4025 = vmatpush1.bf16.msra.mxu0 0
        %4026 = vmatprep.subr.bf16.mxu0 0
        %4027 = vmatpush1.bf16.msra.mxu0 0
        %4028 = vmatprep.subr.bf16.mxu0 0
        %4029 = vmatpush1.bf16.msra.mxu0 0
        %4030 = vmatprep.subr.bf16.mxu0 0
        %4031 = vmatpush1.bf16.msra.mxu0 0
        %4032 = vmatprep.subr.bf16.mxu0 0
        %4033 = vmatpush1.bf16.msra.mxu0 0
        %4034 = vmatprep.subr.bf16.mxu0 0
        %4035 = vmatpush1.bf16.msra.mxu0 0
        %4036 = vmatprep.subr.bf16.mxu0 0
        %4037 = vmatpush1.bf16.msra.mxu0 0
        %4038 = vmatprep.subr.bf16.mxu0 0
        %4039 = vmatpush1.bf16.msra.mxu0 %v4022
        %4040 = vmatprep.subr.bf16.mxu0 0
        %4041 = vmatpush2.bf16.msra.mxu0 0
        %4042 = vmatprep.subr.bf16.mxu0 0
        %4043 = vmatpush2.bf16.msra.mxu0 0
        %4044 = vmatprep.subr.bf16.mxu0 0
        %4045 = vmatpush2.bf16.msra.mxu0 0
        %4046 = vmatprep.subr.bf16.mxu0 0
        %4047 = vmatpush2.bf16.msra.mxu0 0
        %4048 = vmatprep.subr.bf16.mxu0 0
        %4049 = vmatpush2.bf16.msra.mxu0 0
        %4050 = vmatprep.subr.bf16.mxu0 0
        %4051 = vmatpush2.bf16.msra.mxu0 0
        %4052 = vmatprep.subr.bf16.mxu0 0
        %4053 = vmatpush2.bf16.msra.mxu0 0
        %4054 = vmatprep.subr.bf16.mxu0 0
        %4055 = vmatpush2.bf16.msra.mxu0 0
        %4056 = vmatprep.mubr.bf16.mxu0 0
        %4057 = vmatmul.mubr.bf16.gmra.mxu0 %v4019
        %v4058 = vpop.f32.mrf.mxu0
        %v4059 = vadd.f32 0.0, %v4058
        %v4060 = vpop.f32.mrf.mxu0
        %v4061 = vpop.f32.mrf.mxu0
        %v4062 = vpop.f32.mrf.mxu0
        %4063 = vdwg.mxu0
        %v4064 = vld [vmem:[%s303 + $0xc24] sm:$0xff]
        %v4065 = vld [vmem:[%s303 + $0xc2c] sm:$0xf]
        %v4066 = vld [vmem:[%s303 + $0xc84] sm:$0xff]
        %v4067 = vld [vmem:[%s303 + $0xc8c] sm:$0xf]
        %v4068 = vld [vmem:[%s303 + $0xce4] sm:$0xff]
        %v4069 = vld [vmem:[%s303 + $0xcec] sm:$0xf]
        %v4070 = vld [vmem:[%s303 + $0xd44] sm:$0xff]
        %v4071 = vld [vmem:[%s303 + $0xd4c] sm:$0xf]
        %v4072 = vld [vmem:[%s303 + $0xda4] sm:$0xff]
        %v4073 = vld [vmem:[%s303 + $0xdac] sm:$0xf]
        %v4074 = vld [vmem:[%s303 + $0xe04] sm:$0xff]
        %v4075 = vld [vmem:[%s303 + $0xe0c] sm:$0xf]
        %v4076 = vld [vmem:[%s303 + $0xe64] sm:$0xff]
        %v4077 = vld [vmem:[%s303 + $0xe6c] sm:$0xf]
        %v4078 = vld [vmem:[%s303 + $0xec4] sm:$0xff]
        %v4079 = vld [vmem:[%s303 + $0xecc] sm:$0xf]
        %v4080 = vpack.c.bf16 %v4059, %v4013
        %v4097 = vunpack.c.l.b16 %v4064
        %v4098 = vunpack.c.h.b16 %v4064
        %v4099 = vunpack.c.l.b16 %v4065
        %v4100 = vunpack.c.l.b16 %v4066
        %v4101 = vunpack.c.h.b16 %v4066
        %v4102 = vunpack.c.l.b16 %v4067
        %v4103 = vunpack.c.l.b16 %v4068
        %v4104 = vunpack.c.h.b16 %v4068
        %v4105 = vunpack.c.l.b16 %v4069
        %v4106 = vunpack.c.l.b16 %v4070
        %v4107 = vunpack.c.h.b16 %v4070
        %v4108 = vunpack.c.l.b16 %v4071
        %v4109 = vunpack.c.l.b16 %v4072
        %v4110 = vunpack.c.h.b16 %v4072
        %v4111 = vunpack.c.l.b16 %v4073
        %v4112 = vunpack.c.l.b16 %v4074
        %v4113 = vunpack.c.h.b16 %v4074
        %v4114 = vunpack.c.l.b16 %v4075
        %v4115 = vunpack.c.l.b16 %v4076
        %v4116 = vunpack.c.h.b16 %v4076
        %v4117 = vunpack.c.l.b16 %v4077
        %v4118 = vunpack.c.l.b16 %v4078
        %v4119 = vunpack.c.h.b16 %v4078
        %v4120 = vunpack.c.l.b16 %v4079
        %v4121 = vpack.c.b16 %v4100, %v4097
        %v4122 = vpack.c.b16 %v4101, %v4098
        %v4123 = vpack.c.b16 %v4102, %v4099
        %v4124 = vpack.c.b16 %v4106, %v4103
        %v4125 = vpack.c.b16 %v4107, %v4104
        %v4126 = vpack.c.b16 %v4108, %v4105
        %v4127 = vpack.c.b16 %v4112, %v4109
        %v4128 = vpack.c.b16 %v4113, %v4110
        %v4129 = vpack.c.b16 %v4114, %v4111
        %v4130 = vpack.c.b16 %v4118, %v4115
        %v4131 = vpack.c.b16 %v4119, %v4116
        %v4132 = vpack.c.b16 %v4120, %v4117
        %v4146 = vsel %vm2289, %v4080, 0
        %4148 = vmatprep.subr.bf16.mxu0 0
        %4149 = vmatpush1.bf16.msra.mxu0 0
        %4150 = vmatprep.subr.bf16.mxu0 0
        %4151 = vmatpush1.bf16.msra.mxu0 0
        %4152 = vmatprep.subr.bf16.mxu0 0
        %4153 = vmatpush1.bf16.msra.mxu0 0
        %4154 = vmatprep.subr.bf16.mxu0 0
        %4155 = vmatpush1.bf16.msra.mxu0 0
        %4156 = vmatprep.subr.bf16.mxu0 %v4131
        %4157 = vmatpush1.bf16.msra.mxu0 %v4130
        %4158 = vmatprep.subr.bf16.mxu0 %v4128
        %4159 = vmatpush1.bf16.msra.mxu0 %v4127
        %4160 = vmatprep.subr.bf16.mxu0 %v4125
        %4161 = vmatpush1.bf16.msra.mxu0 %v4124
        %4162 = vmatprep.subr.bf16.mxu0 %v4122
        %4163 = vmatpush1.bf16.msra.mxu0 %v4121
        %4164 = vmatprep.subr.bf16.mxu0 0
        %4165 = vmatpush2.bf16.msra.mxu0 0
        %4166 = vmatprep.subr.bf16.mxu0 0
        %4167 = vmatpush2.bf16.msra.mxu0 0
        %4168 = vmatprep.subr.bf16.mxu0 0
        %4169 = vmatpush2.bf16.msra.mxu0 0
        %4170 = vmatprep.subr.bf16.mxu0 0
        %4171 = vmatpush2.bf16.msra.mxu0 0
        %4172 = vmatprep.subr.bf16.mxu0 0
        %4173 = vmatpush2.bf16.msra.mxu0 0
        %4174 = vmatprep.subr.bf16.mxu0 0
        %4175 = vmatpush2.bf16.msra.mxu0 0
        %4176 = vmatprep.subr.bf16.mxu0 0
        %4177 = vmatpush2.bf16.msra.mxu0 0
        %4178 = vmatprep.subr.bf16.mxu0 0
        %4179 = vmatpush2.bf16.msra.mxu0 0
        %4180 = vmatprep.mubr.bf16.mxu0 0
        %4181 = vmatmul.mubr.bf16.gmra.mxu0 %v4146
        %v4182 = vpop.f32.mrf.mxu0
        %v4183 = vadd.f32 0.0, %v4182
        %v4184 = vpop.f32.mrf.mxu0
        %v4185 = vadd.f32 0.0, %v4184
        %v4186 = vpop.f32.mrf.mxu0
        %v4187 = vadd.f32 0.0, %v4186
        %v4188 = vpop.f32.mrf.mxu0
        %v4189 = vadd.f32 0.0, %v4188
        %4190 = vdwg.mxu0
        %4191 = vmatprep.subr.bf16.mxu0 0
        %4192 = vmatpush1.bf16.msra.mxu0 0
        %4193 = vmatprep.subr.bf16.mxu0 0
        %4194 = vmatpush1.bf16.msra.mxu0 0
        %4195 = vmatprep.subr.bf16.mxu0 0
        %4196 = vmatpush1.bf16.msra.mxu0 0
        %4197 = vmatprep.subr.bf16.mxu0 0
        %4198 = vmatpush1.bf16.msra.mxu0 0
        %4199 = vmatprep.subr.bf16.mxu0 0
        %4200 = vmatpush1.bf16.msra.mxu0 %v4132
        %4201 = vmatprep.subr.bf16.mxu0 0
        %4202 = vmatpush1.bf16.msra.mxu0 %v4129
        %4203 = vmatprep.subr.bf16.mxu0 0
        %4204 = vmatpush1.bf16.msra.mxu0 %v4126
        %4205 = vmatprep.subr.bf16.mxu0 0
        %4206 = vmatpush1.bf16.msra.mxu0 %v4123
        %4207 = vmatprep.subr.bf16.mxu0 0
        %4208 = vmatpush2.bf16.msra.mxu0 0
        %4209 = vmatprep.subr.bf16.mxu0 0
        %4210 = vmatpush2.bf16.msra.mxu0 0
        %4211 = vmatprep.subr.bf16.mxu0 0
        %4212 = vmatpush2.bf16.msra.mxu0 0
        %4213 = vmatprep.subr.bf16.mxu0 0
        %4214 = vmatpush2.bf16.msra.mxu0 0
        %4215 = vmatprep.subr.bf16.mxu0 0
        %4216 = vmatpush2.bf16.msra.mxu0 0
        %4217 = vmatprep.subr.bf16.mxu0 0
        %4218 = vmatpush2.bf16.msra.mxu0 0
        %4219 = vmatprep.subr.bf16.mxu0 0
        %4220 = vmatpush2.bf16.msra.mxu0 0
        %4221 = vmatprep.subr.bf16.mxu0 0
        %4222 = vmatpush2.bf16.msra.mxu0 0
        %4223 = vmatprep.mubr.bf16.mxu0 0
        %4224 = vmatmul.mubr.bf16.gmra.mxu0 %v4146
        %v4225 = vpop.f32.mrf.mxu0
        %v4226 = vadd.f32 0.0, %v4225
        %v4227 = vpop.f32.mrf.mxu0
        %v4228 = vpop.f32.mrf.mxu0
        %v4229 = vadd.f32 0.0, %v4228
        %v4230 = vpop.f32.mrf.mxu0
        %4231 = vdwg.mxu0
        %v4232 = vadd.f32 %v3848, %v4183
        %v4233 = vadd.f32 %v3849, %v4185
        %v4234 = vadd.f32 %v3850, %v4226
        %v4235 = vadd.f32 %v3851, %v4187
        %v4236 = vadd.f32 %v3852, %v4189
        %v4237 = vadd.f32 %v3853, %v4229
        %4239 = vrot.lane.b32.xlu0 %v2268, 64
        %v4240 = vpop.permute.xlu0 %4239
        %4242 = vrot.lane.b32.xlu0 %v2274, 64
        %v4243 = vpop.permute.xlu0 %4242
        %v4245 = vsel %vm2289, %v4240, 0
        %v4248 = vsel %vm2289, %v4243, 0
        %4250 = vmatprep.subr.bf16.mxu0 0
        %4251 = vmatpush1.bf16.xpose.msra.mxu0 0
        %4252 = vmatprep.subr.bf16.mxu0 0
        %4253 = vmatpush1.bf16.xpose.msra.mxu0 0
        %4254 = vmatprep.subr.bf16.mxu0 0
        %4255 = vmatpush1.bf16.xpose.msra.mxu0 0
        %4256 = vmatprep.subr.bf16.mxu0 0
        %4257 = vmatpush1.bf16.xpose.msra.mxu0 0
        %4258 = vmatprep.subr.bf16.mxu0 0
        %4259 = vmatpush1.bf16.xpose.msra.mxu0 0
        %4260 = vmatprep.subr.bf16.mxu0 0
        %4261 = vmatpush1.bf16.xpose.msra.mxu0 0
        %4262 = vmatprep.subr.bf16.mxu0 0
        %4263 = vmatpush1.bf16.xpose.msra.mxu0 0
        %4264 = vmatprep.subr.bf16.mxu0 0
        %4265 = vmatpush1.bf16.xpose.msra.mxu0 %v4248
        %4266 = vmatprep.subr.bf16.mxu0 0
        %4267 = vmatpush2.bf16.xpose.msra.mxu0 0
        %4268 = vmatprep.subr.bf16.mxu0 0
        %4269 = vmatpush2.bf16.xpose.msra.mxu0 0
        %4270 = vmatprep.subr.bf16.mxu0 0
        %4271 = vmatpush2.bf16.xpose.msra.mxu0 0
        %4272 = vmatprep.subr.bf16.mxu0 0
        %4273 = vmatpush2.bf16.xpose.msra.mxu0 0
        %4274 = vmatprep.subr.bf16.mxu0 0
        %4275 = vmatpush2.bf16.xpose.msra.mxu0 0
        %4276 = vmatprep.subr.bf16.mxu0 0
        %4277 = vmatpush2.bf16.xpose.msra.mxu0 0
        %4278 = vmatprep.subr.bf16.mxu0 0
        %4279 = vmatpush2.bf16.xpose.msra.mxu0 0
        %4280 = vmatprep.subr.bf16.mxu0 0
        %4281 = vmatpush2.bf16.xpose.msra.mxu0 0
        %4282 = vmatprep.mubr.bf16.mxu0 0
        %4283 = vmatmul.mubr.bf16.gmra.mxu0 %v4245
        %v4284 = vpop.f32.mrf.mxu0
        %v4285 = vadd.f32 0.0, %v4284
        %v4286 = vpop.f32.mrf.mxu0
        %v4287 = vpop.f32.mrf.mxu0
        %v4288 = vpop.f32.mrf.mxu0
        %4289 = vdwg.mxu0
        %4291 = vrot.lane.b32.xlu0 %v2271, 64
        %v4292 = vpop.permute.xlu0 %4291
        %4294 = vrot.lane.b32.xlu0 %v2277, 64
        %v4295 = vpop.permute.xlu0 %4294
        %v4297 = vsel %vm2289, %v4292, 0
        %v4300 = vsel %vm2289, %v4295, 0
        %4302 = vmatprep.subr.bf16.mxu0 0
        %4303 = vmatpush1.bf16.xpose.msra.mxu0 0
        %4304 = vmatprep.subr.bf16.mxu0 0
        %4305 = vmatpush1.bf16.xpose.msra.mxu0 0
        %4306 = vmatprep.subr.bf16.mxu0 0
        %4307 = vmatpush1.bf16.xpose.msra.mxu0 0
        %4308 = vmatprep.subr.bf16.mxu0 0
        %4309 = vmatpush1.bf16.xpose.msra.mxu0 0
        %4310 = vmatprep.subr.bf16.mxu0 0
        %4311 = vmatpush1.bf16.xpose.msra.mxu0 0
        %4312 = vmatprep.subr.bf16.mxu0 0
        %4313 = vmatpush1.bf16.xpose.msra.mxu0 0
        %4314 = vmatprep.subr.bf16.mxu0 0
        %4315 = vmatpush1.bf16.xpose.msra.mxu0 0
        %4316 = vmatprep.subr.bf16.mxu0 0
        %4317 = vmatpush1.bf16.xpose.msra.mxu0 %v4300
        %4318 = vmatprep.subr.bf16.mxu0 0
        %4319 = vmatpush2.bf16.xpose.msra.mxu0 0
        %4320 = vmatprep.subr.bf16.mxu0 0
        %4321 = vmatpush2.bf16.xpose.msra.mxu0 0
        %4322 = vmatprep.subr.bf16.mxu0 0
        %4323 = vmatpush2.bf16.xpose.msra.mxu0 0
        %4324 = vmatprep.subr.bf16.mxu0 0
        %4325 = vmatpush2.bf16.xpose.msra.mxu0 0
        %4326 = vmatprep.subr.bf16.mxu0 0
        %4327 = vmatpush2.bf16.xpose.msra.mxu0 0
        %4328 = vmatprep.subr.bf16.mxu0 0
        %4329 = vmatpush2.bf16.xpose.msra.mxu0 0
        %4330 = vmatprep.subr.bf16.mxu0 0
        %4331 = vmatpush2.bf16.xpose.msra.mxu0 0
        %4332 = vmatprep.subr.bf16.mxu0 0
        %4333 = vmatpush2.bf16.xpose.msra.mxu0 0
        %4334 = vmatprep.mubr.bf16.mxu0 0
        %4335 = vmatmul.mubr.bf16.gmra.mxu0 %v4297
        %v4336 = vpop.f32.mrf.mxu0
        %v4337 = vadd.f32 0.0, %v4336
        %v4338 = vpop.f32.mrf.mxu0
        %v4339 = vpop.f32.mrf.mxu0
        %v4340 = vpop.f32.mrf.mxu0
        %4341 = vdwg.mxu0
        %v4342 = vsel %vm2383, %v4285, -inf
        %v4343 = vsel %vm2383, %v4337, -inf
        %v4344 = vsel %vm2386, %v4342, -inf
        %4345 = vmax.xlane.f32.xlu0 %v4344
        %v4346 = vpop.xlane.xlu0 %4345
        %v4347 = vsel %vm2386, %v4343, -inf
        %4348 = vmax.xlane.f32.xlu0 %v4347
        %v4349 = vpop.xlane.xlu0 %4348
        %v4350 = vsub.f32 %v4342, %v4346
        %v4351 = vsub.f32 %v4343, %v4349
        %v4352 = vmul.f32 %v4350, 1.442695
        %v4353 = vpow.pop %v4352
        %v4354 = vmul.f32 %v4351, 1.442695
        %v4355 = vpow.pop %v4354
        %v4356 = vsel %vm2386, %v4353, 0.0
        %4357 = vadd.xlane.f32.xlu0 %v4356
        %v4358 = vpop.xlane.xlu0 %4357
        %v4359 = vsel %vm2386, %v4355, 0.0
        %4360 = vadd.xlane.f32.xlu0 %v4359
        %v4361 = vpop.xlane.xlu0 %4360
        %v4362 = vrcp.pop %v4358
        %v4363 = vrcp.pop %v4361
        %v4364 = vmul.f32 %v4353, %v4362
        %v4365 = vmul.f32 %v4355, %v4363
        %v4366 = vpack.c.bf16 %v4364, %v4364
        %v4367 = vpack.c.bf16 %v4365, %v4365
        %4369 = vrot.lane.b32.xlu0 %v2280, 64
        %v4370 = vpop.permute.xlu0 %4369
        %v4372 = vsel %vm2386, %v4366, 0
        %v4375 = vsel %vm2414, %v4370, 0
        %4377 = vmatprep.subr.bf16.mxu0 0
        %4378 = vmatpush1.bf16.msra.mxu0 0
        %4379 = vmatprep.subr.bf16.mxu0 0
        %4380 = vmatpush1.bf16.msra.mxu0 0
        %4381 = vmatprep.subr.bf16.mxu0 0
        %4382 = vmatpush1.bf16.msra.mxu0 0
        %4383 = vmatprep.subr.bf16.mxu0 0
        %4384 = vmatpush1.bf16.msra.mxu0 0
        %4385 = vmatprep.subr.bf16.mxu0 0
        %4386 = vmatpush1.bf16.msra.mxu0 0
        %4387 = vmatprep.subr.bf16.mxu0 0
        %4388 = vmatpush1.bf16.msra.mxu0 0
        %4389 = vmatprep.subr.bf16.mxu0 0
        %4390 = vmatpush1.bf16.msra.mxu0 0
        %4391 = vmatprep.subr.bf16.mxu0 0
        %4392 = vmatpush1.bf16.msra.mxu0 %v4375
        %4393 = vmatprep.subr.bf16.mxu0 0
        %4394 = vmatpush2.bf16.msra.mxu0 0
        %4395 = vmatprep.subr.bf16.mxu0 0
        %4396 = vmatpush2.bf16.msra.mxu0 0
        %4397 = vmatprep.subr.bf16.mxu0 0
        %4398 = vmatpush2.bf16.msra.mxu0 0
        %4399 = vmatprep.subr.bf16.mxu0 0
        %4400 = vmatpush2.bf16.msra.mxu0 0
        %4401 = vmatprep.subr.bf16.mxu0 0
        %4402 = vmatpush2.bf16.msra.mxu0 0
        %4403 = vmatprep.subr.bf16.mxu0 0
        %4404 = vmatpush2.bf16.msra.mxu0 0
        %4405 = vmatprep.subr.bf16.mxu0 0
        %4406 = vmatpush2.bf16.msra.mxu0 0
        %4407 = vmatprep.subr.bf16.mxu0 0
        %4408 = vmatpush2.bf16.msra.mxu0 0
        %4409 = vmatprep.mubr.bf16.mxu0 0
        %4410 = vmatmul.mubr.bf16.gmra.mxu0 %v4372
        %v4411 = vpop.f32.mrf.mxu0
        %v4412 = vadd.f32 0.0, %v4411
        %v4413 = vpop.f32.mrf.mxu0
        %v4414 = vpop.f32.mrf.mxu0
        %v4415 = vpop.f32.mrf.mxu0
        %4416 = vdwg.mxu0
        %4418 = vrot.lane.b32.xlu0 %v2283, 64
        %v4419 = vpop.permute.xlu0 %4418
        %v4421 = vsel %vm2386, %v4367, 0
        %v4424 = vsel %vm2414, %v4419, 0
        %4426 = vmatprep.subr.bf16.mxu0 0
        %4427 = vmatpush1.bf16.msra.mxu0 0
        %4428 = vmatprep.subr.bf16.mxu0 0
        %4429 = vmatpush1.bf16.msra.mxu0 0
        %4430 = vmatprep.subr.bf16.mxu0 0
        %4431 = vmatpush1.bf16.msra.mxu0 0
        %4432 = vmatprep.subr.bf16.mxu0 0
        %4433 = vmatpush1.bf16.msra.mxu0 0
        %4434 = vmatprep.subr.bf16.mxu0 0
        %4435 = vmatpush1.bf16.msra.mxu0 0
        %4436 = vmatprep.subr.bf16.mxu0 0
        %4437 = vmatpush1.bf16.msra.mxu0 0
        %4438 = vmatprep.subr.bf16.mxu0 0
        %4439 = vmatpush1.bf16.msra.mxu0 0
        %4440 = vmatprep.subr.bf16.mxu0 0
        %4441 = vmatpush1.bf16.msra.mxu0 %v4424
        %4442 = vmatprep.subr.bf16.mxu0 0
        %4443 = vmatpush2.bf16.msra.mxu0 0
        %4444 = vmatprep.subr.bf16.mxu0 0
        %4445 = vmatpush2.bf16.msra.mxu0 0
        %4446 = vmatprep.subr.bf16.mxu0 0
        %4447 = vmatpush2.bf16.msra.mxu0 0
        %4448 = vmatprep.subr.bf16.mxu0 0
        %4449 = vmatpush2.bf16.msra.mxu0 0
        %4450 = vmatprep.subr.bf16.mxu0 0
        %4451 = vmatpush2.bf16.msra.mxu0 0
        %4452 = vmatprep.subr.bf16.mxu0 0
        %4453 = vmatpush2.bf16.msra.mxu0 0
        %4454 = vmatprep.subr.bf16.mxu0 0
        %4455 = vmatpush2.bf16.msra.mxu0 0
        %4456 = vmatprep.subr.bf16.mxu0 0
        %4457 = vmatpush2.bf16.msra.mxu0 0
        %4458 = vmatprep.mubr.bf16.mxu0 0
        %4459 = vmatmul.mubr.bf16.gmra.mxu0 %v4421
        %v4460 = vpop.f32.mrf.mxu0
        %v4461 = vadd.f32 0.0, %v4460
        %v4462 = vpop.f32.mrf.mxu0
        %v4463 = vpop.f32.mrf.mxu0
        %v4464 = vpop.f32.mrf.mxu0
        %4465 = vdwg.mxu0
        %v4466 = vld [vmem:[%s303 + $0xf24] sm:$0xff]
        %v4467 = vld [vmem:[%s303 + $0xf2c] sm:$0xf]
        %v4468 = vld [vmem:[%s303 + $0xf84] sm:$0xff]
        %v4469 = vld [vmem:[%s303 + $0xf8c] sm:$0xf]
        %v4470 = vld [vmem:[%s303 + $0xfe4] sm:$0xff]
        %v4471 = vld [vmem:[%s303 + $0xfec] sm:$0xf]
        %v4472 = vld [vmem:[%s303 + $0x1044] sm:$0xff]
        %v4473 = vld [vmem:[%s303 + $0x104c] sm:$0xf]
        %v4474 = vld [vmem:[%s303 + $0x10a4] sm:$0xff]
        %v4475 = vld [vmem:[%s303 + $0x10ac] sm:$0xf]
        %v4476 = vld [vmem:[%s303 + $0x1104] sm:$0xff]
        %v4477 = vld [vmem:[%s303 + $0x110c] sm:$0xf]
        %v4478 = vld [vmem:[%s303 + $0x1164] sm:$0xff]
        %v4479 = vld [vmem:[%s303 + $0x116c] sm:$0xf]
        %v4480 = vld [vmem:[%s303 + $0x11c4] sm:$0xff]
        %v4481 = vld [vmem:[%s303 + $0x11cc] sm:$0xf]
        %v4482 = vpack.c.bf16 %v4461, %v4412
        %v4499 = vunpack.c.l.b16 %v4466
        %v4500 = vunpack.c.h.b16 %v4466
        %v4501 = vunpack.c.l.b16 %v4467
        %v4502 = vunpack.c.l.b16 %v4468
        %v4503 = vunpack.c.h.b16 %v4468
        %v4504 = vunpack.c.l.b16 %v4469
        %v4505 = vunpack.c.l.b16 %v4470
        %v4506 = vunpack.c.h.b16 %v4470
        %v4507 = vunpack.c.l.b16 %v4471
        %v4508 = vunpack.c.l.b16 %v4472
        %v4509 = vunpack.c.h.b16 %v4472
        %v4510 = vunpack.c.l.b16 %v4473
        %v4511 = vunpack.c.l.b16 %v4474
        %v4512 = vunpack.c.h.b16 %v4474
        %v4513 = vunpack.c.l.b16 %v4475
        %v4514 = vunpack.c.l.b16 %v4476
        %v4515 = vunpack.c.h.b16 %v4476
        %v4516 = vunpack.c.l.b16 %v4477
        %v4517 = vunpack.c.l.b16 %v4478
        %v4518 = vunpack.c.h.b16 %v4478
        %v4519 = vunpack.c.l.b16 %v4479
        %v4520 = vunpack.c.l.b16 %v4480
        %v4521 = vunpack.c.h.b16 %v4480
        %v4522 = vunpack.c.l.b16 %v4481
        %v4523 = vpack.c.b16 %v4502, %v4499
        %v4524 = vpack.c.b16 %v4503, %v4500
        %v4525 = vpack.c.b16 %v4504, %v4501
        %v4526 = vpack.c.b16 %v4508, %v4505
        %v4527 = vpack.c.b16 %v4509, %v4506
        %v4528 = vpack.c.b16 %v4510, %v4507
        %v4529 = vpack.c.b16 %v4514, %v4511
        %v4530 = vpack.c.b16 %v4515, %v4512
        %v4531 = vpack.c.b16 %v4516, %v4513
        %v4532 = vpack.c.b16 %v4520, %v4517
        %v4533 = vpack.c.b16 %v4521, %v4518
        %v4534 = vpack.c.b16 %v4522, %v4519
        %v4548 = vsel %vm2289, %v4482, 0
        %4550 = vmatprep.subr.bf16.mxu0 0
        %4551 = vmatpush1.bf16.msra.mxu0 0
        %4552 = vmatprep.subr.bf16.mxu0 0
        %4553 = vmatpush1.bf16.msra.mxu0 0
        %4554 = vmatprep.subr.bf16.mxu0 0
        %4555 = vmatpush1.bf16.msra.mxu0 0
        %4556 = vmatprep.subr.bf16.mxu0 0
        %4557 = vmatpush1.bf16.msra.mxu0 0
        %4558 = vmatprep.subr.bf16.mxu0 %v4533
        %4559 = vmatpush1.bf16.msra.mxu0 %v4532
        %4560 = vmatprep.subr.bf16.mxu0 %v4530
        %4561 = vmatpush1.bf16.msra.mxu0 %v4529
        %4562 = vmatprep.subr.bf16.mxu0 %v4527
        %4563 = vmatpush1.bf16.msra.mxu0 %v4526
        %4564 = vmatprep.subr.bf16.mxu0 %v4524
        %4565 = vmatpush1.bf16.msra.mxu0 %v4523
        %4566 = vmatprep.subr.bf16.mxu0 0
        %4567 = vmatpush2.bf16.msra.mxu0 0
        %4568 = vmatprep.subr.bf16.mxu0 0
        %4569 = vmatpush2.bf16.msra.mxu0 0
        %4570 = vmatprep.subr.bf16.mxu0 0
        %4571 = vmatpush2.bf16.msra.mxu0 0
        %4572 = vmatprep.subr.bf16.mxu0 0
        %4573 = vmatpush2.bf16.msra.mxu0 0
        %4574 = vmatprep.subr.bf16.mxu0 0
        %4575 = vmatpush2.bf16.msra.mxu0 0
        %4576 = vmatprep.subr.bf16.mxu0 0
        %4577 = vmatpush2.bf16.msra.mxu0 0
        %4578 = vmatprep.subr.bf16.mxu0 0
        %4579 = vmatpush2.bf16.msra.mxu0 0
        %4580 = vmatprep.subr.bf16.mxu0 0
        %4581 = vmatpush2.bf16.msra.mxu0 0
        %4582 = vmatprep.mubr.bf16.mxu0 0
        %4583 = vmatmul.mubr.bf16.gmra.mxu0 %v4548
        %v4584 = vpop.f32.mrf.mxu0
        %v4585 = vadd.f32 0.0, %v4584
        %v4586 = vpop.f32.mrf.mxu0
        %v4587 = vadd.f32 0.0, %v4586
        %v4588 = vpop.f32.mrf.mxu0
        %v4589 = vadd.f32 0.0, %v4588
        %v4590 = vpop.f32.mrf.mxu0
        %v4591 = vadd.f32 0.0, %v4590
        %4592 = vdwg.mxu0
        %4593 = vmatprep.subr.bf16.mxu0 0
        %4594 = vmatpush1.bf16.msra.mxu0 0
        %4595 = vmatprep.subr.bf16.mxu0 0
        %4596 = vmatpush1.bf16.msra.mxu0 0
        %4597 = vmatprep.subr.bf16.mxu0 0
        %4598 = vmatpush1.bf16.msra.mxu0 0
        %4599 = vmatprep.subr.bf16.mxu0 0
        %4600 = vmatpush1.bf16.msra.mxu0 0
        %4601 = vmatprep.subr.bf16.mxu0 0
        %4602 = vmatpush1.bf16.msra.mxu0 %v4534
        %4603 = vmatprep.subr.bf16.mxu0 0
        %4604 = vmatpush1.bf16.msra.mxu0 %v4531
        %4605 = vmatprep.subr.bf16.mxu0 0
        %4606 = vmatpush1.bf16.msra.mxu0 %v4528
        %4607 = vmatprep.subr.bf16.mxu0 0
        %4608 = vmatpush1.bf16.msra.mxu0 %v4525
        %4609 = vmatprep.subr.bf16.mxu0 0
        %4610 = vmatpush2.bf16.msra.mxu0 0
        %4611 = vmatprep.subr.bf16.mxu0 0
        %4612 = vmatpush2.bf16.msra.mxu0 0
        %4613 = vmatprep.subr.bf16.mxu0 0
        %4614 = vmatpush2.bf16.msra.mxu0 0
        %4615 = vmatprep.subr.bf16.mxu0 0
        %4616 = vmatpush2.bf16.msra.mxu0 0
        %4617 = vmatprep.subr.bf16.mxu0 0
        %4618 = vmatpush2.bf16.msra.mxu0 0
        %4619 = vmatprep.subr.bf16.mxu0 0
        %4620 = vmatpush2.bf16.msra.mxu0 0
        %4621 = vmatprep.subr.bf16.mxu0 0
        %4622 = vmatpush2.bf16.msra.mxu0 0
        %4623 = vmatprep.subr.bf16.mxu0 0
        %4624 = vmatpush2.bf16.msra.mxu0 0
        %4625 = vmatprep.mubr.bf16.mxu0 0
        %4626 = vmatmul.mubr.bf16.gmra.mxu0 %v4548
        %v4627 = vpop.f32.mrf.mxu0
        %v4628 = vadd.f32 0.0, %v4627
        %v4629 = vpop.f32.mrf.mxu0
        %v4630 = vpop.f32.mrf.mxu0
        %v4631 = vadd.f32 0.0, %v4630
        %v4632 = vpop.f32.mrf.mxu0
        %4633 = vdwg.mxu0
        %v4634 = vadd.f32 %v4232, %v4585
        %v4635 = vadd.f32 %v4233, %v4587
        %v4636 = vadd.f32 %v4234, %v4628
        %v4637 = vadd.f32 %v4235, %v4589
        %v4638 = vadd.f32 %v4236, %v4591
        %v4639 = vadd.f32 %v4237, %v4631
        %v4640 = vadd.f32 %v397, %v4634
        %v4641 = vadd.f32 %v398, %v4635
        %v4642 = vadd.f32 %v399, %v4636
        %v4643 = vadd.f32 %v400, %v4637
        %v4644 = vadd.f32 %v401, %v4638
        %v4645 = vadd.f32 %v402, %v4639
        %v4646 = vlaneseq
        %v4647 = vshrl.u32 %v4646, 7
        %v4648 = vsub.s32 4, %v4647
        %v4649 = vrot.slane %v403, %v4648
        %v4650 = vlaneseq
        %v4651 = vshrl.u32 %v4650, 7
        %v4652 = vsub.s32 4, %v4651
        %v4653 = vrot.slane %v404, %v4652
        %v4654 = vlaneseq
        %v4655 = vshrl.u32 %v4654, 7
        %v4656 = vsub.s32 4, %v4655
        %v4657 = vrot.slane %v405, %v4656
        %v4658 = vadd.f32 %v4640, %v4649
        %v4659 = vadd.f32 %v4641, %v4653
        %v4660 = vadd.f32 %v4642, %v4657
        %v4661 = vadd.f32 %v4643, %v4649
        %v4662 = vadd.f32 %v4644, %v4653
        %v4663 = vadd.f32 %v4645, %v4657
        %v4664 = vadd.f32 %v4658, %v4659
        %v4665 = vadd.f32 %v4664, %v4660
        %4666 = vadd.xlane.f32.xlu0 %v4665
        %v4667 = vpop.xlane.xlu0 %4666
        %v4668 = vadd.f32 %v4661, %v4662
        %v4669 = vadd.f32 %v4668, %v4663
        %4670 = vadd.xlane.f32.xlu0 %v4669
        %v4671 = vpop.xlane.xlu0 %4670
        %v4672 = vmul.f32 %v4667, %v416
        %v4673 = vmul.f32 %v4671, %v416
        %v4674 = vsub.f32 %v4658, %v4672
        %v4675 = vsub.f32 %v4659, %v4672
        %v4676 = vsub.f32 %v4660, %v4672
        %v4677 = vsub.f32 %v4661, %v4673
        %v4678 = vsub.f32 %v4662, %v4673
        %v4679 = vsub.f32 %v4663, %v4673
        %v4680 = vmul.f32 %v4674, %v4674
        %v4681 = vmul.f32 %v4675, %v4675
        %v4682 = vmul.f32 %v4676, %v4676
        %v4683 = vmul.f32 %v4677, %v4677
        %v4684 = vmul.f32 %v4678, %v4678
        %v4685 = vmul.f32 %v4679, %v4679
        %v4686 = vadd.f32 %v4680, %v4681
        %v4687 = vadd.f32 %v4686, %v4682
        %4688 = vadd.xlane.f32.xlu0 %v4687
        %v4689 = vpop.xlane.xlu0 %4688
        %v4690 = vadd.f32 %v4683, %v4684
        %v4691 = vadd.f32 %v4690, %v4685
        %4692 = vadd.xlane.f32.xlu0 %v4691
        %v4693 = vpop.xlane.xlu0 %4692
        %v4694 = vmul.f32 %v4689, %v416
        %v4695 = vmul.f32 %v4693, %v416
        %v4696 = vadd.f32 %v4694, 1e-05
        %v4697 = vadd.f32 %v4695, 1e-05
        %v4698 = vrsqrt.pop %v4696
        %v4699 = vrsqrt.pop %v4697
        %v4700 = vmul.f32 %v4674, %v4698
        %v4701 = vmul.f32 %v4675, %v4698
        %v4702 = vmul.f32 %v4676, %v4698
        %v4703 = vmul.f32 %v4677, %v4699
        %v4704 = vmul.f32 %v4678, %v4699
        %v4705 = vmul.f32 %v4679, %v4699
        %v4706 = vlaneseq
        %v4707 = vshrl.u32 %v4706, 7
        %v4708 = vsub.s32 2, %v4707
        %v4709 = vrot.slane %v403, %v4708
        %v4710 = vlaneseq
        %v4711 = vshrl.u32 %v4710, 7
        %v4712 = vsub.s32 2, %v4711
        %v4713 = vrot.slane %v404, %v4712
        %v4714 = vlaneseq
        %v4715 = vshrl.u32 %v4714, 7
        %v4716 = vsub.s32 2, %v4715
        %v4717 = vrot.slane %v405, %v4716
        %v4718 = vmul.f32 %v4700, %v4709
        %v4719 = vmul.f32 %v4701, %v4713
        %v4720 = vmul.f32 %v4702, %v4717
        %v4721 = vmul.f32 %v4703, %v4709
        %v4722 = vmul.f32 %v4704, %v4713
        %v4723 = vmul.f32 %v4705, %v4717
        %v4724 = vlaneseq
        %v4725 = vshrl.u32 %v4724, 7
        %v4726 = vsub.s32 3, %v4725
        %v4727 = vrot.slane %v403, %v4726
        %v4728 = vlaneseq
        %v4729 = vshrl.u32 %v4728, 7
        %v4730 = vsub.s32 3, %v4729
        %v4731 = vrot.slane %v404, %v4730
        %v4732 = vlaneseq
        %v4733 = vshrl.u32 %v4732, 7
        %v4734 = vsub.s32 3, %v4733
        %v4735 = vrot.slane %v405, %v4734
        %v4736 = vadd.f32 %v4718, %v4727
        %v4737 = vadd.f32 %v4719, %v4731
        %v4738 = vadd.f32 %v4720, %v4735
        %v4739 = vadd.f32 %v4721, %v4727
        %v4740 = vadd.f32 %v4722, %v4731
        %v4741 = vadd.f32 %v4723, %v4735
        %v4742 = vpack.c.bf16 %v4739, %v4736
        %v4743 = vpack.c.bf16 %v4740, %v4737
        %v4744 = vpack.c.bf16 %v4741, %v4738
        %v4745 = vld [vmem:[%s303 + $0x30] sm:$0xff]
        %v4746 = vld [vmem:[%s303 + $0x38] sm:$0xff]
        %v4747 = vld [vmem:[%s303 + $0x40] sm:$0xff]
        %v4748 = vld [vmem:[%s303 + $0x48] sm:$0xff]
        %v4749 = vld [vmem:[%s303 + $0x50] sm:$0xff]
        %v4750 = vld [vmem:[%s303 + $0x58] sm:$0xff]
        %v4751 = vld [vmem:[%s303 + $0x90] sm:$0xff]
        %v4752 = vld [vmem:[%s303 + $0x98] sm:$0xff]
        %v4753 = vld [vmem:[%s303 + $0xa0] sm:$0xff]
        %v4754 = vld [vmem:[%s303 + $0xa8] sm:$0xff]
        %v4755 = vld [vmem:[%s303 + $0xb0] sm:$0xff]
        %v4756 = vld [vmem:[%s303 + $0xb8] sm:$0xff]
        %v4757 = vld [vmem:[%s303 + $0xf0] sm:$0xff]
        %v4758 = vld [vmem:[%s303 + $0xf8] sm:$0xff]
        %v4759 = vld [vmem:[%s303 + $0x100] sm:$0xff]
        %v4760 = vld [vmem:[%s303 + $0x108] sm:$0xff]
        %v4761 = vld [vmem:[%s303 + $0x110] sm:$0xff]
        %v4762 = vld [vmem:[%s303 + $0x118] sm:$0xff]
        %v4763 = vld [vmem:[%s303 + $0x150] sm:$0xff]
        %v4764 = vld [vmem:[%s303 + $0x158] sm:$0xff]
        %v4765 = vld [vmem:[%s303 + $0x160] sm:$0xff]
        %v4766 = vld [vmem:[%s303 + $0x168] sm:$0xff]
        %v4767 = vld [vmem:[%s303 + $0x170] sm:$0xff]
        %v4768 = vld [vmem:[%s303 + $0x178] sm:$0xff]
        %v4769 = vld [vmem:[%s303 + $0x1b0] sm:$0xff]
        %v4770 = vld [vmem:[%s303 + $0x1b8] sm:$0xff]
        %v4771 = vld [vmem:[%s303 + $0x1c0] sm:$0xff]
        %v4772 = vld [vmem:[%s303 + $0x1c8] sm:$0xff]
        %v4773 = vld [vmem:[%s303 + $0x1d0] sm:$0xff]
        %v4774 = vld [vmem:[%s303 + $0x1d8] sm:$0xff]
        %v4775 = vld [vmem:[%s303 + $0x210] sm:$0xff]
        %v4776 = vld [vmem:[%s303 + $0x218] sm:$0xff]
        %v4777 = vld [vmem:[%s303 + $0x220] sm:$0xff]
        %v4778 = vld [vmem:[%s303 + $0x228] sm:$0xff]
        %v4779 = vld [vmem:[%s303 + $0x230] sm:$0xff]
        %v4780 = vld [vmem:[%s303 + $0x238] sm:$0xff]
        %v4781 = vld [vmem:[%s303 + $0x270] sm:$0xff]
        %v4782 = vld [vmem:[%s303 + $0x278] sm:$0xff]
        %v4783 = vld [vmem:[%s303 + $0x280] sm:$0xff]
        %v4784 = vld [vmem:[%s303 + $0x288] sm:$0xff]
        %v4785 = vld [vmem:[%s303 + $0x290] sm:$0xff]
        %v4786 = vld [vmem:[%s303 + $0x298] sm:$0xff]
        %v4787 = vld [vmem:[%s303 + $0x2d0] sm:$0xff]
        %v4788 = vld [vmem:[%s303 + $0x2d8] sm:$0xff]
        %v4789 = vld [vmem:[%s303 + $0x2e0] sm:$0xff]
        %v4790 = vld [vmem:[%s303 + $0x2e8] sm:$0xff]
        %v4791 = vld [vmem:[%s303 + $0x2f0] sm:$0xff]
        %v4792 = vld [vmem:[%s303 + $0x2f8] sm:$0xff]
        %v4793 = vld [vmem:[%s303 + $0x330] sm:$0xff]
        %v4794 = vld [vmem:[%s303 + $0x338] sm:$0xff]
        %v4795 = vld [vmem:[%s303 + $0x340] sm:$0xff]
        %v4796 = vld [vmem:[%s303 + $0x348] sm:$0xff]
        %v4797 = vld [vmem:[%s303 + $0x350] sm:$0xff]
        %v4798 = vld [vmem:[%s303 + $0x358] sm:$0xff]
        %v4799 = vld [vmem:[%s303 + $0x390] sm:$0xff]
        %v4800 = vld [vmem:[%s303 + $0x398] sm:$0xff]
        %v4801 = vld [vmem:[%s303 + $0x3a0] sm:$0xff]
        %v4802 = vld [vmem:[%s303 + $0x3a8] sm:$0xff]
        %v4803 = vld [vmem:[%s303 + $0x3b0] sm:$0xff]
        %v4804 = vld [vmem:[%s303 + $0x3b8] sm:$0xff]
        %v4805 = vld [vmem:[%s303 + $0x3f0] sm:$0xff]
        %v4806 = vld [vmem:[%s303 + $0x3f8] sm:$0xff]
        %v4807 = vld [vmem:[%s303 + $0x400] sm:$0xff]
        %v4808 = vld [vmem:[%s303 + $0x408] sm:$0xff]
        %v4809 = vld [vmem:[%s303 + $0x410] sm:$0xff]
        %v4810 = vld [vmem:[%s303 + $0x418] sm:$0xff]
        %v4811 = vld [vmem:[%s303 + $0x450] sm:$0xff]
        %v4812 = vld [vmem:[%s303 + $0x458] sm:$0xff]
        %v4813 = vld [vmem:[%s303 + $0x460] sm:$0xff]
        %v4814 = vld [vmem:[%s303 + $0x468] sm:$0xff]
        %v4815 = vld [vmem:[%s303 + $0x470] sm:$0xff]
        %v4816 = vld [vmem:[%s303 + $0x478] sm:$0xff]
        %v4817 = vld [vmem:[%s303 + $0x4b0] sm:$0xff]
        %v4818 = vld [vmem:[%s303 + $0x4b8] sm:$0xff]
        %v4819 = vld [vmem:[%s303 + $0x4c0] sm:$0xff]
        %v4820 = vld [vmem:[%s303 + $0x4c8] sm:$0xff]
        %v4821 = vld [vmem:[%s303 + $0x4d0] sm:$0xff]
        %v4822 = vld [vmem:[%s303 + $0x4d8] sm:$0xff]
        %v4823 = vld [vmem:[%s303 + $0x510] sm:$0xff]
        %v4824 = vld [vmem:[%s303 + $0x518] sm:$0xff]
        %v4825 = vld [vmem:[%s303 + $0x520] sm:$0xff]
        %v4826 = vld [vmem:[%s303 + $0x528] sm:$0xff]
        %v4827 = vld [vmem:[%s303 + $0x530] sm:$0xff]
        %v4828 = vld [vmem:[%s303 + $0x538] sm:$0xff]
        %v4829 = vld [vmem:[%s303 + $0x570] sm:$0xff]
        %v4830 = vld [vmem:[%s303 + $0x578] sm:$0xff]
        %v4831 = vld [vmem:[%s303 + $0x580] sm:$0xff]
        %v4832 = vld [vmem:[%s303 + $0x588] sm:$0xff]
        %v4833 = vld [vmem:[%s303 + $0x590] sm:$0xff]
        %v4834 = vld [vmem:[%s303 + $0x598] sm:$0xff]
        %v4835 = vld [vmem:[%s303 + $0x5d0] sm:$0xff]
        %v4836 = vld [vmem:[%s303 + $0x5d8] sm:$0xff]
        %v4837 = vld [vmem:[%s303 + $0x5e0] sm:$0xff]
        %v4838 = vld [vmem:[%s303 + $0x5e8] sm:$0xff]
        %v4839 = vld [vmem:[%s303 + $0x5f0] sm:$0xff]
        %v4840 = vld [vmem:[%s303 + $0x5f8] sm:$0xff]
        %v4841 = vld [vmem:[%s303 + $0x630] sm:$0xff]
        %v4842 = vld [vmem:[%s303 + $0x638] sm:$0xff]
        %v4843 = vld [vmem:[%s303 + $0x640] sm:$0xff]
        %v4844 = vld [vmem:[%s303 + $0x648] sm:$0xff]
        %v4845 = vld [vmem:[%s303 + $0x650] sm:$0xff]
        %v4846 = vld [vmem:[%s303 + $0x658] sm:$0xff]
        %v4847 = vld [vmem:[%s303 + $0x690] sm:$0xff]
        %v4848 = vld [vmem:[%s303 + $0x698] sm:$0xff]
        %v4849 = vld [vmem:[%s303 + $0x6a0] sm:$0xff]
        %v4850 = vld [vmem:[%s303 + $0x6a8] sm:$0xff]
        %v4851 = vld [vmem:[%s303 + $0x6b0] sm:$0xff]
        %v4852 = vld [vmem:[%s303 + $0x6b8] sm:$0xff]
        %v4853 = vld [vmem:[%s303 + $0x6f0] sm:$0xff]
        %v4854 = vld [vmem:[%s303 + $0x6f8] sm:$0xff]
        %v4855 = vld [vmem:[%s303 + $0x700] sm:$0xff]
        %v4856 = vld [vmem:[%s303 + $0x708] sm:$0xff]
        %v4857 = vld [vmem:[%s303 + $0x710] sm:$0xff]
        %v4858 = vld [vmem:[%s303 + $0x718] sm:$0xff]
        %v4859 = vld [vmem:[%s303 + $0x750] sm:$0xff]
        %v4860 = vld [vmem:[%s303 + $0x758] sm:$0xff]
        %v4861 = vld [vmem:[%s303 + $0x760] sm:$0xff]
        %v4862 = vld [vmem:[%s303 + $0x768] sm:$0xff]
        %v4863 = vld [vmem:[%s303 + $0x770] sm:$0xff]
        %v4864 = vld [vmem:[%s303 + $0x778] sm:$0xff]
        %v4865 = vld [vmem:[%s303 + $0x7b0] sm:$0xff]
        %v4866 = vld [vmem:[%s303 + $0x7b8] sm:$0xff]
        %v4867 = vld [vmem:[%s303 + $0x7c0] sm:$0xff]
        %v4868 = vld [vmem:[%s303 + $0x7c8] sm:$0xff]
        %v4869 = vld [vmem:[%s303 + $0x7d0] sm:$0xff]
        %v4870 = vld [vmem:[%s303 + $0x7d8] sm:$0xff]
        %v4871 = vld [vmem:[%s303 + $0x810] sm:$0xff]
        %v4872 = vld [vmem:[%s303 + $0x818] sm:$0xff]
        %v4873 = vld [vmem:[%s303 + $0x820] sm:$0xff]
        %v4874 = vld [vmem:[%s303 + $0x828] sm:$0xff]
        %v4875 = vld [vmem:[%s303 + $0x830] sm:$0xff]
        %v4876 = vld [vmem:[%s303 + $0x838] sm:$0xff]
        %v4877 = vld [vmem:[%s303 + $0x870] sm:$0xff]
        %v4878 = vld [vmem:[%s303 + $0x878] sm:$0xff]
        %v4879 = vld [vmem:[%s303 + $0x880] sm:$0xff]
        %v4880 = vld [vmem:[%s303 + $0x888] sm:$0xff]
        %v4881 = vld [vmem:[%s303 + $0x890] sm:$0xff]
        %v4882 = vld [vmem:[%s303 + $0x898] sm:$0xff]
        %v4883 = vld [vmem:[%s303 + $0x8d0] sm:$0xff]
        %v4884 = vld [vmem:[%s303 + $0x8d8] sm:$0xff]
        %v4885 = vld [vmem:[%s303 + $0x8e0] sm:$0xff]
        %v4886 = vld [vmem:[%s303 + $0x8e8] sm:$0xff]
        %v4887 = vld [vmem:[%s303 + $0x8f0] sm:$0xff]
        %v4888 = vld [vmem:[%s303 + $0x8f8] sm:$0xff]
        %v4889 = vld [vmem:[%s303 + $0x930] sm:$0xff]
        %v4890 = vld [vmem:[%s303 + $0x938] sm:$0xff]
        %v4891 = vld [vmem:[%s303 + $0x940] sm:$0xff]
        %v4892 = vld [vmem:[%s303 + $0x948] sm:$0xff]
        %v4893 = vld [vmem:[%s303 + $0x950] sm:$0xff]
        %v4894 = vld [vmem:[%s303 + $0x958] sm:$0xff]
        %v4895 = vld [vmem:[%s303 + $0x990] sm:$0xff]
        %v4896 = vld [vmem:[%s303 + $0x998] sm:$0xff]
        %v4897 = vld [vmem:[%s303 + $0x9a0] sm:$0xff]
        %v4898 = vld [vmem:[%s303 + $0x9a8] sm:$0xff]
        %v4899 = vld [vmem:[%s303 + $0x9b0] sm:$0xff]
        %v4900 = vld [vmem:[%s303 + $0x9b8] sm:$0xff]
        %v4901 = vld [vmem:[%s303 + $0x9f0] sm:$0xff]
        %v4902 = vld [vmem:[%s303 + $0x9f8] sm:$0xff]
        %v4903 = vld [vmem:[%s303 + $0xa00] sm:$0xff]
        %v4904 = vld [vmem:[%s303 + $0xa08] sm:$0xff]
        %v4905 = vld [vmem:[%s303 + $0xa10] sm:$0xff]
        %v4906 = vld [vmem:[%s303 + $0xa18] sm:$0xff]
        %v4907 = vld [vmem:[%s303 + $0xa50] sm:$0xff]
        %v4908 = vld [vmem:[%s303 + $0xa58] sm:$0xff]
        %v4909 = vld [vmem:[%s303 + $0xa60] sm:$0xff]
        %v4910 = vld [vmem:[%s303 + $0xa68] sm:$0xff]
        %v4911 = vld [vmem:[%s303 + $0xa70] sm:$0xff]
        %v4912 = vld [vmem:[%s303 + $0xa78] sm:$0xff]
        %v4913 = vld [vmem:[%s303 + $0xab0] sm:$0xff]
        %v4914 = vld [vmem:[%s303 + $0xab8] sm:$0xff]
        %v4915 = vld [vmem:[%s303 + $0xac0] sm:$0xff]
        %v4916 = vld [vmem:[%s303 + $0xac8] sm:$0xff]
        %v4917 = vld [vmem:[%s303 + $0xad0] sm:$0xff]
        %v4918 = vld [vmem:[%s303 + $0xad8] sm:$0xff]
        %v4919 = vld [vmem:[%s303 + $0xb10] sm:$0xff]
        %v4920 = vld [vmem:[%s303 + $0xb18] sm:$0xff]
        %v4921 = vld [vmem:[%s303 + $0xb20] sm:$0xff]
        %v4922 = vld [vmem:[%s303 + $0xb28] sm:$0xff]
        %v4923 = vld [vmem:[%s303 + $0xb30] sm:$0xff]
        %v4924 = vld [vmem:[%s303 + $0xb38] sm:$0xff]
        %v4925 = vld [vmem:[%s303 + $0xb70] sm:$0xff]
        %v4926 = vld [vmem:[%s303 + $0xb78] sm:$0xff]
        %v4927 = vld [vmem:[%s303 + $0xb80] sm:$0xff]
        %v4928 = vld [vmem:[%s303 + $0xb88] sm:$0xff]
        %v4929 = vld [vmem:[%s303 + $0xb90] sm:$0xff]
        %v4930 = vld [vmem:[%s303 + $0xb98] sm:$0xff]
        %v4931 = vld [vmem:[%s303 + $0xbd0] sm:$0xff]
        %v4932 = vld [vmem:[%s303 + $0xbd8] sm:$0xff]
        %v4933 = vld [vmem:[%s303 + $0xbe0] sm:$0xff]
        %v4934 = vld [vmem:[%s303 + $0xbe8] sm:$0xff]
        %v4935 = vld [vmem:[%s303 + $0xbf0] sm:$0xff]
        %v4936 = vld [vmem:[%s303 + $0xbf8] sm:$0xff]
        %v4937 = vld [vmem:[%s303 + $0xc30] sm:$0xff]
        %v4938 = vld [vmem:[%s303 + $0xc38] sm:$0xff]
        %v4939 = vld [vmem:[%s303 + $0xc40] sm:$0xff]
        %v4940 = vld [vmem:[%s303 + $0xc48] sm:$0xff]
        %v4941 = vld [vmem:[%s303 + $0xc50] sm:$0xff]
        %v4942 = vld [vmem:[%s303 + $0xc58] sm:$0xff]
        %v4943 = vld [vmem:[%s303 + $0xc90] sm:$0xff]
        %v4944 = vld [vmem:[%s303 + $0xc98] sm:$0xff]
        %v4945 = vld [vmem:[%s303 + $0xca0] sm:$0xff]
        %v4946 = vld [vmem:[%s303 + $0xca8] sm:$0xff]
        %v4947 = vld [vmem:[%s303 + $0xcb0] sm:$0xff]
        %v4948 = vld [vmem:[%s303 + $0xcb8] sm:$0xff]
        %v4949 = vld [vmem:[%s303 + $0xcf0] sm:$0xff]
        %v4950 = vld [vmem:[%s303 + $0xcf8] sm:$0xff]
        %v4951 = vld [vmem:[%s303 + $0xd00] sm:$0xff]
        %v4952 = vld [vmem:[%s303 + $0xd08] sm:$0xff]
        %v4953 = vld [vmem:[%s303 + $0xd10] sm:$0xff]
        %v4954 = vld [vmem:[%s303 + $0xd18] sm:$0xff]
        %v4955 = vld [vmem:[%s303 + $0xd50] sm:$0xff]
        %v4956 = vld [vmem:[%s303 + $0xd58] sm:$0xff]
        %v4957 = vld [vmem:[%s303 + $0xd60] sm:$0xff]
        %v4958 = vld [vmem:[%s303 + $0xd68] sm:$0xff]
        %v4959 = vld [vmem:[%s303 + $0xd70] sm:$0xff]
        %v4960 = vld [vmem:[%s303 + $0xd78] sm:$0xff]
        %v4961 = vld [vmem:[%s303 + $0xdb0] sm:$0xff]
        %v4962 = vld [vmem:[%s303 + $0xdb8] sm:$0xff]
        %v4963 = vld [vmem:[%s303 + $0xdc0] sm:$0xff]
        %v4964 = vld [vmem:[%s303 + $0xdc8] sm:$0xff]
        %v4965 = vld [vmem:[%s303 + $0xdd0] sm:$0xff]
        %v4966 = vld [vmem:[%s303 + $0xdd8] sm:$0xff]
        %v4967 = vld [vmem:[%s303 + $0xe10] sm:$0xff]
        %v4968 = vld [vmem:[%s303 + $0xe18] sm:$0xff]
        %v4969 = vld [vmem:[%s303 + $0xe20] sm:$0xff]
        %v4970 = vld [vmem:[%s303 + $0xe28] sm:$0xff]
        %v4971 = vld [vmem:[%s303 + $0xe30] sm:$0xff]
        %v4972 = vld [vmem:[%s303 + $0xe38] sm:$0xff]
        %v4973 = vld [vmem:[%s303 + $0xe70] sm:$0xff]
        %v4974 = vld [vmem:[%s303 + $0xe78] sm:$0xff]
        %v4975 = vld [vmem:[%s303 + $0xe80] sm:$0xff]
        %v4976 = vld [vmem:[%s303 + $0xe88] sm:$0xff]
        %v4977 = vld [vmem:[%s303 + $0xe90] sm:$0xff]
        %v4978 = vld [vmem:[%s303 + $0xe98] sm:$0xff]
        %v4979 = vld [vmem:[%s303 + $0xed0] sm:$0xff]
        %v4980 = vld [vmem:[%s303 + $0xed8] sm:$0xff]
        %v4981 = vld [vmem:[%s303 + $0xee0] sm:$0xff]
        %v4982 = vld [vmem:[%s303 + $0xee8] sm:$0xff]
        %v4983 = vld [vmem:[%s303 + $0xef0] sm:$0xff]
        %v4984 = vld [vmem:[%s303 + $0xef8] sm:$0xff]
        %v4985 = vld [vmem:[%s303 + $0xf30] sm:$0xff]
        %v4986 = vld [vmem:[%s303 + $0xf38] sm:$0xff]
        %v4987 = vld [vmem:[%s303 + $0xf40] sm:$0xff]
        %v4988 = vld [vmem:[%s303 + $0xf48] sm:$0xff]
        %v4989 = vld [vmem:[%s303 + $0xf50] sm:$0xff]
        %v4990 = vld [vmem:[%s303 + $0xf58] sm:$0xff]
        %v4991 = vld [vmem:[%s303 + $0xf90] sm:$0xff]
        %v4992 = vld [vmem:[%s303 + $0xf98] sm:$0xff]
        %v4993 = vld [vmem:[%s303 + $0xfa0] sm:$0xff]
        %v4994 = vld [vmem:[%s303 + $0xfa8] sm:$0xff]
        %v4995 = vld [vmem:[%s303 + $0xfb0] sm:$0xff]
        %v4996 = vld [vmem:[%s303 + $0xfb8] sm:$0xff]
        %v4997 = vld [vmem:[%s303 + $0xff0] sm:$0xff]
        %v4998 = vld [vmem:[%s303 + $0xff8] sm:$0xff]
        %v4999 = vld [vmem:[%s303 + $0x1000] sm:$0xff]
        %v5000 = vld [vmem:[%s303 + $0x1008] sm:$0xff]
        %v5001 = vld [vmem:[%s303 + $0x1010] sm:$0xff]
        %v5002 = vld [vmem:[%s303 + $0x1018] sm:$0xff]
        %v5003 = vld [vmem:[%s303 + $0x1050] sm:$0xff]
        %v5004 = vld [vmem:[%s303 + $0x1058] sm:$0xff]
        %v5005 = vld [vmem:[%s303 + $0x1060] sm:$0xff]
        %v5006 = vld [vmem:[%s303 + $0x1068] sm:$0xff]
        %v5007 = vld [vmem:[%s303 + $0x1070] sm:$0xff]
        %v5008 = vld [vmem:[%s303 + $0x1078] sm:$0xff]
        %v5009 = vld [vmem:[%s303 + $0x10b0] sm:$0xff]
        %v5010 = vld [vmem:[%s303 + $0x10b8] sm:$0xff]
        %v5011 = vld [vmem:[%s303 + $0x10c0] sm:$0xff]
        %v5012 = vld [vmem:[%s303 + $0x10c8] sm:$0xff]
        %v5013 = vld [vmem:[%s303 + $0x10d0] sm:$0xff]
        %v5014 = vld [vmem:[%s303 + $0x10d8] sm:$0xff]
        %v5015 = vld [vmem:[%s303 + $0x1110] sm:$0xff]
        %v5016 = vld [vmem:[%s303 + $0x1118] sm:$0xff]
        %v5017 = vld [vmem:[%s303 + $0x1120] sm:$0xff]
        %v5018 = vld [vmem:[%s303 + $0x1128] sm:$0xff]
        %v5019 = vld [vmem:[%s303 + $0x1130] sm:$0xff]
        %v5020 = vld [vmem:[%s303 + $0x1138] sm:$0xff]
        %v5021 = vld [vmem:[%s303 + $0x1170] sm:$0xff]
        %v5022 = vld [vmem:[%s303 + $0x1178] sm:$0xff]
        %v5023 = vld [vmem:[%s303 + $0x1180] sm:$0xff]
        %v5024 = vld [vmem:[%s303 + $0x1188] sm:$0xff]
        %v5025 = vld [vmem:[%s303 + $0x1190] sm:$0xff]
        %v5026 = vld [vmem:[%s303 + $0x1198] sm:$0xff]
        %v5027 = vld [vmem:[%s303 + $0x11d0] sm:$0xff]
        %v5028 = vld [vmem:[%s303 + $0x11d8] sm:$0xff]
        %v5029 = vld [vmem:[%s303 + $0x11e0] sm:$0xff]
        %v5030 = vld [vmem:[%s303 + $0x11e8] sm:$0xff]
        %v5031 = vld [vmem:[%s303 + $0x11f0] sm:$0xff]
        %v5032 = vld [vmem:[%s303 + $0x11f8] sm:$0xff]
        %v5035 = vlaneseq
        %v5036 = vshrl.u32 %v5035, 7
        %v5037 = vsub.s32 0, %v5036
        %v5038 = vrot.slane %v406, %v5037
        %v5039 = vlaneseq
        %v5040 = vshrl.u32 %v5039, 7
        %v5041 = vsub.s32 1, %v5040
        %v5042 = vrot.slane %v406, %v5041
        %v5043 = vlaneseq
        %v5044 = vshrl.u32 %v5043, 7
        %v5045 = vsub.s32 2, %v5044
        %v5046 = vrot.slane %v406, %v5045
        %v5047 = vlaneseq
        %v5048 = vshrl.u32 %v5047, 7
        %v5049 = vsub.s32 3, %v5048
        %v5050 = vrot.slane %v406, %v5049
        %v5051 = vlaneseq
        %v5052 = vshrl.u32 %v5051, 7
        %v5053 = vsub.s32 4, %v5052
        %v5054 = vrot.slane %v406, %v5053
        %v5055 = vlaneseq
        %v5056 = vshrl.u32 %v5055, 7
        %v5057 = vsub.s32 5, %v5056
        %v5058 = vrot.slane %v406, %v5057
        %v5059 = vlaneseq
        %v5060 = vshrl.u32 %v5059, 7
        %v5061 = vsub.s32 6, %v5060
        %v5062 = vrot.slane %v406, %v5061
        %v5063 = vlaneseq
        %v5064 = vshrl.u32 %v5063, 7
        %v5065 = vsub.s32 7, %v5064
        %v5066 = vrot.slane %v406, %v5065
        %v5067 = vlaneseq
        %v5068 = vshrl.u32 %v5067, 7
        %v5069 = vsub.s32 0, %v5068
        %v5070 = vrot.slane %v407, %v5069
        %v5071 = vlaneseq
        %v5072 = vshrl.u32 %v5071, 7
        %v5073 = vsub.s32 1, %v5072
        %v5074 = vrot.slane %v407, %v5073
        %v5075 = vlaneseq
        %v5076 = vshrl.u32 %v5075, 7
        %v5077 = vsub.s32 2, %v5076
        %v5078 = vrot.slane %v407, %v5077
        %v5079 = vlaneseq
        %v5080 = vshrl.u32 %v5079, 7
        %v5081 = vsub.s32 3, %v5080
        %v5082 = vrot.slane %v407, %v5081
        %v5383 = vunpack.c.l.b16 %v4745
        %v5384 = vunpack.c.h.b16 %v4745
        %v5385 = vunpack.c.l.b16 %v4746
        %v5386 = vunpack.c.h.b16 %v4746
        %v5387 = vunpack.c.l.b16 %v4747
        %v5388 = vunpack.c.h.b16 %v4747
        %v5389 = vunpack.c.l.b16 %v4748
        %v5390 = vunpack.c.h.b16 %v4748
        %v5391 = vunpack.c.l.b16 %v4749
        %v5392 = vunpack.c.h.b16 %v4749
        %v5393 = vunpack.c.l.b16 %v4750
        %v5394 = vunpack.c.h.b16 %v4750
        %v5395 = vunpack.c.l.b16 %v4751
        %v5396 = vunpack.c.h.b16 %v4751
        %v5397 = vunpack.c.l.b16 %v4752
        %v5398 = vunpack.c.h.b16 %v4752
        %v5399 = vunpack.c.l.b16 %v4753
        %v5400 = vunpack.c.h.b16 %v4753
        %v5401 = vunpack.c.l.b16 %v4754
        %v5402 = vunpack.c.h.b16 %v4754
        %v5403 = vunpack.c.l.b16 %v4755
        %v5404 = vunpack.c.h.b16 %v4755
        %v5405 = vunpack.c.l.b16 %v4756
        %v5406 = vunpack.c.h.b16 %v4756
        %v5407 = vunpack.c.l.b16 %v4757
        %v5408 = vunpack.c.h.b16 %v4757
        %v5409 = vunpack.c.l.b16 %v4758
        %v5410 = vunpack.c.h.b16 %v4758
        %v5411 = vunpack.c.l.b16 %v4759
        %v5412 = vunpack.c.h.b16 %v4759
        %v5413 = vunpack.c.l.b16 %v4760
        %v5414 = vunpack.c.h.b16 %v4760
        %v5415 = vunpack.c.l.b16 %v4761
        %v5416 = vunpack.c.h.b16 %v4761
        %v5417 = vunpack.c.l.b16 %v4762
        %v5418 = vunpack.c.h.b16 %v4762
        %v5419 = vunpack.c.l.b16 %v4763
        %v5420 = vunpack.c.h.b16 %v4763
        %v5421 = vunpack.c.l.b16 %v4764
        %v5422 = vunpack.c.h.b16 %v4764
        %v5423 = vunpack.c.l.b16 %v4765
        %v5424 = vunpack.c.h.b16 %v4765
        %v5425 = vunpack.c.l.b16 %v4766
        %v5426 = vunpack.c.h.b16 %v4766
        %v5427 = vunpack.c.l.b16 %v4767
        %v5428 = vunpack.c.h.b16 %v4767
        %v5429 = vunpack.c.l.b16 %v4768
        %v5430 = vunpack.c.h.b16 %v4768
        %v5431 = vunpack.c.l.b16 %v4769
        %v5432 = vunpack.c.h.b16 %v4769
        %v5433 = vunpack.c.l.b16 %v4770
        %v5434 = vunpack.c.h.b16 %v4770
        %v5435 = vunpack.c.l.b16 %v4771
        %v5436 = vunpack.c.h.b16 %v4771
        %v5437 = vunpack.c.l.b16 %v4772
        %v5438 = vunpack.c.h.b16 %v4772
        %v5439 = vunpack.c.l.b16 %v4773
        %v5440 = vunpack.c.h.b16 %v4773
        %v5441 = vunpack.c.l.b16 %v4774
        %v5442 = vunpack.c.h.b16 %v4774
        %v5443 = vunpack.c.l.b16 %v4775
        %v5444 = vunpack.c.h.b16 %v4775
        %v5445 = vunpack.c.l.b16 %v4776
        %v5446 = vunpack.c.h.b16 %v4776
        %v5447 = vunpack.c.l.b16 %v4777
        %v5448 = vunpack.c.h.b16 %v4777
        %v5449 = vunpack.c.l.b16 %v4778
        %v5450 = vunpack.c.h.b16 %v4778
        %v5451 = vunpack.c.l.b16 %v4779
        %v5452 = vunpack.c.h.b16 %v4779
        %v5453 = vunpack.c.l.b16 %v4780
        %v5454 = vunpack.c.h.b16 %v4780
        %v5455 = vunpack.c.l.b16 %v4781
        %v5456 = vunpack.c.h.b16 %v4781
        %v5457 = vunpack.c.l.b16 %v4782
        %v5458 = vunpack.c.h.b16 %v4782
        %v5459 = vunpack.c.l.b16 %v4783
        %v5460 = vunpack.c.h.b16 %v4783
        %v5461 = vunpack.c.l.b16 %v4784
        %v5462 = vunpack.c.h.b16 %v4784
        %v5463 = vunpack.c.l.b16 %v4785
        %v5464 = vunpack.c.h.b16 %v4785
        %v5465 = vunpack.c.l.b16 %v4786
        %v5466 = vunpack.c.h.b16 %v4786
        %v5467 = vunpack.c.l.b16 %v4787
        %v5468 = vunpack.c.h.b16 %v4787
        %v5469 = vunpack.c.l.b16 %v4788
        %v5470 = vunpack.c.h.b16 %v4788
        %v5471 = vunpack.c.l.b16 %v4789
        %v5472 = vunpack.c.h.b16 %v4789
        %v5473 = vunpack.c.l.b16 %v4790
        %v5474 = vunpack.c.h.b16 %v4790
        %v5475 = vunpack.c.l.b16 %v4791
        %v5476 = vunpack.c.h.b16 %v4791
        %v5477 = vunpack.c.l.b16 %v4792
        %v5478 = vunpack.c.h.b16 %v4792
        %v5479 = vunpack.c.l.b16 %v4793
        %v5480 = vunpack.c.h.b16 %v4793
        %v5481 = vunpack.c.l.b16 %v4794
        %v5482 = vunpack.c.h.b16 %v4794
        %v5483 = vunpack.c.l.b16 %v4795
        %v5484 = vunpack.c.h.b16 %v4795
        %v5485 = vunpack.c.l.b16 %v4796
        %v5486 = vunpack.c.h.b16 %v4796
        %v5487 = vunpack.c.l.b16 %v4797
        %v5488 = vunpack.c.h.b16 %v4797
        %v5489 = vunpack.c.l.b16 %v4798
        %v5490 = vunpack.c.h.b16 %v4798
        %v5491 = vunpack.c.l.b16 %v4799
        %v5492 = vunpack.c.h.b16 %v4799
        %v5493 = vunpack.c.l.b16 %v4800
        %v5494 = vunpack.c.h.b16 %v4800
        %v5495 = vunpack.c.l.b16 %v4801
        %v5496 = vunpack.c.h.b16 %v4801
        %v5497 = vunpack.c.l.b16 %v4802
        %v5498 = vunpack.c.h.b16 %v4802
        %v5499 = vunpack.c.l.b16 %v4803
        %v5500 = vunpack.c.h.b16 %v4803
        %v5501 = vunpack.c.l.b16 %v4804
        %v5502 = vunpack.c.h.b16 %v4804
        %v5503 = vunpack.c.l.b16 %v4805
        %v5504 = vunpack.c.h.b16 %v4805
        %v5505 = vunpack.c.l.b16 %v4806
        %v5506 = vunpack.c.h.b16 %v4806
        %v5507 = vunpack.c.l.b16 %v4807
        %v5508 = vunpack.c.h.b16 %v4807
        %v5509 = vunpack.c.l.b16 %v4808
        %v5510 = vunpack.c.h.b16 %v4808
        %v5511 = vunpack.c.l.b16 %v4809
        %v5512 = vunpack.c.h.b16 %v4809
        %v5513 = vunpack.c.l.b16 %v4810
        %v5514 = vunpack.c.h.b16 %v4810
        %v5515 = vunpack.c.l.b16 %v4811
        %v5516 = vunpack.c.h.b16 %v4811
        %v5517 = vunpack.c.l.b16 %v4812
        %v5518 = vunpack.c.h.b16 %v4812
        %v5519 = vunpack.c.l.b16 %v4813
        %v5520 = vunpack.c.h.b16 %v4813
        %v5521 = vunpack.c.l.b16 %v4814
        %v5522 = vunpack.c.h.b16 %v4814
        %v5523 = vunpack.c.l.b16 %v4815
        %v5524 = vunpack.c.h.b16 %v4815
        %v5525 = vunpack.c.l.b16 %v4816
        %v5526 = vunpack.c.h.b16 %v4816
        %v5527 = vunpack.c.l.b16 %v4817
        %v5528 = vunpack.c.h.b16 %v4817
        %v5529 = vunpack.c.l.b16 %v4818
        %v5530 = vunpack.c.h.b16 %v4818
        %v5531 = vunpack.c.l.b16 %v4819
        %v5532 = vunpack.c.h.b16 %v4819
        %v5533 = vunpack.c.l.b16 %v4820
        %v5534 = vunpack.c.h.b16 %v4820
        %v5535 = vunpack.c.l.b16 %v4821
        %v5536 = vunpack.c.h.b16 %v4821
        %v5537 = vunpack.c.l.b16 %v4822
        %v5538 = vunpack.c.h.b16 %v4822
        %v5539 = vunpack.c.l.b16 %v4823
        %v5540 = vunpack.c.h.b16 %v4823
        %v5541 = vunpack.c.l.b16 %v4824
        %v5542 = vunpack.c.h.b16 %v4824
        %v5543 = vunpack.c.l.b16 %v4825
        %v5544 = vunpack.c.h.b16 %v4825
        %v5545 = vunpack.c.l.b16 %v4826
        %v5546 = vunpack.c.h.b16 %v4826
        %v5547 = vunpack.c.l.b16 %v4827
        %v5548 = vunpack.c.h.b16 %v4827
        %v5549 = vunpack.c.l.b16 %v4828
        %v5550 = vunpack.c.h.b16 %v4828
        %v5551 = vunpack.c.l.b16 %v4829
        %v5552 = vunpack.c.h.b16 %v4829
        %v5553 = vunpack.c.l.b16 %v4830
        %v5554 = vunpack.c.h.b16 %v4830
        %v5555 = vunpack.c.l.b16 %v4831
        %v5556 = vunpack.c.h.b16 %v4831
        %v5557 = vunpack.c.l.b16 %v4832
        %v5558 = vunpack.c.h.b16 %v4832
        %v5559 = vunpack.c.l.b16 %v4833
        %v5560 = vunpack.c.h.b16 %v4833
        %v5561 = vunpack.c.l.b16 %v4834
        %v5562 = vunpack.c.h.b16 %v4834
        %v5563 = vunpack.c.l.b16 %v4835
        %v5564 = vunpack.c.h.b16 %v4835
        %v5565 = vunpack.c.l.b16 %v4836
        %v5566 = vunpack.c.h.b16 %v4836
        %v5567 = vunpack.c.l.b16 %v4837
        %v5568 = vunpack.c.h.b16 %v4837
        %v5569 = vunpack.c.l.b16 %v4838
        %v5570 = vunpack.c.h.b16 %v4838
        %v5571 = vunpack.c.l.b16 %v4839
        %v5572 = vunpack.c.h.b16 %v4839
        %v5573 = vunpack.c.l.b16 %v4840
        %v5574 = vunpack.c.h.b16 %v4840
        %v5575 = vunpack.c.l.b16 %v4841
        %v5576 = vunpack.c.h.b16 %v4841
        %v5577 = vunpack.c.l.b16 %v4842
        %v5578 = vunpack.c.h.b16 %v4842
        %v5579 = vunpack.c.l.b16 %v4843
        %v5580 = vunpack.c.h.b16 %v4843
        %v5581 = vunpack.c.l.b16 %v4844
        %v5582 = vunpack.c.h.b16 %v4844
        %v5583 = vunpack.c.l.b16 %v4845
        %v5584 = vunpack.c.h.b16 %v4845
        %v5585 = vunpack.c.l.b16 %v4846
        %v5586 = vunpack.c.h.b16 %v4846
        %v5587 = vunpack.c.l.b16 %v4847
        %v5588 = vunpack.c.h.b16 %v4847
        %v5589 = vunpack.c.l.b16 %v4848
        %v5590 = vunpack.c.h.b16 %v4848
        %v5591 = vunpack.c.l.b16 %v4849
        %v5592 = vunpack.c.h.b16 %v4849
        %v5593 = vunpack.c.l.b16 %v4850
        %v5594 = vunpack.c.h.b16 %v4850
        %v5595 = vunpack.c.l.b16 %v4851
        %v5596 = vunpack.c.h.b16 %v4851
        %v5597 = vunpack.c.l.b16 %v4852
        %v5598 = vunpack.c.h.b16 %v4852
        %v5599 = vunpack.c.l.b16 %v4853
        %v5600 = vunpack.c.h.b16 %v4853
        %v5601 = vunpack.c.l.b16 %v4854
        %v5602 = vunpack.c.h.b16 %v4854
        %v5603 = vunpack.c.l.b16 %v4855
        %v5604 = vunpack.c.h.b16 %v4855
        %v5605 = vunpack.c.l.b16 %v4856
        %v5606 = vunpack.c.h.b16 %v4856
        %v5607 = vunpack.c.l.b16 %v4857
        %v5608 = vunpack.c.h.b16 %v4857
        %v5609 = vunpack.c.l.b16 %v4858
        %v5610 = vunpack.c.h.b16 %v4858
        %v5611 = vunpack.c.l.b16 %v4859
        %v5612 = vunpack.c.h.b16 %v4859
        %v5613 = vunpack.c.l.b16 %v4860
        %v5614 = vunpack.c.h.b16 %v4860
        %v5615 = vunpack.c.l.b16 %v4861
        %v5616 = vunpack.c.h.b16 %v4861
        %v5617 = vunpack.c.l.b16 %v4862
        %v5618 = vunpack.c.h.b16 %v4862
        %v5619 = vunpack.c.l.b16 %v4863
        %v5620 = vunpack.c.h.b16 %v4863
        %v5621 = vunpack.c.l.b16 %v4864
        %v5622 = vunpack.c.h.b16 %v4864
        %v5623 = vunpack.c.l.b16 %v4865
        %v5624 = vunpack.c.h.b16 %v4865
        %v5625 = vunpack.c.l.b16 %v4866
        %v5626 = vunpack.c.h.b16 %v4866
        %v5627 = vunpack.c.l.b16 %v4867
        %v5628 = vunpack.c.h.b16 %v4867
        %v5629 = vunpack.c.l.b16 %v4868
        %v5630 = vunpack.c.h.b16 %v4868
        %v5631 = vunpack.c.l.b16 %v4869
        %v5632 = vunpack.c.h.b16 %v4869
        %v5633 = vunpack.c.l.b16 %v4870
        %v5634 = vunpack.c.h.b16 %v4870
        %v5635 = vunpack.c.l.b16 %v4871
        %v5636 = vunpack.c.h.b16 %v4871
        %v5637 = vunpack.c.l.b16 %v4872
        %v5638 = vunpack.c.h.b16 %v4872
        %v5639 = vunpack.c.l.b16 %v4873
        %v5640 = vunpack.c.h.b16 %v4873
        %v5641 = vunpack.c.l.b16 %v4874
        %v5642 = vunpack.c.h.b16 %v4874
        %v5643 = vunpack.c.l.b16 %v4875
        %v5644 = vunpack.c.h.b16 %v4875
        %v5645 = vunpack.c.l.b16 %v4876
        %v5646 = vunpack.c.h.b16 %v4876
        %v5647 = vunpack.c.l.b16 %v4877
        %v5648 = vunpack.c.h.b16 %v4877
        %v5649 = vunpack.c.l.b16 %v4878
        %v5650 = vunpack.c.h.b16 %v4878
        %v5651 = vunpack.c.l.b16 %v4879
        %v5652 = vunpack.c.h.b16 %v4879
        %v5653 = vunpack.c.l.b16 %v4880
        %v5654 = vunpack.c.h.b16 %v4880
        %v5655 = vunpack.c.l.b16 %v4881
        %v5656 = vunpack.c.h.b16 %v4881
        %v5657 = vunpack.c.l.b16 %v4882
        %v5658 = vunpack.c.h.b16 %v4882
        %v5659 = vunpack.c.l.b16 %v4883
        %v5660 = vunpack.c.h.b16 %v4883
        %v5661 = vunpack.c.l.b16 %v4884
        %v5662 = vunpack.c.h.b16 %v4884
        %v5663 = vunpack.c.l.b16 %v4885
        %v5664 = vunpack.c.h.b16 %v4885
        %v5665 = vunpack.c.l.b16 %v4886
        %v5666 = vunpack.c.h.b16 %v4886
        %v5667 = vunpack.c.l.b16 %v4887
        %v5668 = vunpack.c.h.b16 %v4887
        %v5669 = vunpack.c.l.b16 %v4888
        %v5670 = vunpack.c.h.b16 %v4888
        %v5671 = vunpack.c.l.b16 %v4889
        %v5672 = vunpack.c.h.b16 %v4889
        %v5673 = vunpack.c.l.b16 %v4890
        %v5674 = vunpack.c.h.b16 %v4890
        %v5675 = vunpack.c.l.b16 %v4891
        %v5676 = vunpack.c.h.b16 %v4891
        %v5677 = vunpack.c.l.b16 %v4892
        %v5678 = vunpack.c.h.b16 %v4892
        %v5679 = vunpack.c.l.b16 %v4893
        %v5680 = vunpack.c.h.b16 %v4893
        %v5681 = vunpack.c.l.b16 %v4894
        %v5682 = vunpack.c.h.b16 %v4894
        %v5683 = vunpack.c.l.b16 %v4895
        %v5684 = vunpack.c.h.b16 %v4895
        %v5685 = vunpack.c.l.b16 %v4896
        %v5686 = vunpack.c.h.b16 %v4896
        %v5687 = vunpack.c.l.b16 %v4897
        %v5688 = vunpack.c.h.b16 %v4897
        %v5689 = vunpack.c.l.b16 %v4898
        %v5690 = vunpack.c.h.b16 %v4898
        %v5691 = vunpack.c.l.b16 %v4899
        %v5692 = vunpack.c.h.b16 %v4899
        %v5693 = vunpack.c.l.b16 %v4900
        %v5694 = vunpack.c.h.b16 %v4900
        %v5695 = vunpack.c.l.b16 %v4901
        %v5696 = vunpack.c.h.b16 %v4901
        %v5697 = vunpack.c.l.b16 %v4902
        %v5698 = vunpack.c.h.b16 %v4902
        %v5699 = vunpack.c.l.b16 %v4903
        %v5700 = vunpack.c.h.b16 %v4903
        %v5701 = vunpack.c.l.b16 %v4904
        %v5702 = vunpack.c.h.b16 %v4904
        %v5703 = vunpack.c.l.b16 %v4905
        %v5704 = vunpack.c.h.b16 %v4905
        %v5705 = vunpack.c.l.b16 %v4906
        %v5706 = vunpack.c.h.b16 %v4906
        %v5707 = vunpack.c.l.b16 %v4907
        %v5708 = vunpack.c.h.b16 %v4907
        %v5709 = vunpack.c.l.b16 %v4908
        %v5710 = vunpack.c.h.b16 %v4908
        %v5711 = vunpack.c.l.b16 %v4909
        %v5712 = vunpack.c.h.b16 %v4909
        %v5713 = vunpack.c.l.b16 %v4910
        %v5714 = vunpack.c.h.b16 %v4910
        %v5715 = vunpack.c.l.b16 %v4911
        %v5716 = vunpack.c.h.b16 %v4911
        %v5717 = vunpack.c.l.b16 %v4912
        %v5718 = vunpack.c.h.b16 %v4912
        %v5719 = vunpack.c.l.b16 %v4913
        %v5720 = vunpack.c.h.b16 %v4913
        %v5721 = vunpack.c.l.b16 %v4914
        %v5722 = vunpack.c.h.b16 %v4914
        %v5723 = vunpack.c.l.b16 %v4915
        %v5724 = vunpack.c.h.b16 %v4915
        %v5725 = vunpack.c.l.b16 %v4916
        %v5726 = vunpack.c.h.b16 %v4916
        %v5727 = vunpack.c.l.b16 %v4917
        %v5728 = vunpack.c.h.b16 %v4917
        %v5729 = vunpack.c.l.b16 %v4918
        %v5730 = vunpack.c.h.b16 %v4918
        %v5731 = vunpack.c.l.b16 %v4919
        %v5732 = vunpack.c.h.b16 %v4919
        %v5733 = vunpack.c.l.b16 %v4920
        %v5734 = vunpack.c.h.b16 %v4920
        %v5735 = vunpack.c.l.b16 %v4921
        %v5736 = vunpack.c.h.b16 %v4921
        %v5737 = vunpack.c.l.b16 %v4922
        %v5738 = vunpack.c.h.b16 %v4922
        %v5739 = vunpack.c.l.b16 %v4923
        %v5740 = vunpack.c.h.b16 %v4923
        %v5741 = vunpack.c.l.b16 %v4924
        %v5742 = vunpack.c.h.b16 %v4924
        %v5743 = vunpack.c.l.b16 %v4925
        %v5744 = vunpack.c.h.b16 %v4925
        %v5745 = vunpack.c.l.b16 %v4926
        %v5746 = vunpack.c.h.b16 %v4926
        %v5747 = vunpack.c.l.b16 %v4927
        %v5748 = vunpack.c.h.b16 %v4927
        %v5749 = vunpack.c.l.b16 %v4928
        %v5750 = vunpack.c.h.b16 %v4928
        %v5751 = vunpack.c.l.b16 %v4929
        %v5752 = vunpack.c.h.b16 %v4929
        %v5753 = vunpack.c.l.b16 %v4930
        %v5754 = vunpack.c.h.b16 %v4930
        %v5755 = vunpack.c.l.b16 %v4931
        %v5756 = vunpack.c.h.b16 %v4931
        %v5757 = vunpack.c.l.b16 %v4932
        %v5758 = vunpack.c.h.b16 %v4932
        %v5759 = vunpack.c.l.b16 %v4933
        %v5760 = vunpack.c.h.b16 %v4933
        %v5761 = vunpack.c.l.b16 %v4934
        %v5762 = vunpack.c.h.b16 %v4934
        %v5763 = vunpack.c.l.b16 %v4935
        %v5764 = vunpack.c.h.b16 %v4935
        %v5765 = vunpack.c.l.b16 %v4936
        %v5766 = vunpack.c.h.b16 %v4936
        %v5767 = vunpack.c.l.b16 %v4937
        %v5768 = vunpack.c.h.b16 %v4937
        %v5769 = vunpack.c.l.b16 %v4938
        %v5770 = vunpack.c.h.b16 %v4938
        %v5771 = vunpack.c.l.b16 %v4939
        %v5772 = vunpack.c.h.b16 %v4939
        %v5773 = vunpack.c.l.b16 %v4940
        %v5774 = vunpack.c.h.b16 %v4940
        %v5775 = vunpack.c.l.b16 %v4941
        %v5776 = vunpack.c.h.b16 %v4941
        %v5777 = vunpack.c.l.b16 %v4942
        %v5778 = vunpack.c.h.b16 %v4942
        %v5779 = vunpack.c.l.b16 %v4943
        %v5780 = vunpack.c.h.b16 %v4943
        %v5781 = vunpack.c.l.b16 %v4944
        %v5782 = vunpack.c.h.b16 %v4944
        %v5783 = vunpack.c.l.b16 %v4945
        %v5784 = vunpack.c.h.b16 %v4945
        %v5785 = vunpack.c.l.b16 %v4946
        %v5786 = vunpack.c.h.b16 %v4946
        %v5787 = vunpack.c.l.b16 %v4947
        %v5788 = vunpack.c.h.b16 %v4947
        %v5789 = vunpack.c.l.b16 %v4948
        %v5790 = vunpack.c.h.b16 %v4948
        %v5791 = vunpack.c.l.b16 %v4949
        %v5792 = vunpack.c.h.b16 %v4949
        %v5793 = vunpack.c.l.b16 %v4950
        %v5794 = vunpack.c.h.b16 %v4950
        %v5795 = vunpack.c.l.b16 %v4951
        %v5796 = vunpack.c.h.b16 %v4951
        %v5797 = vunpack.c.l.b16 %v4952
        %v5798 = vunpack.c.h.b16 %v4952
        %v5799 = vunpack.c.l.b16 %v4953
        %v5800 = vunpack.c.h.b16 %v4953
        %v5801 = vunpack.c.l.b16 %v4954
        %v5802 = vunpack.c.h.b16 %v4954
        %v5803 = vunpack.c.l.b16 %v4955
        %v5804 = vunpack.c.h.b16 %v4955
        %v5805 = vunpack.c.l.b16 %v4956
        %v5806 = vunpack.c.h.b16 %v4956
        %v5807 = vunpack.c.l.b16 %v4957
        %v5808 = vunpack.c.h.b16 %v4957
        %v5809 = vunpack.c.l.b16 %v4958
        %v5810 = vunpack.c.h.b16 %v4958
        %v5811 = vunpack.c.l.b16 %v4959
        %v5812 = vunpack.c.h.b16 %v4959
        %v5813 = vunpack.c.l.b16 %v4960
        %v5814 = vunpack.c.h.b16 %v4960
        %v5815 = vunpack.c.l.b16 %v4961
        %v5816 = vunpack.c.h.b16 %v4961
        %v5817 = vunpack.c.l.b16 %v4962
        %v5818 = vunpack.c.h.b16 %v4962
        %v5819 = vunpack.c.l.b16 %v4963
        %v5820 = vunpack.c.h.b16 %v4963
        %v5821 = vunpack.c.l.b16 %v4964
        %v5822 = vunpack.c.h.b16 %v4964
        %v5823 = vunpack.c.l.b16 %v4965
        %v5824 = vunpack.c.h.b16 %v4965
        %v5825 = vunpack.c.l.b16 %v4966
        %v5826 = vunpack.c.h.b16 %v4966
        %v5827 = vunpack.c.l.b16 %v4967
        %v5828 = vunpack.c.h.b16 %v4967
        %v5829 = vunpack.c.l.b16 %v4968
        %v5830 = vunpack.c.h.b16 %v4968
        %v5831 = vunpack.c.l.b16 %v4969
        %v5832 = vunpack.c.h.b16 %v4969
        %v5833 = vunpack.c.l.b16 %v4970
        %v5834 = vunpack.c.h.b16 %v4970
        %v5835 = vunpack.c.l.b16 %v4971
        %v5836 = vunpack.c.h.b16 %v4971
        %v5837 = vunpack.c.l.b16 %v4972
        %v5838 = vunpack.c.h.b16 %v4972
        %v5839 = vunpack.c.l.b16 %v4973
        %v5840 = vunpack.c.h.b16 %v4973
        %v5841 = vunpack.c.l.b16 %v4974
        %v5842 = vunpack.c.h.b16 %v4974
        %v5843 = vunpack.c.l.b16 %v4975
        %v5844 = vunpack.c.h.b16 %v4975
        %v5845 = vunpack.c.l.b16 %v4976
        %v5846 = vunpack.c.h.b16 %v4976
        %v5847 = vunpack.c.l.b16 %v4977
        %v5848 = vunpack.c.h.b16 %v4977
        %v5849 = vunpack.c.l.b16 %v4978
        %v5850 = vunpack.c.h.b16 %v4978
        %v5851 = vunpack.c.l.b16 %v4979
        %v5852 = vunpack.c.h.b16 %v4979
        %v5853 = vunpack.c.l.b16 %v4980
        %v5854 = vunpack.c.h.b16 %v4980
        %v5855 = vunpack.c.l.b16 %v4981
        %v5856 = vunpack.c.h.b16 %v4981
        %v5857 = vunpack.c.l.b16 %v4982
        %v5858 = vunpack.c.h.b16 %v4982
        %v5859 = vunpack.c.l.b16 %v4983
        %v5860 = vunpack.c.h.b16 %v4983
        %v5861 = vunpack.c.l.b16 %v4984
        %v5862 = vunpack.c.h.b16 %v4984
        %v5863 = vunpack.c.l.b16 %v4985
        %v5864 = vunpack.c.h.b16 %v4985
        %v5865 = vunpack.c.l.b16 %v4986
        %v5866 = vunpack.c.h.b16 %v4986
        %v5867 = vunpack.c.l.b16 %v4987
        %v5868 = vunpack.c.h.b16 %v4987
        %v5869 = vunpack.c.l.b16 %v4988
        %v5870 = vunpack.c.h.b16 %v4988
        %v5871 = vunpack.c.l.b16 %v4989
        %v5872 = vunpack.c.h.b16 %v4989
        %v5873 = vunpack.c.l.b16 %v4990
        %v5874 = vunpack.c.h.b16 %v4990
        %v5875 = vunpack.c.l.b16 %v4991
        %v5876 = vunpack.c.h.b16 %v4991
        %v5877 = vunpack.c.l.b16 %v4992
        %v5878 = vunpack.c.h.b16 %v4992
        %v5879 = vunpack.c.l.b16 %v4993
        %v5880 = vunpack.c.h.b16 %v4993
        %v5881 = vunpack.c.l.b16 %v4994
        %v5882 = vunpack.c.h.b16 %v4994
        %v5883 = vunpack.c.l.b16 %v4995
        %v5884 = vunpack.c.h.b16 %v4995
        %v5885 = vunpack.c.l.b16 %v4996
        %v5886 = vunpack.c.h.b16 %v4996
        %v5887 = vunpack.c.l.b16 %v4997
        %v5888 = vunpack.c.h.b16 %v4997
        %v5889 = vunpack.c.l.b16 %v4998
        %v5890 = vunpack.c.h.b16 %v4998
        %v5891 = vunpack.c.l.b16 %v4999
        %v5892 = vunpack.c.h.b16 %v4999
        %v5893 = vunpack.c.l.b16 %v5000
        %v5894 = vunpack.c.h.b16 %v5000
        %v5895 = vunpack.c.l.b16 %v5001
        %v5896 = vunpack.c.h.b16 %v5001
        %v5897 = vunpack.c.l.b16 %v5002
        %v5898 = vunpack.c.h.b16 %v5002
        %v5899 = vunpack.c.l.b16 %v5003
        %v5900 = vunpack.c.h.b16 %v5003
        %v5901 = vunpack.c.l.b16 %v5004
        %v5902 = vunpack.c.h.b16 %v5004
        %v5903 = vunpack.c.l.b16 %v5005
        %v5904 = vunpack.c.h.b16 %v5005
        %v5905 = vunpack.c.l.b16 %v5006
        %v5906 = vunpack.c.h.b16 %v5006
        %v5907 = vunpack.c.l.b16 %v5007
        %v5908 = vunpack.c.h.b16 %v5007
        %v5909 = vunpack.c.l.b16 %v5008
        %v5910 = vunpack.c.h.b16 %v5008
        %v5911 = vunpack.c.l.b16 %v5009
        %v5912 = vunpack.c.h.b16 %v5009
        %v5913 = vunpack.c.l.b16 %v5010
        %v5914 = vunpack.c.h.b16 %v5010
        %v5915 = vunpack.c.l.b16 %v5011
        %v5916 = vunpack.c.h.b16 %v5011
        %v5917 = vunpack.c.l.b16 %v5012
        %v5918 = vunpack.c.h.b16 %v5012
        %v5919 = vunpack.c.l.b16 %v5013
        %v5920 = vunpack.c.h.b16 %v5013
        %v5921 = vunpack.c.l.b16 %v5014
        %v5922 = vunpack.c.h.b16 %v5014
        %v5923 = vunpack.c.l.b16 %v5015
        %v5924 = vunpack.c.h.b16 %v5015
        %v5925 = vunpack.c.l.b16 %v5016
        %v5926 = vunpack.c.h.b16 %v5016
        %v5927 = vunpack.c.l.b16 %v5017
        %v5928 = vunpack.c.h.b16 %v5017
        %v5929 = vunpack.c.l.b16 %v5018
        %v5930 = vunpack.c.h.b16 %v5018
        %v5931 = vunpack.c.l.b16 %v5019
        %v5932 = vunpack.c.h.b16 %v5019
        %v5933 = vunpack.c.l.b16 %v5020
        %v5934 = vunpack.c.h.b16 %v5020
        %v5935 = vunpack.c.l.b16 %v5021
        %v5936 = vunpack.c.h.b16 %v5021
        %v5937 = vunpack.c.l.b16 %v5022
        %v5938 = vunpack.c.h.b16 %v5022
        %v5939 = vunpack.c.l.b16 %v5023
        %v5940 = vunpack.c.h.b16 %v5023
        %v5941 = vunpack.c.l.b16 %v5024
        %v5942 = vunpack.c.h.b16 %v5024
        %v5943 = vunpack.c.l.b16 %v5025
        %v5944 = vunpack.c.h.b16 %v5025
        %v5945 = vunpack.c.l.b16 %v5026
        %v5946 = vunpack.c.h.b16 %v5026
        %v5947 = vunpack.c.l.b16 %v5027
        %v5948 = vunpack.c.h.b16 %v5027
        %v5949 = vunpack.c.l.b16 %v5028
        %v5950 = vunpack.c.h.b16 %v5028
        %v5951 = vunpack.c.l.b16 %v5029
        %v5952 = vunpack.c.h.b16 %v5029
        %v5953 = vunpack.c.l.b16 %v5030
        %v5954 = vunpack.c.h.b16 %v5030
        %v5955 = vunpack.c.l.b16 %v5031
        %v5956 = vunpack.c.h.b16 %v5031
        %v5957 = vunpack.c.l.b16 %v5032
        %v5958 = vunpack.c.h.b16 %v5032
        %v5959 = vpack.c.b16 %v5395, %v5383
        %v5960 = vpack.c.b16 %v5396, %v5384
        %v5961 = vpack.c.b16 %v5397, %v5385
        %v5962 = vpack.c.b16 %v5398, %v5386
        %v5963 = vpack.c.b16 %v5399, %v5387
        %v5964 = vpack.c.b16 %v5400, %v5388
        %v5965 = vpack.c.b16 %v5401, %v5389
        %v5966 = vpack.c.b16 %v5402, %v5390
        %v5967 = vpack.c.b16 %v5403, %v5391
        %v5968 = vpack.c.b16 %v5404, %v5392
        %v5969 = vpack.c.b16 %v5405, %v5393
        %v5970 = vpack.c.b16 %v5406, %v5394
        %v5971 = vpack.c.b16 %v5419, %v5407
        %v5972 = vpack.c.b16 %v5420, %v5408
        %v5973 = vpack.c.b16 %v5421, %v5409
        %v5974 = vpack.c.b16 %v5422, %v5410
        %v5975 = vpack.c.b16 %v5423, %v5411
        %v5976 = vpack.c.b16 %v5424, %v5412
        %v5977 = vpack.c.b16 %v5425, %v5413
        %v5978 = vpack.c.b16 %v5426, %v5414
        %v5979 = vpack.c.b16 %v5427, %v5415
        %v5980 = vpack.c.b16 %v5428, %v5416
        %v5981 = vpack.c.b16 %v5429, %v5417
        %v5982 = vpack.c.b16 %v5430, %v5418
        %v5983 = vpack.c.b16 %v5443, %v5431
        %v5984 = vpack.c.b16 %v5444, %v5432
        %v5985 = vpack.c.b16 %v5445, %v5433
        %v5986 = vpack.c.b16 %v5446, %v5434
        %v5987 = vpack.c.b16 %v5447, %v5435
        %v5988 = vpack.c.b16 %v5448, %v5436
        %v5989 = vpack.c.b16 %v5449, %v5437
        %v5990 = vpack.c.b16 %v5450, %v5438
        %v5991 = vpack.c.b16 %v5451, %v5439
        %v5992 = vpack.c.b16 %v5452, %v5440
        %v5993 = vpack.c.b16 %v5453, %v5441
        %v5994 = vpack.c.b16 %v5454, %v5442
        %v5995 = vpack.c.b16 %v5467, %v5455
        %v5996 = vpack.c.b16 %v5468, %v5456
        %v5997 = vpack.c.b16 %v5469, %v5457
        %v5998 = vpack.c.b16 %v5470, %v5458
        %v5999 = vpack.c.b16 %v5471, %v5459
        %v6000 = vpack.c.b16 %v5472, %v5460
        %v6001 = vpack.c.b16 %v5473, %v5461
        %v6002 = vpack.c.b16 %v5474, %v5462
        %v6003 = vpack.c.b16 %v5475, %v5463
        %v6004 = vpack.c.b16 %v5476, %v5464
        %v6005 = vpack.c.b16 %v5477, %v5465
        %v6006 = vpack.c.b16 %v5478, %v5466
        %v6007 = vpack.c.b16 %v5491, %v5479
        %v6008 = vpack.c.b16 %v5492, %v5480
        %v6009 = vpack.c.b16 %v5493, %v5481
        %v6010 = vpack.c.b16 %v5494, %v5482
        %v6011 = vpack.c.b16 %v5495, %v5483
        %v6012 = vpack.c.b16 %v5496, %v5484
        %v6013 = vpack.c.b16 %v5497, %v5485
        %v6014 = vpack.c.b16 %v5498, %v5486
        %v6015 = vpack.c.b16 %v5499, %v5487
        %v6016 = vpack.c.b16 %v5500, %v5488
        %v6017 = vpack.c.b16 %v5501, %v5489
        %v6018 = vpack.c.b16 %v5502, %v5490
        %v6019 = vpack.c.b16 %v5515, %v5503
        %v6020 = vpack.c.b16 %v5516, %v5504
        %v6021 = vpack.c.b16 %v5517, %v5505
        %v6022 = vpack.c.b16 %v5518, %v5506
        %v6023 = vpack.c.b16 %v5519, %v5507
        %v6024 = vpack.c.b16 %v5520, %v5508
        %v6025 = vpack.c.b16 %v5521, %v5509
        %v6026 = vpack.c.b16 %v5522, %v5510
        %v6027 = vpack.c.b16 %v5523, %v5511
        %v6028 = vpack.c.b16 %v5524, %v5512
        %v6029 = vpack.c.b16 %v5525, %v5513
        %v6030 = vpack.c.b16 %v5526, %v5514
        %v6031 = vpack.c.b16 %v5539, %v5527
        %v6032 = vpack.c.b16 %v5540, %v5528
        %v6033 = vpack.c.b16 %v5541, %v5529
        %v6034 = vpack.c.b16 %v5542, %v5530
        %v6035 = vpack.c.b16 %v5543, %v5531
        %v6036 = vpack.c.b16 %v5544, %v5532
        %v6037 = vpack.c.b16 %v5545, %v5533
        %v6038 = vpack.c.b16 %v5546, %v5534
        %v6039 = vpack.c.b16 %v5547, %v5535
        %v6040 = vpack.c.b16 %v5548, %v5536
        %v6041 = vpack.c.b16 %v5549, %v5537
        %v6042 = vpack.c.b16 %v5550, %v5538
        %v6043 = vpack.c.b16 %v5563, %v5551
        %v6044 = vpack.c.b16 %v5564, %v5552
        %v6045 = vpack.c.b16 %v5565, %v5553
        %v6046 = vpack.c.b16 %v5566, %v5554
        %v6047 = vpack.c.b16 %v5567, %v5555
        %v6048 = vpack.c.b16 %v5568, %v5556
        %v6049 = vpack.c.b16 %v5569, %v5557
        %v6050 = vpack.c.b16 %v5570, %v5558
        %v6051 = vpack.c.b16 %v5571, %v5559
        %v6052 = vpack.c.b16 %v5572, %v5560
        %v6053 = vpack.c.b16 %v5573, %v5561
        %v6054 = vpack.c.b16 %v5574, %v5562
        %v6055 = vpack.c.b16 %v5587, %v5575
        %v6056 = vpack.c.b16 %v5588, %v5576
        %v6057 = vpack.c.b16 %v5589, %v5577
        %v6058 = vpack.c.b16 %v5590, %v5578
        %v6059 = vpack.c.b16 %v5591, %v5579
        %v6060 = vpack.c.b16 %v5592, %v5580
        %v6061 = vpack.c.b16 %v5593, %v5581
        %v6062 = vpack.c.b16 %v5594, %v5582
        %v6063 = vpack.c.b16 %v5595, %v5583
        %v6064 = vpack.c.b16 %v5596, %v5584
        %v6065 = vpack.c.b16 %v5597, %v5585
        %v6066 = vpack.c.b16 %v5598, %v5586
        %v6067 = vpack.c.b16 %v5611, %v5599
        %v6068 = vpack.c.b16 %v5612, %v5600
        %v6069 = vpack.c.b16 %v5613, %v5601
        %v6070 = vpack.c.b16 %v5614, %v5602
        %v6071 = vpack.c.b16 %v5615, %v5603
        %v6072 = vpack.c.b16 %v5616, %v5604
        %v6073 = vpack.c.b16 %v5617, %v5605
        %v6074 = vpack.c.b16 %v5618, %v5606
        %v6075 = vpack.c.b16 %v5619, %v5607
        %v6076 = vpack.c.b16 %v5620, %v5608
        %v6077 = vpack.c.b16 %v5621, %v5609
        %v6078 = vpack.c.b16 %v5622, %v5610
        %v6079 = vpack.c.b16 %v5635, %v5623
        %v6080 = vpack.c.b16 %v5636, %v5624
        %v6081 = vpack.c.b16 %v5637, %v5625
        %v6082 = vpack.c.b16 %v5638, %v5626
        %v6083 = vpack.c.b16 %v5639, %v5627
        %v6084 = vpack.c.b16 %v5640, %v5628
        %v6085 = vpack.c.b16 %v5641, %v5629
        %v6086 = vpack.c.b16 %v5642, %v5630
        %v6087 = vpack.c.b16 %v5643, %v5631
        %v6088 = vpack.c.b16 %v5644, %v5632
        %v6089 = vpack.c.b16 %v5645, %v5633
        %v6090 = vpack.c.b16 %v5646, %v5634
        %v6091 = vpack.c.b16 %v5659, %v5647
        %v6092 = vpack.c.b16 %v5660, %v5648
        %v6093 = vpack.c.b16 %v5661, %v5649
        %v6094 = vpack.c.b16 %v5662, %v5650
        %v6095 = vpack.c.b16 %v5663, %v5651
        %v6096 = vpack.c.b16 %v5664, %v5652
        %v6097 = vpack.c.b16 %v5665, %v5653
        %v6098 = vpack.c.b16 %v5666, %v5654
        %v6099 = vpack.c.b16 %v5667, %v5655
        %v6100 = vpack.c.b16 %v5668, %v5656
        %v6101 = vpack.c.b16 %v5669, %v5657
        %v6102 = vpack.c.b16 %v5670, %v5658
        %v6103 = vpack.c.b16 %v5683, %v5671
        %v6104 = vpack.c.b16 %v5684, %v5672
        %v6105 = vpack.c.b16 %v5685, %v5673
        %v6106 = vpack.c.b16 %v5686, %v5674
        %v6107 = vpack.c.b16 %v5687, %v5675
        %v6108 = vpack.c.b16 %v5688, %v5676
        %v6109 = vpack.c.b16 %v5689, %v5677
        %v6110 = vpack.c.b16 %v5690, %v5678
        %v6111 = vpack.c.b16 %v5691, %v5679
        %v6112 = vpack.c.b16 %v5692, %v5680
        %v6113 = vpack.c.b16 %v5693, %v5681
        %v6114 = vpack.c.b16 %v5694, %v5682
        %v6115 = vpack.c.b16 %v5707, %v5695
        %v6116 = vpack.c.b16 %v5708, %v5696
        %v6117 = vpack.c.b16 %v5709, %v5697
        %v6118 = vpack.c.b16 %v5710, %v5698
        %v6119 = vpack.c.b16 %v5711, %v5699
        %v6120 = vpack.c.b16 %v5712, %v5700
        %v6121 = vpack.c.b16 %v5713, %v5701
        %v6122 = vpack.c.b16 %v5714, %v5702
        %v6123 = vpack.c.b16 %v5715, %v5703
        %v6124 = vpack.c.b16 %v5716, %v5704
        %v6125 = vpack.c.b16 %v5717, %v5705
        %v6126 = vpack.c.b16 %v5718, %v5706
        %v6127 = vpack.c.b16 %v5731, %v5719
        %v6128 = vpack.c.b16 %v5732, %v5720
        %v6129 = vpack.c.b16 %v5733, %v5721
        %v6130 = vpack.c.b16 %v5734, %v5722
        %v6131 = vpack.c.b16 %v5735, %v5723
        %v6132 = vpack.c.b16 %v5736, %v5724
        %v6133 = vpack.c.b16 %v5737, %v5725
        %v6134 = vpack.c.b16 %v5738, %v5726
        %v6135 = vpack.c.b16 %v5739, %v5727
        %v6136 = vpack.c.b16 %v5740, %v5728
        %v6137 = vpack.c.b16 %v5741, %v5729
        %v6138 = vpack.c.b16 %v5742, %v5730
        %v6139 = vpack.c.b16 %v5755, %v5743
        %v6140 = vpack.c.b16 %v5756, %v5744
        %v6141 = vpack.c.b16 %v5757, %v5745
        %v6142 = vpack.c.b16 %v5758, %v5746
        %v6143 = vpack.c.b16 %v5759, %v5747
        %v6144 = vpack.c.b16 %v5760, %v5748
        %v6145 = vpack.c.b16 %v5761, %v5749
        %v6146 = vpack.c.b16 %v5762, %v5750
        %v6147 = vpack.c.b16 %v5763, %v5751
        %v6148 = vpack.c.b16 %v5764, %v5752
        %v6149 = vpack.c.b16 %v5765, %v5753
        %v6150 = vpack.c.b16 %v5766, %v5754
        %v6151 = vpack.c.b16 %v5779, %v5767
        %v6152 = vpack.c.b16 %v5780, %v5768
        %v6153 = vpack.c.b16 %v5781, %v5769
        %v6154 = vpack.c.b16 %v5782, %v5770
        %v6155 = vpack.c.b16 %v5783, %v5771
        %v6156 = vpack.c.b16 %v5784, %v5772
        %v6157 = vpack.c.b16 %v5785, %v5773
        %v6158 = vpack.c.b16 %v5786, %v5774
        %v6159 = vpack.c.b16 %v5787, %v5775
        %v6160 = vpack.c.b16 %v5788, %v5776
        %v6161 = vpack.c.b16 %v5789, %v5777
        %v6162 = vpack.c.b16 %v5790, %v5778
        %v6163 = vpack.c.b16 %v5803, %v5791
        %v6164 = vpack.c.b16 %v5804, %v5792
        %v6165 = vpack.c.b16 %v5805, %v5793
        %v6166 = vpack.c.b16 %v5806, %v5794
        %v6167 = vpack.c.b16 %v5807, %v5795
        %v6168 = vpack.c.b16 %v5808, %v5796
        %v6169 = vpack.c.b16 %v5809, %v5797
        %v6170 = vpack.c.b16 %v5810, %v5798
        %v6171 = vpack.c.b16 %v5811, %v5799
        %v6172 = vpack.c.b16 %v5812, %v5800
        %v6173 = vpack.c.b16 %v5813, %v5801
        %v6174 = vpack.c.b16 %v5814, %v5802
        %v6175 = vpack.c.b16 %v5827, %v5815
        %v6176 = vpack.c.b16 %v5828, %v5816
        %v6177 = vpack.c.b16 %v5829, %v5817
        %v6178 = vpack.c.b16 %v5830, %v5818
        %v6179 = vpack.c.b16 %v5831, %v5819
        %v6180 = vpack.c.b16 %v5832, %v5820
        %v6181 = vpack.c.b16 %v5833, %v5821
        %v6182 = vpack.c.b16 %v5834, %v5822
        %v6183 = vpack.c.b16 %v5835, %v5823
        %v6184 = vpack.c.b16 %v5836, %v5824
        %v6185 = vpack.c.b16 %v5837, %v5825
        %v6186 = vpack.c.b16 %v5838, %v5826
        %v6187 = vpack.c.b16 %v5851, %v5839
        %v6188 = vpack.c.b16 %v5852, %v5840
        %v6189 = vpack.c.b16 %v5853, %v5841
        %v6190 = vpack.c.b16 %v5854, %v5842
        %v6191 = vpack.c.b16 %v5855, %v5843
        %v6192 = vpack.c.b16 %v5856, %v5844
        %v6193 = vpack.c.b16 %v5857, %v5845
        %v6194 = vpack.c.b16 %v5858, %v5846
        %v6195 = vpack.c.b16 %v5859, %v5847
        %v6196 = vpack.c.b16 %v5860, %v5848
        %v6197 = vpack.c.b16 %v5861, %v5849
        %v6198 = vpack.c.b16 %v5862, %v5850
        %v6199 = vpack.c.b16 %v5875, %v5863
        %v6200 = vpack.c.b16 %v5876, %v5864
        %v6201 = vpack.c.b16 %v5877, %v5865
        %v6202 = vpack.c.b16 %v5878, %v5866
        %v6203 = vpack.c.b16 %v5879, %v5867
        %v6204 = vpack.c.b16 %v5880, %v5868
        %v6205 = vpack.c.b16 %v5881, %v5869
        %v6206 = vpack.c.b16 %v5882, %v5870
        %v6207 = vpack.c.b16 %v5883, %v5871
        %v6208 = vpack.c.b16 %v5884, %v5872
        %v6209 = vpack.c.b16 %v5885, %v5873
        %v6210 = vpack.c.b16 %v5886, %v5874
        %v6211 = vpack.c.b16 %v5899, %v5887
        %v6212 = vpack.c.b16 %v5900, %v5888
        %v6213 = vpack.c.b16 %v5901, %v5889
        %v6214 = vpack.c.b16 %v5902, %v5890
        %v6215 = vpack.c.b16 %v5903, %v5891
        %v6216 = vpack.c.b16 %v5904, %v5892
        %v6217 = vpack.c.b16 %v5905, %v5893
        %v6218 = vpack.c.b16 %v5906, %v5894
        %v6219 = vpack.c.b16 %v5907, %v5895
        %v6220 = vpack.c.b16 %v5908, %v5896
        %v6221 = vpack.c.b16 %v5909, %v5897
        %v6222 = vpack.c.b16 %v5910, %v5898
        %v6223 = vpack.c.b16 %v5923, %v5911
        %v6224 = vpack.c.b16 %v5924, %v5912
        %v6225 = vpack.c.b16 %v5925, %v5913
        %v6226 = vpack.c.b16 %v5926, %v5914
        %v6227 = vpack.c.b16 %v5927, %v5915
        %v6228 = vpack.c.b16 %v5928, %v5916
        %v6229 = vpack.c.b16 %v5929, %v5917
        %v6230 = vpack.c.b16 %v5930, %v5918
        %v6231 = vpack.c.b16 %v5931, %v5919
        %v6232 = vpack.c.b16 %v5932, %v5920
        %v6233 = vpack.c.b16 %v5933, %v5921
        %v6234 = vpack.c.b16 %v5934, %v5922
        %v6235 = vpack.c.b16 %v5947, %v5935
        %v6236 = vpack.c.b16 %v5948, %v5936
        %v6237 = vpack.c.b16 %v5949, %v5937
        %v6238 = vpack.c.b16 %v5950, %v5938
        %v6239 = vpack.c.b16 %v5951, %v5939
        %v6240 = vpack.c.b16 %v5952, %v5940
        %v6241 = vpack.c.b16 %v5953, %v5941
        %v6242 = vpack.c.b16 %v5954, %v5942
        %v6243 = vpack.c.b16 %v5955, %v5943
        %v6244 = vpack.c.b16 %v5956, %v5944
        %v6245 = vpack.c.b16 %v5957, %v5945
        %v6246 = vpack.c.b16 %v5958, %v5946
        %6535 = vmatprep.subr.bf16.mxu0 %v6044
        %6536 = vmatpush1.bf16.msra.mxu0 %v6043
        %6537 = vmatprep.subr.bf16.mxu0 %v6032
        %6538 = vmatpush1.bf16.msra.mxu0 %v6031
        %6539 = vmatprep.subr.bf16.mxu0 %v6020
        %6540 = vmatpush1.bf16.msra.mxu0 %v6019
        %6541 = vmatprep.subr.bf16.mxu0 %v6008
        %6542 = vmatpush1.bf16.msra.mxu0 %v6007
        %6543 = vmatprep.subr.bf16.mxu0 %v5996
        %6544 = vmatpush1.bf16.msra.mxu0 %v5995
        %6545 = vmatprep.subr.bf16.mxu0 %v5984
        %6546 = vmatpush1.bf16.msra.mxu0 %v5983
        %6547 = vmatprep.subr.bf16.mxu0 %v5972
        %6548 = vmatpush1.bf16.msra.mxu0 %v5971
        %6549 = vmatprep.subr.bf16.mxu0 %v5960
        %6550 = vmatpush1.bf16.msra.mxu0 %v5959
        %6551 = vmatprep.subr.bf16.mxu0 %v6140
        %6552 = vmatpush2.bf16.msra.mxu0 %v6139
        %6553 = vmatprep.subr.bf16.mxu0 %v6128
        %6554 = vmatpush2.bf16.msra.mxu0 %v6127
        %6555 = vmatprep.subr.bf16.mxu0 %v6116
        %6556 = vmatpush2.bf16.msra.mxu0 %v6115
        %6557 = vmatprep.subr.bf16.mxu0 %v6104
        %6558 = vmatpush2.bf16.msra.mxu0 %v6103
        %6559 = vmatprep.subr.bf16.mxu0 %v6092
        %6560 = vmatpush2.bf16.msra.mxu0 %v6091
        %6561 = vmatprep.subr.bf16.mxu0 %v6080
        %6562 = vmatpush2.bf16.msra.mxu0 %v6079
        %6563 = vmatprep.subr.bf16.mxu0 %v6068
        %6564 = vmatpush2.bf16.msra.mxu0 %v6067
        %6565 = vmatprep.subr.bf16.mxu0 %v6056
        %6566 = vmatpush2.bf16.msra.mxu0 %v6055
        %6567 = vmatprep.mubr.bf16.mxu0 %v4743
        %6568 = vmatmul.mubr.bf16.gmra.mxu0 %v4742
        %v6569 = vpop.f32.mrf.mxu0
        %v6570 = vadd.f32 %v5038, %v6569
        %v6571 = vpop.f32.mrf.mxu0
        %v6572 = vadd.f32 %v5042, %v6571
        %v6573 = vpop.f32.mrf.mxu0
        %v6574 = vadd.f32 %v5038, %v6573
        %v6575 = vpop.f32.mrf.mxu0
        %v6576 = vadd.f32 %v5042, %v6575
        %6577 = vdwg.mxu0
        %6578 = vmatprep.subr.bf16.mxu0 %v6236
        %6579 = vmatpush1.bf16.msra.mxu0 %v6235
        %6580 = vmatprep.subr.bf16.mxu0 %v6224
        %6581 = vmatpush1.bf16.msra.mxu0 %v6223
        %6582 = vmatprep.subr.bf16.mxu0 %v6212
        %6583 = vmatpush1.bf16.msra.mxu0 %v6211
        %6584 = vmatprep.subr.bf16.mxu0 %v6200
        %6585 = vmatpush1.bf16.msra.mxu0 %v6199
        %6586 = vmatprep.subr.bf16.mxu0 %v6188
        %6587 = vmatpush1.bf16.msra.mxu0 %v6187
        %6588 = vmatprep.subr.bf16.mxu0 %v6176
        %6589 = vmatpush1.bf16.msra.mxu0 %v6175
        %6590 = vmatprep.subr.bf16.mxu0 %v6164
        %6591 = vmatpush1.bf16.msra.mxu0 %v6163
        %6592 = vmatprep.subr.bf16.mxu0 %v6152
        %6593 = vmatpush1.bf16.msra.mxu0 %v6151
        %6594 = vmatprep.subr.bf16.mxu0 0
        %6595 = vmatpush2.bf16.msra.mxu0 0
        %6596 = vmatprep.subr.bf16.mxu0 0
        %6597 = vmatpush2.bf16.msra.mxu0 0
        %6598 = vmatprep.subr.bf16.mxu0 0
        %6599 = vmatpush2.bf16.msra.mxu0 0
        %6600 = vmatprep.subr.bf16.mxu0 0
        %6601 = vmatpush2.bf16.msra.mxu0 0
        %6602 = vmatprep.subr.bf16.mxu0 0
        %6603 = vmatpush2.bf16.msra.mxu0 0
        %6604 = vmatprep.subr.bf16.mxu0 0
        %6605 = vmatpush2.bf16.msra.mxu0 0
        %6606 = vmatprep.subr.bf16.mxu0 0
        %6607 = vmatpush2.bf16.msra.mxu0 0
        %6608 = vmatprep.subr.bf16.mxu0 0
        %6609 = vmatpush2.bf16.msra.mxu0 0
        %6610 = vmatprep.mubr.bf16.mxu0 0
        %6611 = vmatmul.mubr.bf16.gmra.mxu0 %v4744
        %v6612 = vpop.f32.mrf.mxu0
        %v6613 = vadd.f32 %v6570, %v6612
        %v6614 = vpop.f32.mrf.mxu0
        %v6615 = vadd.f32 %v6572, %v6614
        %v6616 = vpop.f32.mrf.mxu0
        %v6617 = vadd.f32 %v6574, %v6616
        %v6618 = vpop.f32.mrf.mxu0
        %v6619 = vadd.f32 %v6576, %v6618
        %6620 = vdwg.mxu0
        %6621 = vmatprep.subr.bf16.mxu0 %v6046
        %6622 = vmatpush1.bf16.msra.mxu0 %v6045
        %6623 = vmatprep.subr.bf16.mxu0 %v6034
        %6624 = vmatpush1.bf16.msra.mxu0 %v6033
        %6625 = vmatprep.subr.bf16.mxu0 %v6022
        %6626 = vmatpush1.bf16.msra.mxu0 %v6021
        %6627 = vmatprep.subr.bf16.mxu0 %v6010
        %6628 = vmatpush1.bf16.msra.mxu0 %v6009
        %6629 = vmatprep.subr.bf16.mxu0 %v5998
        %6630 = vmatpush1.bf16.msra.mxu0 %v5997
        %6631 = vmatprep.subr.bf16.mxu0 %v5986
        %6632 = vmatpush1.bf16.msra.mxu0 %v5985
        %6633 = vmatprep.subr.bf16.mxu0 %v5974
        %6634 = vmatpush1.bf16.msra.mxu0 %v5973
        %6635 = vmatprep.subr.bf16.mxu0 %v5962
        %6636 = vmatpush1.bf16.msra.mxu0 %v5961
        %6637 = vmatprep.subr.bf16.mxu0 %v6142
        %6638 = vmatpush2.bf16.msra.mxu0 %v6141
        %6639 = vmatprep.subr.bf16.mxu0 %v6130
        %6640 = vmatpush2.bf16.msra.mxu0 %v6129
        %6641 = vmatprep.subr.bf16.mxu0 %v6118
        %6642 = vmatpush2.bf16.msra.mxu0 %v6117
        %6643 = vmatprep.subr.bf16.mxu0 %v6106
        %6644 = vmatpush2.bf16.msra.mxu0 %v6105
        %6645 = vmatprep.subr.bf16.mxu0 %v6094
        %6646 = vmatpush2.bf16.msra.mxu0 %v6093
        %6647 = vmatprep.subr.bf16.mxu0 %v6082
        %6648 = vmatpush2.bf16.msra.mxu0 %v6081
        %6649 = vmatprep.subr.bf16.mxu0 %v6070
        %6650 = vmatpush2.bf16.msra.mxu0 %v6069
        %6651 = vmatprep.subr.bf16.mxu0 %v6058
        %6652 = vmatpush2.bf16.msra.mxu0 %v6057
        %6653 = vmatprep.mubr.bf16.mxu0 %v4743
        %6654 = vmatmul.mubr.bf16.gmra.mxu0 %v4742
        %v6655 = vpop.f32.mrf.mxu0
        %v6656 = vadd.f32 %v5046, %v6655
        %v6657 = vpop.f32.mrf.mxu0
        %v6658 = vadd.f32 %v5050, %v6657
        %v6659 = vpop.f32.mrf.mxu0
        %v6660 = vadd.f32 %v5046, %v6659
        %v6661 = vpop.f32.mrf.mxu0
        %v6662 = vadd.f32 %v5050, %v6661
        %6663 = vdwg.mxu0
        %6664 = vmatprep.subr.bf16.mxu0 %v6238
        %6665 = vmatpush1.bf16.msra.mxu0 %v6237
        %6666 = vmatprep.subr.bf16.mxu0 %v6226
        %6667 = vmatpush1.bf16.msra.mxu0 %v6225
        %6668 = vmatprep.subr.bf16.mxu0 %v6214
        %6669 = vmatpush1.bf16.msra.mxu0 %v6213
        %6670 = vmatprep.subr.bf16.mxu0 %v6202
        %6671 = vmatpush1.bf16.msra.mxu0 %v6201
        %6672 = vmatprep.subr.bf16.mxu0 %v6190
        %6673 = vmatpush1.bf16.msra.mxu0 %v6189
        %6674 = vmatprep.subr.bf16.mxu0 %v6178
        %6675 = vmatpush1.bf16.msra.mxu0 %v6177
        %6676 = vmatprep.subr.bf16.mxu0 %v6166
        %6677 = vmatpush1.bf16.msra.mxu0 %v6165
        %6678 = vmatprep.subr.bf16.mxu0 %v6154
        %6679 = vmatpush1.bf16.msra.mxu0 %v6153
        %6680 = vmatprep.subr.bf16.mxu0 0
        %6681 = vmatpush2.bf16.msra.mxu0 0
        %6682 = vmatprep.subr.bf16.mxu0 0
        %6683 = vmatpush2.bf16.msra.mxu0 0
        %6684 = vmatprep.subr.bf16.mxu0 0
        %6685 = vmatpush2.bf16.msra.mxu0 0
        %6686 = vmatprep.subr.bf16.mxu0 0
        %6687 = vmatpush2.bf16.msra.mxu0 0
        %6688 = vmatprep.subr.bf16.mxu0 0
        %6689 = vmatpush2.bf16.msra.mxu0 0
        %6690 = vmatprep.subr.bf16.mxu0 0
        %6691 = vmatpush2.bf16.msra.mxu0 0
        %6692 = vmatprep.subr.bf16.mxu0 0
        %6693 = vmatpush2.bf16.msra.mxu0 0
        %6694 = vmatprep.subr.bf16.mxu0 0
        %6695 = vmatpush2.bf16.msra.mxu0 0
        %6696 = vmatprep.mubr.bf16.mxu0 0
        %6697 = vmatmul.mubr.bf16.gmra.mxu0 %v4744
        %v6698 = vpop.f32.mrf.mxu0
        %v6699 = vadd.f32 %v6656, %v6698
        %v6700 = vpop.f32.mrf.mxu0
        %v6701 = vadd.f32 %v6658, %v6700
        %v6702 = vpop.f32.mrf.mxu0
        %v6703 = vadd.f32 %v6660, %v6702
        %v6704 = vpop.f32.mrf.mxu0
        %v6705 = vadd.f32 %v6662, %v6704
        %6706 = vdwg.mxu0
        %6707 = vmatprep.subr.bf16.mxu0 %v6048
        %6708 = vmatpush1.bf16.msra.mxu0 %v6047
        %6709 = vmatprep.subr.bf16.mxu0 %v6036
        %6710 = vmatpush1.bf16.msra.mxu0 %v6035
        %6711 = vmatprep.subr.bf16.mxu0 %v6024
        %6712 = vmatpush1.bf16.msra.mxu0 %v6023
        %6713 = vmatprep.subr.bf16.mxu0 %v6012
        %6714 = vmatpush1.bf16.msra.mxu0 %v6011
        %6715 = vmatprep.subr.bf16.mxu0 %v6000
        %6716 = vmatpush1.bf16.msra.mxu0 %v5999
        %6717 = vmatprep.subr.bf16.mxu0 %v5988
        %6718 = vmatpush1.bf16.msra.mxu0 %v5987
        %6719 = vmatprep.subr.bf16.mxu0 %v5976
        %6720 = vmatpush1.bf16.msra.mxu0 %v5975
        %6721 = vmatprep.subr.bf16.mxu0 %v5964
        %6722 = vmatpush1.bf16.msra.mxu0 %v5963
        %6723 = vmatprep.subr.bf16.mxu0 %v6144
        %6724 = vmatpush2.bf16.msra.mxu0 %v6143
        %6725 = vmatprep.subr.bf16.mxu0 %v6132
        %6726 = vmatpush2.bf16.msra.mxu0 %v6131
        %6727 = vmatprep.subr.bf16.mxu0 %v6120
        %6728 = vmatpush2.bf16.msra.mxu0 %v6119
        %6729 = vmatprep.subr.bf16.mxu0 %v6108
        %6730 = vmatpush2.bf16.msra.mxu0 %v6107
        %6731 = vmatprep.subr.bf16.mxu0 %v6096
        %6732 = vmatpush2.bf16.msra.mxu0 %v6095
        %6733 = vmatprep.subr.bf16.mxu0 %v6084
        %6734 = vmatpush2.bf16.msra.mxu0 %v6083
        %6735 = vmatprep.subr.bf16.mxu0 %v6072
        %6736 = vmatpush2.bf16.msra.mxu0 %v6071
        %6737 = vmatprep.subr.bf16.mxu0 %v6060
        %6738 = vmatpush2.bf16.msra.mxu0 %v6059
        %6739 = vmatprep.mubr.bf16.mxu0 %v4743
        %6740 = vmatmul.mubr.bf16.gmra.mxu0 %v4742
        %v6741 = vpop.f32.mrf.mxu0
        %v6742 = vadd.f32 %v5054, %v6741
        %v6743 = vpop.f32.mrf.mxu0
        %v6744 = vadd.f32 %v5058, %v6743
        %v6745 = vpop.f32.mrf.mxu0
        %v6746 = vadd.f32 %v5054, %v6745
        %v6747 = vpop.f32.mrf.mxu0
        %v6748 = vadd.f32 %v5058, %v6747
        %6749 = vdwg.mxu0
        %6750 = vmatprep.subr.bf16.mxu0 %v6240
        %6751 = vmatpush1.bf16.msra.mxu0 %v6239
        %6752 = vmatprep.subr.bf16.mxu0 %v6228
        %6753 = vmatpush1.bf16.msra.mxu0 %v6227
        %6754 = vmatprep.subr.bf16.mxu0 %v6216
        %6755 = vmatpush1.bf16.msra.mxu0 %v6215
        %6756 = vmatprep.subr.bf16.mxu0 %v6204
        %6757 = vmatpush1.bf16.msra.mxu0 %v6203
        %6758 = vmatprep.subr.bf16.mxu0 %v6192
        %6759 = vmatpush1.bf16.msra.mxu0 %v6191
        %6760 = vmatprep.subr.bf16.mxu0 %v6180
        %6761 = vmatpush1.bf16.msra.mxu0 %v6179
        %6762 = vmatprep.subr.bf16.mxu0 %v6168
        %6763 = vmatpush1.bf16.msra.mxu0 %v6167
        %6764 = vmatprep.subr.bf16.mxu0 %v6156
        %6765 = vmatpush1.bf16.msra.mxu0 %v6155
        %6766 = vmatprep.subr.bf16.mxu0 0
        %6767 = vmatpush2.bf16.msra.mxu0 0
        %6768 = vmatprep.subr.bf16.mxu0 0
        %6769 = vmatpush2.bf16.msra.mxu0 0
        %6770 = vmatprep.subr.bf16.mxu0 0
        %6771 = vmatpush2.bf16.msra.mxu0 0
        %6772 = vmatprep.subr.bf16.mxu0 0
        %6773 = vmatpush2.bf16.msra.mxu0 0
        %6774 = vmatprep.subr.bf16.mxu0 0
        %6775 = vmatpush2.bf16.msra.mxu0 0
        %6776 = vmatprep.subr.bf16.mxu0 0
        %6777 = vmatpush2.bf16.msra.mxu0 0
        %6778 = vmatprep.subr.bf16.mxu0 0
        %6779 = vmatpush2.bf16.msra.mxu0 0
        %6780 = vmatprep.subr.bf16.mxu0 0
        %6781 = vmatpush2.bf16.msra.mxu0 0
        %6782 = vmatprep.mubr.bf16.mxu0 0
        %6783 = vmatmul.mubr.bf16.gmra.mxu0 %v4744
        %v6784 = vpop.f32.mrf.mxu0
        %v6785 = vadd.f32 %v6742, %v6784
        %v6786 = vpop.f32.mrf.mxu0
        %v6787 = vadd.f32 %v6744, %v6786
        %v6788 = vpop.f32.mrf.mxu0
        %v6789 = vadd.f32 %v6746, %v6788
        %v6790 = vpop.f32.mrf.mxu0
        %v6791 = vadd.f32 %v6748, %v6790
        %6792 = vdwg.mxu0
        %6793 = vmatprep.subr.bf16.mxu0 %v6050
        %6794 = vmatpush1.bf16.msra.mxu0 %v6049
        %6795 = vmatprep.subr.bf16.mxu0 %v6038
        %6796 = vmatpush1.bf16.msra.mxu0 %v6037
        %6797 = vmatprep.subr.bf16.mxu0 %v6026
        %6798 = vmatpush1.bf16.msra.mxu0 %v6025
        %6799 = vmatprep.subr.bf16.mxu0 %v6014
        %6800 = vmatpush1.bf16.msra.mxu0 %v6013
        %6801 = vmatprep.subr.bf16.mxu0 %v6002
        %6802 = vmatpush1.bf16.msra.mxu0 %v6001
        %6803 = vmatprep.subr.bf16.mxu0 %v5990
        %6804 = vmatpush1.bf16.msra.mxu0 %v5989
        %6805 = vmatprep.subr.bf16.mxu0 %v5978
        %6806 = vmatpush1.bf16.msra.mxu0 %v5977
        %6807 = vmatprep.subr.bf16.mxu0 %v5966
        %6808 = vmatpush1.bf16.msra.mxu0 %v5965
        %6809 = vmatprep.subr.bf16.mxu0 %v6146
        %6810 = vmatpush2.bf16.msra.mxu0 %v6145
        %6811 = vmatprep.subr.bf16.mxu0 %v6134
        %6812 = vmatpush2.bf16.msra.mxu0 %v6133
        %6813 = vmatprep.subr.bf16.mxu0 %v6122
        %6814 = vmatpush2.bf16.msra.mxu0 %v6121
        %6815 = vmatprep.subr.bf16.mxu0 %v6110
        %6816 = vmatpush2.bf16.msra.mxu0 %v6109
        %6817 = vmatprep.subr.bf16.mxu0 %v6098
        %6818 = vmatpush2.bf16.msra.mxu0 %v6097
        %6819 = vmatprep.subr.bf16.mxu0 %v6086
        %6820 = vmatpush2.bf16.msra.mxu0 %v6085
        %6821 = vmatprep.subr.bf16.mxu0 %v6074
        %6822 = vmatpush2.bf16.msra.mxu0 %v6073
        %6823 = vmatprep.subr.bf16.mxu0 %v6062
        %6824 = vmatpush2.bf16.msra.mxu0 %v6061
        %6825 = vmatprep.mubr.bf16.mxu0 %v4743
        %6826 = vmatmul.mubr.bf16.gmra.mxu0 %v4742
        %v6827 = vpop.f32.mrf.mxu0
        %v6828 = vadd.f32 %v5062, %v6827
        %v6829 = vpop.f32.mrf.mxu0
        %v6830 = vadd.f32 %v5066, %v6829
        %v6831 = vpop.f32.mrf.mxu0
        %v6832 = vadd.f32 %v5062, %v6831
        %v6833 = vpop.f32.mrf.mxu0
        %v6834 = vadd.f32 %v5066, %v6833
        %6835 = vdwg.mxu0
        %6836 = vmatprep.subr.bf16.mxu0 %v6242
        %6837 = vmatpush1.bf16.msra.mxu0 %v6241
        %6838 = vmatprep.subr.bf16.mxu0 %v6230
        %6839 = vmatpush1.bf16.msra.mxu0 %v6229
        %6840 = vmatprep.subr.bf16.mxu0 %v6218
        %6841 = vmatpush1.bf16.msra.mxu0 %v6217
        %6842 = vmatprep.subr.bf16.mxu0 %v6206
        %6843 = vmatpush1.bf16.msra.mxu0 %v6205
        %6844 = vmatprep.subr.bf16.mxu0 %v6194
        %6845 = vmatpush1.bf16.msra.mxu0 %v6193
        %6846 = vmatprep.subr.bf16.mxu0 %v6182
        %6847 = vmatpush1.bf16.msra.mxu0 %v6181
        %6848 = vmatprep.subr.bf16.mxu0 %v6170
        %6849 = vmatpush1.bf16.msra.mxu0 %v6169
        %6850 = vmatprep.subr.bf16.mxu0 %v6158
        %6851 = vmatpush1.bf16.msra.mxu0 %v6157
        %6852 = vmatprep.subr.bf16.mxu0 0
        %6853 = vmatpush2.bf16.msra.mxu0 0
        %6854 = vmatprep.subr.bf16.mxu0 0
        %6855 = vmatpush2.bf16.msra.mxu0 0
        %6856 = vmatprep.subr.bf16.mxu0 0
        %6857 = vmatpush2.bf16.msra.mxu0 0
        %6858 = vmatprep.subr.bf16.mxu0 0
        %6859 = vmatpush2.bf16.msra.mxu0 0
        %6860 = vmatprep.subr.bf16.mxu0 0
        %6861 = vmatpush2.bf16.msra.mxu0 0
        %6862 = vmatprep.subr.bf16.mxu0 0
        %6863 = vmatpush2.bf16.msra.mxu0 0
        %6864 = vmatprep.subr.bf16.mxu0 0
        %6865 = vmatpush2.bf16.msra.mxu0 0
        %6866 = vmatprep.subr.bf16.mxu0 0
        %6867 = vmatpush2.bf16.msra.mxu0 0
        %6868 = vmatprep.mubr.bf16.mxu0 0
        %6869 = vmatmul.mubr.bf16.gmra.mxu0 %v4744
        %v6870 = vpop.f32.mrf.mxu0
        %v6871 = vadd.f32 %v6828, %v6870
        %v6872 = vpop.f32.mrf.mxu0
        %v6873 = vadd.f32 %v6830, %v6872
        %v6874 = vpop.f32.mrf.mxu0
        %v6875 = vadd.f32 %v6832, %v6874
        %v6876 = vpop.f32.mrf.mxu0
        %v6877 = vadd.f32 %v6834, %v6876
        %6878 = vdwg.mxu0
        %6879 = vmatprep.subr.bf16.mxu0 %v6052
        %6880 = vmatpush1.bf16.msra.mxu0 %v6051
        %6881 = vmatprep.subr.bf16.mxu0 %v6040
        %6882 = vmatpush1.bf16.msra.mxu0 %v6039
        %6883 = vmatprep.subr.bf16.mxu0 %v6028
        %6884 = vmatpush1.bf16.msra.mxu0 %v6027
        %6885 = vmatprep.subr.bf16.mxu0 %v6016
        %6886 = vmatpush1.bf16.msra.mxu0 %v6015
        %6887 = vmatprep.subr.bf16.mxu0 %v6004
        %6888 = vmatpush1.bf16.msra.mxu0 %v6003
        %6889 = vmatprep.subr.bf16.mxu0 %v5992
        %6890 = vmatpush1.bf16.msra.mxu0 %v5991
        %6891 = vmatprep.subr.bf16.mxu0 %v5980
        %6892 = vmatpush1.bf16.msra.mxu0 %v5979
        %6893 = vmatprep.subr.bf16.mxu0 %v5968
        %6894 = vmatpush1.bf16.msra.mxu0 %v5967
        %6895 = vmatprep.subr.bf16.mxu0 %v6148
        %6896 = vmatpush2.bf16.msra.mxu0 %v6147
        %6897 = vmatprep.subr.bf16.mxu0 %v6136
        %6898 = vmatpush2.bf16.msra.mxu0 %v6135
        %6899 = vmatprep.subr.bf16.mxu0 %v6124
        %6900 = vmatpush2.bf16.msra.mxu0 %v6123
        %6901 = vmatprep.subr.bf16.mxu0 %v6112
        %6902 = vmatpush2.bf16.msra.mxu0 %v6111
        %6903 = vmatprep.subr.bf16.mxu0 %v6100
        %6904 = vmatpush2.bf16.msra.mxu0 %v6099
        %6905 = vmatprep.subr.bf16.mxu0 %v6088
        %6906 = vmatpush2.bf16.msra.mxu0 %v6087
        %6907 = vmatprep.subr.bf16.mxu0 %v6076
        %6908 = vmatpush2.bf16.msra.mxu0 %v6075
        %6909 = vmatprep.subr.bf16.mxu0 %v6064
        %6910 = vmatpush2.bf16.msra.mxu0 %v6063
        %6911 = vmatprep.mubr.bf16.mxu0 %v4743
        %6912 = vmatmul.mubr.bf16.gmra.mxu0 %v4742
        %v6913 = vpop.f32.mrf.mxu0
        %v6914 = vadd.f32 %v5070, %v6913
        %v6915 = vpop.f32.mrf.mxu0
        %v6916 = vadd.f32 %v5074, %v6915
        %v6917 = vpop.f32.mrf.mxu0
        %v6918 = vadd.f32 %v5070, %v6917
        %v6919 = vpop.f32.mrf.mxu0
        %v6920 = vadd.f32 %v5074, %v6919
        %6921 = vdwg.mxu0
        %6922 = vmatprep.subr.bf16.mxu0 %v6244
        %6923 = vmatpush1.bf16.msra.mxu0 %v6243
        %6924 = vmatprep.subr.bf16.mxu0 %v6232
        %6925 = vmatpush1.bf16.msra.mxu0 %v6231
        %6926 = vmatprep.subr.bf16.mxu0 %v6220
        %6927 = vmatpush1.bf16.msra.mxu0 %v6219
        %6928 = vmatprep.subr.bf16.mxu0 %v6208
        %6929 = vmatpush1.bf16.msra.mxu0 %v6207
        %6930 = vmatprep.subr.bf16.mxu0 %v6196
        %6931 = vmatpush1.bf16.msra.mxu0 %v6195
        %6932 = vmatprep.subr.bf16.mxu0 %v6184
        %6933 = vmatpush1.bf16.msra.mxu0 %v6183
        %6934 = vmatprep.subr.bf16.mxu0 %v6172
        %6935 = vmatpush1.bf16.msra.mxu0 %v6171
        %6936 = vmatprep.subr.bf16.mxu0 %v6160
        %6937 = vmatpush1.bf16.msra.mxu0 %v6159
        %6938 = vmatprep.subr.bf16.mxu0 0
        %6939 = vmatpush2.bf16.msra.mxu0 0
        %6940 = vmatprep.subr.bf16.mxu0 0
        %6941 = vmatpush2.bf16.msra.mxu0 0
        %6942 = vmatprep.subr.bf16.mxu0 0
        %6943 = vmatpush2.bf16.msra.mxu0 0
        %6944 = vmatprep.subr.bf16.mxu0 0
        %6945 = vmatpush2.bf16.msra.mxu0 0
        %6946 = vmatprep.subr.bf16.mxu0 0
        %6947 = vmatpush2.bf16.msra.mxu0 0
        %6948 = vmatprep.subr.bf16.mxu0 0
        %6949 = vmatpush2.bf16.msra.mxu0 0
        %6950 = vmatprep.subr.bf16.mxu0 0
        %6951 = vmatpush2.bf16.msra.mxu0 0
        %6952 = vmatprep.subr.bf16.mxu0 0
        %6953 = vmatpush2.bf16.msra.mxu0 0
        %6954 = vmatprep.mubr.bf16.mxu0 0
        %6955 = vmatmul.mubr.bf16.gmra.mxu0 %v4744
        %v6956 = vpop.f32.mrf.mxu0
        %v6957 = vadd.f32 %v6914, %v6956
        %v6958 = vpop.f32.mrf.mxu0
        %v6959 = vadd.f32 %v6916, %v6958
        %v6960 = vpop.f32.mrf.mxu0
        %v6961 = vadd.f32 %v6918, %v6960
        %v6962 = vpop.f32.mrf.mxu0
        %v6963 = vadd.f32 %v6920, %v6962
        %6964 = vdwg.mxu0
        %6965 = vmatprep.subr.bf16.mxu0 %v6054
        %6966 = vmatpush1.bf16.msra.mxu0 %v6053
        %6967 = vmatprep.subr.bf16.mxu0 %v6042
        %6968 = vmatpush1.bf16.msra.mxu0 %v6041
        %6969 = vmatprep.subr.bf16.mxu0 %v6030
        %6970 = vmatpush1.bf16.msra.mxu0 %v6029
        %6971 = vmatprep.subr.bf16.mxu0 %v6018
        %6972 = vmatpush1.bf16.msra.mxu0 %v6017
        %6973 = vmatprep.subr.bf16.mxu0 %v6006
        %6974 = vmatpush1.bf16.msra.mxu0 %v6005
        %6975 = vmatprep.subr.bf16.mxu0 %v5994
        %6976 = vmatpush1.bf16.msra.mxu0 %v5993
        %6977 = vmatprep.subr.bf16.mxu0 %v5982
        %6978 = vmatpush1.bf16.msra.mxu0 %v5981
        %6979 = vmatprep.subr.bf16.mxu0 %v5970
        %6980 = vmatpush1.bf16.msra.mxu0 %v5969
        %6981 = vmatprep.subr.bf16.mxu0 %v6150
        %6982 = vmatpush2.bf16.msra.mxu0 %v6149
        %6983 = vmatprep.subr.bf16.mxu0 %v6138
        %6984 = vmatpush2.bf16.msra.mxu0 %v6137
        %6985 = vmatprep.subr.bf16.mxu0 %v6126
        %6986 = vmatpush2.bf16.msra.mxu0 %v6125
        %6987 = vmatprep.subr.bf16.mxu0 %v6114
        %6988 = vmatpush2.bf16.msra.mxu0 %v6113
        %6989 = vmatprep.subr.bf16.mxu0 %v6102
        %6990 = vmatpush2.bf16.msra.mxu0 %v6101
        %6991 = vmatprep.subr.bf16.mxu0 %v6090
        %6992 = vmatpush2.bf16.msra.mxu0 %v6089
        %6993 = vmatprep.subr.bf16.mxu0 %v6078
        %6994 = vmatpush2.bf16.msra.mxu0 %v6077
        %6995 = vmatprep.subr.bf16.mxu0 %v6066
        %6996 = vmatpush2.bf16.msra.mxu0 %v6065
        %6997 = vmatprep.mubr.bf16.mxu0 %v4743
        %6998 = vmatmul.mubr.bf16.gmra.mxu0 %v4742
        %v6999 = vpop.f32.mrf.mxu0
        %v7000 = vadd.f32 %v5078, %v6999
        %v7001 = vpop.f32.mrf.mxu0
        %v7002 = vadd.f32 %v5082, %v7001
        %v7003 = vpop.f32.mrf.mxu0
        %v7004 = vadd.f32 %v5078, %v7003
        %v7005 = vpop.f32.mrf.mxu0
        %v7006 = vadd.f32 %v5082, %v7005
        %7007 = vdwg.mxu0
        %7008 = vmatprep.subr.bf16.mxu0 %v6246
        %7009 = vmatpush1.bf16.msra.mxu0 %v6245
        %7010 = vmatprep.subr.bf16.mxu0 %v6234
        %7011 = vmatpush1.bf16.msra.mxu0 %v6233
        %7012 = vmatprep.subr.bf16.mxu0 %v6222
        %7013 = vmatpush1.bf16.msra.mxu0 %v6221
        %7014 = vmatprep.subr.bf16.mxu0 %v6210
        %7015 = vmatpush1.bf16.msra.mxu0 %v6209
        %7016 = vmatprep.subr.bf16.mxu0 %v6198
        %7017 = vmatpush1.bf16.msra.mxu0 %v6197
        %7018 = vmatprep.subr.bf16.mxu0 %v6186
        %7019 = vmatpush1.bf16.msra.mxu0 %v6185
        %7020 = vmatprep.subr.bf16.mxu0 %v6174
        %7021 = vmatpush1.bf16.msra.mxu0 %v6173
        %7022 = vmatprep.subr.bf16.mxu0 %v6162
        %7023 = vmatpush1.bf16.msra.mxu0 %v6161
        %7024 = vmatprep.subr.bf16.mxu0 0
        %7025 = vmatpush2.bf16.msra.mxu0 0
        %7026 = vmatprep.subr.bf16.mxu0 0
        %7027 = vmatpush2.bf16.msra.mxu0 0
        %7028 = vmatprep.subr.bf16.mxu0 0
        %7029 = vmatpush2.bf16.msra.mxu0 0
        %7030 = vmatprep.subr.bf16.mxu0 0
        %7031 = vmatpush2.bf16.msra.mxu0 0
        %7032 = vmatprep.subr.bf16.mxu0 0
        %7033 = vmatpush2.bf16.msra.mxu0 0
        %7034 = vmatprep.subr.bf16.mxu0 0
        %7035 = vmatpush2.bf16.msra.mxu0 0
        %7036 = vmatprep.subr.bf16.mxu0 0
        %7037 = vmatpush2.bf16.msra.mxu0 0
        %7038 = vmatprep.subr.bf16.mxu0 0
        %7039 = vmatpush2.bf16.msra.mxu0 0
        %7040 = vmatprep.mubr.bf16.mxu0 0
        %7041 = vmatmul.mubr.bf16.gmra.mxu0 %v4744
        %v7042 = vpop.f32.mrf.mxu0
        %v7043 = vadd.f32 %v7000, %v7042
        %v7044 = vpop.f32.mrf.mxu0
        %v7045 = vadd.f32 %v7002, %v7044
        %v7046 = vpop.f32.mrf.mxu0
        %v7047 = vadd.f32 %v7004, %v7046
        %v7048 = vpop.f32.mrf.mxu0
        %v7049 = vadd.f32 %v7006, %v7048
        %7050 = vdwg.mxu0
        %v7051 = vmax.f32 %v6613, 0.0
        %v7052 = vmax.f32 %v6615, 0.0
        %v7053 = vmax.f32 %v6699, 0.0
        %v7054 = vmax.f32 %v6701, 0.0
        %v7055 = vmax.f32 %v6785, 0.0
        %v7056 = vmax.f32 %v6787, 0.0
        %v7057 = vmax.f32 %v6871, 0.0
        %v7058 = vmax.f32 %v6873, 0.0
        %v7059 = vmax.f32 %v6957, 0.0
        %v7060 = vmax.f32 %v6959, 0.0
        %v7061 = vmax.f32 %v7043, 0.0
        %v7062 = vmax.f32 %v7045, 0.0
        %v7063 = vmax.f32 %v6617, 0.0
        %v7064 = vmax.f32 %v6619, 0.0
        %v7065 = vmax.f32 %v6703, 0.0
        %v7066 = vmax.f32 %v6705, 0.0
        %v7067 = vmax.f32 %v6789, 0.0
        %v7068 = vmax.f32 %v6791, 0.0
        %v7069 = vmax.f32 %v6875, 0.0
        %v7070 = vmax.f32 %v6877, 0.0
        %v7071 = vmax.f32 %v6961, 0.0
        %v7072 = vmax.f32 %v6963, 0.0
        %v7073 = vmax.f32 %v7047, 0.0
        %v7074 = vmax.f32 %v7049, 0.0
        %v7075 = vpack.c.bf16 %v7063, %v7051
        %v7076 = vpack.c.bf16 %v7064, %v7052
        %v7077 = vpack.c.bf16 %v7065, %v7053
        %v7078 = vpack.c.bf16 %v7066, %v7054
        %v7079 = vpack.c.bf16 %v7067, %v7055
        %v7080 = vpack.c.bf16 %v7068, %v7056
        %v7081 = vpack.c.bf16 %v7069, %v7057
        %v7082 = vpack.c.bf16 %v7070, %v7058
        %v7083 = vpack.c.bf16 %v7071, %v7059
        %v7084 = vpack.c.bf16 %v7072, %v7060
        %v7085 = vpack.c.bf16 %v7073, %v7061
        %v7086 = vpack.c.bf16 %v7074, %v7062
        %v7087 = vld [vmem:[%s312] sm:$0xff]
        %v7088 = vld [vmem:[%s312 + $0x8] sm:$0xf]
        %v7089 = vld [vmem:[%s312 + $0xc] sm:$0xff]
        %v7090 = vld [vmem:[%s312 + $0x14] sm:$0xf]
        %v7091 = vld [vmem:[%s312 + $0x18] sm:$0xff]
        %v7092 = vld [vmem:[%s312 + $0x20] sm:$0xf]
        %v7093 = vld [vmem:[%s312 + $0x24] sm:$0xff]
        %v7094 = vld [vmem:[%s312 + $0x2c] sm:$0xf]
        %v7095 = vld [vmem:[%s312 + $0x30] sm:$0xff]
        %v7096 = vld [vmem:[%s312 + $0x38] sm:$0xf]
        %v7097 = vld [vmem:[%s312 + $0x3c] sm:$0xff]
        %v7098 = vld [vmem:[%s312 + $0x44] sm:$0xf]
        %v7099 = vld [vmem:[%s312 + $0x48] sm:$0xff]
        %v7100 = vld [vmem:[%s312 + $0x50] sm:$0xf]
        %v7101 = vld [vmem:[%s312 + $0x54] sm:$0xff]
        %v7102 = vld [vmem:[%s312 + $0x5c] sm:$0xf]
        %v7103 = vld [vmem:[%s312 + $0x60] sm:$0xff]
        %v7104 = vld [vmem:[%s312 + $0x68] sm:$0xf]
        %v7105 = vld [vmem:[%s312 + $0x6c] sm:$0xff]
        %v7106 = vld [vmem:[%s312 + $0x74] sm:$0xf]
        %v7107 = vld [vmem:[%s312 + $0x78] sm:$0xff]
        %v7108 = vld [vmem:[%s312 + $0x80] sm:$0xf]
        %v7109 = vld [vmem:[%s312 + $0x84] sm:$0xff]
        %v7110 = vld [vmem:[%s312 + $0x8c] sm:$0xf]
        %v7111 = vld [vmem:[%s312 + $0x90] sm:$0xff]
        %v7112 = vld [vmem:[%s312 + $0x98] sm:$0xf]
        %v7113 = vld [vmem:[%s312 + $0x9c] sm:$0xff]
        %v7114 = vld [vmem:[%s312 + $0xa4] sm:$0xf]
        %v7115 = vld [vmem:[%s312 + $0xa8] sm:$0xff]
        %v7116 = vld [vmem:[%s312 + $0xb0] sm:$0xf]
        %v7117 = vld [vmem:[%s312 + $0xb4] sm:$0xff]
        %v7118 = vld [vmem:[%s312 + $0xbc] sm:$0xf]
        %v7119 = vld [vmem:[%s312 + $0xc0] sm:$0xff]
        %v7120 = vld [vmem:[%s312 + $0xc8] sm:$0xf]
        %v7121 = vld [vmem:[%s312 + $0xcc] sm:$0xff]
        %v7122 = vld [vmem:[%s312 + $0xd4] sm:$0xf]
        %v7123 = vld [vmem:[%s312 + $0xd8] sm:$0xff]
        %v7124 = vld [vmem:[%s312 + $0xe0] sm:$0xf]
        %v7125 = vld [vmem:[%s312 + $0xe4] sm:$0xff]
        %v7126 = vld [vmem:[%s312 + $0xec] sm:$0xf]
        %v7127 = vld [vmem:[%s312 + $0xf0] sm:$0xff]
        %v7128 = vld [vmem:[%s312 + $0xf8] sm:$0xf]
        %v7129 = vld [vmem:[%s312 + $0xfc] sm:$0xff]
        %v7130 = vld [vmem:[%s312 + $0x104] sm:$0xf]
        %v7131 = vld [vmem:[%s312 + $0x108] sm:$0xff]
        %v7132 = vld [vmem:[%s312 + $0x110] sm:$0xf]
        %v7133 = vld [vmem:[%s312 + $0x114] sm:$0xff]
        %v7134 = vld [vmem:[%s312 + $0x11c] sm:$0xf]
        %v7135 = vld [vmem:[%s312 + $0x120] sm:$0xff]
        %v7136 = vld [vmem:[%s312 + $0x128] sm:$0xf]
        %v7137 = vld [vmem:[%s312 + $0x12c] sm:$0xff]
        %v7138 = vld [vmem:[%s312 + $0x134] sm:$0xf]
        %v7139 = vld [vmem:[%s312 + $0x138] sm:$0xff]
        %v7140 = vld [vmem:[%s312 + $0x140] sm:$0xf]
        %v7141 = vld [vmem:[%s312 + $0x144] sm:$0xff]
        %v7142 = vld [vmem:[%s312 + $0x14c] sm:$0xf]
        %v7143 = vld [vmem:[%s312 + $0x150] sm:$0xff]
        %v7144 = vld [vmem:[%s312 + $0x158] sm:$0xf]
        %v7145 = vld [vmem:[%s312 + $0x15c] sm:$0xff]
        %v7146 = vld [vmem:[%s312 + $0x164] sm:$0xf]
        %v7147 = vld [vmem:[%s312 + $0x168] sm:$0xff]
        %v7148 = vld [vmem:[%s312 + $0x170] sm:$0xf]
        %v7149 = vld [vmem:[%s312 + $0x174] sm:$0xff]
        %v7150 = vld [vmem:[%s312 + $0x17c] sm:$0xf]
        %v7151 = vld [vmem:[%s312 + $0x180] sm:$0xff]
        %v7152 = vld [vmem:[%s312 + $0x188] sm:$0xf]
        %v7153 = vld [vmem:[%s312 + $0x18c] sm:$0xff]
        %v7154 = vld [vmem:[%s312 + $0x194] sm:$0xf]
        %v7155 = vld [vmem:[%s312 + $0x198] sm:$0xff]
        %v7156 = vld [vmem:[%s312 + $0x1a0] sm:$0xf]
        %v7157 = vld [vmem:[%s312 + $0x1a4] sm:$0xff]
        %v7158 = vld [vmem:[%s312 + $0x1ac] sm:$0xf]
        %v7159 = vld [vmem:[%s312 + $0x1b0] sm:$0xff]
        %v7160 = vld [vmem:[%s312 + $0x1b8] sm:$0xf]
        %v7161 = vld [vmem:[%s312 + $0x1bc] sm:$0xff]
        %v7162 = vld [vmem:[%s312 + $0x1c4] sm:$0xf]
        %v7163 = vld [vmem:[%s312 + $0x1c8] sm:$0xff]
        %v7164 = vld [vmem:[%s312 + $0x1d0] sm:$0xf]
        %v7165 = vld [vmem:[%s312 + $0x1d4] sm:$0xff]
        %v7166 = vld [vmem:[%s312 + $0x1dc] sm:$0xf]
        %v7167 = vld [vmem:[%s312 + $0x1e0] sm:$0xff]
        %v7168 = vld [vmem:[%s312 + $0x1e8] sm:$0xf]
        %v7169 = vld [vmem:[%s312 + $0x1ec] sm:$0xff]
        %v7170 = vld [vmem:[%s312 + $0x1f4] sm:$0xf]
        %v7171 = vld [vmem:[%s312 + $0x1f8] sm:$0xff]
        %v7172 = vld [vmem:[%s312 + $0x200] sm:$0xf]
        %v7173 = vld [vmem:[%s312 + $0x204] sm:$0xff]
        %v7174 = vld [vmem:[%s312 + $0x20c] sm:$0xf]
        %v7175 = vld [vmem:[%s312 + $0x210] sm:$0xff]
        %v7176 = vld [vmem:[%s312 + $0x218] sm:$0xf]
        %v7177 = vld [vmem:[%s312 + $0x21c] sm:$0xff]
        %v7178 = vld [vmem:[%s312 + $0x224] sm:$0xf]
        %v7179 = vld [vmem:[%s312 + $0x228] sm:$0xff]
        %v7180 = vld [vmem:[%s312 + $0x230] sm:$0xf]
        %v7181 = vld [vmem:[%s312 + $0x234] sm:$0xff]
        %v7182 = vld [vmem:[%s312 + $0x23c] sm:$0xf]
        %v7183 = vld [vmem:[%s312 + $0x240] sm:$0xff]
        %v7184 = vld [vmem:[%s312 + $0x248] sm:$0xf]
        %v7185 = vld [vmem:[%s312 + $0x24c] sm:$0xff]
        %v7186 = vld [vmem:[%s312 + $0x254] sm:$0xf]
        %v7187 = vld [vmem:[%s312 + $0x258] sm:$0xff]
        %v7188 = vld [vmem:[%s312 + $0x260] sm:$0xf]
        %v7189 = vld [vmem:[%s312 + $0x264] sm:$0xff]
        %v7190 = vld [vmem:[%s312 + $0x26c] sm:$0xf]
        %v7191 = vld [vmem:[%s312 + $0x270] sm:$0xff]
        %v7192 = vld [vmem:[%s312 + $0x278] sm:$0xf]
        %v7193 = vld [vmem:[%s312 + $0x27c] sm:$0xff]
        %v7194 = vld [vmem:[%s312 + $0x284] sm:$0xf]
        %v7195 = vld [vmem:[%s312 + $0x288] sm:$0xff]
        %v7196 = vld [vmem:[%s312 + $0x290] sm:$0xf]
        %v7197 = vld [vmem:[%s312 + $0x294] sm:$0xff]
        %v7198 = vld [vmem:[%s312 + $0x29c] sm:$0xf]
        %v7199 = vld [vmem:[%s312 + $0x2a0] sm:$0xff]
        %v7200 = vld [vmem:[%s312 + $0x2a8] sm:$0xf]
        %v7201 = vld [vmem:[%s312 + $0x2ac] sm:$0xff]
        %v7202 = vld [vmem:[%s312 + $0x2b4] sm:$0xf]
        %v7203 = vld [vmem:[%s312 + $0x2b8] sm:$0xff]
        %v7204 = vld [vmem:[%s312 + $0x2c0] sm:$0xf]
        %v7205 = vld [vmem:[%s312 + $0x2c4] sm:$0xff]
        %v7206 = vld [vmem:[%s312 + $0x2cc] sm:$0xf]
        %v7207 = vld [vmem:[%s312 + $0x2d0] sm:$0xff]
        %v7208 = vld [vmem:[%s312 + $0x2d8] sm:$0xf]
        %v7209 = vld [vmem:[%s312 + $0x2dc] sm:$0xff]
        %v7210 = vld [vmem:[%s312 + $0x2e4] sm:$0xf]
        %v7211 = vld [vmem:[%s312 + $0x2e8] sm:$0xff]
        %v7212 = vld [vmem:[%s312 + $0x2f0] sm:$0xf]
        %v7213 = vld [vmem:[%s312 + $0x2f4] sm:$0xff]
        %v7214 = vld [vmem:[%s312 + $0x2fc] sm:$0xf]
        %v7215 = vld [vmem:[%s312 + $0x300] sm:$0xff]
        %v7216 = vld [vmem:[%s312 + $0x308] sm:$0xf]
        %v7217 = vld [vmem:[%s312 + $0x30c] sm:$0xff]
        %v7218 = vld [vmem:[%s312 + $0x314] sm:$0xf]
        %v7219 = vld [vmem:[%s312 + $0x318] sm:$0xff]
        %v7220 = vld [vmem:[%s312 + $0x320] sm:$0xf]
        %v7221 = vld [vmem:[%s312 + $0x324] sm:$0xff]
        %v7222 = vld [vmem:[%s312 + $0x32c] sm:$0xf]
        %v7223 = vld [vmem:[%s312 + $0x330] sm:$0xff]
        %v7224 = vld [vmem:[%s312 + $0x338] sm:$0xf]
        %v7225 = vld [vmem:[%s312 + $0x33c] sm:$0xff]
        %v7226 = vld [vmem:[%s312 + $0x344] sm:$0xf]
        %v7227 = vld [vmem:[%s312 + $0x348] sm:$0xff]
        %v7228 = vld [vmem:[%s312 + $0x350] sm:$0xf]
        %v7229 = vld [vmem:[%s312 + $0x354] sm:$0xff]
        %v7230 = vld [vmem:[%s312 + $0x35c] sm:$0xf]
        %v7231 = vld [vmem:[%s312 + $0x360] sm:$0xff]
        %v7232 = vld [vmem:[%s312 + $0x368] sm:$0xf]
        %v7233 = vld [vmem:[%s312 + $0x36c] sm:$0xff]
        %v7234 = vld [vmem:[%s312 + $0x374] sm:$0xf]
        %v7235 = vld [vmem:[%s312 + $0x378] sm:$0xff]
        %v7236 = vld [vmem:[%s312 + $0x380] sm:$0xf]
        %v7237 = vld [vmem:[%s312 + $0x384] sm:$0xff]
        %v7238 = vld [vmem:[%s312 + $0x38c] sm:$0xf]
        %v7239 = vld [vmem:[%s312 + $0x390] sm:$0xff]
        %v7240 = vld [vmem:[%s312 + $0x398] sm:$0xf]
        %v7241 = vld [vmem:[%s312 + $0x39c] sm:$0xff]
        %v7242 = vld [vmem:[%s312 + $0x3a4] sm:$0xf]
        %v7243 = vld [vmem:[%s312 + $0x3a8] sm:$0xff]
        %v7244 = vld [vmem:[%s312 + $0x3b0] sm:$0xf]
        %v7245 = vld [vmem:[%s312 + $0x3b4] sm:$0xff]
        %v7246 = vld [vmem:[%s312 + $0x3bc] sm:$0xf]
        %v7247 = vld [vmem:[%s312 + $0x3c0] sm:$0xff]
        %v7248 = vld [vmem:[%s312 + $0x3c8] sm:$0xf]
        %v7249 = vld [vmem:[%s312 + $0x3cc] sm:$0xff]
        %v7250 = vld [vmem:[%s312 + $0x3d4] sm:$0xf]
        %v7251 = vld [vmem:[%s312 + $0x3d8] sm:$0xff]
        %v7252 = vld [vmem:[%s312 + $0x3e0] sm:$0xf]
        %v7253 = vld [vmem:[%s312 + $0x3e4] sm:$0xff]
        %v7254 = vld [vmem:[%s312 + $0x3ec] sm:$0xf]
        %v7255 = vld [vmem:[%s312 + $0x3f0] sm:$0xff]
        %v7256 = vld [vmem:[%s312 + $0x3f8] sm:$0xf]
        %v7257 = vld [vmem:[%s312 + $0x3fc] sm:$0xff]
        %v7258 = vld [vmem:[%s312 + $0x404] sm:$0xf]
        %v7259 = vld [vmem:[%s312 + $0x408] sm:$0xff]
        %v7260 = vld [vmem:[%s312 + $0x410] sm:$0xf]
        %v7261 = vld [vmem:[%s312 + $0x414] sm:$0xff]
        %v7262 = vld [vmem:[%s312 + $0x41c] sm:$0xf]
        %v7263 = vld [vmem:[%s312 + $0x420] sm:$0xff]
        %v7264 = vld [vmem:[%s312 + $0x428] sm:$0xf]
        %v7265 = vld [vmem:[%s312 + $0x42c] sm:$0xff]
        %v7266 = vld [vmem:[%s312 + $0x434] sm:$0xf]
        %v7267 = vld [vmem:[%s312 + $0x438] sm:$0xff]
        %v7268 = vld [vmem:[%s312 + $0x440] sm:$0xf]
        %v7269 = vld [vmem:[%s312 + $0x444] sm:$0xff]
        %v7270 = vld [vmem:[%s312 + $0x44c] sm:$0xf]
        %v7271 = vld [vmem:[%s312 + $0x450] sm:$0xff]
        %v7272 = vld [vmem:[%s312 + $0x458] sm:$0xf]
        %v7273 = vld [vmem:[%s312 + $0x45c] sm:$0xff]
        %v7274 = vld [vmem:[%s312 + $0x464] sm:$0xf]
        %v7275 = vld [vmem:[%s312 + $0x468] sm:$0xff]
        %v7276 = vld [vmem:[%s312 + $0x470] sm:$0xf]
        %v7277 = vld [vmem:[%s312 + $0x474] sm:$0xff]
        %v7278 = vld [vmem:[%s312 + $0x47c] sm:$0xf]
        %v7279 = vld [vmem:[%s312 + $0x480] sm:$0xff]
        %v7280 = vld [vmem:[%s312 + $0x488] sm:$0xf]
        %v7281 = vld [vmem:[%s312 + $0x48c] sm:$0xff]
        %v7282 = vld [vmem:[%s312 + $0x494] sm:$0xf]
        %v7283 = vld [vmem:[%s312 + $0x498] sm:$0xff]
        %v7284 = vld [vmem:[%s312 + $0x4a0] sm:$0xf]
        %v7285 = vld [vmem:[%s312 + $0x4a4] sm:$0xff]
        %v7286 = vld [vmem:[%s312 + $0x4ac] sm:$0xf]
        %v7287 = vld [vmem:[%s312 + $0x4b0] sm:$0xff]
        %v7288 = vld [vmem:[%s312 + $0x4b8] sm:$0xf]
        %v7289 = vld [vmem:[%s312 + $0x4bc] sm:$0xff]
        %v7290 = vld [vmem:[%s312 + $0x4c4] sm:$0xf]
        %v7291 = vld [vmem:[%s312 + $0x4c8] sm:$0xff]
        %v7292 = vld [vmem:[%s312 + $0x4d0] sm:$0xf]
        %v7293 = vld [vmem:[%s312 + $0x4d4] sm:$0xff]
        %v7294 = vld [vmem:[%s312 + $0x4dc] sm:$0xf]
        %v7295 = vld [vmem:[%s312 + $0x4e0] sm:$0xff]
        %v7296 = vld [vmem:[%s312 + $0x4e8] sm:$0xf]
        %v7297 = vld [vmem:[%s312 + $0x4ec] sm:$0xff]
        %v7298 = vld [vmem:[%s312 + $0x4f4] sm:$0xf]
        %v7299 = vld [vmem:[%s312 + $0x4f8] sm:$0xff]
        %v7300 = vld [vmem:[%s312 + $0x500] sm:$0xf]
        %v7301 = vld [vmem:[%s312 + $0x504] sm:$0xff]
        %v7302 = vld [vmem:[%s312 + $0x50c] sm:$0xf]
        %v7303 = vld [vmem:[%s312 + $0x510] sm:$0xff]
        %v7304 = vld [vmem:[%s312 + $0x518] sm:$0xf]
        %v7305 = vld [vmem:[%s312 + $0x51c] sm:$0xff]
        %v7306 = vld [vmem:[%s312 + $0x524] sm:$0xf]
        %v7307 = vld [vmem:[%s312 + $0x528] sm:$0xff]
        %v7308 = vld [vmem:[%s312 + $0x530] sm:$0xf]
        %v7309 = vld [vmem:[%s312 + $0x534] sm:$0xff]
        %v7310 = vld [vmem:[%s312 + $0x53c] sm:$0xf]
        %v7311 = vld [vmem:[%s312 + $0x540] sm:$0xff]
        %v7312 = vld [vmem:[%s312 + $0x548] sm:$0xf]
        %v7313 = vld [vmem:[%s312 + $0x54c] sm:$0xff]
        %v7314 = vld [vmem:[%s312 + $0x554] sm:$0xf]
        %v7315 = vld [vmem:[%s312 + $0x558] sm:$0xff]
        %v7316 = vld [vmem:[%s312 + $0x560] sm:$0xf]
        %v7317 = vld [vmem:[%s312 + $0x564] sm:$0xff]
        %v7318 = vld [vmem:[%s312 + $0x56c] sm:$0xf]
        %v7319 = vld [vmem:[%s312 + $0x570] sm:$0xff]
        %v7320 = vld [vmem:[%s312 + $0x578] sm:$0xf]
        %v7321 = vld [vmem:[%s312 + $0x57c] sm:$0xff]
        %v7322 = vld [vmem:[%s312 + $0x584] sm:$0xf]
        %v7323 = vld [vmem:[%s312 + $0x588] sm:$0xff]
        %v7324 = vld [vmem:[%s312 + $0x590] sm:$0xf]
        %v7325 = vld [vmem:[%s312 + $0x594] sm:$0xff]
        %v7326 = vld [vmem:[%s312 + $0x59c] sm:$0xf]
        %v7327 = vld [vmem:[%s312 + $0x5a0] sm:$0xff]
        %v7328 = vld [vmem:[%s312 + $0x5a8] sm:$0xf]
        %v7329 = vld [vmem:[%s312 + $0x5ac] sm:$0xff]
        %v7330 = vld [vmem:[%s312 + $0x5b4] sm:$0xf]
        %v7331 = vld [vmem:[%s312 + $0x5b8] sm:$0xff]
        %v7332 = vld [vmem:[%s312 + $0x5c0] sm:$0xf]
        %v7333 = vld [vmem:[%s312 + $0x5c4] sm:$0xff]
        %v7334 = vld [vmem:[%s312 + $0x5cc] sm:$0xf]
        %v7335 = vld [vmem:[%s312 + $0x5d0] sm:$0xff]
        %v7336 = vld [vmem:[%s312 + $0x5d8] sm:$0xf]
        %v7337 = vld [vmem:[%s312 + $0x5dc] sm:$0xff]
        %v7338 = vld [vmem:[%s312 + $0x5e4] sm:$0xf]
        %v7339 = vld [vmem:[%s312 + $0x5e8] sm:$0xff]
        %v7340 = vld [vmem:[%s312 + $0x5f0] sm:$0xf]
        %v7341 = vld [vmem:[%s312 + $0x5f4] sm:$0xff]
        %v7342 = vld [vmem:[%s312 + $0x5fc] sm:$0xf]
        %v7343 = vld [vmem:[%s312 + $0x600] sm:$0xff]
        %v7344 = vld [vmem:[%s312 + $0x608] sm:$0xf]
        %v7345 = vld [vmem:[%s312 + $0x60c] sm:$0xff]
        %v7346 = vld [vmem:[%s312 + $0x614] sm:$0xf]
        %v7347 = vld [vmem:[%s312 + $0x618] sm:$0xff]
        %v7348 = vld [vmem:[%s312 + $0x620] sm:$0xf]
        %v7349 = vld [vmem:[%s312 + $0x624] sm:$0xff]
        %v7350 = vld [vmem:[%s312 + $0x62c] sm:$0xf]
        %v7351 = vld [vmem:[%s312 + $0x630] sm:$0xff]
        %v7352 = vld [vmem:[%s312 + $0x638] sm:$0xf]
        %v7353 = vld [vmem:[%s312 + $0x63c] sm:$0xff]
        %v7354 = vld [vmem:[%s312 + $0x644] sm:$0xf]
        %v7355 = vld [vmem:[%s312 + $0x648] sm:$0xff]
        %v7356 = vld [vmem:[%s312 + $0x650] sm:$0xf]
        %v7357 = vld [vmem:[%s312 + $0x654] sm:$0xff]
        %v7358 = vld [vmem:[%s312 + $0x65c] sm:$0xf]
        %v7359 = vld [vmem:[%s312 + $0x660] sm:$0xff]
        %v7360 = vld [vmem:[%s312 + $0x668] sm:$0xf]
        %v7361 = vld [vmem:[%s312 + $0x66c] sm:$0xff]
        %v7362 = vld [vmem:[%s312 + $0x674] sm:$0xf]
        %v7363 = vld [vmem:[%s312 + $0x678] sm:$0xff]
        %v7364 = vld [vmem:[%s312 + $0x680] sm:$0xf]
        %v7365 = vld [vmem:[%s312 + $0x684] sm:$0xff]
        %v7366 = vld [vmem:[%s312 + $0x68c] sm:$0xf]
        %v7367 = vld [vmem:[%s312 + $0x690] sm:$0xff]
        %v7368 = vld [vmem:[%s312 + $0x698] sm:$0xf]
        %v7369 = vld [vmem:[%s312 + $0x69c] sm:$0xff]
        %v7370 = vld [vmem:[%s312 + $0x6a4] sm:$0xf]
        %v7371 = vld [vmem:[%s312 + $0x6a8] sm:$0xff]
        %v7372 = vld [vmem:[%s312 + $0x6b0] sm:$0xf]
        %v7373 = vld [vmem:[%s312 + $0x6b4] sm:$0xff]
        %v7374 = vld [vmem:[%s312 + $0x6bc] sm:$0xf]
        %v7375 = vld [vmem:[%s312 + $0x6c0] sm:$0xff]
        %v7376 = vld [vmem:[%s312 + $0x6c8] sm:$0xf]
        %v7377 = vld [vmem:[%s312 + $0x6cc] sm:$0xff]
        %v7378 = vld [vmem:[%s312 + $0x6d4] sm:$0xf]
        %v7379 = vld [vmem:[%s312 + $0x6d8] sm:$0xff]
        %v7380 = vld [vmem:[%s312 + $0x6e0] sm:$0xf]
        %v7381 = vld [vmem:[%s312 + $0x6e4] sm:$0xff]
        %v7382 = vld [vmem:[%s312 + $0x6ec] sm:$0xf]
        %v7383 = vld [vmem:[%s312 + $0x6f0] sm:$0xff]
        %v7384 = vld [vmem:[%s312 + $0x6f8] sm:$0xf]
        %v7385 = vld [vmem:[%s312 + $0x6fc] sm:$0xff]
        %v7386 = vld [vmem:[%s312 + $0x704] sm:$0xf]
        %v7387 = vld [vmem:[%s312 + $0x708] sm:$0xff]
        %v7388 = vld [vmem:[%s312 + $0x710] sm:$0xf]
        %v7389 = vld [vmem:[%s312 + $0x714] sm:$0xff]
        %v7390 = vld [vmem:[%s312 + $0x71c] sm:$0xf]
        %v7391 = vld [vmem:[%s312 + $0x720] sm:$0xff]
        %v7392 = vld [vmem:[%s312 + $0x728] sm:$0xf]
        %v7393 = vld [vmem:[%s312 + $0x72c] sm:$0xff]
        %v7394 = vld [vmem:[%s312 + $0x734] sm:$0xf]
        %v7395 = vld [vmem:[%s312 + $0x738] sm:$0xff]
        %v7396 = vld [vmem:[%s312 + $0x740] sm:$0xf]
        %v7397 = vld [vmem:[%s312 + $0x744] sm:$0xff]
        %v7398 = vld [vmem:[%s312 + $0x74c] sm:$0xf]
        %v7399 = vld [vmem:[%s312 + $0x750] sm:$0xff]
        %v7400 = vld [vmem:[%s312 + $0x758] sm:$0xf]
        %v7401 = vld [vmem:[%s312 + $0x75c] sm:$0xff]
        %v7402 = vld [vmem:[%s312 + $0x764] sm:$0xf]
        %v7403 = vld [vmem:[%s312 + $0x768] sm:$0xff]
        %v7404 = vld [vmem:[%s312 + $0x770] sm:$0xf]
        %v7405 = vld [vmem:[%s312 + $0x774] sm:$0xff]
        %v7406 = vld [vmem:[%s312 + $0x77c] sm:$0xf]
        %v7407 = vld [vmem:[%s312 + $0x780] sm:$0xff]
        %v7408 = vld [vmem:[%s312 + $0x788] sm:$0xf]
        %v7409 = vld [vmem:[%s312 + $0x78c] sm:$0xff]
        %v7410 = vld [vmem:[%s312 + $0x794] sm:$0xf]
        %v7411 = vld [vmem:[%s312 + $0x798] sm:$0xff]
        %v7412 = vld [vmem:[%s312 + $0x7a0] sm:$0xf]
        %v7413 = vld [vmem:[%s312 + $0x7a4] sm:$0xff]
        %v7414 = vld [vmem:[%s312 + $0x7ac] sm:$0xf]
        %v7415 = vld [vmem:[%s312 + $0x7b0] sm:$0xff]
        %v7416 = vld [vmem:[%s312 + $0x7b8] sm:$0xf]
        %v7417 = vld [vmem:[%s312 + $0x7bc] sm:$0xff]
        %v7418 = vld [vmem:[%s312 + $0x7c4] sm:$0xf]
        %v7419 = vld [vmem:[%s312 + $0x7c8] sm:$0xff]
        %v7420 = vld [vmem:[%s312 + $0x7d0] sm:$0xf]
        %v7421 = vld [vmem:[%s312 + $0x7d4] sm:$0xff]
        %v7422 = vld [vmem:[%s312 + $0x7dc] sm:$0xf]
        %v7423 = vld [vmem:[%s312 + $0x7e0] sm:$0xff]
        %v7424 = vld [vmem:[%s312 + $0x7e8] sm:$0xf]
        %v7425 = vld [vmem:[%s312 + $0x7ec] sm:$0xff]
        %v7426 = vld [vmem:[%s312 + $0x7f4] sm:$0xf]
        %v7427 = vld [vmem:[%s312 + $0x7f8] sm:$0xff]
        %v7428 = vld [vmem:[%s312 + $0x800] sm:$0xf]
        %v7429 = vld [vmem:[%s312 + $0x804] sm:$0xff]
        %v7430 = vld [vmem:[%s312 + $0x80c] sm:$0xf]
        %v7431 = vld [vmem:[%s312 + $0x810] sm:$0xff]
        %v7432 = vld [vmem:[%s312 + $0x818] sm:$0xf]
        %v7433 = vld [vmem:[%s312 + $0x81c] sm:$0xff]
        %v7434 = vld [vmem:[%s312 + $0x824] sm:$0xf]
        %v7435 = vld [vmem:[%s312 + $0x828] sm:$0xff]
        %v7436 = vld [vmem:[%s312 + $0x830] sm:$0xf]
        %v7437 = vld [vmem:[%s312 + $0x834] sm:$0xff]
        %v7438 = vld [vmem:[%s312 + $0x83c] sm:$0xf]
        %v7439 = vld [vmem:[%s312 + $0x840] sm:$0xff]
        %v7440 = vld [vmem:[%s312 + $0x848] sm:$0xf]
        %v7441 = vld [vmem:[%s312 + $0x84c] sm:$0xff]
        %v7442 = vld [vmem:[%s312 + $0x854] sm:$0xf]
        %v7443 = vld [vmem:[%s312 + $0x858] sm:$0xff]
        %v7444 = vld [vmem:[%s312 + $0x860] sm:$0xf]
        %v7445 = vld [vmem:[%s312 + $0x864] sm:$0xff]
        %v7446 = vld [vmem:[%s312 + $0x86c] sm:$0xf]
        %v7447 = vld [vmem:[%s312 + $0x870] sm:$0xff]
        %v7448 = vld [vmem:[%s312 + $0x878] sm:$0xf]
        %v7449 = vld [vmem:[%s312 + $0x87c] sm:$0xff]
        %v7450 = vld [vmem:[%s312 + $0x884] sm:$0xf]
        %v7451 = vld [vmem:[%s312 + $0x888] sm:$0xff]
        %v7452 = vld [vmem:[%s312 + $0x890] sm:$0xf]
        %v7453 = vld [vmem:[%s312 + $0x894] sm:$0xff]
        %v7454 = vld [vmem:[%s312 + $0x89c] sm:$0xf]
        %v7455 = vld [vmem:[%s312 + $0x8a0] sm:$0xff]
        %v7456 = vld [vmem:[%s312 + $0x8a8] sm:$0xf]
        %v7457 = vld [vmem:[%s312 + $0x8ac] sm:$0xff]
        %v7458 = vld [vmem:[%s312 + $0x8b4] sm:$0xf]
        %v7459 = vld [vmem:[%s312 + $0x8b8] sm:$0xff]
        %v7460 = vld [vmem:[%s312 + $0x8c0] sm:$0xf]
        %v7461 = vld [vmem:[%s312 + $0x8c4] sm:$0xff]
        %v7462 = vld [vmem:[%s312 + $0x8cc] sm:$0xf]
        %v7463 = vld [vmem:[%s312 + $0x8d0] sm:$0xff]
        %v7464 = vld [vmem:[%s312 + $0x8d8] sm:$0xf]
        %v7465 = vld [vmem:[%s312 + $0x8dc] sm:$0xff]
        %v7466 = vld [vmem:[%s312 + $0x8e4] sm:$0xf]
        %v7467 = vld [vmem:[%s312 + $0x8e8] sm:$0xff]
        %v7468 = vld [vmem:[%s312 + $0x8f0] sm:$0xf]
        %v7469 = vld [vmem:[%s312 + $0x8f4] sm:$0xff]
        %v7470 = vld [vmem:[%s312 + $0x8fc] sm:$0xf]
        %v7471 = vlaneseq
        %v7472 = vshrl.u32 %v7471, 7
        %v7473 = vsub.s32 5, %v7472
        %v7474 = vrot.slane %v403, %v7473
        %v7475 = vlaneseq
        %v7476 = vshrl.u32 %v7475, 7
        %v7477 = vsub.s32 5, %v7476
        %v7478 = vrot.slane %v404, %v7477
        %v7479 = vlaneseq
        %v7480 = vshrl.u32 %v7479, 7
        %v7481 = vsub.s32 5, %v7480
        %v7482 = vrot.slane %v405, %v7481
        %v7867 = vunpack.c.l.b16 %v7087
        %v7868 = vunpack.c.h.b16 %v7087
        %v7869 = vunpack.c.l.b16 %v7088
        %v7870 = vunpack.c.l.b16 %v7089
        %v7871 = vunpack.c.h.b16 %v7089
        %v7872 = vunpack.c.l.b16 %v7090
        %v7873 = vunpack.c.l.b16 %v7091
        %v7874 = vunpack.c.h.b16 %v7091
        %v7875 = vunpack.c.l.b16 %v7092
        %v7876 = vunpack.c.l.b16 %v7093
        %v7877 = vunpack.c.h.b16 %v7093
        %v7878 = vunpack.c.l.b16 %v7094
        %v7879 = vunpack.c.l.b16 %v7095
        %v7880 = vunpack.c.h.b16 %v7095
        %v7881 = vunpack.c.l.b16 %v7096
        %v7882 = vunpack.c.l.b16 %v7097
        %v7883 = vunpack.c.h.b16 %v7097
        %v7884 = vunpack.c.l.b16 %v7098
        %v7885 = vunpack.c.l.b16 %v7099
        %v7886 = vunpack.c.h.b16 %v7099
        %v7887 = vunpack.c.l.b16 %v7100
        %v7888 = vunpack.c.l.b16 %v7101
        %v7889 = vunpack.c.h.b16 %v7101
        %v7890 = vunpack.c.l.b16 %v7102
        %v7891 = vunpack.c.l.b16 %v7103
        %v7892 = vunpack.c.h.b16 %v7103
        %v7893 = vunpack.c.l.b16 %v7104
        %v7894 = vunpack.c.l.b16 %v7105
        %v7895 = vunpack.c.h.b16 %v7105
        %v7896 = vunpack.c.l.b16 %v7106
        %v7897 = vunpack.c.l.b16 %v7107
        %v7898 = vunpack.c.h.b16 %v7107
        %v7899 = vunpack.c.l.b16 %v7108
        %v7900 = vunpack.c.l.b16 %v7109
        %v7901 = vunpack.c.h.b16 %v7109
        %v7902 = vunpack.c.l.b16 %v7110
        %v7903 = vunpack.c.l.b16 %v7111
        %v7904 = vunpack.c.h.b16 %v7111
        %v7905 = vunpack.c.l.b16 %v7112
        %v7906 = vunpack.c.l.b16 %v7113
        %v7907 = vunpack.c.h.b16 %v7113
        %v7908 = vunpack.c.l.b16 %v7114
        %v7909 = vunpack.c.l.b16 %v7115
        %v7910 = vunpack.c.h.b16 %v7115
        %v7911 = vunpack.c.l.b16 %v7116
        %v7912 = vunpack.c.l.b16 %v7117
        %v7913 = vunpack.c.h.b16 %v7117
        %v7914 = vunpack.c.l.b16 %v7118
        %v7915 = vunpack.c.l.b16 %v7119
        %v7916 = vunpack.c.h.b16 %v7119
        %v7917 = vunpack.c.l.b16 %v7120
        %v7918 = vunpack.c.l.b16 %v7121
        %v7919 = vunpack.c.h.b16 %v7121
        %v7920 = vunpack.c.l.b16 %v7122
        %v7921 = vunpack.c.l.b16 %v7123
        %v7922 = vunpack.c.h.b16 %v7123
        %v7923 = vunpack.c.l.b16 %v7124
        %v7924 = vunpack.c.l.b16 %v7125
        %v7925 = vunpack.c.h.b16 %v7125
        %v7926 = vunpack.c.l.b16 %v7126
        %v7927 = vunpack.c.l.b16 %v7127
        %v7928 = vunpack.c.h.b16 %v7127
        %v7929 = vunpack.c.l.b16 %v7128
        %v7930 = vunpack.c.l.b16 %v7129
        %v7931 = vunpack.c.h.b16 %v7129
        %v7932 = vunpack.c.l.b16 %v7130
        %v7933 = vunpack.c.l.b16 %v7131
        %v7934 = vunpack.c.h.b16 %v7131
        %v7935 = vunpack.c.l.b16 %v7132
        %v7936 = vunpack.c.l.b16 %v7133
        %v7937 = vunpack.c.h.b16 %v7133
        %v7938 = vunpack.c.l.b16 %v7134
        %v7939 = vunpack.c.l.b16 %v7135
        %v7940 = vunpack.c.h.b16 %v7135
        %v7941 = vunpack.c.l.b16 %v7136
        %v7942 = vunpack.c.l.b16 %v7137
        %v7943 = vunpack.c.h.b16 %v7137
        %v7944 = vunpack.c.l.b16 %v7138
        %v7945 = vunpack.c.l.b16 %v7139
        %v7946 = vunpack.c.h.b16 %v7139
        %v7947 = vunpack.c.l.b16 %v7140
        %v7948 = vunpack.c.l.b16 %v7141
        %v7949 = vunpack.c.h.b16 %v7141
        %v7950 = vunpack.c.l.b16 %v7142
        %v7951 = vunpack.c.l.b16 %v7143
        %v7952 = vunpack.c.h.b16 %v7143
        %v7953 = vunpack.c.l.b16 %v7144
        %v7954 = vunpack.c.l.b16 %v7145
        %v7955 = vunpack.c.h.b16 %v7145
        %v7956 = vunpack.c.l.b16 %v7146
        %v7957 = vunpack.c.l.b16 %v7147
        %v7958 = vunpack.c.h.b16 %v7147
        %v7959 = vunpack.c.l.b16 %v7148
        %v7960 = vunpack.c.l.b16 %v7149
        %v7961 = vunpack.c.h.b16 %v7149
        %v7962 = vunpack.c.l.b16 %v7150
        %v7963 = vunpack.c.l.b16 %v7151
        %v7964 = vunpack.c.h.b16 %v7151
        %v7965 = vunpack.c.l.b16 %v7152
        %v7966 = vunpack.c.l.b16 %v7153
        %v7967 = vunpack.c.h.b16 %v7153
        %v7968 = vunpack.c.l.b16 %v7154
        %v7969 = vunpack.c.l.b16 %v7155
        %v7970 = vunpack.c.h.b16 %v7155
        %v7971 = vunpack.c.l.b16 %v7156
        %v7972 = vunpack.c.l.b16 %v7157
        %v7973 = vunpack.c.h.b16 %v7157
        %v7974 = vunpack.c.l.b16 %v7158
        %v7975 = vunpack.c.l.b16 %v7159
        %v7976 = vunpack.c.h.b16 %v7159
        %v7977 = vunpack.c.l.b16 %v7160
        %v7978 = vunpack.c.l.b16 %v7161
        %v7979 = vunpack.c.h.b16 %v7161
        %v7980 = vunpack.c.l.b16 %v7162
        %v7981 = vunpack.c.l.b16 %v7163
        %v7982 = vunpack.c.h.b16 %v7163
        %v7983 = vunpack.c.l.b16 %v7164
        %v7984 = vunpack.c.l.b16 %v7165
        %v7985 = vunpack.c.h.b16 %v7165
        %v7986 = vunpack.c.l.b16 %v7166
        %v7987 = vunpack.c.l.b16 %v7167
        %v7988 = vunpack.c.h.b16 %v7167
        %v7989 = vunpack.c.l.b16 %v7168
        %v7990 = vunpack.c.l.b16 %v7169
        %v7991 = vunpack.c.h.b16 %v7169
        %v7992 = vunpack.c.l.b16 %v7170
        %v7993 = vunpack.c.l.b16 %v7171
        %v7994 = vunpack.c.h.b16 %v7171
        %v7995 = vunpack.c.l.b16 %v7172
        %v7996 = vunpack.c.l.b16 %v7173
        %v7997 = vunpack.c.h.b16 %v7173
        %v7998 = vunpack.c.l.b16 %v7174
        %v7999 = vunpack.c.l.b16 %v7175
        %v8000 = vunpack.c.h.b16 %v7175
        %v8001 = vunpack.c.l.b16 %v7176
        %v8002 = vunpack.c.l.b16 %v7177
        %v8003 = vunpack.c.h.b16 %v7177
        %v8004 = vunpack.c.l.b16 %v7178
        %v8005 = vunpack.c.l.b16 %v7179
        %v8006 = vunpack.c.h.b16 %v7179
        %v8007 = vunpack.c.l.b16 %v7180
        %v8008 = vunpack.c.l.b16 %v7181
        %v8009 = vunpack.c.h.b16 %v7181
        %v8010 = vunpack.c.l.b16 %v7182
        %v8011 = vunpack.c.l.b16 %v7183
        %v8012 = vunpack.c.h.b16 %v7183
        %v8013 = vunpack.c.l.b16 %v7184
        %v8014 = vunpack.c.l.b16 %v7185
        %v8015 = vunpack.c.h.b16 %v7185
        %v8016 = vunpack.c.l.b16 %v7186
        %v8017 = vunpack.c.l.b16 %v7187
        %v8018 = vunpack.c.h.b16 %v7187
        %v8019 = vunpack.c.l.b16 %v7188
        %v8020 = vunpack.c.l.b16 %v7189
        %v8021 = vunpack.c.h.b16 %v7189
        %v8022 = vunpack.c.l.b16 %v7190
        %v8023 = vunpack.c.l.b16 %v7191
        %v8024 = vunpack.c.h.b16 %v7191
        %v8025 = vunpack.c.l.b16 %v7192
        %v8026 = vunpack.c.l.b16 %v7193
        %v8027 = vunpack.c.h.b16 %v7193
        %v8028 = vunpack.c.l.b16 %v7194
        %v8029 = vunpack.c.l.b16 %v7195
        %v8030 = vunpack.c.h.b16 %v7195
        %v8031 = vunpack.c.l.b16 %v7196
        %v8032 = vunpack.c.l.b16 %v7197
        %v8033 = vunpack.c.h.b16 %v7197
        %v8034 = vunpack.c.l.b16 %v7198
        %v8035 = vunpack.c.l.b16 %v7199
        %v8036 = vunpack.c.h.b16 %v7199
        %v8037 = vunpack.c.l.b16 %v7200
        %v8038 = vunpack.c.l.b16 %v7201
        %v8039 = vunpack.c.h.b16 %v7201
        %v8040 = vunpack.c.l.b16 %v7202
        %v8041 = vunpack.c.l.b16 %v7203
        %v8042 = vunpack.c.h.b16 %v7203
        %v8043 = vunpack.c.l.b16 %v7204
        %v8044 = vunpack.c.l.b16 %v7205
        %v8045 = vunpack.c.h.b16 %v7205
        %v8046 = vunpack.c.l.b16 %v7206
        %v8047 = vunpack.c.l.b16 %v7207
        %v8048 = vunpack.c.h.b16 %v7207
        %v8049 = vunpack.c.l.b16 %v7208
        %v8050 = vunpack.c.l.b16 %v7209
        %v8051 = vunpack.c.h.b16 %v7209
        %v8052 = vunpack.c.l.b16 %v7210
        %v8053 = vunpack.c.l.b16 %v7211
        %v8054 = vunpack.c.h.b16 %v7211
        %v8055 = vunpack.c.l.b16 %v7212
        %v8056 = vunpack.c.l.b16 %v7213
        %v8057 = vunpack.c.h.b16 %v7213
        %v8058 = vunpack.c.l.b16 %v7214
        %v8059 = vunpack.c.l.b16 %v7215
        %v8060 = vunpack.c.h.b16 %v7215
        %v8061 = vunpack.c.l.b16 %v7216
        %v8062 = vunpack.c.l.b16 %v7217
        %v8063 = vunpack.c.h.b16 %v7217
        %v8064 = vunpack.c.l.b16 %v7218
        %v8065 = vunpack.c.l.b16 %v7219
        %v8066 = vunpack.c.h.b16 %v7219
        %v8067 = vunpack.c.l.b16 %v7220
        %v8068 = vunpack.c.l.b16 %v7221
        %v8069 = vunpack.c.h.b16 %v7221
        %v8070 = vunpack.c.l.b16 %v7222
        %v8071 = vunpack.c.l.b16 %v7223
        %v8072 = vunpack.c.h.b16 %v7223
        %v8073 = vunpack.c.l.b16 %v7224
        %v8074 = vunpack.c.l.b16 %v7225
        %v8075 = vunpack.c.h.b16 %v7225
        %v8076 = vunpack.c.l.b16 %v7226
        %v8077 = vunpack.c.l.b16 %v7227
        %v8078 = vunpack.c.h.b16 %v7227
        %v8079 = vunpack.c.l.b16 %v7228
        %v8080 = vunpack.c.l.b16 %v7229
        %v8081 = vunpack.c.h.b16 %v7229
        %v8082 = vunpack.c.l.b16 %v7230
        %v8083 = vunpack.c.l.b16 %v7231
        %v8084 = vunpack.c.h.b16 %v7231
        %v8085 = vunpack.c.l.b16 %v7232
        %v8086 = vunpack.c.l.b16 %v7233
        %v8087 = vunpack.c.h.b16 %v7233
        %v8088 = vunpack.c.l.b16 %v7234
        %v8089 = vunpack.c.l.b16 %v7235
        %v8090 = vunpack.c.h.b16 %v7235
        %v8091 = vunpack.c.l.b16 %v7236
        %v8092 = vunpack.c.l.b16 %v7237
        %v8093 = vunpack.c.h.b16 %v7237
        %v8094 = vunpack.c.l.b16 %v7238
        %v8095 = vunpack.c.l.b16 %v7239
        %v8096 = vunpack.c.h.b16 %v7239
        %v8097 = vunpack.c.l.b16 %v7240
        %v8098 = vunpack.c.l.b16 %v7241
        %v8099 = vunpack.c.h.b16 %v7241
        %v8100 = vunpack.c.l.b16 %v7242
        %v8101 = vunpack.c.l.b16 %v7243
        %v8102 = vunpack.c.h.b16 %v7243
        %v8103 = vunpack.c.l.b16 %v7244
        %v8104 = vunpack.c.l.b16 %v7245
        %v8105 = vunpack.c.h.b16 %v7245
        %v8106 = vunpack.c.l.b16 %v7246
        %v8107 = vunpack.c.l.b16 %v7247
        %v8108 = vunpack.c.h.b16 %v7247
        %v8109 = vunpack.c.l.b16 %v7248
        %v8110 = vunpack.c.l.b16 %v7249
        %v8111 = vunpack.c.h.b16 %v7249
        %v8112 = vunpack.c.l.b16 %v7250
        %v8113 = vunpack.c.l.b16 %v7251
        %v8114 = vunpack.c.h.b16 %v7251
        %v8115 = vunpack.c.l.b16 %v7252
        %v8116 = vunpack.c.l.b16 %v7253
        %v8117 = vunpack.c.h.b16 %v7253
        %v8118 = vunpack.c.l.b16 %v7254
        %v8119 = vunpack.c.l.b16 %v7255
        %v8120 = vunpack.c.h.b16 %v7255
        %v8121 = vunpack.c.l.b16 %v7256
        %v8122 = vunpack.c.l.b16 %v7257
        %v8123 = vunpack.c.h.b16 %v7257
        %v8124 = vunpack.c.l.b16 %v7258
        %v8125 = vunpack.c.l.b16 %v7259
        %v8126 = vunpack.c.h.b16 %v7259
        %v8127 = vunpack.c.l.b16 %v7260
        %v8128 = vunpack.c.l.b16 %v7261
        %v8129 = vunpack.c.h.b16 %v7261
        %v8130 = vunpack.c.l.b16 %v7262
        %v8131 = vunpack.c.l.b16 %v7263
        %v8132 = vunpack.c.h.b16 %v7263
        %v8133 = vunpack.c.l.b16 %v7264
        %v8134 = vunpack.c.l.b16 %v7265
        %v8135 = vunpack.c.h.b16 %v7265
        %v8136 = vunpack.c.l.b16 %v7266
        %v8137 = vunpack.c.l.b16 %v7267
        %v8138 = vunpack.c.h.b16 %v7267
        %v8139 = vunpack.c.l.b16 %v7268
        %v8140 = vunpack.c.l.b16 %v7269
        %v8141 = vunpack.c.h.b16 %v7269
        %v8142 = vunpack.c.l.b16 %v7270
        %v8143 = vunpack.c.l.b16 %v7271
        %v8144 = vunpack.c.h.b16 %v7271
        %v8145 = vunpack.c.l.b16 %v7272
        %v8146 = vunpack.c.l.b16 %v7273
        %v8147 = vunpack.c.h.b16 %v7273
        %v8148 = vunpack.c.l.b16 %v7274
        %v8149 = vunpack.c.l.b16 %v7275
        %v8150 = vunpack.c.h.b16 %v7275
        %v8151 = vunpack.c.l.b16 %v7276
        %v8152 = vunpack.c.l.b16 %v7277
        %v8153 = vunpack.c.h.b16 %v7277
        %v8154 = vunpack.c.l.b16 %v7278
        %v8155 = vunpack.c.l.b16 %v7279
        %v8156 = vunpack.c.h.b16 %v7279
        %v8157 = vunpack.c.l.b16 %v7280
        %v8158 = vunpack.c.l.b16 %v7281
        %v8159 = vunpack.c.h.b16 %v7281
        %v8160 = vunpack.c.l.b16 %v7282
        %v8161 = vunpack.c.l.b16 %v7283
        %v8162 = vunpack.c.h.b16 %v7283
        %v8163 = vunpack.c.l.b16 %v7284
        %v8164 = vunpack.c.l.b16 %v7285
        %v8165 = vunpack.c.h.b16 %v7285
        %v8166 = vunpack.c.l.b16 %v7286
        %v8167 = vunpack.c.l.b16 %v7287
        %v8168 = vunpack.c.h.b16 %v7287
        %v8169 = vunpack.c.l.b16 %v7288
        %v8170 = vunpack.c.l.b16 %v7289
        %v8171 = vunpack.c.h.b16 %v7289
        %v8172 = vunpack.c.l.b16 %v7290
        %v8173 = vunpack.c.l.b16 %v7291
        %v8174 = vunpack.c.h.b16 %v7291
        %v8175 = vunpack.c.l.b16 %v7292
        %v8176 = vunpack.c.l.b16 %v7293
        %v8177 = vunpack.c.h.b16 %v7293
        %v8178 = vunpack.c.l.b16 %v7294
        %v8179 = vunpack.c.l.b16 %v7295
        %v8180 = vunpack.c.h.b16 %v7295
        %v8181 = vunpack.c.l.b16 %v7296
        %v8182 = vunpack.c.l.b16 %v7297
        %v8183 = vunpack.c.h.b16 %v7297
        %v8184 = vunpack.c.l.b16 %v7298
        %v8185 = vunpack.c.l.b16 %v7299
        %v8186 = vunpack.c.h.b16 %v7299
        %v8187 = vunpack.c.l.b16 %v7300
        %v8188 = vunpack.c.l.b16 %v7301
        %v8189 = vunpack.c.h.b16 %v7301
        %v8190 = vunpack.c.l.b16 %v7302
        %v8191 = vunpack.c.l.b16 %v7303
        %v8192 = vunpack.c.h.b16 %v7303
        %v8193 = vunpack.c.l.b16 %v7304
        %v8194 = vunpack.c.l.b16 %v7305
        %v8195 = vunpack.c.h.b16 %v7305
        %v8196 = vunpack.c.l.b16 %v7306
        %v8197 = vunpack.c.l.b16 %v7307
        %v8198 = vunpack.c.h.b16 %v7307
        %v8199 = vunpack.c.l.b16 %v7308
        %v8200 = vunpack.c.l.b16 %v7309
        %v8201 = vunpack.c.h.b16 %v7309
        %v8202 = vunpack.c.l.b16 %v7310
        %v8203 = vunpack.c.l.b16 %v7311
        %v8204 = vunpack.c.h.b16 %v7311
        %v8205 = vunpack.c.l.b16 %v7312
        %v8206 = vunpack.c.l.b16 %v7313
        %v8207 = vunpack.c.h.b16 %v7313
        %v8208 = vunpack.c.l.b16 %v7314
        %v8209 = vunpack.c.l.b16 %v7315
        %v8210 = vunpack.c.h.b16 %v7315
        %v8211 = vunpack.c.l.b16 %v7316
        %v8212 = vunpack.c.l.b16 %v7317
        %v8213 = vunpack.c.h.b16 %v7317
        %v8214 = vunpack.c.l.b16 %v7318
        %v8215 = vunpack.c.l.b16 %v7319
        %v8216 = vunpack.c.h.b16 %v7319
        %v8217 = vunpack.c.l.b16 %v7320
        %v8218 = vunpack.c.l.b16 %v7321
        %v8219 = vunpack.c.h.b16 %v7321
        %v8220 = vunpack.c.l.b16 %v7322
        %v8221 = vunpack.c.l.b16 %v7323
        %v8222 = vunpack.c.h.b16 %v7323
        %v8223 = vunpack.c.l.b16 %v7324
        %v8224 = vunpack.c.l.b16 %v7325
        %v8225 = vunpack.c.h.b16 %v7325
        %v8226 = vunpack.c.l.b16 %v7326
        %v8227 = vunpack.c.l.b16 %v7327
        %v8228 = vunpack.c.h.b16 %v7327
        %v8229 = vunpack.c.l.b16 %v7328
        %v8230 = vunpack.c.l.b16 %v7329
        %v8231 = vunpack.c.h.b16 %v7329
        %v8232 = vunpack.c.l.b16 %v7330
        %v8233 = vunpack.c.l.b16 %v7331
        %v8234 = vunpack.c.h.b16 %v7331
        %v8235 = vunpack.c.l.b16 %v7332
        %v8236 = vunpack.c.l.b16 %v7333
        %v8237 = vunpack.c.h.b16 %v7333
        %v8238 = vunpack.c.l.b16 %v7334
        %v8239 = vunpack.c.l.b16 %v7335
        %v8240 = vunpack.c.h.b16 %v7335
        %v8241 = vunpack.c.l.b16 %v7336
        %v8242 = vunpack.c.l.b16 %v7337
        %v8243 = vunpack.c.h.b16 %v7337
        %v8244 = vunpack.c.l.b16 %v7338
        %v8245 = vunpack.c.l.b16 %v7339
        %v8246 = vunpack.c.h.b16 %v7339
        %v8247 = vunpack.c.l.b16 %v7340
        %v8248 = vunpack.c.l.b16 %v7341
        %v8249 = vunpack.c.h.b16 %v7341
        %v8250 = vunpack.c.l.b16 %v7342
        %v8251 = vunpack.c.l.b16 %v7343
        %v8252 = vunpack.c.h.b16 %v7343
        %v8253 = vunpack.c.l.b16 %v7344
        %v8254 = vunpack.c.l.b16 %v7345
        %v8255 = vunpack.c.h.b16 %v7345
        %v8256 = vunpack.c.l.b16 %v7346
        %v8257 = vunpack.c.l.b16 %v7347
        %v8258 = vunpack.c.h.b16 %v7347
        %v8259 = vunpack.c.l.b16 %v7348
        %v8260 = vunpack.c.l.b16 %v7349
        %v8261 = vunpack.c.h.b16 %v7349
        %v8262 = vunpack.c.l.b16 %v7350
        %v8263 = vunpack.c.l.b16 %v7351
        %v8264 = vunpack.c.h.b16 %v7351
        %v8265 = vunpack.c.l.b16 %v7352
        %v8266 = vunpack.c.l.b16 %v7353
        %v8267 = vunpack.c.h.b16 %v7353
        %v8268 = vunpack.c.l.b16 %v7354
        %v8269 = vunpack.c.l.b16 %v7355
        %v8270 = vunpack.c.h.b16 %v7355
        %v8271 = vunpack.c.l.b16 %v7356
        %v8272 = vunpack.c.l.b16 %v7357
        %v8273 = vunpack.c.h.b16 %v7357
        %v8274 = vunpack.c.l.b16 %v7358
        %v8275 = vunpack.c.l.b16 %v7359
        %v8276 = vunpack.c.h.b16 %v7359
        %v8277 = vunpack.c.l.b16 %v7360
        %v8278 = vunpack.c.l.b16 %v7361
        %v8279 = vunpack.c.h.b16 %v7361
        %v8280 = vunpack.c.l.b16 %v7362
        %v8281 = vunpack.c.l.b16 %v7363
        %v8282 = vunpack.c.h.b16 %v7363
        %v8283 = vunpack.c.l.b16 %v7364
        %v8284 = vunpack.c.l.b16 %v7365
        %v8285 = vunpack.c.h.b16 %v7365
        %v8286 = vunpack.c.l.b16 %v7366
        %v8287 = vunpack.c.l.b16 %v7367
        %v8288 = vunpack.c.h.b16 %v7367
        %v8289 = vunpack.c.l.b16 %v7368
        %v8290 = vunpack.c.l.b16 %v7369
        %v8291 = vunpack.c.h.b16 %v7369
        %v8292 = vunpack.c.l.b16 %v7370
        %v8293 = vunpack.c.l.b16 %v7371
        %v8294 = vunpack.c.h.b16 %v7371
        %v8295 = vunpack.c.l.b16 %v7372
        %v8296 = vunpack.c.l.b16 %v7373
        %v8297 = vunpack.c.h.b16 %v7373
        %v8298 = vunpack.c.l.b16 %v7374
        %v8299 = vunpack.c.l.b16 %v7375
        %v8300 = vunpack.c.h.b16 %v7375
        %v8301 = vunpack.c.l.b16 %v7376
        %v8302 = vunpack.c.l.b16 %v7377
        %v8303 = vunpack.c.h.b16 %v7377
        %v8304 = vunpack.c.l.b16 %v7378
        %v8305 = vunpack.c.l.b16 %v7379
        %v8306 = vunpack.c.h.b16 %v7379
        %v8307 = vunpack.c.l.b16 %v7380
        %v8308 = vunpack.c.l.b16 %v7381
        %v8309 = vunpack.c.h.b16 %v7381
        %v8310 = vunpack.c.l.b16 %v7382
        %v8311 = vunpack.c.l.b16 %v7383
        %v8312 = vunpack.c.h.b16 %v7383
        %v8313 = vunpack.c.l.b16 %v7384
        %v8314 = vunpack.c.l.b16 %v7385
        %v8315 = vunpack.c.h.b16 %v7385
        %v8316 = vunpack.c.l.b16 %v7386
        %v8317 = vunpack.c.l.b16 %v7387
        %v8318 = vunpack.c.h.b16 %v7387
        %v8319 = vunpack.c.l.b16 %v7388
        %v8320 = vunpack.c.l.b16 %v7389
        %v8321 = vunpack.c.h.b16 %v7389
        %v8322 = vunpack.c.l.b16 %v7390
        %v8323 = vunpack.c.l.b16 %v7391
        %v8324 = vunpack.c.h.b16 %v7391
        %v8325 = vunpack.c.l.b16 %v7392
        %v8326 = vunpack.c.l.b16 %v7393
        %v8327 = vunpack.c.h.b16 %v7393
        %v8328 = vunpack.c.l.b16 %v7394
        %v8329 = vunpack.c.l.b16 %v7395
        %v8330 = vunpack.c.h.b16 %v7395
        %v8331 = vunpack.c.l.b16 %v7396
        %v8332 = vunpack.c.l.b16 %v7397
        %v8333 = vunpack.c.h.b16 %v7397
        %v8334 = vunpack.c.l.b16 %v7398
        %v8335 = vunpack.c.l.b16 %v7399
        %v8336 = vunpack.c.h.b16 %v7399
        %v8337 = vunpack.c.l.b16 %v7400
        %v8338 = vunpack.c.l.b16 %v7401
        %v8339 = vunpack.c.h.b16 %v7401
        %v8340 = vunpack.c.l.b16 %v7402
        %v8341 = vunpack.c.l.b16 %v7403
        %v8342 = vunpack.c.h.b16 %v7403
        %v8343 = vunpack.c.l.b16 %v7404
        %v8344 = vunpack.c.l.b16 %v7405
        %v8345 = vunpack.c.h.b16 %v7405
        %v8346 = vunpack.c.l.b16 %v7406
        %v8347 = vunpack.c.l.b16 %v7407
        %v8348 = vunpack.c.h.b16 %v7407
        %v8349 = vunpack.c.l.b16 %v7408
        %v8350 = vunpack.c.l.b16 %v7409
        %v8351 = vunpack.c.h.b16 %v7409
        %v8352 = vunpack.c.l.b16 %v7410
        %v8353 = vunpack.c.l.b16 %v7411
        %v8354 = vunpack.c.h.b16 %v7411
        %v8355 = vunpack.c.l.b16 %v7412
        %v8356 = vunpack.c.l.b16 %v7413
        %v8357 = vunpack.c.h.b16 %v7413
        %v8358 = vunpack.c.l.b16 %v7414
        %v8359 = vunpack.c.l.b16 %v7415
        %v8360 = vunpack.c.h.b16 %v7415
        %v8361 = vunpack.c.l.b16 %v7416
        %v8362 = vunpack.c.l.b16 %v7417
        %v8363 = vunpack.c.h.b16 %v7417
        %v8364 = vunpack.c.l.b16 %v7418
        %v8365 = vunpack.c.l.b16 %v7419
        %v8366 = vunpack.c.h.b16 %v7419
        %v8367 = vunpack.c.l.b16 %v7420
        %v8368 = vunpack.c.l.b16 %v7421
        %v8369 = vunpack.c.h.b16 %v7421
        %v8370 = vunpack.c.l.b16 %v7422
        %v8371 = vunpack.c.l.b16 %v7423
        %v8372 = vunpack.c.h.b16 %v7423
        %v8373 = vunpack.c.l.b16 %v7424
        %v8374 = vunpack.c.l.b16 %v7425
        %v8375 = vunpack.c.h.b16 %v7425
        %v8376 = vunpack.c.l.b16 %v7426
        %v8377 = vunpack.c.l.b16 %v7427
        %v8378 = vunpack.c.h.b16 %v7427
        %v8379 = vunpack.c.l.b16 %v7428
        %v8380 = vunpack.c.l.b16 %v7429
        %v8381 = vunpack.c.h.b16 %v7429
        %v8382 = vunpack.c.l.b16 %v7430
        %v8383 = vunpack.c.l.b16 %v7431
        %v8384 = vunpack.c.h.b16 %v7431
        %v8385 = vunpack.c.l.b16 %v7432
        %v8386 = vunpack.c.l.b16 %v7433
        %v8387 = vunpack.c.h.b16 %v7433
        %v8388 = vunpack.c.l.b16 %v7434
        %v8389 = vunpack.c.l.b16 %v7435
        %v8390 = vunpack.c.h.b16 %v7435
        %v8391 = vunpack.c.l.b16 %v7436
        %v8392 = vunpack.c.l.b16 %v7437
        %v8393 = vunpack.c.h.b16 %v7437
        %v8394 = vunpack.c.l.b16 %v7438
        %v8395 = vunpack.c.l.b16 %v7439
        %v8396 = vunpack.c.h.b16 %v7439
        %v8397 = vunpack.c.l.b16 %v7440
        %v8398 = vunpack.c.l.b16 %v7441
        %v8399 = vunpack.c.h.b16 %v7441
        %v8400 = vunpack.c.l.b16 %v7442
        %v8401 = vunpack.c.l.b16 %v7443
        %v8402 = vunpack.c.h.b16 %v7443
        %v8403 = vunpack.c.l.b16 %v7444
        %v8404 = vunpack.c.l.b16 %v7445
        %v8405 = vunpack.c.h.b16 %v7445
        %v8406 = vunpack.c.l.b16 %v7446
        %v8407 = vunpack.c.l.b16 %v7447
        %v8408 = vunpack.c.h.b16 %v7447
        %v8409 = vunpack.c.l.b16 %v7448
        %v8410 = vunpack.c.l.b16 %v7449
        %v8411 = vunpack.c.h.b16 %v7449
        %v8412 = vunpack.c.l.b16 %v7450
        %v8413 = vunpack.c.l.b16 %v7451
        %v8414 = vunpack.c.h.b16 %v7451
        %v8415 = vunpack.c.l.b16 %v7452
        %v8416 = vunpack.c.l.b16 %v7453
        %v8417 = vunpack.c.h.b16 %v7453
        %v8418 = vunpack.c.l.b16 %v7454
        %v8419 = vunpack.c.l.b16 %v7455
        %v8420 = vunpack.c.h.b16 %v7455
        %v8421 = vunpack.c.l.b16 %v7456
        %v8422 = vunpack.c.l.b16 %v7457
        %v8423 = vunpack.c.h.b16 %v7457
        %v8424 = vunpack.c.l.b16 %v7458
        %v8425 = vunpack.c.l.b16 %v7459
        %v8426 = vunpack.c.h.b16 %v7459
        %v8427 = vunpack.c.l.b16 %v7460
        %v8428 = vunpack.c.l.b16 %v7461
        %v8429 = vunpack.c.h.b16 %v7461
        %v8430 = vunpack.c.l.b16 %v7462
        %v8431 = vunpack.c.l.b16 %v7463
        %v8432 = vunpack.c.h.b16 %v7463
        %v8433 = vunpack.c.l.b16 %v7464
        %v8434 = vunpack.c.l.b16 %v7465
        %v8435 = vunpack.c.h.b16 %v7465
        %v8436 = vunpack.c.l.b16 %v7466
        %v8437 = vunpack.c.l.b16 %v7467
        %v8438 = vunpack.c.h.b16 %v7467
        %v8439 = vunpack.c.l.b16 %v7468
        %v8440 = vunpack.c.l.b16 %v7469
        %v8441 = vunpack.c.h.b16 %v7469
        %v8442 = vunpack.c.l.b16 %v7470
        %v8443 = vpack.c.b16 %v7870, %v7867
        %v8444 = vpack.c.b16 %v7871, %v7868
        %v8445 = vpack.c.b16 %v7872, %v7869
        %v8446 = vpack.c.b16 %v7876, %v7873
        %v8447 = vpack.c.b16 %v7877, %v7874
        %v8448 = vpack.c.b16 %v7878, %v7875
        %v8449 = vpack.c.b16 %v7882, %v7879
        %v8450 = vpack.c.b16 %v7883, %v7880
        %v8451 = vpack.c.b16 %v7884, %v7881
        %v8452 = vpack.c.b16 %v7888, %v7885
        %v8453 = vpack.c.b16 %v7889, %v7886
        %v8454 = vpack.c.b16 %v7890, %v7887
        %v8455 = vpack.c.b16 %v7894, %v7891
        %v8456 = vpack.c.b16 %v7895, %v7892
        %v8457 = vpack.c.b16 %v7896, %v7893
        %v8458 = vpack.c.b16 %v7900, %v7897
        %v8459 = vpack.c.b16 %v7901, %v7898
        %v8460 = vpack.c.b16 %v7902, %v7899
        %v8461 = vpack.c.b16 %v7906, %v7903
        %v8462 = vpack.c.b16 %v7907, %v7904
        %v8463 = vpack.c.b16 %v7908, %v7905
        %v8464 = vpack.c.b16 %v7912, %v7909
        %v8465 = vpack.c.b16 %v7913, %v7910
        %v8466 = vpack.c.b16 %v7914, %v7911
        %v8467 = vpack.c.b16 %v7918, %v7915
        %v8468 = vpack.c.b16 %v7919, %v7916
        %v8469 = vpack.c.b16 %v7920, %v7917
        %v8470 = vpack.c.b16 %v7924, %v7921
        %v8471 = vpack.c.b16 %v7925, %v7922
        %v8472 = vpack.c.b16 %v7926, %v7923
        %v8473 = vpack.c.b16 %v7930, %v7927
        %v8474 = vpack.c.b16 %v7931, %v7928
        %v8475 = vpack.c.b16 %v7932, %v7929
        %v8476 = vpack.c.b16 %v7936, %v7933
        %v8477 = vpack.c.b16 %v7937, %v7934
        %v8478 = vpack.c.b16 %v7938, %v7935
        %v8479 = vpack.c.b16 %v7942, %v7939
        %v8480 = vpack.c.b16 %v7943, %v7940
        %v8481 = vpack.c.b16 %v7944, %v7941
        %v8482 = vpack.c.b16 %v7948, %v7945
        %v8483 = vpack.c.b16 %v7949, %v7946
        %v8484 = vpack.c.b16 %v7950, %v7947
        %v8485 = vpack.c.b16 %v7954, %v7951
        %v8486 = vpack.c.b16 %v7955, %v7952
        %v8487 = vpack.c.b16 %v7956, %v7953
        %v8488 = vpack.c.b16 %v7960, %v7957
        %v8489 = vpack.c.b16 %v7961, %v7958
        %v8490 = vpack.c.b16 %v7962, %v7959
        %v8491 = vpack.c.b16 %v7966, %v7963
        %v8492 = vpack.c.b16 %v7967, %v7964
        %v8493 = vpack.c.b16 %v7968, %v7965
        %v8494 = vpack.c.b16 %v7972, %v7969
        %v8495 = vpack.c.b16 %v7973, %v7970
        %v8496 = vpack.c.b16 %v7974, %v7971
        %v8497 = vpack.c.b16 %v7978, %v7975
        %v8498 = vpack.c.b16 %v7979, %v7976
        %v8499 = vpack.c.b16 %v7980, %v7977
        %v8500 = vpack.c.b16 %v7984, %v7981
        %v8501 = vpack.c.b16 %v7985, %v7982
        %v8502 = vpack.c.b16 %v7986, %v7983
        %v8503 = vpack.c.b16 %v7990, %v7987
        %v8504 = vpack.c.b16 %v7991, %v7988
        %v8505 = vpack.c.b16 %v7992, %v7989
        %v8506 = vpack.c.b16 %v7996, %v7993
        %v8507 = vpack.c.b16 %v7997, %v7994
        %v8508 = vpack.c.b16 %v7998, %v7995
        %v8509 = vpack.c.b16 %v8002, %v7999
        %v8510 = vpack.c.b16 %v8003, %v8000
        %v8511 = vpack.c.b16 %v8004, %v8001
        %v8512 = vpack.c.b16 %v8008, %v8005
        %v8513 = vpack.c.b16 %v8009, %v8006
        %v8514 = vpack.c.b16 %v8010, %v8007
        %v8515 = vpack.c.b16 %v8014, %v8011
        %v8516 = vpack.c.b16 %v8015, %v8012
        %v8517 = vpack.c.b16 %v8016, %v8013
        %v8518 = vpack.c.b16 %v8020, %v8017
        %v8519 = vpack.c.b16 %v8021, %v8018
        %v8520 = vpack.c.b16 %v8022, %v8019
        %v8521 = vpack.c.b16 %v8026, %v8023
        %v8522 = vpack.c.b16 %v8027, %v8024
        %v8523 = vpack.c.b16 %v8028, %v8025
        %v8524 = vpack.c.b16 %v8032, %v8029
        %v8525 = vpack.c.b16 %v8033, %v8030
        %v8526 = vpack.c.b16 %v8034, %v8031
        %v8527 = vpack.c.b16 %v8038, %v8035
        %v8528 = vpack.c.b16 %v8039, %v8036
        %v8529 = vpack.c.b16 %v8040, %v8037
        %v8530 = vpack.c.b16 %v8044, %v8041
        %v8531 = vpack.c.b16 %v8045, %v8042
        %v8532 = vpack.c.b16 %v8046, %v8043
        %v8533 = vpack.c.b16 %v8050, %v8047
        %v8534 = vpack.c.b16 %v8051, %v8048
        %v8535 = vpack.c.b16 %v8052, %v8049
        %v8536 = vpack.c.b16 %v8056, %v8053
        %v8537 = vpack.c.b16 %v8057, %v8054
        %v8538 = vpack.c.b16 %v8058, %v8055
        %v8539 = vpack.c.b16 %v8062, %v8059
        %v8540 = vpack.c.b16 %v8063, %v8060
        %v8541 = vpack.c.b16 %v8064, %v8061
        %v8542 = vpack.c.b16 %v8068, %v8065
        %v8543 = vpack.c.b16 %v8069, %v8066
        %v8544 = vpack.c.b16 %v8070, %v8067
        %v8545 = vpack.c.b16 %v8074, %v8071
        %v8546 = vpack.c.b16 %v8075, %v8072
        %v8547 = vpack.c.b16 %v8076, %v8073
        %v8548 = vpack.c.b16 %v8080, %v8077
        %v8549 = vpack.c.b16 %v8081, %v8078
        %v8550 = vpack.c.b16 %v8082, %v8079
        %v8551 = vpack.c.b16 %v8086, %v8083
        %v8552 = vpack.c.b16 %v8087, %v8084
        %v8553 = vpack.c.b16 %v8088, %v8085
        %v8554 = vpack.c.b16 %v8092, %v8089
        %v8555 = vpack.c.b16 %v8093, %v8090
        %v8556 = vpack.c.b16 %v8094, %v8091
        %v8557 = vpack.c.b16 %v8098, %v8095
        %v8558 = vpack.c.b16 %v8099, %v8096
        %v8559 = vpack.c.b16 %v8100, %v8097
        %v8560 = vpack.c.b16 %v8104, %v8101
        %v8561 = vpack.c.b16 %v8105, %v8102
        %v8562 = vpack.c.b16 %v8106, %v8103
        %v8563 = vpack.c.b16 %v8110, %v8107
        %v8564 = vpack.c.b16 %v8111, %v8108
        %v8565 = vpack.c.b16 %v8112, %v8109
        %v8566 = vpack.c.b16 %v8116, %v8113
        %v8567 = vpack.c.b16 %v8117, %v8114
        %v8568 = vpack.c.b16 %v8118, %v8115
        %v8569 = vpack.c.b16 %v8122, %v8119
        %v8570 = vpack.c.b16 %v8123, %v8120
        %v8571 = vpack.c.b16 %v8124, %v8121
        %v8572 = vpack.c.b16 %v8128, %v8125
        %v8573 = vpack.c.b16 %v8129, %v8126
        %v8574 = vpack.c.b16 %v8130, %v8127
        %v8575 = vpack.c.b16 %v8134, %v8131
        %v8576 = vpack.c.b16 %v8135, %v8132
        %v8577 = vpack.c.b16 %v8136, %v8133
        %v8578 = vpack.c.b16 %v8140, %v8137
        %v8579 = vpack.c.b16 %v8141, %v8138
        %v8580 = vpack.c.b16 %v8142, %v8139
        %v8581 = vpack.c.b16 %v8146, %v8143
        %v8582 = vpack.c.b16 %v8147, %v8144
        %v8583 = vpack.c.b16 %v8148, %v8145
        %v8584 = vpack.c.b16 %v8152, %v8149
        %v8585 = vpack.c.b16 %v8153, %v8150
        %v8586 = vpack.c.b16 %v8154, %v8151
        %v8587 = vpack.c.b16 %v8158, %v8155
        %v8588 = vpack.c.b16 %v8159, %v8156
        %v8589 = vpack.c.b16 %v8160, %v8157
        %v8590 = vpack.c.b16 %v8164, %v8161
        %v8591 = vpack.c.b16 %v8165, %v8162
        %v8592 = vpack.c.b16 %v8166, %v8163
        %v8593 = vpack.c.b16 %v8170, %v8167
        %v8594 = vpack.c.b16 %v8171, %v8168
        %v8595 = vpack.c.b16 %v8172, %v8169
        %v8596 = vpack.c.b16 %v8176, %v8173
        %v8597 = vpack.c.b16 %v8177, %v8174
        %v8598 = vpack.c.b16 %v8178, %v8175
        %v8599 = vpack.c.b16 %v8182, %v8179
        %v8600 = vpack.c.b16 %v8183, %v8180
        %v8601 = vpack.c.b16 %v8184, %v8181
        %v8602 = vpack.c.b16 %v8188, %v8185
        %v8603 = vpack.c.b16 %v8189, %v8186
        %v8604 = vpack.c.b16 %v8190, %v8187
        %v8605 = vpack.c.b16 %v8194, %v8191
        %v8606 = vpack.c.b16 %v8195, %v8192
        %v8607 = vpack.c.b16 %v8196, %v8193
        %v8608 = vpack.c.b16 %v8200, %v8197
        %v8609 = vpack.c.b16 %v8201, %v8198
        %v8610 = vpack.c.b16 %v8202, %v8199
        %v8611 = vpack.c.b16 %v8206, %v8203
        %v8612 = vpack.c.b16 %v8207, %v8204
        %v8613 = vpack.c.b16 %v8208, %v8205
        %v8614 = vpack.c.b16 %v8212, %v8209
        %v8615 = vpack.c.b16 %v8213, %v8210
        %v8616 = vpack.c.b16 %v8214, %v8211
        %v8617 = vpack.c.b16 %v8218, %v8215
        %v8618 = vpack.c.b16 %v8219, %v8216
        %v8619 = vpack.c.b16 %v8220, %v8217
        %v8620 = vpack.c.b16 %v8224, %v8221
        %v8621 = vpack.c.b16 %v8225, %v8222
        %v8622 = vpack.c.b16 %v8226, %v8223
        %v8623 = vpack.c.b16 %v8230, %v8227
        %v8624 = vpack.c.b16 %v8231, %v8228
        %v8625 = vpack.c.b16 %v8232, %v8229
        %v8626 = vpack.c.b16 %v8236, %v8233
        %v8627 = vpack.c.b16 %v8237, %v8234
        %v8628 = vpack.c.b16 %v8238, %v8235
        %v8629 = vpack.c.b16 %v8242, %v8239
        %v8630 = vpack.c.b16 %v8243, %v8240
        %v8631 = vpack.c.b16 %v8244, %v8241
        %v8632 = vpack.c.b16 %v8248, %v8245
        %v8633 = vpack.c.b16 %v8249, %v8246
        %v8634 = vpack.c.b16 %v8250, %v8247
        %v8635 = vpack.c.b16 %v8254, %v8251
        %v8636 = vpack.c.b16 %v8255, %v8252
        %v8637 = vpack.c.b16 %v8256, %v8253
        %v8638 = vpack.c.b16 %v8260, %v8257
        %v8639 = vpack.c.b16 %v8261, %v8258
        %v8640 = vpack.c.b16 %v8262, %v8259
        %v8641 = vpack.c.b16 %v8266, %v8263
        %v8642 = vpack.c.b16 %v8267, %v8264
        %v8643 = vpack.c.b16 %v8268, %v8265
        %v8644 = vpack.c.b16 %v8272, %v8269
        %v8645 = vpack.c.b16 %v8273, %v8270
        %v8646 = vpack.c.b16 %v8274, %v8271
        %v8647 = vpack.c.b16 %v8278, %v8275
        %v8648 = vpack.c.b16 %v8279, %v8276
        %v8649 = vpack.c.b16 %v8280, %v8277
        %v8650 = vpack.c.b16 %v8284, %v8281
        %v8651 = vpack.c.b16 %v8285, %v8282
        %v8652 = vpack.c.b16 %v8286, %v8283
        %v8653 = vpack.c.b16 %v8290, %v8287
        %v8654 = vpack.c.b16 %v8291, %v8288
        %v8655 = vpack.c.b16 %v8292, %v8289
        %v8656 = vpack.c.b16 %v8296, %v8293
        %v8657 = vpack.c.b16 %v8297, %v8294
        %v8658 = vpack.c.b16 %v8298, %v8295
        %v8659 = vpack.c.b16 %v8302, %v8299
        %v8660 = vpack.c.b16 %v8303, %v8300
        %v8661 = vpack.c.b16 %v8304, %v8301
        %v8662 = vpack.c.b16 %v8308, %v8305
        %v8663 = vpack.c.b16 %v8309, %v8306
        %v8664 = vpack.c.b16 %v8310, %v8307
        %v8665 = vpack.c.b16 %v8314, %v8311
        %v8666 = vpack.c.b16 %v8315, %v8312
        %v8667 = vpack.c.b16 %v8316, %v8313
        %v8668 = vpack.c.b16 %v8320, %v8317
        %v8669 = vpack.c.b16 %v8321, %v8318
        %v8670 = vpack.c.b16 %v8322, %v8319
        %v8671 = vpack.c.b16 %v8326, %v8323
        %v8672 = vpack.c.b16 %v8327, %v8324
        %v8673 = vpack.c.b16 %v8328, %v8325
        %v8674 = vpack.c.b16 %v8332, %v8329
        %v8675 = vpack.c.b16 %v8333, %v8330
        %v8676 = vpack.c.b16 %v8334, %v8331
        %v8677 = vpack.c.b16 %v8338, %v8335
        %v8678 = vpack.c.b16 %v8339, %v8336
        %v8679 = vpack.c.b16 %v8340, %v8337
        %v8680 = vpack.c.b16 %v8344, %v8341
        %v8681 = vpack.c.b16 %v8345, %v8342
        %v8682 = vpack.c.b16 %v8346, %v8343
        %v8683 = vpack.c.b16 %v8350, %v8347
        %v8684 = vpack.c.b16 %v8351, %v8348
        %v8685 = vpack.c.b16 %v8352, %v8349
        %v8686 = vpack.c.b16 %v8356, %v8353
        %v8687 = vpack.c.b16 %v8357, %v8354
        %v8688 = vpack.c.b16 %v8358, %v8355
        %v8689 = vpack.c.b16 %v8362, %v8359
        %v8690 = vpack.c.b16 %v8363, %v8360
        %v8691 = vpack.c.b16 %v8364, %v8361
        %v8692 = vpack.c.b16 %v8368, %v8365
        %v8693 = vpack.c.b16 %v8369, %v8366
        %v8694 = vpack.c.b16 %v8370, %v8367
        %v8695 = vpack.c.b16 %v8374, %v8371
        %v8696 = vpack.c.b16 %v8375, %v8372
        %v8697 = vpack.c.b16 %v8376, %v8373
        %v8698 = vpack.c.b16 %v8380, %v8377
        %v8699 = vpack.c.b16 %v8381, %v8378
        %v8700 = vpack.c.b16 %v8382, %v8379
        %v8701 = vpack.c.b16 %v8386, %v8383
        %v8702 = vpack.c.b16 %v8387, %v8384
        %v8703 = vpack.c.b16 %v8388, %v8385
        %v8704 = vpack.c.b16 %v8392, %v8389
        %v8705 = vpack.c.b16 %v8393, %v8390
        %v8706 = vpack.c.b16 %v8394, %v8391
        %v8707 = vpack.c.b16 %v8398, %v8395
        %v8708 = vpack.c.b16 %v8399, %v8396
        %v8709 = vpack.c.b16 %v8400, %v8397
        %v8710 = vpack.c.b16 %v8404, %v8401
        %v8711 = vpack.c.b16 %v8405, %v8402
        %v8712 = vpack.c.b16 %v8406, %v8403
        %v8713 = vpack.c.b16 %v8410, %v8407
        %v8714 = vpack.c.b16 %v8411, %v8408
        %v8715 = vpack.c.b16 %v8412, %v8409
        %v8716 = vpack.c.b16 %v8416, %v8413
        %v8717 = vpack.c.b16 %v8417, %v8414
        %v8718 = vpack.c.b16 %v8418, %v8415
        %v8719 = vpack.c.b16 %v8422, %v8419
        %v8720 = vpack.c.b16 %v8423, %v8420
        %v8721 = vpack.c.b16 %v8424, %v8421
        %v8722 = vpack.c.b16 %v8428, %v8425
        %v8723 = vpack.c.b16 %v8429, %v8426
        %v8724 = vpack.c.b16 %v8430, %v8427
        %v8725 = vpack.c.b16 %v8434, %v8431
        %v8726 = vpack.c.b16 %v8435, %v8432
        %v8727 = vpack.c.b16 %v8436, %v8433
        %v8728 = vpack.c.b16 %v8440, %v8437
        %v8729 = vpack.c.b16 %v8441, %v8438
        %v8730 = vpack.c.b16 %v8442, %v8439
        %9019 = vmatprep.subr.bf16.mxu0 %v8465
        %9020 = vmatpush1.bf16.msra.mxu0 %v8464
        %9021 = vmatprep.subr.bf16.mxu0 %v8462
        %9022 = vmatpush1.bf16.msra.mxu0 %v8461
        %9023 = vmatprep.subr.bf16.mxu0 %v8459
        %9024 = vmatpush1.bf16.msra.mxu0 %v8458
        %9025 = vmatprep.subr.bf16.mxu0 %v8456
        %9026 = vmatpush1.bf16.msra.mxu0 %v8455
        %9027 = vmatprep.subr.bf16.mxu0 %v8453
        %9028 = vmatpush1.bf16.msra.mxu0 %v8452
        %9029 = vmatprep.subr.bf16.mxu0 %v8450
        %9030 = vmatpush1.bf16.msra.mxu0 %v8449
        %9031 = vmatprep.subr.bf16.mxu0 %v8447
        %9032 = vmatpush1.bf16.msra.mxu0 %v8446
        %9033 = vmatprep.subr.bf16.mxu0 %v8444
        %9034 = vmatpush1.bf16.msra.mxu0 %v8443
        %9035 = vmatprep.subr.bf16.mxu0 %v8489
        %9036 = vmatpush2.bf16.msra.mxu0 %v8488
        %9037 = vmatprep.subr.bf16.mxu0 %v8486
        %9038 = vmatpush2.bf16.msra.mxu0 %v8485
        %9039 = vmatprep.subr.bf16.mxu0 %v8483
        %9040 = vmatpush2.bf16.msra.mxu0 %v8482
        %9041 = vmatprep.subr.bf16.mxu0 %v8480
        %9042 = vmatpush2.bf16.msra.mxu0 %v8479
        %9043 = vmatprep.subr.bf16.mxu0 %v8477
        %9044 = vmatpush2.bf16.msra.mxu0 %v8476
        %9045 = vmatprep.subr.bf16.mxu0 %v8474
        %9046 = vmatpush2.bf16.msra.mxu0 %v8473
        %9047 = vmatprep.subr.bf16.mxu0 %v8471
        %9048 = vmatpush2.bf16.msra.mxu0 %v8470
        %9049 = vmatprep.subr.bf16.mxu0 %v8468
        %9050 = vmatpush2.bf16.msra.mxu0 %v8467
        %9051 = vmatprep.mubr.bf16.mxu0 %v7076
        %9052 = vmatmul.mubr.bf16.gmra.mxu0 %v7075
        %v9053 = vpop.f32.mrf.mxu0
        %v9054 = vadd.f32 %v7474, %v9053
        %v9055 = vpop.f32.mrf.mxu0
        %v9056 = vadd.f32 %v7478, %v9055
        %v9057 = vpop.f32.mrf.mxu0
        %v9058 = vadd.f32 %v7474, %v9057
        %v9059 = vpop.f32.mrf.mxu0
        %v9060 = vadd.f32 %v7478, %v9059
        %9061 = vdwg.mxu0
        %9062 = vmatprep.subr.bf16.mxu0 %v8513
        %9063 = vmatpush1.bf16.msra.mxu0 %v8512
        %9064 = vmatprep.subr.bf16.mxu0 %v8510
        %9065 = vmatpush1.bf16.msra.mxu0 %v8509
        %9066 = vmatprep.subr.bf16.mxu0 %v8507
        %9067 = vmatpush1.bf16.msra.mxu0 %v8506
        %9068 = vmatprep.subr.bf16.mxu0 %v8504
        %9069 = vmatpush1.bf16.msra.mxu0 %v8503
        %9070 = vmatprep.subr.bf16.mxu0 %v8501
        %9071 = vmatpush1.bf16.msra.mxu0 %v8500
        %9072 = vmatprep.subr.bf16.mxu0 %v8498
        %9073 = vmatpush1.bf16.msra.mxu0 %v8497
        %9074 = vmatprep.subr.bf16.mxu0 %v8495
        %9075 = vmatpush1.bf16.msra.mxu0 %v8494
        %9076 = vmatprep.subr.bf16.mxu0 %v8492
        %9077 = vmatpush1.bf16.msra.mxu0 %v8491
        %9078 = vmatprep.subr.bf16.mxu0 %v8537
        %9079 = vmatpush2.bf16.msra.mxu0 %v8536
        %9080 = vmatprep.subr.bf16.mxu0 %v8534
        %9081 = vmatpush2.bf16.msra.mxu0 %v8533
        %9082 = vmatprep.subr.bf16.mxu0 %v8531
        %9083 = vmatpush2.bf16.msra.mxu0 %v8530
        %9084 = vmatprep.subr.bf16.mxu0 %v8528
        %9085 = vmatpush2.bf16.msra.mxu0 %v8527
        %9086 = vmatprep.subr.bf16.mxu0 %v8525
        %9087 = vmatpush2.bf16.msra.mxu0 %v8524
        %9088 = vmatprep.subr.bf16.mxu0 %v8522
        %9089 = vmatpush2.bf16.msra.mxu0 %v8521
        %9090 = vmatprep.subr.bf16.mxu0 %v8519
        %9091 = vmatpush2.bf16.msra.mxu0 %v8518
        %9092 = vmatprep.subr.bf16.mxu0 %v8516
        %9093 = vmatpush2.bf16.msra.mxu0 %v8515
        %9094 = vmatprep.mubr.bf16.mxu0 %v7078
        %9095 = vmatmul.mubr.bf16.gmra.mxu0 %v7077
        %v9096 = vpop.f32.mrf.mxu0
        %v9097 = vadd.f32 %v9054, %v9096
        %v9098 = vpop.f32.mrf.mxu0
        %v9099 = vadd.f32 %v9056, %v9098
        %v9100 = vpop.f32.mrf.mxu0
        %v9101 = vadd.f32 %v9058, %v9100
        %v9102 = vpop.f32.mrf.mxu0
        %v9103 = vadd.f32 %v9060, %v9102
        %9104 = vdwg.mxu0
        %9105 = vmatprep.subr.bf16.mxu0 %v8561
        %9106 = vmatpush1.bf16.msra.mxu0 %v8560
        %9107 = vmatprep.subr.bf16.mxu0 %v8558
        %9108 = vmatpush1.bf16.msra.mxu0 %v8557
        %9109 = vmatprep.subr.bf16.mxu0 %v8555
        %9110 = vmatpush1.bf16.msra.mxu0 %v8554
        %9111 = vmatprep.subr.bf16.mxu0 %v8552
        %9112 = vmatpush1.bf16.msra.mxu0 %v8551
        %9113 = vmatprep.subr.bf16.mxu0 %v8549
        %9114 = vmatpush1.bf16.msra.mxu0 %v8548
        %9115 = vmatprep.subr.bf16.mxu0 %v8546
        %9116 = vmatpush1.bf16.msra.mxu0 %v8545
        %9117 = vmatprep.subr.bf16.mxu0 %v8543
        %9118 = vmatpush1.bf16.msra.mxu0 %v8542
        %9119 = vmatprep.subr.bf16.mxu0 %v8540
        %9120 = vmatpush1.bf16.msra.mxu0 %v8539
        %9121 = vmatprep.subr.bf16.mxu0 %v8585
        %9122 = vmatpush2.bf16.msra.mxu0 %v8584
        %9123 = vmatprep.subr.bf16.mxu0 %v8582
        %9124 = vmatpush2.bf16.msra.mxu0 %v8581
        %9125 = vmatprep.subr.bf16.mxu0 %v8579
        %9126 = vmatpush2.bf16.msra.mxu0 %v8578
        %9127 = vmatprep.subr.bf16.mxu0 %v8576
        %9128 = vmatpush2.bf16.msra.mxu0 %v8575
        %9129 = vmatprep.subr.bf16.mxu0 %v8573
        %9130 = vmatpush2.bf16.msra.mxu0 %v8572
        %9131 = vmatprep.subr.bf16.mxu0 %v8570
        %9132 = vmatpush2.bf16.msra.mxu0 %v8569
        %9133 = vmatprep.subr.bf16.mxu0 %v8567
        %9134 = vmatpush2.bf16.msra.mxu0 %v8566
        %9135 = vmatprep.subr.bf16.mxu0 %v8564
        %9136 = vmatpush2.bf16.msra.mxu0 %v8563
        %9137 = vmatprep.mubr.bf16.mxu0 %v7080
        %9138 = vmatmul.mubr.bf16.gmra.mxu0 %v7079
        %v9139 = vpop.f32.mrf.mxu0
        %v9140 = vadd.f32 %v9097, %v9139
        %v9141 = vpop.f32.mrf.mxu0
        %v9142 = vadd.f32 %v9099, %v9141
        %v9143 = vpop.f32.mrf.mxu0
        %v9144 = vadd.f32 %v9101, %v9143
        %v9145 = vpop.f32.mrf.mxu0
        %v9146 = vadd.f32 %v9103, %v9145
        %9147 = vdwg.mxu0
        %9148 = vmatprep.subr.bf16.mxu0 %v8609
        %9149 = vmatpush1.bf16.msra.mxu0 %v8608
        %9150 = vmatprep.subr.bf16.mxu0 %v8606
        %9151 = vmatpush1.bf16.msra.mxu0 %v8605
        %9152 = vmatprep.subr.bf16.mxu0 %v8603
        %9153 = vmatpush1.bf16.msra.mxu0 %v8602
        %9154 = vmatprep.subr.bf16.mxu0 %v8600
        %9155 = vmatpush1.bf16.msra.mxu0 %v8599
        %9156 = vmatprep.subr.bf16.mxu0 %v8597
        %9157 = vmatpush1.bf16.msra.mxu0 %v8596
        %9158 = vmatprep.subr.bf16.mxu0 %v8594
        %9159 = vmatpush1.bf16.msra.mxu0 %v8593
        %9160 = vmatprep.subr.bf16.mxu0 %v8591
        %9161 = vmatpush1.bf16.msra.mxu0 %v8590
        %9162 = vmatprep.subr.bf16.mxu0 %v8588
        %9163 = vmatpush1.bf16.msra.mxu0 %v8587
        %9164 = vmatprep.subr.bf16.mxu0 %v8633
        %9165 = vmatpush2.bf16.msra.mxu0 %v8632
        %9166 = vmatprep.subr.bf16.mxu0 %v8630
        %9167 = vmatpush2.bf16.msra.mxu0 %v8629
        %9168 = vmatprep.subr.bf16.mxu0 %v8627
        %9169 = vmatpush2.bf16.msra.mxu0 %v8626
        %9170 = vmatprep.subr.bf16.mxu0 %v8624
        %9171 = vmatpush2.bf16.msra.mxu0 %v8623
        %9172 = vmatprep.subr.bf16.mxu0 %v8621
        %9173 = vmatpush2.bf16.msra.mxu0 %v8620
        %9174 = vmatprep.subr.bf16.mxu0 %v8618
        %9175 = vmatpush2.bf16.msra.mxu0 %v8617
        %9176 = vmatprep.subr.bf16.mxu0 %v8615
        %9177 = vmatpush2.bf16.msra.mxu0 %v8614
        %9178 = vmatprep.subr.bf16.mxu0 %v8612
        %9179 = vmatpush2.bf16.msra.mxu0 %v8611
        %9180 = vmatprep.mubr.bf16.mxu0 %v7082
        %9181 = vmatmul.mubr.bf16.gmra.mxu0 %v7081
        %v9182 = vpop.f32.mrf.mxu0
        %v9183 = vadd.f32 %v9140, %v9182
        %v9184 = vpop.f32.mrf.mxu0
        %v9185 = vadd.f32 %v9142, %v9184
        %v9186 = vpop.f32.mrf.mxu0
        %v9187 = vadd.f32 %v9144, %v9186
        %v9188 = vpop.f32.mrf.mxu0
        %v9189 = vadd.f32 %v9146, %v9188
        %9190 = vdwg.mxu0
        %9191 = vmatprep.subr.bf16.mxu0 %v8657
        %9192 = vmatpush1.bf16.msra.mxu0 %v8656
        %9193 = vmatprep.subr.bf16.mxu0 %v8654
        %9194 = vmatpush1.bf16.msra.mxu0 %v8653
        %9195 = vmatprep.subr.bf16.mxu0 %v8651
        %9196 = vmatpush1.bf16.msra.mxu0 %v8650
        %9197 = vmatprep.subr.bf16.mxu0 %v8648
        %9198 = vmatpush1.bf16.msra.mxu0 %v8647
        %9199 = vmatprep.subr.bf16.mxu0 %v8645
        %9200 = vmatpush1.bf16.msra.mxu0 %v8644
        %9201 = vmatprep.subr.bf16.mxu0 %v8642
        %9202 = vmatpush1.bf16.msra.mxu0 %v8641
        %9203 = vmatprep.subr.bf16.mxu0 %v8639
        %9204 = vmatpush1.bf16.msra.mxu0 %v8638
        %9205 = vmatprep.subr.bf16.mxu0 %v8636
        %9206 = vmatpush1.bf16.msra.mxu0 %v8635
        %9207 = vmatprep.subr.bf16.mxu0 %v8681
        %9208 = vmatpush2.bf16.msra.mxu0 %v8680
        %9209 = vmatprep.subr.bf16.mxu0 %v8678
        %9210 = vmatpush2.bf16.msra.mxu0 %v8677
        %9211 = vmatprep.subr.bf16.mxu0 %v8675
        %9212 = vmatpush2.bf16.msra.mxu0 %v8674
        %9213 = vmatprep.subr.bf16.mxu0 %v8672
        %9214 = vmatpush2.bf16.msra.mxu0 %v8671
        %9215 = vmatprep.subr.bf16.mxu0 %v8669
        %9216 = vmatpush2.bf16.msra.mxu0 %v8668
        %9217 = vmatprep.subr.bf16.mxu0 %v8666
        %9218 = vmatpush2.bf16.msra.mxu0 %v8665
        %9219 = vmatprep.subr.bf16.mxu0 %v8663
        %9220 = vmatpush2.bf16.msra.mxu0 %v8662
        %9221 = vmatprep.subr.bf16.mxu0 %v8660
        %9222 = vmatpush2.bf16.msra.mxu0 %v8659
        %9223 = vmatprep.mubr.bf16.mxu0 %v7084
        %9224 = vmatmul.mubr.bf16.gmra.mxu0 %v7083
        %v9225 = vpop.f32.mrf.mxu0
        %v9226 = vadd.f32 %v9183, %v9225
        %v9227 = vpop.f32.mrf.mxu0
        %v9228 = vadd.f32 %v9185, %v9227
        %v9229 = vpop.f32.mrf.mxu0
        %v9230 = vadd.f32 %v9187, %v9229
        %v9231 = vpop.f32.mrf.mxu0
        %v9232 = vadd.f32 %v9189, %v9231
        %9233 = vdwg.mxu0
        %9234 = vmatprep.subr.bf16.mxu0 %v8705
        %9235 = vmatpush1.bf16.msra.mxu0 %v8704
        %9236 = vmatprep.subr.bf16.mxu0 %v8702
        %9237 = vmatpush1.bf16.msra.mxu0 %v8701
        %9238 = vmatprep.subr.bf16.mxu0 %v8699
        %9239 = vmatpush1.bf16.msra.mxu0 %v8698
        %9240 = vmatprep.subr.bf16.mxu0 %v8696
        %9241 = vmatpush1.bf16.msra.mxu0 %v8695
        %9242 = vmatprep.subr.bf16.mxu0 %v8693
        %9243 = vmatpush1.bf16.msra.mxu0 %v8692
        %9244 = vmatprep.subr.bf16.mxu0 %v8690
        %9245 = vmatpush1.bf16.msra.mxu0 %v8689
        %9246 = vmatprep.subr.bf16.mxu0 %v8687
        %9247 = vmatpush1.bf16.msra.mxu0 %v8686
        %9248 = vmatprep.subr.bf16.mxu0 %v8684
        %9249 = vmatpush1.bf16.msra.mxu0 %v8683
        %9250 = vmatprep.subr.bf16.mxu0 %v8729
        %9251 = vmatpush2.bf16.msra.mxu0 %v8728
        %9252 = vmatprep.subr.bf16.mxu0 %v8726
        %9253 = vmatpush2.bf16.msra.mxu0 %v8725
        %9254 = vmatprep.subr.bf16.mxu0 %v8723
        %9255 = vmatpush2.bf16.msra.mxu0 %v8722
        %9256 = vmatprep.subr.bf16.mxu0 %v8720
        %9257 = vmatpush2.bf16.msra.mxu0 %v8719
        %9258 = vmatprep.subr.bf16.mxu0 %v8717
        %9259 = vmatpush2.bf16.msra.mxu0 %v8716
        %9260 = vmatprep.subr.bf16.mxu0 %v8714
        %9261 = vmatpush2.bf16.msra.mxu0 %v8713
        %9262 = vmatprep.subr.bf16.mxu0 %v8711
        %9263 = vmatpush2.bf16.msra.mxu0 %v8710
        %9264 = vmatprep.subr.bf16.mxu0 %v8708
        %9265 = vmatpush2.bf16.msra.mxu0 %v8707
        %9266 = vmatprep.mubr.bf16.mxu0 %v7086
        %9267 = vmatmul.mubr.bf16.gmra.mxu0 %v7085
        %v9268 = vpop.f32.mrf.mxu0
        %v9269 = vadd.f32 %v9226, %v9268
        %v9270 = vpop.f32.mrf.mxu0
        %v9271 = vadd.f32 %v9228, %v9270
        %v9272 = vpop.f32.mrf.mxu0
        %v9273 = vadd.f32 %v9230, %v9272
        %v9274 = vpop.f32.mrf.mxu0
        %v9275 = vadd.f32 %v9232, %v9274
        %9276 = vdwg.mxu0
        %9277 = vmatprep.subr.bf16.mxu0 0
        %9278 = vmatpush1.bf16.msra.mxu0 %v8466
        %9279 = vmatprep.subr.bf16.mxu0 0
        %9280 = vmatpush1.bf16.msra.mxu0 %v8463
        %9281 = vmatprep.subr.bf16.mxu0 0
        %9282 = vmatpush1.bf16.msra.mxu0 %v8460
        %9283 = vmatprep.subr.bf16.mxu0 0
        %9284 = vmatpush1.bf16.msra.mxu0 %v8457
        %9285 = vmatprep.subr.bf16.mxu0 0
        %9286 = vmatpush1.bf16.msra.mxu0 %v8454
        %9287 = vmatprep.subr.bf16.mxu0 0
        %9288 = vmatpush1.bf16.msra.mxu0 %v8451
        %9289 = vmatprep.subr.bf16.mxu0 0
        %9290 = vmatpush1.bf16.msra.mxu0 %v8448
        %9291 = vmatprep.subr.bf16.mxu0 0
        %9292 = vmatpush1.bf16.msra.mxu0 %v8445
        %9293 = vmatprep.subr.bf16.mxu0 0
        %9294 = vmatpush2.bf16.msra.mxu0 %v8490
        %9295 = vmatprep.subr.bf16.mxu0 0
        %9296 = vmatpush2.bf16.msra.mxu0 %v8487
        %9297 = vmatprep.subr.bf16.mxu0 0
        %9298 = vmatpush2.bf16.msra.mxu0 %v8484
        %9299 = vmatprep.subr.bf16.mxu0 0
        %9300 = vmatpush2.bf16.msra.mxu0 %v8481
        %9301 = vmatprep.subr.bf16.mxu0 0
        %9302 = vmatpush2.bf16.msra.mxu0 %v8478
        %9303 = vmatprep.subr.bf16.mxu0 0
        %9304 = vmatpush2.bf16.msra.mxu0 %v8475
        %9305 = vmatprep.subr.bf16.mxu0 0
        %9306 = vmatpush2.bf16.msra.mxu0 %v8472
        %9307 = vmatprep.subr.bf16.mxu0 0
        %9308 = vmatpush2.bf16.msra.mxu0 %v8469
        %9309 = vmatprep.mubr.bf16.mxu0 %v7076
        %9310 = vmatmul.mubr.bf16.gmra.mxu0 %v7075
        %v9311 = vpop.f32.mrf.mxu0
        %v9312 = vadd.f32 %v7482, %v9311
        %v9313 = vpop.f32.mrf.mxu0
        %v9314 = vpop.f32.mrf.mxu0
        %v9315 = vadd.f32 %v7482, %v9314
        %v9316 = vpop.f32.mrf.mxu0
        %9317 = vdwg.mxu0
        %9318 = vmatprep.subr.bf16.mxu0 0
        %9319 = vmatpush1.bf16.msra.mxu0 %v8514
        %9320 = vmatprep.subr.bf16.mxu0 0
        %9321 = vmatpush1.bf16.msra.mxu0 %v8511
        %9322 = vmatprep.subr.bf16.mxu0 0
        %9323 = vmatpush1.bf16.msra.mxu0 %v8508
        %9324 = vmatprep.subr.bf16.mxu0 0
        %9325 = vmatpush1.bf16.msra.mxu0 %v8505
        %9326 = vmatprep.subr.bf16.mxu0 0
        %9327 = vmatpush1.bf16.msra.mxu0 %v8502
        %9328 = vmatprep.subr.bf16.mxu0 0
        %9329 = vmatpush1.bf16.msra.mxu0 %v8499
        %9330 = vmatprep.subr.bf16.mxu0 0
        %9331 = vmatpush1.bf16.msra.mxu0 %v8496
        %9332 = vmatprep.subr.bf16.mxu0 0
        %9333 = vmatpush1.bf16.msra.mxu0 %v8493
        %9334 = vmatprep.subr.bf16.mxu0 0
        %9335 = vmatpush2.bf16.msra.mxu0 %v8538
        %9336 = vmatprep.subr.bf16.mxu0 0
        %9337 = vmatpush2.bf16.msra.mxu0 %v8535
        %9338 = vmatprep.subr.bf16.mxu0 0
        %9339 = vmatpush2.bf16.msra.mxu0 %v8532
        %9340 = vmatprep.subr.bf16.mxu0 0
        %9341 = vmatpush2.bf16.msra.mxu0 %v8529
        %9342 = vmatprep.subr.bf16.mxu0 0
        %9343 = vmatpush2.bf16.msra.mxu0 %v8526
        %9344 = vmatprep.subr.bf16.mxu0 0
        %9345 = vmatpush2.bf16.msra.mxu0 %v8523
        %9346 = vmatprep.subr.bf16.mxu0 0
        %9347 = vmatpush2.bf16.msra.mxu0 %v8520
        %9348 = vmatprep.subr.bf16.mxu0 0
        %9349 = vmatpush2.bf16.msra.mxu0 %v8517
        %9350 = vmatprep.mubr.bf16.mxu0 %v7078
        %9351 = vmatmul.mubr.bf16.gmra.mxu0 %v7077
        %v9352 = vpop.f32.mrf.mxu0
        %v9353 = vadd.f32 %v9312, %v9352
        %v9354 = vpop.f32.mrf.mxu0
        %v9355 = vpop.f32.mrf.mxu0
        %v9356 = vadd.f32 %v9315, %v9355
        %v9357 = vpop.f32.mrf.mxu0
        %9358 = vdwg.mxu0
        %9359 = vmatprep.subr.bf16.mxu0 0
        %9360 = vmatpush1.bf16.msra.mxu0 %v8562
        %9361 = vmatprep.subr.bf16.mxu0 0
        %9362 = vmatpush1.bf16.msra.mxu0 %v8559
        %9363 = vmatprep.subr.bf16.mxu0 0
        %9364 = vmatpush1.bf16.msra.mxu0 %v8556
        %9365 = vmatprep.subr.bf16.mxu0 0
        %9366 = vmatpush1.bf16.msra.mxu0 %v8553
        %9367 = vmatprep.subr.bf16.mxu0 0
        %9368 = vmatpush1.bf16.msra.mxu0 %v8550
        %9369 = vmatprep.subr.bf16.mxu0 0
        %9370 = vmatpush1.bf16.msra.mxu0 %v8547
        %9371 = vmatprep.subr.bf16.mxu0 0
        %9372 = vmatpush1.bf16.msra.mxu0 %v8544
        %9373 = vmatprep.subr.bf16.mxu0 0
        %9374 = vmatpush1.bf16.msra.mxu0 %v8541
        %9375 = vmatprep.subr.bf16.mxu0 0
        %9376 = vmatpush2.bf16.msra.mxu0 %v8586
        %9377 = vmatprep.subr.bf16.mxu0 0
        %9378 = vmatpush2.bf16.msra.mxu0 %v8583
        %9379 = vmatprep.subr.bf16.mxu0 0
        %9380 = vmatpush2.bf16.msra.mxu0 %v8580
        %9381 = vmatprep.subr.bf16.mxu0 0
        %9382 = vmatpush2.bf16.msra.mxu0 %v8577
        %9383 = vmatprep.subr.bf16.mxu0 0
        %9384 = vmatpush2.bf16.msra.mxu0 %v8574
        %9385 = vmatprep.subr.bf16.mxu0 0
        %9386 = vmatpush2.bf16.msra.mxu0 %v8571
        %9387 = vmatprep.subr.bf16.mxu0 0
        %9388 = vmatpush2.bf16.msra.mxu0 %v8568
        %9389 = vmatprep.subr.bf16.mxu0 0
        %9390 = vmatpush2.bf16.msra.mxu0 %v8565
        %9391 = vmatprep.mubr.bf16.mxu0 %v7080
        %9392 = vmatmul.mubr.bf16.gmra.mxu0 %v7079
        %v9393 = vpop.f32.mrf.mxu0
        %v9394 = vadd.f32 %v9353, %v9393
        %v9395 = vpop.f32.mrf.mxu0
        %v9396 = vpop.f32.mrf.mxu0
        %v9397 = vadd.f32 %v9356, %v9396
        %v9398 = vpop.f32.mrf.mxu0
        %9399 = vdwg.mxu0
        %9400 = vmatprep.subr.bf16.mxu0 0
        %9401 = vmatpush1.bf16.msra.mxu0 %v8610
        %9402 = vmatprep.subr.bf16.mxu0 0
        %9403 = vmatpush1.bf16.msra.mxu0 %v8607
        %9404 = vmatprep.subr.bf16.mxu0 0
        %9405 = vmatpush1.bf16.msra.mxu0 %v8604
        %9406 = vmatprep.subr.bf16.mxu0 0
        %9407 = vmatpush1.bf16.msra.mxu0 %v8601
        %9408 = vmatprep.subr.bf16.mxu0 0
        %9409 = vmatpush1.bf16.msra.mxu0 %v8598
        %9410 = vmatprep.subr.bf16.mxu0 0
        %9411 = vmatpush1.bf16.msra.mxu0 %v8595
        %9412 = vmatprep.subr.bf16.mxu0 0
        %9413 = vmatpush1.bf16.msra.mxu0 %v8592
        %9414 = vmatprep.subr.bf16.mxu0 0
        %9415 = vmatpush1.bf16.msra.mxu0 %v8589
        %9416 = vmatprep.subr.bf16.mxu0 0
        %9417 = vmatpush2.bf16.msra.mxu0 %v8634
        %9418 = vmatprep.subr.bf16.mxu0 0
        %9419 = vmatpush2.bf16.msra.mxu0 %v8631
        %9420 = vmatprep.subr.bf16.mxu0 0
        %9421 = vmatpush2.bf16.msra.mxu0 %v8628
        %9422 = vmatprep.subr.bf16.mxu0 0
        %9423 = vmatpush2.bf16.msra.mxu0 %v8625
        %9424 = vmatprep.subr.bf16.mxu0 0
        %9425 = vmatpush2.bf16.msra.mxu0 %v8622
        %9426 = vmatprep.subr.bf16.mxu0 0
        %9427 = vmatpush2.bf16.msra.mxu0 %v8619
        %9428 = vmatprep.subr.bf16.mxu0 0
        %9429 = vmatpush2.bf16.msra.mxu0 %v8616
        %9430 = vmatprep.subr.bf16.mxu0 0
        %9431 = vmatpush2.bf16.msra.mxu0 %v8613
        %9432 = vmatprep.mubr.bf16.mxu0 %v7082
        %9433 = vmatmul.mubr.bf16.gmra.mxu0 %v7081
        %v9434 = vpop.f32.mrf.mxu0
        %v9435 = vadd.f32 %v9394, %v9434
        %v9436 = vpop.f32.mrf.mxu0
        %v9437 = vpop.f32.mrf.mxu0
        %v9438 = vadd.f32 %v9397, %v9437
        %v9439 = vpop.f32.mrf.mxu0
        %9440 = vdwg.mxu0
        %9441 = vmatprep.subr.bf16.mxu0 0
        %9442 = vmatpush1.bf16.msra.mxu0 %v8658
        %9443 = vmatprep.subr.bf16.mxu0 0
        %9444 = vmatpush1.bf16.msra.mxu0 %v8655
        %9445 = vmatprep.subr.bf16.mxu0 0
        %9446 = vmatpush1.bf16.msra.mxu0 %v8652
        %9447 = vmatprep.subr.bf16.mxu0 0
        %9448 = vmatpush1.bf16.msra.mxu0 %v8649
        %9449 = vmatprep.subr.bf16.mxu0 0
        %9450 = vmatpush1.bf16.msra.mxu0 %v8646
        %9451 = vmatprep.subr.bf16.mxu0 0
        %9452 = vmatpush1.bf16.msra.mxu0 %v8643
        %9453 = vmatprep.subr.bf16.mxu0 0
        %9454 = vmatpush1.bf16.msra.mxu0 %v8640
        %9455 = vmatprep.subr.bf16.mxu0 0
        %9456 = vmatpush1.bf16.msra.mxu0 %v8637
        %9457 = vmatprep.subr.bf16.mxu0 0
        %9458 = vmatpush2.bf16.msra.mxu0 %v8682
        %9459 = vmatprep.subr.bf16.mxu0 0
        %9460 = vmatpush2.bf16.msra.mxu0 %v8679
        %9461 = vmatprep.subr.bf16.mxu0 0
        %9462 = vmatpush2.bf16.msra.mxu0 %v8676
        %9463 = vmatprep.subr.bf16.mxu0 0
        %9464 = vmatpush2.bf16.msra.mxu0 %v8673
        %9465 = vmatprep.subr.bf16.mxu0 0
        %9466 = vmatpush2.bf16.msra.mxu0 %v8670
        %9467 = vmatprep.subr.bf16.mxu0 0
        %9468 = vmatpush2.bf16.msra.mxu0 %v8667
        %9469 = vmatprep.subr.bf16.mxu0 0
        %9470 = vmatpush2.bf16.msra.mxu0 %v8664
        %9471 = vmatprep.subr.bf16.mxu0 0
        %9472 = vmatpush2.bf16.msra.mxu0 %v8661
        %9473 = vmatprep.mubr.bf16.mxu0 %v7084
        %9474 = vmatmul.mubr.bf16.gmra.mxu0 %v7083
        %v9475 = vpop.f32.mrf.mxu0
        %v9476 = vadd.f32 %v9435, %v9475
        %v9477 = vpop.f32.mrf.mxu0
        %v9478 = vpop.f32.mrf.mxu0
        %v9479 = vadd.f32 %v9438, %v9478
        %v9480 = vpop.f32.mrf.mxu0
        %9481 = vdwg.mxu0
        %9482 = vmatprep.subr.bf16.mxu0 0
        %9483 = vmatpush1.bf16.msra.mxu0 %v8706
        %9484 = vmatprep.subr.bf16.mxu0 0
        %9485 = vmatpush1.bf16.msra.mxu0 %v8703
        %9486 = vmatprep.subr.bf16.mxu0 0
        %9487 = vmatpush1.bf16.msra.mxu0 %v8700
        %9488 = vmatprep.subr.bf16.mxu0 0
        %9489 = vmatpush1.bf16.msra.mxu0 %v8697
        %9490 = vmatprep.subr.bf16.mxu0 0
        %9491 = vmatpush1.bf16.msra.mxu0 %v8694
        %9492 = vmatprep.subr.bf16.mxu0 0
        %9493 = vmatpush1.bf16.msra.mxu0 %v8691
        %9494 = vmatprep.subr.bf16.mxu0 0
        %9495 = vmatpush1.bf16.msra.mxu0 %v8688
        %9496 = vmatprep.subr.bf16.mxu0 0
        %9497 = vmatpush1.bf16.msra.mxu0 %v8685
        %9498 = vmatprep.subr.bf16.mxu0 0
        %9499 = vmatpush2.bf16.msra.mxu0 %v8730
        %9500 = vmatprep.subr.bf16.mxu0 0
        %9501 = vmatpush2.bf16.msra.mxu0 %v8727
        %9502 = vmatprep.subr.bf16.mxu0 0
        %9503 = vmatpush2.bf16.msra.mxu0 %v8724
        %9504 = vmatprep.subr.bf16.mxu0 0
        %9505 = vmatpush2.bf16.msra.mxu0 %v8721
        %9506 = vmatprep.subr.bf16.mxu0 0
        %9507 = vmatpush2.bf16.msra.mxu0 %v8718
        %9508 = vmatprep.subr.bf16.mxu0 0
        %9509 = vmatpush2.bf16.msra.mxu0 %v8715
        %9510 = vmatprep.subr.bf16.mxu0 0
        %9511 = vmatpush2.bf16.msra.mxu0 %v8712
        %9512 = vmatprep.subr.bf16.mxu0 0
        %9513 = vmatpush2.bf16.msra.mxu0 %v8709
        %9514 = vmatprep.mubr.bf16.mxu0 %v7086
        %9515 = vmatmul.mubr.bf16.gmra.mxu0 %v7085
        %v9516 = vpop.f32.mrf.mxu0
        %v9517 = vadd.f32 %v9476, %v9516
        %v9518 = vpop.f32.mrf.mxu0
        %v9519 = vpop.f32.mrf.mxu0
        %v9520 = vadd.f32 %v9479, %v9519
        %v9521 = vpop.f32.mrf.mxu0
        %9522 = vdwg.mxu0
        %v9523 = vadd.f32 %v4658, %v9269
        %v9524 = vadd.f32 %v4659, %v9271
        %v9525 = vadd.f32 %v4660, %v9517
        %v9526 = vadd.f32 %v4661, %v9273
        %v9527 = vadd.f32 %v4662, %v9275
        %v9528 = vadd.f32 %v4663, %v9520
        %9529 = vst [vmem:[#allocation2] sm:$0xff] %v9523
        %9530 = vst [vmem:[#allocation2 + $0x8] sm:$0xff] %v9524
        %9531 = vst [vmem:[#allocation2 + $0x10] sm:$0xff] %v9525
        %9532 = vst [vmem:[#allocation2 + $0x18] sm:$0xff] %v9526
        %9533 = vst [vmem:[#allocation2 + $0x20] sm:$0xff] %v9527
        %9534 = vst [vmem:[#allocation2 + $0x28] sm:$0xff] %v9528
        %p9535 = scmp.eq.s32.totalorder %s27, 1
        // Predicated region
        $region57: #{_gpt_logits.2} parent=39 // pred_check
          %p9536 = pneg %p9535
        $region58: #{_gpt_logits.2} parent=39 // pred_check_branch
          %9538 = sbr.rel (%p9536) target = $region60
        $region59: #{_gpt_logits.2} parent=39 // pred_region
          %9539 = vst [vmem:[%s378] sm:$0xff] %v9523
          %9540 = vst [vmem:[%s378 + $0x8] sm:$0xff] %v9524
          %9541 = vst [vmem:[%s378 + $0x10] sm:$0xff] %v9525
          %9542 = vst [vmem:[%s378 + $0x18] sm:$0xff] %v9526
          %9543 = vst [vmem:[%s378 + $0x20] sm:$0xff] %v9527
          %9544 = vst [vmem:[%s378 + $0x28] sm:$0xff] %v9528
        $region60: #{_gpt_logits.2} parent=39 // pred_fallthru
          _
        %s9545 = smul.u32 2, %s26
        %p9546 = scmp.lt.s32.totalorder %s9545, 1
        %s9547 = scalar_select %p9546, %s9545, 1
        %s9548 = smul.addr %s9547, 3
        %s9549 = smul.addr %s9548, 8
        %s9550 = scalar_lea.vmem %s5, %s9549
        // Predicated region
        $region61: #{_gpt_logits.2} parent=39 // pred_check
          %p9551 = pneg %p182
        $region62: #{_gpt_logits.2} parent=39 // pred_check_branch
          %9553 = sbr.rel (%p9551) target = $region64
        $region63: #{_gpt_logits.2} parent=39 // pred_region
          %s9554 = smul.u32 2, %s26
        $region64: #{_gpt_logits.2} parent=39 // pred_fallthru
          _
        // Predicated region
        $region65: #{_gpt_logits.2} parent=39 // pred_check
          %p9555 = pneg %p182
        $region66: #{_gpt_logits.2} parent=39 // pred_check_branch
          %9557 = sbr.rel (%p9555) target = $region68
        $region67: #{_gpt_logits.2} parent=39 // pred_region
          %s9558 = smul.u32 2, %s26
          %p9559 = scmp.lt.s32.totalorder %s9558, 1
          %s9560 = scalar_select %p9559, %s9558, 1
          %s9561 = smul.addr %s9560, 3
          %s9562 = smul.addr %s9561, 8
          %s9563 = scalar_lea.vmem %s5, %s9562
        $region68: #{_gpt_logits.2} parent=39 // pred_fallthru
          _
      $region40: #{_gpt_logits.2} parent=5 // pred_fallthru
        _
      %p9564 = scmp.le.s32.totalorder 2, %s17
      // Predicated region
      $region69: #{_gpt_logits.2} parent=5 // pred_check
        %p9565 = pneg %p9564
      $region70: #{_gpt_logits.2} parent=5 // pred_check_branch
        %9567 = sbr.rel (%p9565) target = $region72
      $region71: #{_gpt_logits.2} parent=5 // pred_region
        %s9568 = ssub.s32 %s17, 2
      $region72: #{_gpt_logits.2} parent=5 // pred_fallthru
        _
    $region6: #{_gpt_logits.2} parent=1 // loop_footer
      %s21 = sadd.s32 1, %s17
    $region7: #{_gpt_logits.2} parent=1 // loop_footer_branch
      %16 = sbr.rel target = $region3
    $region8: #{_gpt_logits.2} parent=1 // loop_exit
      _
    %9569 = vsyncpa [#allocation4], 1
    %s9570 = scalar_lea.sflag [#allocation4], 1
    %9571 = vsyncpa %s9570, 1
    %9572 = vsyncpa [#allocation6], 1
    %s9573 = scalar_lea.sflag [#allocation6], 1
    %9574 = vsyncpa %s9573, 1

</llo_original>
